<compile_context>
chip_gen: v7x
topology: tpu7x:2x2x1
jax: 0.10.0
libtpu: 0.0.40
codegen_flags: <defaults>
</compile_context>

<pallas_src>
import jax
import jax.numpy as jnp
from jax.experimental import pallas as pl
from jax.experimental.pallas import tpu as pltpu

EPS = 1e-5
K = 17        # Conv1d kernel size used by ResidualBlock
PAD = 8       # zero rows kept on each side of the length axis (= conv1 padding)
LANE = 128

# Per the perf review, matmul operands can be cast to bfloat16 (f32 accumulate)
# for native MXU rate.  Kept at float32 here so the strict 2e-2 numerical check
# against the Precision.HIGHEST reference passes; flip to jnp.bfloat16 (and
# loosen the tolerance) to enable the bf16 MXU path.
MATMUL_DTYPE = jnp.float32


def _round_up(x, m):
    return (x + m - 1) // m * m


# ----------------------------------------------------------------------------
# Pallas kernel: one ResidualBlock forward for a single batch element.
# ----------------------------------------------------------------------------
def _residual_block_kernel(low_ref, up_ref, w1_ref, w2_ref, wsk_ref,
                           selh_ref, selu_ref, s1_ref, t1_ref, bu_ref,
                           s2_ref, t2_ref, low_out_ref, up_out_ref):
    # low_ref / up_ref : (L + 16, Cip)   length-major inputs, 8 zero rows/side
    # w1_ref  : (17*Cip, Cop)            conv1 weights, tap-major im2col order
    # w2_ref  : (20*Cop, Cop)            conv2 weights, (q,r)-group im2col order
    # wsk_ref : (Cip, Cop)               1x1 skip-conv weights
    # selh_ref: (4*(L/4+4), L)           0/1 row-gather: h -> padded phase split
    # selu_ref: (4*(L/4),   L)           0/1 row-gather: upper -> 4 phases
    # s1/t1, bu, s2/t2 : (1, Cop) f32    fused BN / bias epilogue terms
    # low_out_ref / up_out_ref : (L/4 + 16, Cop)  outputs in next-block layout
    Lp, _ = low_ref.shape
    L = Lp - 2 * PAD
    L_out = L // 4
    Md = L_out + 4
    Cop = low_out_ref.shape[1]
    cdt = MATMUL_DTYPE

    # ---- first_branch 1/2: Conv1d(k=17, s=1, p=8) + BN1 + ReLU --------------
    # im2col: 17 shifted (L, Cip) slices concatenated on lanes -> one wide dot.
    g1 = jnp.concatenate(
        [low_ref[pl.ds(k, L), :].astype(cdt) for k in range(K)], axis=1)
    h = jnp.dot(g1, w1_ref[...], preferred_element_type=jnp.float32)
    h = jnp.maximum(h * s1_ref[...] + t1_ref[...], 0.0)          # (L, Cop) f32

    # ---- stride-4 phase split of h via a 0/1 selection matmul (MXU gather) --
    # dall[r*(L/4+4) + m] = h[4m + r - 8]  (exact; zero rows outside [0, L)).
    dall = jnp.dot(selh_ref[...], h.astype(cdt),
                   preferred_element_type=jnp.float32).astype(cdt)

    # ---- first_branch 2/2: Conv1d(k=17, s=4, p=7) ---------------------------
    # im2col over the 20 (q, r) groups (group u holds tap u-1; u = 0, 18, 19
    # carry zero weights) -> one wide dot.
    g2 = jnp.concatenate(
        [dall[(u % 4) * Md + (u // 4):(u % 4) * Md + (u // 4) + L_out, :]
         for u in range(20)], axis=1)                            # (L/4, 20*Cop)
    first = jnp.dot(g2, w2_ref[...], preferred_element_type=jnp.float32)

    # ---- skip_connection: MaxPool1d(4,4) + Conv1d(k=1) ----------------------
    u_slab = up_ref[pl.ds(PAD, L), :].astype(cdt)        # sublane-aligned slice
    uall = jnp.dot(selu_ref[...], u_slab,
                   preferred_element_type=jnp.float32)           # (4*L/4, Cip)
    mp = jnp.maximum(
        jnp.maximum(uall[0:L_out], uall[L_out:2 * L_out]),
        jnp.maximum(uall[2 * L_out:3 * L_out], uall[3 * L_out:4 * L_out]))
    res = jnp.dot(mp.astype(cdt), wsk_ref[...],
                  preferred_element_type=jnp.float32)

    upper_out = first + res + bu_ref[...]
    # ---- second_branch: BN2 + ReLU (+ Dropout = identity in eval) -----------
    lower_out = jnp.maximum(upper_out * s2_ref[...] + t2_ref[...], 0.0)

    # ---- emit outputs already in the next block's padded layout -------------
    zpad = jnp.zeros((PAD, Cop), jnp.float32)
    up_out_ref[pl.ds(0, PAD), :] = zpad
    up_out_ref[pl.ds(PAD, L_out), :] = upper_out
    up_out_ref[pl.ds(PAD + L_out, PAD), :] = zpad
    low_out_ref[pl.ds(0, PAD), :] = zpad
    low_out_ref[pl.ds(PAD, L_out), :] = lower_out
    low_out_ref[pl.ds(PAD + L_out, PAD), :] = zpad


# ----------------------------------------------------------------------------
# Per-block parameter prep: BN/bias folding, 128-lane padding, im2col weight
# matrices, 0/1 selection matrices.
# ----------------------------------------------------------------------------
def _prepare_block(p, c_in, c_out, L):
    Cip = _round_up(c_in, LANE)
    Cop = _round_up(c_out, LANE)
    L_out = L // 4
    cdt = MATMUL_DTYPE

    # conv1: (Co, Ci, 17) -> (17*Cip, Cop), tap-major rows (matches g1 order).
    w1 = jnp.transpose(p['w1'], (2, 1, 0))
    w1 = jnp.pad(w1, ((0, 0), (0, Cip - c_in), (0, Cop - c_out)))
    w1flat = w1.reshape(K * Cip, Cop).astype(cdt)

    # conv2: (Co, Co, 17) -> (20*Cop, Cop); group u (=4q+r) holds tap u-1,
    # groups 0, 18, 19 are zero (matches g2 order in the kernel).
    w2 = jnp.transpose(p['w2'], (2, 1, 0))
    w2 = jnp.pad(w2, ((1, 2), (0, Cop - c_out), (0, Cop - c_out)))
    w2flat = w2.reshape(20 * Cop, Cop).astype(cdt)

    # skip 1x1 conv: (Co, Ci, 1) -> (Cip, Cop).
    wsk = jnp.pad(jnp.transpose(p['wsk'][:, :, 0], (1, 0)),
                  ((0, Cip - c_in), (0, Cop - c_out))).astype(cdt)

    # Eval-mode BN folded into per-channel scale/shift; conv biases folded too.
    s1 = p['g1'] / jnp.sqrt(p['rv1'] + EPS)
    t1 = p['be1'] - p['rm1'] * s1 + s1 * p['b1']
    s2 = p['g2'] / jnp.sqrt(p['rv2'] + EPS)
    t2 = p['be2'] - p['rm2'] * s2
    bu = p['b2'] + p['bsk']
    row = lambda v: jnp.pad(v, (0, Cop - c_out)).reshape(1, Cop).astype(jnp.float32)

    # 0/1 selection matrices (exact MXU row gathers).
    # selh: row r*(L_out+4)+m selects h[4m + r - 8] (all-zero row if OOB).
    rr = jnp.repeat(jnp.arange(4), L_out + 4)
    mm = jnp.tile(jnp.arange(L_out + 4), 4)
    selh = ((4 * mm + rr - 8)[:, None] == jnp.arange(L)[None, :]).astype(cdt)
    # selu: row r*L_out+j selects upper[4j + r].
    rr2 = jnp.repeat(jnp.arange(4), L_out)
    jj2 = jnp.tile(jnp.arange(L_out), 4)
    selu = ((4 * jj2 + rr2)[:, None] == jnp.arange(L)[None, :]).astype(cdt)

    return dict(w1flat=w1flat, w2flat=w2flat, wsk=wsk, selh=selh, selu=selu,
                s1=row(s1), t1=row(t1), bu=row(bu), s2=row(s2), t2=row(t2))


def _residual_block_pallas(lower_a, upper_a, prep):
    """lower_a, upper_a: (N, L+16, Cip) padded length-major activations."""
    N, Lp, Cip = lower_a.shape
    L = Lp - 2 * PAD
    L_out = L // 4
    Cop = prep['w1flat'].shape[1]
    assert prep['wsk'].shape[0] == Cip
    assert prep['selh'].shape == (4 * (L_out + 4), L)

    def full(a):
        return pl.BlockSpec(a.shape, lambda n, nd=a.ndim: (0,) * nd)

    act_spec = pl.BlockSpec((None, Lp, Cip), lambda n: (n, 0, 0))
    out_spec = pl.BlockSpec((None, L_out + 2 * PAD, Cop), lambda n: (n, 0, 0))

    in_specs = [act_spec, act_spec,
                full(prep['w1flat']), full(prep['w2flat']), full(prep['wsk']),
                full(prep['selh']), full(prep['selu']),
                full(prep['s1']), full(prep['t1']), full(prep['bu']),
                full(prep['s2']), full(prep['t2'])]
    out_shape = [jax.ShapeDtypeStruct((N, L_out + 2 * PAD, Cop), jnp.float32),
                 jax.ShapeDtypeStruct((N, L_out + 2 * PAD, Cop), jnp.float32)]

    low_o, up_o = pl.pallas_call(
        _residual_block_kernel,
        grid=(N,),
        in_specs=in_specs,
        out_specs=[out_spec, out_spec],
        out_shape=out_shape,
        compiler_params=pltpu.CompilerParams(
            dimension_semantics=("parallel",),
            vmem_limit_bytes=32 * 1024 * 1024),
    )(lower_a, upper_a, prep['w1flat'], prep['w2flat'], prep['wsk'],
      prep['selh'], prep['selu'], prep['s1'], prep['t1'], prep['bu'],
      prep['s2'], prep['t2'])
    return low_o, up_o


def stacked_residual_pallas(x, block_params):
    """x: (N, C0, L) float32 (PyTorch NCL). Returns (N, C_last, L / 4**nblocks)."""
    N, c, L = x.shape
    # One relayout at the top of the stack: NCL -> padded length-major layout.
    a = jnp.pad(jnp.transpose(x, (0, 2, 1)),
                ((0, 0), (PAD, PAD), (0, _round_up(c, LANE) - c)))
    lower = upper = a
    for p in block_params:
        assert L % 4 == 0
        c_out = c + 64
        prep = _prepare_block(p, c, c_out, L)
        lower, upper = _residual_block_pallas(lower, upper, prep)
        L, c = L // 4, c_out
    # One relayout at the bottom: strip padding, back to NCL.
    return jnp.transpose(lower[:, PAD:PAD + L, :c], (0, 2, 1))


# ----------------------------------------------------------------------------
# Deterministic parameter init (shapes from the PyTorch __init__)
# ----------------------------------------------------------------------------
def init_block_params(key, c_in, c_out):
    ks = jax.random.split(key, 14)
    f32 = jnp.float32
    return dict(
        w1=0.10 * jax.random.normal(ks[0], (c_out, c_in, K), f32),
        b1=0.10 * jax.random.normal(ks[1], (c_out,), f32),
        g1=1.0 + 0.10 * jax.random.normal(ks[2], (c_out,), f32),
        be1=0.10 * jax.random.normal(ks[3], (c_out,), f32),
        rm1=0.10 * jax.random.normal(ks[4], (c_out,), f32),
        rv1=1.0 + 0.10 * jnp.abs(jax.random.normal(ks[5], (c_out,), f32)),
        w2=0.05 * jax.random.normal(ks[6], (c_out, c_out, K), f32),
        b2=0.10 * jax.random.normal(ks[7], (c_out,), f32),
        wsk=0.10 * jax.random.normal(ks[8], (c_out, c_in, 1), f32),
        bsk=0.10 * jax.random.normal(ks[9], (c_out,), f32),
        g2=1.0 + 0.10 * jax.random.normal(ks[10], (c_out,), f32),
        be2=0.10 * jax.random.normal(ks[11], (c_out,), f32),
        rm2=0.10 * jax.random.normal(ks[12], (c_out,), f32),
        rv2=1.0 + 0.10 * jnp.abs(jax.random.normal(ks[13], (c_out,), f32)),
    )


# ----------------------------------------------------------------------------
# Pure-JAX reference (eval-mode semantics) for verification
# ----------------------------------------------------------------------------
def _conv1d_ref(x, w, b, stride, pad):
    y = jax.lax.conv_general_dilated(
        x, w, window_strides=(stride,), padding=[(pad, pad)],
        dimension_numbers=('NCH', 'OIH', 'NCH'),
        precision=jax.lax.Precision.HIGHEST)
    return y + b[None, :, None]


def _bn_eval_ref(x, g, b, rm, rv):
    s = g / jnp.sqrt(rv + EPS)
    return x * s[None, :, None] + (b - rm * s)[None, :, None]


def _residual_block_ref(lower, upper, p):
    h = _conv1d_ref(lower, p['w1'], p['b1'], 1, 8)
    h = jnp.maximum(_bn_eval_ref(h, p['g1'], p['be1'], p['rm1'], p['rv1']), 0.0)
    f = _conv1d_ref(h, p['w2'], p['b2'], 4, 7)
    N, C, L = upper.shape
    m = jnp.max(upper.reshape(N, C, L // 4, 4), axis=-1)      # MaxPool1d(4,4)
    res = _conv1d_ref(m, p['wsk'], p['bsk'], 1, 0)
    upper_out = f + res
    lower_out = jnp.maximum(
        _bn_eval_ref(upper_out, p['g2'], p['be2'], p['rm2'], p['rv2']), 0.0)
    return lower_out, upper_out


def stacked_residual_ref(x, block_params):
    lower, upper = x, x
    for p in block_params:
        lower, upper = _residual_block_ref(lower, upper, p)
    return lower


# ----------------------------------------------------------------------------
if __name__ == "__main__":
    key = jax.random.PRNGKey(0)
    N, L = 2, 64
    channels = [4, 68]            # StackedResidual(channels, num_blocks=2):
                                  # channels[i+1] must equal channels[i] + 64
    kx, k0, k1 = jax.random.split(key, 3)
    x = jax.random.normal(kx, (N, channels[0], L), jnp.float32)

    params = [init_block_params(k, c, c + 64)
              for k, c in zip((k0, k1), channels)]

    fwd = jax.jit(stacked_residual_pallas)
    out = jax.block_until_ready(fwd(x, params))

    ref = stacked_residual_ref(x, params)
    assert out.shape == ref.shape == (N, channels[-1] + 64, L // 16), out.shape

    if bool(jnp.allclose(out, ref, rtol=2e-2, atol=2e-2)):
        print("KERNEL_OK")
    else:
        print("MISMATCH max_abs_err=", float(jnp.max(jnp.abs(out - ref))))
</pallas_src>

<mosaic_0001>
module attributes {stable_mosaic.version = 11 : i64} {
  func.func @_residual_block_kernel(%arg0: i32, %arg1: memref<1x80x128xf32, #tpu.memory_space<vmem>>, %arg2: memref<1x80x128xf32, #tpu.memory_space<vmem>>, %arg3: memref<2176x128xf32, #tpu.memory_space<vmem>>, %arg4: memref<2560x128xf32, #tpu.memory_space<vmem>>, %arg5: memref<128x128xf32, #tpu.memory_space<vmem>>, %arg6: memref<80x64xf32, #tpu.memory_space<vmem>>, %arg7: memref<64x64xf32, #tpu.memory_space<vmem>>, %arg8: memref<1x128xf32, #tpu.memory_space<vmem>>, %arg9: memref<1x128xf32, #tpu.memory_space<vmem>>, %arg10: memref<1x128xf32, #tpu.memory_space<vmem>>, %arg11: memref<1x128xf32, #tpu.memory_space<vmem>>, %arg12: memref<1x128xf32, #tpu.memory_space<vmem>>, %arg13: memref<1x32x128xf32, #tpu.memory_space<vmem>>, %arg14: memref<1x32x128xf32, #tpu.memory_space<vmem>>) attributes {dimension_semantics = [#tpu.dimension_semantics<parallel>], iteration_bounds = array<i64: 2>, scalar_prefetch = 0 : i64, scratch_operands = 0 : i64, tpu.core_type = #tpu.core_type<tc>, window_params = [{transform_indices = @transform_0, window_bounds = array<i64: 1, 80, 128>}, {transform_indices = @transform_1, window_bounds = array<i64: 1, 80, 128>}, {pipeline_mode = #tpu.pipeline_mode<synchronous>, transform_indices = @transform_2, window_bounds = array<i64: 2176, 128>}, {pipeline_mode = #tpu.pipeline_mode<synchronous>, transform_indices = @transform_3, window_bounds = array<i64: 2560, 128>}, {pipeline_mode = #tpu.pipeline_mode<synchronous>, transform_indices = @transform_4, window_bounds = array<i64: 128, 128>}, {pipeline_mode = #tpu.pipeline_mode<synchronous>, transform_indices = @transform_5, window_bounds = array<i64: 80, 64>}, {pipeline_mode = #tpu.pipeline_mode<synchronous>, transform_indices = @transform_6, window_bounds = array<i64: 64, 64>}, {pipeline_mode = #tpu.pipeline_mode<synchronous>, transform_indices = @transform_7, window_bounds = array<i64: 1, 128>}, {pipeline_mode = #tpu.pipeline_mode<synchronous>, transform_indices = @transform_8, window_bounds = array<i64: 1, 128>}, {pipeline_mode = #tpu.pipeline_mode<synchronous>, transform_indices = @transform_9, window_bounds = array<i64: 1, 128>}, {pipeline_mode = #tpu.pipeline_mode<synchronous>, transform_indices = @transform_10, window_bounds = array<i64: 1, 128>}, {pipeline_mode = #tpu.pipeline_mode<synchronous>, transform_indices = @transform_11, window_bounds = array<i64: 1, 128>}, {transform_indices = @transform_12, window_bounds = array<i64: 1, 32, 128>}, {transform_indices = @transform_13, window_bounds = array<i64: 1, 32, 128>}]} {
    %c0 = arith.constant 0 : index
    %c0_0 = arith.constant 0 : index
    %c0_1 = arith.constant 0 : index
    %0 = vector.load %arg1[%c0, %c0_0, %c0_1] : memref<1x80x128xf32, #tpu.memory_space<vmem>>, vector<1x64x128xf32>
    %1 = vector.shape_cast %0 : vector<1x64x128xf32> to vector<64x128xf32>
    %c0_2 = arith.constant 0 : index
    %c1 = arith.constant 1 : index
    %c0_3 = arith.constant 0 : index
    %2 = vector.load %arg1[%c0_2, %c1, %c0_3] : memref<1x80x128xf32, #tpu.memory_space<vmem>>, vector<1x64x128xf32>
    %3 = vector.shape_cast %2 : vector<1x64x128xf32> to vector<64x128xf32>
    %c0_4 = arith.constant 0 : index
    %c2 = arith.constant 2 : index
    %c0_5 = arith.constant 0 : index
    %4 = vector.load %arg1[%c0_4, %c2, %c0_5] : memref<1x80x128xf32, #tpu.memory_space<vmem>>, vector<1x64x128xf32>
    %5 = vector.shape_cast %4 : vector<1x64x128xf32> to vector<64x128xf32>
    %c0_6 = arith.constant 0 : index
    %c3 = arith.constant 3 : index
    %c0_7 = arith.constant 0 : index
    %6 = vector.load %arg1[%c0_6, %c3, %c0_7] : memref<1x80x128xf32, #tpu.memory_space<vmem>>, vector<1x64x128xf32>
    %7 = vector.shape_cast %6 : vector<1x64x128xf32> to vector<64x128xf32>
    %c0_8 = arith.constant 0 : index
    %c4 = arith.constant 4 : index
    %c0_9 = arith.constant 0 : index
    %8 = vector.load %arg1[%c0_8, %c4, %c0_9] : memref<1x80x128xf32, #tpu.memory_space<vmem>>, vector<1x64x128xf32>
    %9 = vector.shape_cast %8 : vector<1x64x128xf32> to vector<64x128xf32>
    %c0_10 = arith.constant 0 : index
    %c5 = arith.constant 5 : index
    %c0_11 = arith.constant 0 : index
    %10 = vector.load %arg1[%c0_10, %c5, %c0_11] : memref<1x80x128xf32, #tpu.memory_space<vmem>>, vector<1x64x128xf32>
    %11 = vector.shape_cast %10 : vector<1x64x128xf32> to vector<64x128xf32>
    %c0_12 = arith.constant 0 : index
    %c6 = arith.constant 6 : index
    %c0_13 = arith.constant 0 : index
    %12 = vector.load %arg1[%c0_12, %c6, %c0_13] : memref<1x80x128xf32, #tpu.memory_space<vmem>>, vector<1x64x128xf32>
    %13 = vector.shape_cast %12 : vector<1x64x128xf32> to vector<64x128xf32>
    %c0_14 = arith.constant 0 : index
    %c7 = arith.constant 7 : index
    %c0_15 = arith.constant 0 : index
    %14 = vector.load %arg1[%c0_14, %c7, %c0_15] : memref<1x80x128xf32, #tpu.memory_space<vmem>>, vector<1x64x128xf32>
    %15 = vector.shape_cast %14 : vector<1x64x128xf32> to vector<64x128xf32>
    %c0_16 = arith.constant 0 : index
    %c8 = arith.constant 8 : index
    %c0_17 = arith.constant 0 : index
    %16 = vector.load %arg1[%c0_16, %c8, %c0_17] : memref<1x80x128xf32, #tpu.memory_space<vmem>>, vector<1x64x128xf32>
    %17 = vector.shape_cast %16 : vector<1x64x128xf32> to vector<64x128xf32>
    %c0_18 = arith.constant 0 : index
    %c9 = arith.constant 9 : index
    %c0_19 = arith.constant 0 : index
    %18 = vector.load %arg1[%c0_18, %c9, %c0_19] : memref<1x80x128xf32, #tpu.memory_space<vmem>>, vector<1x64x128xf32>
    %19 = vector.shape_cast %18 : vector<1x64x128xf32> to vector<64x128xf32>
    %c0_20 = arith.constant 0 : index
    %c10 = arith.constant 10 : index
    %c0_21 = arith.constant 0 : index
    %20 = vector.load %arg1[%c0_20, %c10, %c0_21] : memref<1x80x128xf32, #tpu.memory_space<vmem>>, vector<1x64x128xf32>
    %21 = vector.shape_cast %20 : vector<1x64x128xf32> to vector<64x128xf32>
    %c0_22 = arith.constant 0 : index
    %c11 = arith.constant 11 : index
    %c0_23 = arith.constant 0 : index
    %22 = vector.load %arg1[%c0_22, %c11, %c0_23] : memref<1x80x128xf32, #tpu.memory_space<vmem>>, vector<1x64x128xf32>
    %23 = vector.shape_cast %22 : vector<1x64x128xf32> to vector<64x128xf32>
    %c0_24 = arith.constant 0 : index
    %c12 = arith.constant 12 : index
    %c0_25 = arith.constant 0 : index
    %24 = vector.load %arg1[%c0_24, %c12, %c0_25] : memref<1x80x128xf32, #tpu.memory_space<vmem>>, vector<1x64x128xf32>
    %25 = vector.shape_cast %24 : vector<1x64x128xf32> to vector<64x128xf32>
    %c0_26 = arith.constant 0 : index
    %c13 = arith.constant 13 : index
    %c0_27 = arith.constant 0 : index
    %26 = vector.load %arg1[%c0_26, %c13, %c0_27] : memref<1x80x128xf32, #tpu.memory_space<vmem>>, vector<1x64x128xf32>
    %27 = vector.shape_cast %26 : vector<1x64x128xf32> to vector<64x128xf32>
    %c0_28 = arith.constant 0 : index
    %c14 = arith.constant 14 : index
    %c0_29 = arith.constant 0 : index
    %28 = vector.load %arg1[%c0_28, %c14, %c0_29] : memref<1x80x128xf32, #tpu.memory_space<vmem>>, vector<1x64x128xf32>
    %29 = vector.shape_cast %28 : vector<1x64x128xf32> to vector<64x128xf32>
    %c0_30 = arith.constant 0 : index
    %c15 = arith.constant 15 : index
    %c0_31 = arith.constant 0 : index
    %30 = vector.load %arg1[%c0_30, %c15, %c0_31] : memref<1x80x128xf32, #tpu.memory_space<vmem>>, vector<1x64x128xf32>
    %31 = vector.shape_cast %30 : vector<1x64x128xf32> to vector<64x128xf32>
    %c0_32 = arith.constant 0 : index
    %c16 = arith.constant 16 : index
    %c0_33 = arith.constant 0 : index
    %32 = vector.load %arg1[%c0_32, %c16, %c0_33] : memref<1x80x128xf32, #tpu.memory_space<vmem>>, vector<1x64x128xf32>
    %33 = vector.shape_cast %32 : vector<1x64x128xf32> to vector<64x128xf32>
    %34 = tpu.concatenate %1, %3, %5, %7, %9, %11, %13, %15, %17, %19, %21, %23, %25, %27, %29, %31 in 1 : vector<64x128xf32>, vector<64x128xf32>, vector<64x128xf32>, vector<64x128xf32>, vector<64x128xf32>, vector<64x128xf32>, vector<64x128xf32>, vector<64x128xf32>, vector<64x128xf32>, vector<64x128xf32>, vector<64x128xf32>, vector<64x128xf32>, vector<64x128xf32>, vector<64x128xf32>, vector<64x128xf32>, vector<64x128xf32> -> vector<64x2048xf32>
    %35 = tpu.concatenate %34, %33 in 1 : vector<64x2048xf32>, vector<64x128xf32> -> vector<64x2176xf32>
    %c0_34 = arith.constant 0 : index
    %c0_35 = arith.constant 0 : index
    %36 = vector.load %arg3[%c0_34, %c0_35] : memref<2176x128xf32, #tpu.memory_space<vmem>>, vector<2176x128xf32>
    %cst = arith.constant dense<0.000000e+00> : vector<64x128xf32>
    %37 = tpu.matmul %35, %36, %cst {dimension_numbers = #tpu.dot_dimension_numbers<[1], [0], [0], [1], [0, 0, 1, 1], [], []>} : vector<64x2176xf32>, vector<2176x128xf32>, vector<64x128xf32> -> vector<64x128xf32>
    %c0_36 = arith.constant 0 : index
    %c0_37 = arith.constant 0 : index
    %38 = vector.load %arg8[%c0_36, %c0_37] : memref<1x128xf32, #tpu.memory_space<vmem>>, vector<1x128xf32>
    %39 = vector.broadcast %38 : vector<1x128xf32> to vector<64x128xf32>
    %40 = arith.mulf %37, %39 : vector<64x128xf32>
    %c0_38 = arith.constant 0 : index
    %c0_39 = arith.constant 0 : index
    %41 = vector.load %arg9[%c0_38, %c0_39] : memref<1x128xf32, #tpu.memory_space<vmem>>, vector<1x128xf32>
    %42 = vector.broadcast %41 : vector<1x128xf32> to vector<64x128xf32>
    %43 = arith.addf %40, %42 : vector<64x128xf32>
    %cst_40 = arith.constant 0.000000e+00 : f32
    %44 = vector.broadcast %cst_40 : f32 to vector<64x128xf32>
    %45 = arith.maximumf %43, %44 : vector<64x128xf32>
    %c0_41 = arith.constant 0 : index
    %c0_42 = arith.constant 0 : index
    %46 = vector.load %arg6[%c0_41, %c0_42] : memref<80x64xf32, #tpu.memory_space<vmem>>, vector<80x64xf32>
    %cst_43 = arith.constant dense<0.000000e+00> : vector<80x128xf32>
    %47 = tpu.matmul %46, %45, %cst_43 {dimension_numbers = #tpu.dot_dimension_numbers<[1], [0], [0], [1], [0, 0, 1, 1], [], []>} : vector<80x64xf32>, vector<64x128xf32>, vector<80x128xf32> -> vector<80x128xf32>
    %48 = vector.extract_strided_slice %47 {offsets = [0, 0], sizes = [16, 128], strides = [1, 1]} : vector<80x128xf32> to vector<16x128xf32>
    %49 = vector.extract_strided_slice %47 {offsets = [20, 0], sizes = [16, 128], strides = [1, 1]} : vector<80x128xf32> to vector<16x128xf32>
    %50 = vector.extract_strided_slice %47 {offsets = [40, 0], sizes = [16, 128], strides = [1, 1]} : vector<80x128xf32> to vector<16x128xf32>
    %51 = vector.extract_strided_slice %47 {offsets = [60, 0], sizes = [16, 128], strides = [1, 1]} : vector<80x128xf32> to vector<16x128xf32>
    %52 = vector.extract_strided_slice %47 {offsets = [1, 0], sizes = [16, 128], strides = [1, 1]} : vector<80x128xf32> to vector<16x128xf32>
    %53 = vector.extract_strided_slice %47 {offsets = [21, 0], sizes = [16, 128], strides = [1, 1]} : vector<80x128xf32> to vector<16x128xf32>
    %54 = vector.extract_strided_slice %47 {offsets = [41, 0], sizes = [16, 128], strides = [1, 1]} : vector<80x128xf32> to vector<16x128xf32>
    %55 = vector.extract_strided_slice %47 {offsets = [61, 0], sizes = [16, 128], strides = [1, 1]} : vector<80x128xf32> to vector<16x128xf32>
    %56 = vector.extract_strided_slice %47 {offsets = [2, 0], sizes = [16, 128], strides = [1, 1]} : vector<80x128xf32> to vector<16x128xf32>
    %57 = vector.extract_strided_slice %47 {offsets = [22, 0], sizes = [16, 128], strides = [1, 1]} : vector<80x128xf32> to vector<16x128xf32>
    %58 = vector.extract_strided_slice %47 {offsets = [42, 0], sizes = [16, 128], strides = [1, 1]} : vector<80x128xf32> to vector<16x128xf32>
    %59 = vector.extract_strided_slice %47 {offsets = [62, 0], sizes = [16, 128], strides = [1, 1]} : vector<80x128xf32> to vector<16x128xf32>
    %60 = vector.extract_strided_slice %47 {offsets = [3, 0], sizes = [16, 128], strides = [1, 1]} : vector<80x128xf32> to vector<16x128xf32>
    %61 = vector.extract_strided_slice %47 {offsets = [23, 0], sizes = [16, 128], strides = [1, 1]} : vector<80x128xf32> to vector<16x128xf32>
    %62 = vector.extract_strided_slice %47 {offsets = [43, 0], sizes = [16, 128], strides = [1, 1]} : vector<80x128xf32> to vector<16x128xf32>
    %63 = vector.extract_strided_slice %47 {offsets = [63, 0], sizes = [16, 128], strides = [1, 1]} : vector<80x128xf32> to vector<16x128xf32>
    %64 = vector.extract_strided_slice %47 {offsets = [4, 0], sizes = [16, 128], strides = [1, 1]} : vector<80x128xf32> to vector<16x128xf32>
    %65 = vector.extract_strided_slice %47 {offsets = [24, 0], sizes = [16, 128], strides = [1, 1]} : vector<80x128xf32> to vector<16x128xf32>
    %66 = vector.extract_strided_slice %47 {offsets = [44, 0], sizes = [16, 128], strides = [1, 1]} : vector<80x128xf32> to vector<16x128xf32>
    %67 = vector.extract_strided_slice %47 {offsets = [64, 0], sizes = [16, 128], strides = [1, 1]} : vector<80x128xf32> to vector<16x128xf32>
    %68 = tpu.concatenate %48, %49, %50, %51, %52, %53, %54, %55, %56, %57, %58, %59, %60, %61, %62, %63 in 1 : vector<16x128xf32>, vector<16x128xf32>, vector<16x128xf32>, vector<16x128xf32>, vector<16x128xf32>, vector<16x128xf32>, vector<16x128xf32>, vector<16x128xf32>, vector<16x128xf32>, vector<16x128xf32>, vector<16x128xf32>, vector<16x128xf32>, vector<16x128xf32>, vector<16x128xf32>, vector<16x128xf32>, vector<16x128xf32> -> vector<16x2048xf32>
    %69 = tpu.concatenate %64, %65, %66, %67 in 1 : vector<16x128xf32>, vector<16x128xf32>, vector<16x128xf32>, vector<16x128xf32> -> vector<16x512xf32>
    %70 = tpu.concatenate %68, %69 in 1 : vector<16x2048xf32>, vector<16x512xf32> -> vector<16x2560xf32>
    %c0_44 = arith.constant 0 : index
    %c0_45 = arith.constant 0 : index
    %71 = vector.load %arg4[%c0_44, %c0_45] : memref<2560x128xf32, #tpu.memory_space<vmem>>, vector<2560x128xf32>
    %cst_46 = arith.constant dense<0.000000e+00> : vector<16x128xf32>
    %72 = tpu.matmul %70, %71, %cst_46 {dimension_numbers = #tpu.dot_dimension_numbers<[1], [0], [0], [1], [0, 0, 1, 1], [], []>} : vector<16x2560xf32>, vector<2560x128xf32>, vector<16x128xf32> -> vector<16x128xf32>
    %c0_47 = arith.constant 0 : index
    %c8_48 = arith.constant 8 : index
    %c0_49 = arith.constant 0 : index
    %73 = vector.load %arg2[%c0_47, %c8_48, %c0_49] : memref<1x80x128xf32, #tpu.memory_space<vmem>>, vector<1x64x128xf32>
    %74 = vector.shape_cast %73 : vector<1x64x128xf32> to vector<64x128xf32>
    %c0_50 = arith.constant 0 : index
    %c0_51 = arith.constant 0 : index
    %75 = vector.load %arg7[%c0_50, %c0_51] : memref<64x64xf32, #tpu.memory_space<vmem>>, vector<64x64xf32>
    %cst_52 = arith.constant dense<0.000000e+00> : vector<64x128xf32>
    %76 = tpu.matmul %75, %74, %cst_52 {dimension_numbers = #tpu.dot_dimension_numbers<[1], [0], [0], [1], [0, 0, 1, 1], [], []>} : vector<64x64xf32>, vector<64x128xf32>, vector<64x128xf32> -> vector<64x128xf32>
    %77 = vector.extract_strided_slice %76 {offsets = [0, 0], sizes = [16, 128], strides = [1, 1]} : vector<64x128xf32> to vector<16x128xf32>
    %78 = vector.extract_strided_slice %76 {offsets = [16, 0], sizes = [16, 128], strides = [1, 1]} : vector<64x128xf32> to vector<16x128xf32>
    %79 = arith.maximumf %77, %78 : vector<16x128xf32>
    %80 = vector.extract_strided_slice %76 {offsets = [32, 0], sizes = [16, 128], strides = [1, 1]} : vector<64x128xf32> to vector<16x128xf32>
    %81 = vector.extract_strided_slice %76 {offsets = [48, 0], sizes = [16, 128], strides = [1, 1]} : vector<64x128xf32> to vector<16x128xf32>
    %82 = arith.maximumf %80, %81 : vector<16x128xf32>
    %83 = arith.maximumf %79, %82 : vector<16x128xf32>
    %c0_53 = arith.constant 0 : index
    %c0_54 = arith.constant 0 : index
    %84 = vector.load %arg5[%c0_53, %c0_54] : memref<128x128xf32, #tpu.memory_space<vmem>>, vector<128x128xf32>
    %cst_55 = arith.constant dense<0.000000e+00> : vector<16x128xf32>
    %85 = tpu.matmul %83, %84, %cst_55 {dimension_numbers = #tpu.dot_dimension_numbers<[1], [0], [0], [1], [0, 0, 1, 1], [], []>} : vector<16x128xf32>, vector<128x128xf32>, vector<16x128xf32> -> vector<16x128xf32>
    %86 = arith.addf %72, %85 : vector<16x128xf32>
    %c0_56 = arith.constant 0 : index
    %c0_57 = arith.constant 0 : index
    %87 = vector.load %arg10[%c0_56, %c0_57] : memref<1x128xf32, #tpu.memory_space<vmem>>, vector<1x128xf32>
    %88 = vector.broadcast %87 : vector<1x128xf32> to vector<16x128xf32>
    %89 = arith.addf %86, %88 : vector<16x128xf32>
    %c0_58 = arith.constant 0 : index
    %c0_59 = arith.constant 0 : index
    %90 = vector.load %arg11[%c0_58, %c0_59] : memref<1x128xf32, #tpu.memory_space<vmem>>, vector<1x128xf32>
    %91 = vector.broadcast %90 : vector<1x128xf32> to vector<16x128xf32>
    %92 = arith.mulf %89, %91 : vector<16x128xf32>
    %c0_60 = arith.constant 0 : index
    %c0_61 = arith.constant 0 : index
    %93 = vector.load %arg12[%c0_60, %c0_61] : memref<1x128xf32, #tpu.memory_space<vmem>>, vector<1x128xf32>
    %94 = vector.broadcast %93 : vector<1x128xf32> to vector<16x128xf32>
    %95 = arith.addf %92, %94 : vector<16x128xf32>
    %cst_62 = arith.constant 0.000000e+00 : f32
    %96 = vector.broadcast %cst_62 : f32 to vector<16x128xf32>
    %97 = arith.maximumf %95, %96 : vector<16x128xf32>
    %cst_63 = arith.constant 0.000000e+00 : f32
    %98 = vector.broadcast %cst_63 : f32 to vector<8x128xf32>
    %c0_64 = arith.constant 0 : index
    %c0_65 = arith.constant 0 : index
    %c0_66 = arith.constant 0 : index
    %99 = vector.load %arg14[%c0_64, %c0_65, %c0_66] : memref<1x32x128xf32, #tpu.memory_space<vmem>>, vector<1x8x128xf32>
    %100 = vector.shape_cast %99 : vector<1x8x128xf32> to vector<8x128xf32>
    %101 = vector.shape_cast %98 : vector<8x128xf32> to vector<1x8x128xf32>
    tpu.vector_store %arg14[%c0_64, %c0_65, %c0_66], %101 {strides = array<i32>} : memref<1x32x128xf32, #tpu.memory_space<vmem>>, vector<1x8x128xf32>,
    %c0_67 = arith.constant 0 : index
    %c8_68 = arith.constant 8 : index
    %c0_69 = arith.constant 0 : index
    %102 = vector.load %arg14[%c0_67, %c8_68, %c0_69] : memref<1x32x128xf32, #tpu.memory_space<vmem>>, vector<1x16x128xf32>
    %103 = vector.shape_cast %102 : vector<1x16x128xf32> to vector<16x128xf32>
    %104 = vector.shape_cast %89 : vector<16x128xf32> to vector<1x16x128xf32>
    tpu.vector_store %arg14[%c0_67, %c8_68, %c0_69], %104 {strides = array<i32>} : memref<1x32x128xf32, #tpu.memory_space<vmem>>, vector<1x16x128xf32>,
    %c0_70 = arith.constant 0 : index
    %c24 = arith.constant 24 : index
    %c0_71 = arith.constant 0 : index
    %105 = vector.load %arg14[%c0_70, %c24, %c0_71] : memref<1x32x128xf32, #tpu.memory_space<vmem>>, vector<1x8x128xf32>
    %106 = vector.shape_cast %105 : vector<1x8x128xf32> to vector<8x128xf32>
    %107 = vector.shape_cast %98 : vector<8x128xf32> to vector<1x8x128xf32>
    tpu.vector_store %arg14[%c0_70, %c24, %c0_71], %107 {strides = array<i32>} : memref<1x32x128xf32, #tpu.memory_space<vmem>>, vector<1x8x128xf32>,
    %c0_72 = arith.constant 0 : index
    %c0_73 = arith.constant 0 : index
    %c0_74 = arith.constant 0 : index
    %108 = vector.load %arg13[%c0_72, %c0_73, %c0_74] : memref<1x32x128xf32, #tpu.memory_space<vmem>>, vector<1x8x128xf32>
    %109 = vector.shape_cast %108 : vector<1x8x128xf32> to vector<8x128xf32>
    %110 = vector.shape_cast %98 : vector<8x128xf32> to vector<1x8x128xf32>
    tpu.vector_store %arg13[%c0_72, %c0_73, %c0_74], %110 {strides = array<i32>} : memref<1x32x128xf32, #tpu.memory_space<vmem>>, vector<1x8x128xf32>,
    %c0_75 = arith.constant 0 : index
    %c8_76 = arith.constant 8 : index
    %c0_77 = arith.constant 0 : index
    %111 = vector.load %arg13[%c0_75, %c8_76, %c0_77] : memref<1x32x128xf32, #tpu.memory_space<vmem>>, vector<1x16x128xf32>
    %112 = vector.shape_cast %111 : vector<1x16x128xf32> to vector<16x128xf32>
    %113 = vector.shape_cast %97 : vector<16x128xf32> to vector<1x16x128xf32>
    tpu.vector_store %arg13[%c0_75, %c8_76, %c0_77], %113 {strides = array<i32>} : memref<1x32x128xf32, #tpu.memory_space<vmem>>, vector<1x16x128xf32>,
    %c0_78 = arith.constant 0 : index
    %c24_79 = arith.constant 24 : index
    %c0_80 = arith.constant 0 : index
    %114 = vector.load %arg13[%c0_78, %c24_79, %c0_80] : memref<1x32x128xf32, #tpu.memory_space<vmem>>, vector<1x8x128xf32>
    %115 = vector.shape_cast %114 : vector<1x8x128xf32> to vector<8x128xf32>
    %116 = vector.shape_cast %98 : vector<8x128xf32> to vector<1x8x128xf32>
    tpu.vector_store %arg13[%c0_78, %c24_79, %c0_80], %116 {strides = array<i32>} : memref<1x32x128xf32, #tpu.memory_space<vmem>>, vector<1x8x128xf32>,
    return
  }
  func.func @transform_0(%arg0: i32) -> (i32, i32, i32) {
    %c0_i32 = arith.constant 0 : i32
    %c0_i32_0 = arith.constant 0 : i32
    %c0_i32_1 = arith.constant 0 : i32
    return %arg0, %c0_i32, %c0_i32_0 : i32, i32, i32
  }
  func.func @transform_1(%arg0: i32) -> (i32, i32, i32) {
    %c0_i32 = arith.constant 0 : i32
    %c0_i32_0 = arith.constant 0 : i32
    %c0_i32_1 = arith.constant 0 : i32
    return %arg0, %c0_i32, %c0_i32_0 : i32, i32, i32
  }
  func.func @transform_2(%arg0: i32) -> (i32, i32) {
    %c0_i32 = arith.constant 0 : i32
    %c0_i32_0 = arith.constant 0 : i32
    %c0_i32_1 = arith.constant 0 : i32
    return %c0_i32, %c0_i32_0 : i32, i32
  }
  func.func @transform_3(%arg0: i32) -> (i32, i32) {
    %c0_i32 = arith.constant 0 : i32
    %c0_i32_0 = arith.constant 0 : i32
    %c0_i32_1 = arith.constant 0 : i32
    return %c0_i32, %c0_i32_0 : i32, i32
  }
  func.func @transform_4(%arg0: i32) -> (i32, i32) {
    %c0_i32 = arith.constant 0 : i32
    %c0_i32_0 = arith.constant 0 : i32
    %c0_i32_1 = arith.constant 0 : i32
    return %c0_i32, %c0_i32_0 : i32, i32
  }
  func.func @transform_5(%arg0: i32) -> (i32, i32) {
    %c0_i32 = arith.constant 0 : i32
    %c0_i32_0 = arith.constant 0 : i32
    %c0_i32_1 = arith.constant 0 : i32
    return %c0_i32, %c0_i32_0 : i32, i32
  }
  func.func @transform_6(%arg0: i32) -> (i32, i32) {
    %c0_i32 = arith.constant 0 : i32
    %c0_i32_0 = arith.constant 0 : i32
    %c0_i32_1 = arith.constant 0 : i32
    return %c0_i32, %c0_i32_0 : i32, i32
  }
  func.func @transform_7(%arg0: i32) -> (i32, i32) {
    %c0_i32 = arith.constant 0 : i32
    %c0_i32_0 = arith.constant 0 : i32
    %c0_i32_1 = arith.constant 0 : i32
    return %c0_i32, %c0_i32_0 : i32, i32
  }
  func.func @transform_8(%arg0: i32) -> (i32, i32) {
    %c0_i32 = arith.constant 0 : i32
    %c0_i32_0 = arith.constant 0 : i32
    %c0_i32_1 = arith.constant 0 : i32
    return %c0_i32, %c0_i32_0 : i32, i32
  }
  func.func @transform_9(%arg0: i32) -> (i32, i32) {
    %c0_i32 = arith.constant 0 : i32
    %c0_i32_0 = arith.constant 0 : i32
    %c0_i32_1 = arith.constant 0 : i32
    return %c0_i32, %c0_i32_0 : i32, i32
  }
  func.func @transform_10(%arg0: i32) -> (i32, i32) {
    %c0_i32 = arith.constant 0 : i32
    %c0_i32_0 = arith.constant 0 : i32
    %c0_i32_1 = arith.constant 0 : i32
    return %c0_i32, %c0_i32_0 : i32, i32
  }
  func.func @transform_11(%arg0: i32) -> (i32, i32) {
    %c0_i32 = arith.constant 0 : i32
    %c0_i32_0 = arith.constant 0 : i32
    %c0_i32_1 = arith.constant 0 : i32
    return %c0_i32, %c0_i32_0 : i32, i32
  }
  func.func @transform_12(%arg0: i32) -> (i32, i32, i32) {
    %c0_i32 = arith.constant 0 : i32
    %c0_i32_0 = arith.constant 0 : i32
    %c0_i32_1 = arith.constant 0 : i32
    return %arg0, %c0_i32, %c0_i32_0 : i32, i32, i32
  }
  func.func @transform_13(%arg0: i32) -> (i32, i32, i32) {
    %c0_i32 = arith.constant 0 : i32
    %c0_i32_0 = arith.constant 0 : i32
    %c0_i32_1 = arith.constant 0 : i32
    return %arg0, %c0_i32, %c0_i32_0 : i32, i32, i32
  }
}

module attributes {stable_mosaic.version = 11 : i64} {
  func.func @_residual_block_kernel(%arg0: i32, %arg1: memref<1x32x128xf32, #tpu.memory_space<vmem>>, %arg2: memref<1x32x128xf32, #tpu.memory_space<vmem>>, %arg3: memref<2176x256xf32, #tpu.memory_space<vmem>>, %arg4: memref<5120x256xf32, #tpu.memory_space<vmem>>, %arg5: memref<128x256xf32, #tpu.memory_space<vmem>>, %arg6: memref<32x16xf32, #tpu.memory_space<vmem>>, %arg7: memref<16x16xf32, #tpu.memory_space<vmem>>, %arg8: memref<1x256xf32, #tpu.memory_space<vmem>>, %arg9: memref<1x256xf32, #tpu.memory_space<vmem>>, %arg10: memref<1x256xf32, #tpu.memory_space<vmem>>, %arg11: memref<1x256xf32, #tpu.memory_space<vmem>>, %arg12: memref<1x256xf32, #tpu.memory_space<vmem>>, %arg13: memref<1x20x256xf32, #tpu.memory_space<vmem>>, %arg14: memref<1x20x256xf32, #tpu.memory_space<vmem>>) attributes {dimension_semantics = [#tpu.dimension_semantics<parallel>], iteration_bounds = array<i64: 2>, scalar_prefetch = 0 : i64, scratch_operands = 0 : i64, tpu.core_type = #tpu.core_type<tc>, window_params = [{transform_indices = @transform_0, window_bounds = array<i64: 1, 32, 128>}, {transform_indices = @transform_1, window_bounds = array<i64: 1, 32, 128>}, {pipeline_mode = #tpu.pipeline_mode<synchronous>, transform_indices = @transform_2, window_bounds = array<i64: 2176, 256>}, {pipeline_mode = #tpu.pipeline_mode<synchronous>, transform_indices = @transform_3, window_bounds = array<i64: 5120, 256>}, {pipeline_mode = #tpu.pipeline_mode<synchronous>, transform_indices = @transform_4, window_bounds = array<i64: 128, 256>}, {pipeline_mode = #tpu.pipeline_mode<synchronous>, transform_indices = @transform_5, window_bounds = array<i64: 32, 16>}, {pipeline_mode = #tpu.pipeline_mode<synchronous>, transform_indices = @transform_6, window_bounds = array<i64: 16, 16>}, {pipeline_mode = #tpu.pipeline_mode<synchronous>, transform_indices = @transform_7, window_bounds = array<i64: 1, 256>}, {pipeline_mode = #tpu.pipeline_mode<synchronous>, transform_indices = @transform_8, window_bounds = array<i64: 1, 256>}, {pipeline_mode = #tpu.pipeline_mode<synchronous>, transform_indices = @transform_9, window_bounds = array<i64: 1, 256>}, {pipeline_mode = #tpu.pipeline_mode<synchronous>, transform_indices = @transform_10, window_bounds = array<i64: 1, 256>}, {pipeline_mode = #tpu.pipeline_mode<synchronous>, transform_indices = @transform_11, window_bounds = array<i64: 1, 256>}, {transform_indices = @transform_12, window_bounds = array<i64: 1, 20, 256>}, {transform_indices = @transform_13, window_bounds = array<i64: 1, 20, 256>}]} {
    %c0 = arith.constant 0 : index
    %c0_0 = arith.constant 0 : index
    %c0_1 = arith.constant 0 : index
    %0 = vector.load %arg1[%c0, %c0_0, %c0_1] : memref<1x32x128xf32, #tpu.memory_space<vmem>>, vector<1x16x128xf32>
    %1 = vector.shape_cast %0 : vector<1x16x128xf32> to vector<16x128xf32>
    %c0_2 = arith.constant 0 : index
    %c1 = arith.constant 1 : index
    %c0_3 = arith.constant 0 : index
    %2 = vector.load %arg1[%c0_2, %c1, %c0_3] : memref<1x32x128xf32, #tpu.memory_space<vmem>>, vector<1x16x128xf32>
    %3 = vector.shape_cast %2 : vector<1x16x128xf32> to vector<16x128xf32>
    %c0_4 = arith.constant 0 : index
    %c2 = arith.constant 2 : index
    %c0_5 = arith.constant 0 : index
    %4 = vector.load %arg1[%c0_4, %c2, %c0_5] : memref<1x32x128xf32, #tpu.memory_space<vmem>>, vector<1x16x128xf32>
    %5 = vector.shape_cast %4 : vector<1x16x128xf32> to vector<16x128xf32>
    %c0_6 = arith.constant 0 : index
    %c3 = arith.constant 3 : index
    %c0_7 = arith.constant 0 : index
    %6 = vector.load %arg1[%c0_6, %c3, %c0_7] : memref<1x32x128xf32, #tpu.memory_space<vmem>>, vector<1x16x128xf32>
    %7 = vector.shape_cast %6 : vector<1x16x128xf32> to vector<16x128xf32>
    %c0_8 = arith.constant 0 : index
    %c4 = arith.constant 4 : index
    %c0_9 = arith.constant 0 : index
    %8 = vector.load %arg1[%c0_8, %c4, %c0_9] : memref<1x32x128xf32, #tpu.memory_space<vmem>>, vector<1x16x128xf32>
    %9 = vector.shape_cast %8 : vector<1x16x128xf32> to vector<16x128xf32>
    %c0_10 = arith.constant 0 : index
    %c5 = arith.constant 5 : index
    %c0_11 = arith.constant 0 : index
    %10 = vector.load %arg1[%c0_10, %c5, %c0_11] : memref<1x32x128xf32, #tpu.memory_space<vmem>>, vector<1x16x128xf32>
    %11 = vector.shape_cast %10 : vector<1x16x128xf32> to vector<16x128xf32>
    %c0_12 = arith.constant 0 : index
    %c6 = arith.constant 6 : index
    %c0_13 = arith.constant 0 : index
    %12 = vector.load %arg1[%c0_12, %c6, %c0_13] : memref<1x32x128xf32, #tpu.memory_space<vmem>>, vector<1x16x128xf32>
    %13 = vector.shape_cast %12 : vector<1x16x128xf32> to vector<16x128xf32>
    %c0_14 = arith.constant 0 : index
    %c7 = arith.constant 7 : index
    %c0_15 = arith.constant 0 : index
    %14 = vector.load %arg1[%c0_14, %c7, %c0_15] : memref<1x32x128xf32, #tpu.memory_space<vmem>>, vector<1x16x128xf32>
    %15 = vector.shape_cast %14 : vector<1x16x128xf32> to vector<16x128xf32>
    %c0_16 = arith.constant 0 : index
    %c8 = arith.constant 8 : index
    %c0_17 = arith.constant 0 : index
    %16 = vector.load %arg1[%c0_16, %c8, %c0_17] : memref<1x32x128xf32, #tpu.memory_space<vmem>>, vector<1x16x128xf32>
    %17 = vector.shape_cast %16 : vector<1x16x128xf32> to vector<16x128xf32>
    %c0_18 = arith.constant 0 : index
    %c9 = arith.constant 9 : index
    %c0_19 = arith.constant 0 : index
    %18 = vector.load %arg1[%c0_18, %c9, %c0_19] : memref<1x32x128xf32, #tpu.memory_space<vmem>>, vector<1x16x128xf32>
    %19 = vector.shape_cast %18 : vector<1x16x128xf32> to vector<16x128xf32>
    %c0_20 = arith.constant 0 : index
    %c10 = arith.constant 10 : index
    %c0_21 = arith.constant 0 : index
    %20 = vector.load %arg1[%c0_20, %c10, %c0_21] : memref<1x32x128xf32, #tpu.memory_space<vmem>>, vector<1x16x128xf32>
    %21 = vector.shape_cast %20 : vector<1x16x128xf32> to vector<16x128xf32>
    %c0_22 = arith.constant 0 : index
    %c11 = arith.constant 11 : index
    %c0_23 = arith.constant 0 : index
    %22 = vector.load %arg1[%c0_22, %c11, %c0_23] : memref<1x32x128xf32, #tpu.memory_space<vmem>>, vector<1x16x128xf32>
    %23 = vector.shape_cast %22 : vector<1x16x128xf32> to vector<16x128xf32>
    %c0_24 = arith.constant 0 : index
    %c12 = arith.constant 12 : index
    %c0_25 = arith.constant 0 : index
    %24 = vector.load %arg1[%c0_24, %c12, %c0_25] : memref<1x32x128xf32, #tpu.memory_space<vmem>>, vector<1x16x128xf32>
    %25 = vector.shape_cast %24 : vector<1x16x128xf32> to vector<16x128xf32>
    %c0_26 = arith.constant 0 : index
    %c13 = arith.constant 13 : index
    %c0_27 = arith.constant 0 : index
    %26 = vector.load %arg1[%c0_26, %c13, %c0_27] : memref<1x32x128xf32, #tpu.memory_space<vmem>>, vector<1x16x128xf32>
    %27 = vector.shape_cast %26 : vector<1x16x128xf32> to vector<16x128xf32>
    %c0_28 = arith.constant 0 : index
    %c14 = arith.constant 14 : index
    %c0_29 = arith.constant 0 : index
    %28 = vector.load %arg1[%c0_28, %c14, %c0_29] : memref<1x32x128xf32, #tpu.memory_space<vmem>>, vector<1x16x128xf32>
    %29 = vector.shape_cast %28 : vector<1x16x128xf32> to vector<16x128xf32>
    %c0_30 = arith.constant 0 : index
    %c15 = arith.constant 15 : index
    %c0_31 = arith.constant 0 : index
    %30 = vector.load %arg1[%c0_30, %c15, %c0_31] : memref<1x32x128xf32, #tpu.memory_space<vmem>>, vector<1x16x128xf32>
    %31 = vector.shape_cast %30 : vector<1x16x128xf32> to vector<16x128xf32>
    %c0_32 = arith.constant 0 : index
    %c16 = arith.constant 16 : index
    %c0_33 = arith.constant 0 : index
    %32 = vector.load %arg1[%c0_32, %c16, %c0_33] : memref<1x32x128xf32, #tpu.memory_space<vmem>>, vector<1x16x128xf32>
    %33 = vector.shape_cast %32 : vector<1x16x128xf32> to vector<16x128xf32>
    %34 = tpu.concatenate %1, %3, %5, %7, %9, %11, %13, %15, %17, %19, %21, %23, %25, %27, %29, %31 in 1 : vector<16x128xf32>, vector<16x128xf32>, vector<16x128xf32>, vector<16x128xf32>, vector<16x128xf32>, vector<16x128xf32>, vector<16x128xf32>, vector<16x128xf32>, vector<16x128xf32>, vector<16x128xf32>, vector<16x128xf32>, vector<16x128xf32>, vector<16x128xf32>, vector<16x128xf32>, vector<16x128xf32>, vector<16x128xf32> -> vector<16x2048xf32>
    %35 = tpu.concatenate %34, %33 in 1 : vector<16x2048xf32>, vector<16x128xf32> -> vector<16x2176xf32>
    %c0_34 = arith.constant 0 : index
    %c0_35 = arith.constant 0 : index
    %36 = vector.load %arg3[%c0_34, %c0_35] : memref<2176x256xf32, #tpu.memory_space<vmem>>, vector<2176x256xf32>
    %cst = arith.constant dense<0.000000e+00> : vector<16x256xf32>
    %37 = tpu.matmul %35, %36, %cst {dimension_numbers = #tpu.dot_dimension_numbers<[1], [0], [0], [1], [0, 0, 1, 1], [], []>} : vector<16x2176xf32>, vector<2176x256xf32>, vector<16x256xf32> -> vector<16x256xf32>
    %c0_36 = arith.constant 0 : index
    %c0_37 = arith.constant 0 : index
    %38 = vector.load %arg8[%c0_36, %c0_37] : memref<1x256xf32, #tpu.memory_space<vmem>>, vector<1x256xf32>
    %39 = vector.broadcast %38 : vector<1x256xf32> to vector<16x256xf32>
    %40 = arith.mulf %37, %39 : vector<16x256xf32>
    %c0_38 = arith.constant 0 : index
    %c0_39 = arith.constant 0 : index
    %41 = vector.load %arg9[%c0_38, %c0_39] : memref<1x256xf32, #tpu.memory_space<vmem>>, vector<1x256xf32>
    %42 = vector.broadcast %41 : vector<1x256xf32> to vector<16x256xf32>
    %43 = arith.addf %40, %42 : vector<16x256xf32>
    %cst_40 = arith.constant 0.000000e+00 : f32
    %44 = vector.broadcast %cst_40 : f32 to vector<16x256xf32>
    %45 = arith.maximumf %43, %44 : vector<16x256xf32>
    %c0_41 = arith.constant 0 : index
    %c0_42 = arith.constant 0 : index
    %46 = vector.load %arg6[%c0_41, %c0_42] : memref<32x16xf32, #tpu.memory_space<vmem>>, vector<32x16xf32>
    %cst_43 = arith.constant dense<0.000000e+00> : vector<32x256xf32>
    %47 = tpu.matmul %46, %45, %cst_43 {dimension_numbers = #tpu.dot_dimension_numbers<[1], [0], [0], [1], [0, 0, 1, 1], [], []>} : vector<32x16xf32>, vector<16x256xf32>, vector<32x256xf32> -> vector<32x256xf32>
    %48 = vector.extract_strided_slice %47 {offsets = [0, 0], sizes = [4, 256], strides = [1, 1]} : vector<32x256xf32> to vector<4x256xf32>
    %49 = vector.extract_strided_slice %47 {offsets = [8, 0], sizes = [4, 256], strides = [1, 1]} : vector<32x256xf32> to vector<4x256xf32>
    %50 = vector.extract_strided_slice %47 {offsets = [16, 0], sizes = [4, 256], strides = [1, 1]} : vector<32x256xf32> to vector<4x256xf32>
    %51 = vector.extract_strided_slice %47 {offsets = [24, 0], sizes = [4, 256], strides = [1, 1]} : vector<32x256xf32> to vector<4x256xf32>
    %52 = vector.extract_strided_slice %47 {offsets = [1, 0], sizes = [4, 256], strides = [1, 1]} : vector<32x256xf32> to vector<4x256xf32>
    %53 = vector.extract_strided_slice %47 {offsets = [9, 0], sizes = [4, 256], strides = [1, 1]} : vector<32x256xf32> to vector<4x256xf32>
    %54 = vector.extract_strided_slice %47 {offsets = [17, 0], sizes = [4, 256], strides = [1, 1]} : vector<32x256xf32> to vector<4x256xf32>
    %55 = vector.extract_strided_slice %47 {offsets = [25, 0], sizes = [4, 256], strides = [1, 1]} : vector<32x256xf32> to vector<4x256xf32>
    %56 = vector.extract_strided_slice %47 {offsets = [2, 0], sizes = [4, 256], strides = [1, 1]} : vector<32x256xf32> to vector<4x256xf32>
    %57 = vector.extract_strided_slice %47 {offsets = [10, 0], sizes = [4, 256], strides = [1, 1]} : vector<32x256xf32> to vector<4x256xf32>
    %58 = vector.extract_strided_slice %47 {offsets = [18, 0], sizes = [4, 256], strides = [1, 1]} : vector<32x256xf32> to vector<4x256xf32>
    %59 = vector.extract_strided_slice %47 {offsets = [26, 0], sizes = [4, 256], strides = [1, 1]} : vector<32x256xf32> to vector<4x256xf32>
    %60 = vector.extract_strided_slice %47 {offsets = [3, 0], sizes = [4, 256], strides = [1, 1]} : vector<32x256xf32> to vector<4x256xf32>
    %61 = vector.extract_strided_slice %47 {offsets = [11, 0], sizes = [4, 256], strides = [1, 1]} : vector<32x256xf32> to vector<4x256xf32>
    %62 = vector.extract_strided_slice %47 {offsets = [19, 0], sizes = [4, 256], strides = [1, 1]} : vector<32x256xf32> to vector<4x256xf32>
    %63 = vector.extract_strided_slice %47 {offsets = [27, 0], sizes = [4, 256], strides = [1, 1]} : vector<32x256xf32> to vector<4x256xf32>
    %64 = vector.extract_strided_slice %47 {offsets = [4, 0], sizes = [4, 256], strides = [1, 1]} : vector<32x256xf32> to vector<4x256xf32>
    %65 = vector.extract_strided_slice %47 {offsets = [12, 0], sizes = [4, 256], strides = [1, 1]} : vector<32x256xf32> to vector<4x256xf32>
    %66 = vector.extract_strided_slice %47 {offsets = [20, 0], sizes = [4, 256], strides = [1, 1]} : vector<32x256xf32> to vector<4x256xf32>
    %67 = vector.extract_strided_slice %47 {offsets = [28, 0], sizes = [4, 256], strides = [1, 1]} : vector<32x256xf32> to vector<4x256xf32>
    %68 = tpu.concatenate %48, %49, %50, %51, %52, %53, %54, %55, %56, %57, %58, %59, %60, %61, %62, %63 in 1 : vector<4x256xf32>, vector<4x256xf32>, vector<4x256xf32>, vector<4x256xf32>, vector<4x256xf32>, vector<4x256xf32>, vector<4x256xf32>, vector<4x256xf32>, vector<4x256xf32>, vector<4x256xf32>, vector<4x256xf32>, vector<4x256xf32>, vector<4x256xf32>, vector<4x256xf32>, vector<4x256xf32>, vector<4x256xf32> -> vector<4x4096xf32>
    %69 = tpu.concatenate %64, %65, %66, %67 in 1 : vector<4x256xf32>, vector<4x256xf32>, vector<4x256xf32>, vector<4x256xf32> -> vector<4x1024xf32>
    %70 = tpu.concatenate %68, %69 in 1 : vector<4x4096xf32>, vector<4x1024xf32> -> vector<4x5120xf32>
    %c0_44 = arith.constant 0 : index
    %c0_45 = arith.constant 0 : index
    %71 = vector.load %arg4[%c0_44, %c0_45] : memref<5120x256xf32, #tpu.memory_space<vmem>>, vector<5120x256xf32>
    %cst_46 = arith.constant dense<0.000000e+00> : vector<4x256xf32>
    %72 = tpu.matmul %70, %71, %cst_46 {dimension_numbers = #tpu.dot_dimension_numbers<[1], [0], [0], [1], [0, 0, 1, 1], [], []>} : vector<4x5120xf32>, vector<5120x256xf32>, vector<4x256xf32> -> vector<4x256xf32>
    %c0_47 = arith.constant 0 : index
    %c8_48 = arith.constant 8 : index
    %c0_49 = arith.constant 0 : index
    %73 = vector.load %arg2[%c0_47, %c8_48, %c0_49] : memref<1x32x128xf32, #tpu.memory_space<vmem>>, vector<1x16x128xf32>
    %74 = vector.shape_cast %73 : vector<1x16x128xf32> to vector<16x128xf32>
    %c0_50 = arith.constant 0 : index
    %c0_51 = arith.constant 0 : index
    %75 = vector.load %arg7[%c0_50, %c0_51] : memref<16x16xf32, #tpu.memory_space<vmem>>, vector<16x16xf32>
    %cst_52 = arith.constant dense<0.000000e+00> : vector<16x128xf32>
    %76 = tpu.matmul %75, %74, %cst_52 {dimension_numbers = #tpu.dot_dimension_numbers<[1], [0], [0], [1], [0, 0, 1, 1], [], []>} : vector<16x16xf32>, vector<16x128xf32>, vector<16x128xf32> -> vector<16x128xf32>
    %77 = vector.extract_strided_slice %76 {offsets = [0, 0], sizes = [4, 128], strides = [1, 1]} : vector<16x128xf32> to vector<4x128xf32>
    %78 = vector.extract_strided_slice %76 {offsets = [4, 0], sizes = [4, 128], strides = [1, 1]} : vector<16x128xf32> to vector<4x128xf32>
    %79 = arith.maximumf %77, %78 : vector<4x128xf32>
    %80 = vector.extract_strided_slice %76 {offsets = [8, 0], sizes = [4, 128], strides = [1, 1]} : vector<16x128xf32> to vector<4x128xf32>
    %81 = vector.extract_strided_slice %76 {offsets = [12, 0], sizes = [4, 128], strides = [1, 1]} : vector<16x128xf32> to vector<4x128xf32>
    %82 = arith.maximumf %80, %81 : vector<4x128xf32>
    %83 = arith.maximumf %79, %82 : vector<4x128xf32>
    %c0_53 = arith.constant 0 : index
    %c0_54 = arith.constant 0 : index
    %84 = vector.load %arg5[%c0_53, %c0_54] : memref<128x256xf32, #tpu.memory_space<vmem>>, vector<128x256xf32>
    %cst_55 = arith.constant dense<0.000000e+00> : vector<4x256xf32>
    %85 = tpu.matmul %83, %84, %cst_55 {dimension_numbers = #tpu.dot_dimension_numbers<[1], [0], [0], [1], [0, 0, 1, 1], [], []>} : vector<4x128xf32>, vector<128x256xf32>, vector<4x256xf32> -> vector<4x256xf32>
    %86 = arith.addf %72, %85 : vector<4x256xf32>
    %c0_56 = arith.constant 0 : index
    %c0_57 = arith.constant 0 : index
    %87 = vector.load %arg10[%c0_56, %c0_57] : memref<1x256xf32, #tpu.memory_space<vmem>>, vector<1x256xf32>
    %88 = vector.broadcast %87 : vector<1x256xf32> to vector<4x256xf32>
    %89 = arith.addf %86, %88 : vector<4x256xf32>
    %c0_58 = arith.constant 0 : index
    %c0_59 = arith.constant 0 : index
    %90 = vector.load %arg11[%c0_58, %c0_59] : memref<1x256xf32, #tpu.memory_space<vmem>>, vector<1x256xf32>
    %91 = vector.broadcast %90 : vector<1x256xf32> to vector<4x256xf32>
    %92 = arith.mulf %89, %91 : vector<4x256xf32>
    %c0_60 = arith.constant 0 : index
    %c0_61 = arith.constant 0 : index
    %93 = vector.load %arg12[%c0_60, %c0_61] : memref<1x256xf32, #tpu.memory_space<vmem>>, vector<1x256xf32>
    %94 = vector.broadcast %93 : vector<1x256xf32> to vector<4x256xf32>
    %95 = arith.addf %92, %94 : vector<4x256xf32>
    %cst_62 = arith.constant 0.000000e+00 : f32
    %96 = vector.broadcast %cst_62 : f32 to vector<4x256xf32>
    %97 = arith.maximumf %95, %96 : vector<4x256xf32>
    %cst_63 = arith.constant 0.000000e+00 : f32
    %98 = vector.broadcast %cst_63 : f32 to vector<8x256xf32>
    %c0_64 = arith.constant 0 : index
    %c0_65 = arith.constant 0 : index
    %c0_66 = arith.constant 0 : index
    %99 = vector.load %arg14[%c0_64, %c0_65, %c0_66] : memref<1x20x256xf32, #tpu.memory_space<vmem>>, vector<1x8x256xf32>
    %100 = vector.shape_cast %99 : vector<1x8x256xf32> to vector<8x256xf32>
    %101 = vector.shape_cast %98 : vector<8x256xf32> to vector<1x8x256xf32>
    tpu.vector_store %arg14[%c0_64, %c0_65, %c0_66], %101 {strides = array<i32>} : memref<1x20x256xf32, #tpu.memory_space<vmem>>, vector<1x8x256xf32>,
    %c0_67 = arith.constant 0 : index
    %c8_68 = arith.constant 8 : index
    %c0_69 = arith.constant 0 : index
    %102 = vector.load %arg14[%c0_67, %c8_68, %c0_69] : memref<1x20x256xf32, #tpu.memory_space<vmem>>, vector<1x4x256xf32>
    %103 = vector.shape_cast %102 : vector<1x4x256xf32> to vector<4x256xf32>
    %104 = vector.shape_cast %89 : vector<4x256xf32> to vector<1x4x256xf32>
    tpu.vector_store %arg14[%c0_67, %c8_68, %c0_69], %104 {strides = array<i32>} : memref<1x20x256xf32, #tpu.memory_space<vmem>>, vector<1x4x256xf32>,
    %c0_70 = arith.constant 0 : index
    %c12_71 = arith.constant 12 : index
    %c0_72 = arith.constant 0 : index
    %105 = vector.load %arg14[%c0_70, %c12_71, %c0_72] : memref<1x20x256xf32, #tpu.memory_space<vmem>>, vector<1x8x256xf32>
    %106 = vector.shape_cast %105 : vector<1x8x256xf32> to vector<8x256xf32>
    %107 = vector.shape_cast %98 : vector<8x256xf32> to vector<1x8x256xf32>
    tpu.vector_store %arg14[%c0_70, %c12_71, %c0_72], %107 {strides = array<i32>} : memref<1x20x256xf32, #tpu.memory_space<vmem>>, vector<1x8x256xf32>,
    %c0_73 = arith.constant 0 : index
    %c0_74 = arith.constant 0 : index
    %c0_75 = arith.constant 0 : index
    %108 = vector.load %arg13[%c0_73, %c0_74, %c0_75] : memref<1x20x256xf32, #tpu.memory_space<vmem>>, vector<1x8x256xf32>
    %109 = vector.shape_cast %108 : vector<1x8x256xf32> to vector<8x256xf32>
    %110 = vector.shape_cast %98 : vector<8x256xf32> to vector<1x8x256xf32>
    tpu.vector_store %arg13[%c0_73, %c0_74, %c0_75], %110 {strides = array<i32>} : memref<1x20x256xf32, #tpu.memory_space<vmem>>, vector<1x8x256xf32>,
    %c0_76 = arith.constant 0 : index
    %c8_77 = arith.constant 8 : index
    %c0_78 = arith.constant 0 : index
    %111 = vector.load %arg13[%c0_76, %c8_77, %c0_78] : memref<1x20x256xf32, #tpu.memory_space<vmem>>, vector<1x4x256xf32>
    %112 = vector.shape_cast %111 : vector<1x4x256xf32> to vector<4x256xf32>
    %113 = vector.shape_cast %97 : vector<4x256xf32> to vector<1x4x256xf32>
    tpu.vector_store %arg13[%c0_76, %c8_77, %c0_78], %113 {strides = array<i32>} : memref<1x20x256xf32, #tpu.memory_space<vmem>>, vector<1x4x256xf32>,
    %c0_79 = arith.constant 0 : index
    %c12_80 = arith.constant 12 : index
    %c0_81 = arith.constant 0 : index
    %114 = vector.load %arg13[%c0_79, %c12_80, %c0_81] : memref<1x20x256xf32, #tpu.memory_space<vmem>>, vector<1x8x256xf32>
    %115 = vector.shape_cast %114 : vector<1x8x256xf32> to vector<8x256xf32>
    %116 = vector.shape_cast %98 : vector<8x256xf32> to vector<1x8x256xf32>
    tpu.vector_store %arg13[%c0_79, %c12_80, %c0_81], %116 {strides = array<i32>} : memref<1x20x256xf32, #tpu.memory_space<vmem>>, vector<1x8x256xf32>,
    return
  }
  func.func @transform_0(%arg0: i32) -> (i32, i32, i32) {
    %c0_i32 = arith.constant 0 : i32
    %c0_i32_0 = arith.constant 0 : i32
    %c0_i32_1 = arith.constant 0 : i32
    return %arg0, %c0_i32, %c0_i32_0 : i32, i32, i32
  }
  func.func @transform_1(%arg0: i32) -> (i32, i32, i32) {
    %c0_i32 = arith.constant 0 : i32
    %c0_i32_0 = arith.constant 0 : i32
    %c0_i32_1 = arith.constant 0 : i32
    return %arg0, %c0_i32, %c0_i32_0 : i32, i32, i32
  }
  func.func @transform_2(%arg0: i32) -> (i32, i32) {
    %c0_i32 = arith.constant 0 : i32
    %c0_i32_0 = arith.constant 0 : i32
    %c0_i32_1 = arith.constant 0 : i32
    return %c0_i32, %c0_i32_0 : i32, i32
  }
  func.func @transform_3(%arg0: i32) -> (i32, i32) {
    %c0_i32 = arith.constant 0 : i32
    %c0_i32_0 = arith.constant 0 : i32
    %c0_i32_1 = arith.constant 0 : i32
    return %c0_i32, %c0_i32_0 : i32, i32
  }
  func.func @transform_4(%arg0: i32) -> (i32, i32) {
    %c0_i32 = arith.constant 0 : i32
    %c0_i32_0 = arith.constant 0 : i32
    %c0_i32_1 = arith.constant 0 : i32
    return %c0_i32, %c0_i32_0 : i32, i32
  }
  func.func @transform_5(%arg0: i32) -> (i32, i32) {
    %c0_i32 = arith.constant 0 : i32
    %c0_i32_0 = arith.constant 0 : i32
    %c0_i32_1 = arith.constant 0 : i32
    return %c0_i32, %c0_i32_0 : i32, i32
  }
  func.func @transform_6(%arg0: i32) -> (i32, i32) {
    %c0_i32 = arith.constant 0 : i32
    %c0_i32_0 = arith.constant 0 : i32
    %c0_i32_1 = arith.constant 0 : i32
    return %c0_i32, %c0_i32_0 : i32, i32
  }
  func.func @transform_7(%arg0: i32) -> (i32, i32) {
    %c0_i32 = arith.constant 0 : i32
    %c0_i32_0 = arith.constant 0 : i32
    %c0_i32_1 = arith.constant 0 : i32
    return %c0_i32, %c0_i32_0 : i32, i32
  }
  func.func @transform_8(%arg0: i32) -> (i32, i32) {
    %c0_i32 = arith.constant 0 : i32
    %c0_i32_0 = arith.constant 0 : i32
    %c0_i32_1 = arith.constant 0 : i32
    return %c0_i32, %c0_i32_0 : i32, i32
  }
  func.func @transform_9(%arg0: i32) -> (i32, i32) {
    %c0_i32 = arith.constant 0 : i32
    %c0_i32_0 = arith.constant 0 : i32
    %c0_i32_1 = arith.constant 0 : i32
    return %c0_i32, %c0_i32_0 : i32, i32
  }
  func.func @transform_10(%arg0: i32) -> (i32, i32) {
    %c0_i32 = arith.constant 0 : i32
    %c0_i32_0 = arith.constant 0 : i32
    %c0_i32_1 = arith.constant 0 : i32
    return %c0_i32, %c0_i32_0 : i32, i32
  }
  func.func @transform_11(%arg0: i32) -> (i32, i32) {
    %c0_i32 = arith.constant 0 : i32
    %c0_i32_0 = arith.constant 0 : i32
    %c0_i32_1 = arith.constant 0 : i32
    return %c0_i32, %c0_i32_0 : i32, i32
  }
  func.func @transform_12(%arg0: i32) -> (i32, i32, i32) {
    %c0_i32 = arith.constant 0 : i32
    %c0_i32_0 = arith.constant 0 : i32
    %c0_i32_1 = arith.constant 0 : i32
    return %arg0, %c0_i32, %c0_i32_0 : i32, i32, i32
  }
  func.func @transform_13(%arg0: i32) -> (i32, i32, i32) {
    %c0_i32 = arith.constant 0 : i32
    %c0_i32_0 = arith.constant 0 : i32
    %c0_i32_1 = arith.constant 0 : i32
    return %arg0, %c0_i32, %c0_i32_0 : i32, i32, i32
  }
}

</mosaic_0001>

<llo_original>
// kernel: stacked_residual_pallas.2
$region0: #{stacked_residual_pallas.2}
  #allocation0 [shape = 'u32[]', space=smem, size = 0x4, offset = 0x4, fixed_abs, tag = 'smem constant byte address 0x4 - core index']
  #allocation1 [shape = 'u32[144,128]{1,0:T(1,128)}', space=vmem, size = 0x12000, scoped, tag = 'internal scratch']
  %s0 = inlined_call_operand.vmem [shape: f32[2,80,128], index: 0, kind: input, shape index: {}, may-alias: {0,1}]
  %s1 = inlined_call_operand.vmem [shape: f32[2,80,128], index: 1, kind: input, shape index: {}, may-alias: {0,1}]
  %s2 = inlined_call_operand.vmem [shape: f32[2176,128], index: 2, kind: input, shape index: {}]
  %s3 = inlined_call_operand.vmem [shape: f32[2560,128], index: 3, kind: input, shape index: {}]
  %s4 = inlined_call_operand.vmem [shape: f32[128,128], index: 4, kind: input, shape index: {}]
  %s5 = inlined_call_operand.vmem [shape: f32[80,64], index: 5, kind: input, shape index: {}]
  %s6 = inlined_call_operand.vmem [shape: f32[64,64], index: 6, kind: input, shape index: {}]
  %s7 = inlined_call_operand.vmem [shape: f32[1,128], index: 7, kind: input, shape index: {}]
  %s8 = inlined_call_operand.vmem [shape: f32[1,128], index: 8, kind: input, shape index: {}]
  %s9 = inlined_call_operand.vmem [shape: f32[1,128], index: 9, kind: input, shape index: {}]
  %s10 = inlined_call_operand.vmem [shape: f32[1,128], index: 10, kind: input, shape index: {}]
  %s11 = inlined_call_operand.vmem [shape: f32[1,128], index: 11, kind: input, shape index: {}]
  %s12 = inlined_call_operand.vmem [shape: f32[2,32,128], index: 12, kind: output, shape index: {0}]
  %s13 = inlined_call_operand.vmem [shape: f32[2,32,128], index: 13, kind: output, shape index: {1}]
  %14 = xla_tuple %s12, %s13
  %s15 = sld [smem:[#allocation0]]
  $region89: #{stacked_residual_pallas.2} parent=0
    _
  %s17 = ssub.s32 1, %s15
  %s18 = scalar_select 0, %s17, %s15
  loop: start=0, step=1, limit=4
  $region2: #{stacked_residual_pallas.2} parent=0 // loop_pre_header
    _
  $region3: #{stacked_residual_pallas.2} parent=0 // loop_header
    %s20 = sphi 0, %s24
    %p21 = scmp.ge.s32.totalorder %s20, 4
    %s30 = sphi 0, %s32
    %s33 = sphi 0, %s30
    %s34 = sphi 0, %s33
    %s50 = sphi 0, %s34
    %s56 = sphi 0, %s58
    %s59 = sphi 0, %s56
    %s60 = sphi 0, %s59
    %s76 = sphi 0, %s60
    %s80 = sphi 0, %s80
    %s82 = sphi 0, %s80
    %s83 = sphi 0, %s82
    %s97 = sphi 0, %s83
    %s101 = sphi 0, %s101
    %s103 = sphi 0, %s101
    %s104 = sphi 0, %s103
    %s118 = sphi 0, %s104
    %s122 = sphi 0, %s122
    %s124 = sphi 0, %s122
    %s125 = sphi 0, %s124
    %s139 = sphi 0, %s125
    %s143 = sphi 0, %s143
    %s145 = sphi 0, %s143
    %s146 = sphi 0, %s145
    %s160 = sphi 0, %s146
    %s164 = sphi 0, %s164
    %s166 = sphi 0, %s164
    %s167 = sphi 0, %s166
    %s181 = sphi 0, %s167
    %s185 = sphi 0, %s185
    %s187 = sphi 0, %s185
    %s188 = sphi 0, %s187
    %s202 = sphi 0, %s188
    %s206 = sphi 0, %s206
    %s208 = sphi 0, %s206
    %s209 = sphi 0, %s208
    %s223 = sphi 0, %s209
    %s227 = sphi 0, %s227
    %s229 = sphi 0, %s227
    %s230 = sphi 0, %s229
    %s244 = sphi 0, %s230
    %s248 = sphi 0, %s248
    %s250 = sphi 0, %s248
    %s251 = sphi 0, %s250
    %s265 = sphi 0, %s251
    %s269 = sphi 0, %s269
    %s271 = sphi 0, %s269
    %s272 = sphi 0, %s271
    %s286 = sphi 0, %s272
    %s292 = sphi 0, %s294
    %s295 = sphi 0, %s292
    %s296 = sphi 0, %s295
    %s312 = sphi 0, %s296
    %s318 = sphi 0, %s320
    %s321 = sphi 0, %s318
    %s322 = sphi 0, %s321
    %s338 = sphi 0, %s322
  $region4: #{stacked_residual_pallas.2} parent=0 // loop_header_branch
    %23 = sbr.rel (%p21) target = $region8
  $region5: #{stacked_residual_pallas.2} parent=0 // loop_body
    %s25 = ssub.s32 %s20, 1
    %s26 = ssub.s32 %s20, 2
    %s27 = sadd.s32 %s20, 1
    %s28 = ssub.s32 %s20, %s27
    %p29 = scmp.eq.s32.totalorder %s28, 0
    %s31 = sadd.s32 %s30, 1
    %s32 = scalar_select %p29, %s30, %s31
    %p35 = pneg %p29
    %p36 = scmp.eq.s32.totalorder %s20, 1
    %p37 = por %p35, %p36
    %p38 = scmp.ne.s32.totalorder %s30, %s33
    %p39 = scmp.eq.s32.totalorder %s20, 0
    %p40 = por %p38, %p39
    %p41 = scmp.ne.s32.totalorder %s30, %s33
    %p42 = scmp.eq.s32.totalorder %s25, 1
    %p43 = por %p41, %p42
    %p44 = scmp.ne.s32.totalorder %s33, %s34
    %p45 = scmp.eq.s32.totalorder %s25, 0
    %p46 = por %p44, %p45
    %p47 = scmp.ne.s32.totalorder %s33, %s34
    %p48 = scmp.eq.s32.totalorder %s26, 1
    %p49 = por %p47, %p48
    %p51 = scmp.ne.s32.totalorder %s34, %s50
    %p52 = scmp.eq.s32.totalorder %s26, 0
    %p53 = por %p51, %p52
    %s54 = ssub.s32 %s20, %s27
    %p55 = scmp.eq.s32.totalorder %s54, 0
    %s57 = sadd.s32 %s56, 1
    %s58 = scalar_select %p55, %s56, %s57
    %p61 = pneg %p55
    %p62 = scmp.eq.s32.totalorder %s20, 1
    %p63 = por %p61, %p62
    %p64 = scmp.ne.s32.totalorder %s56, %s59
    %p65 = scmp.eq.s32.totalorder %s20, 0
    %p66 = por %p64, %p65
    %p67 = scmp.ne.s32.totalorder %s56, %s59
    %p68 = scmp.eq.s32.totalorder %s25, 1
    %p69 = por %p67, %p68
    %p70 = scmp.ne.s32.totalorder %s59, %s60
    %p71 = scmp.eq.s32.totalorder %s25, 0
    %p72 = por %p70, %p71
    %p73 = scmp.ne.s32.totalorder %s59, %s60
    %p74 = scmp.eq.s32.totalorder %s26, 1
    %p75 = por %p73, %p74
    %p77 = scmp.ne.s32.totalorder %s60, %s76
    %p78 = scmp.eq.s32.totalorder %s26, 0
    %p79 = por %p77, %p78
    %s81 = sadd.s32 %s80, 1
    %p84 = scmp.eq.s32.totalorder %s20, 1
    %p85 = scmp.ne.s32.totalorder %s80, %s82
    %p86 = scmp.eq.s32.totalorder %s20, 0
    %p87 = por %p85, %p86
    %p88 = scmp.ne.s32.totalorder %s80, %s82
    %p89 = scmp.eq.s32.totalorder %s25, 1
    %p90 = por %p88, %p89
    %p91 = scmp.ne.s32.totalorder %s82, %s83
    %p92 = scmp.eq.s32.totalorder %s25, 0
    %p93 = por %p91, %p92
    %p94 = scmp.ne.s32.totalorder %s82, %s83
    %p95 = scmp.eq.s32.totalorder %s26, 1
    %p96 = por %p94, %p95
    %p98 = scmp.ne.s32.totalorder %s83, %s97
    %p99 = scmp.eq.s32.totalorder %s26, 0
    %p100 = por %p98, %p99
    %s102 = sadd.s32 %s101, 1
    %p105 = scmp.eq.s32.totalorder %s20, 1
    %p106 = scmp.ne.s32.totalorder %s101, %s103
    %p107 = scmp.eq.s32.totalorder %s20, 0
    %p108 = por %p106, %p107
    %p109 = scmp.ne.s32.totalorder %s101, %s103
    %p110 = scmp.eq.s32.totalorder %s25, 1
    %p111 = por %p109, %p110
    %p112 = scmp.ne.s32.totalorder %s103, %s104
    %p113 = scmp.eq.s32.totalorder %s25, 0
    %p114 = por %p112, %p113
    %p115 = scmp.ne.s32.totalorder %s103, %s104
    %p116 = scmp.eq.s32.totalorder %s26, 1
    %p117 = por %p115, %p116
    %p119 = scmp.ne.s32.totalorder %s104, %s118
    %p120 = scmp.eq.s32.totalorder %s26, 0
    %p121 = por %p119, %p120
    %s123 = sadd.s32 %s122, 1
    %p126 = scmp.eq.s32.totalorder %s20, 1
    %p127 = scmp.ne.s32.totalorder %s122, %s124
    %p128 = scmp.eq.s32.totalorder %s20, 0
    %p129 = por %p127, %p128
    %p130 = scmp.ne.s32.totalorder %s122, %s124
    %p131 = scmp.eq.s32.totalorder %s25, 1
    %p132 = por %p130, %p131
    %p133 = scmp.ne.s32.totalorder %s124, %s125
    %p134 = scmp.eq.s32.totalorder %s25, 0
    %p135 = por %p133, %p134
    %p136 = scmp.ne.s32.totalorder %s124, %s125
    %p137 = scmp.eq.s32.totalorder %s26, 1
    %p138 = por %p136, %p137
    %p140 = scmp.ne.s32.totalorder %s125, %s139
    %p141 = scmp.eq.s32.totalorder %s26, 0
    %p142 = por %p140, %p141
    %s144 = sadd.s32 %s143, 1
    %p147 = scmp.eq.s32.totalorder %s20, 1
    %p148 = scmp.ne.s32.totalorder %s143, %s145
    %p149 = scmp.eq.s32.totalorder %s20, 0
    %p150 = por %p148, %p149
    %p151 = scmp.ne.s32.totalorder %s143, %s145
    %p152 = scmp.eq.s32.totalorder %s25, 1
    %p153 = por %p151, %p152
    %p154 = scmp.ne.s32.totalorder %s145, %s146
    %p155 = scmp.eq.s32.totalorder %s25, 0
    %p156 = por %p154, %p155
    %p157 = scmp.ne.s32.totalorder %s145, %s146
    %p158 = scmp.eq.s32.totalorder %s26, 1
    %p159 = por %p157, %p158
    %p161 = scmp.ne.s32.totalorder %s146, %s160
    %p162 = scmp.eq.s32.totalorder %s26, 0
    %p163 = por %p161, %p162
    %s165 = sadd.s32 %s164, 1
    %p168 = scmp.eq.s32.totalorder %s20, 1
    %p169 = scmp.ne.s32.totalorder %s164, %s166
    %p170 = scmp.eq.s32.totalorder %s20, 0
    %p171 = por %p169, %p170
    %p172 = scmp.ne.s32.totalorder %s164, %s166
    %p173 = scmp.eq.s32.totalorder %s25, 1
    %p174 = por %p172, %p173
    %p175 = scmp.ne.s32.totalorder %s166, %s167
    %p176 = scmp.eq.s32.totalorder %s25, 0
    %p177 = por %p175, %p176
    %p178 = scmp.ne.s32.totalorder %s166, %s167
    %p179 = scmp.eq.s32.totalorder %s26, 1
    %p180 = por %p178, %p179
    %p182 = scmp.ne.s32.totalorder %s167, %s181
    %p183 = scmp.eq.s32.totalorder %s26, 0
    %p184 = por %p182, %p183
    %s186 = sadd.s32 %s185, 1
    %p189 = scmp.eq.s32.totalorder %s20, 1
    %p190 = scmp.ne.s32.totalorder %s185, %s187
    %p191 = scmp.eq.s32.totalorder %s20, 0
    %p192 = por %p190, %p191
    %p193 = scmp.ne.s32.totalorder %s185, %s187
    %p194 = scmp.eq.s32.totalorder %s25, 1
    %p195 = por %p193, %p194
    %p196 = scmp.ne.s32.totalorder %s187, %s188
    %p197 = scmp.eq.s32.totalorder %s25, 0
    %p198 = por %p196, %p197
    %p199 = scmp.ne.s32.totalorder %s187, %s188
    %p200 = scmp.eq.s32.totalorder %s26, 1
    %p201 = por %p199, %p200
    %p203 = scmp.ne.s32.totalorder %s188, %s202
    %p204 = scmp.eq.s32.totalorder %s26, 0
    %p205 = por %p203, %p204
    %s207 = sadd.s32 %s206, 1
    %p210 = scmp.eq.s32.totalorder %s20, 1
    %p211 = scmp.ne.s32.totalorder %s206, %s208
    %p212 = scmp.eq.s32.totalorder %s20, 0
    %p213 = por %p211, %p212
    %p214 = scmp.ne.s32.totalorder %s206, %s208
    %p215 = scmp.eq.s32.totalorder %s25, 1
    %p216 = por %p214, %p215
    %p217 = scmp.ne.s32.totalorder %s208, %s209
    %p218 = scmp.eq.s32.totalorder %s25, 0
    %p219 = por %p217, %p218
    %p220 = scmp.ne.s32.totalorder %s208, %s209
    %p221 = scmp.eq.s32.totalorder %s26, 1
    %p222 = por %p220, %p221
    %p224 = scmp.ne.s32.totalorder %s209, %s223
    %p225 = scmp.eq.s32.totalorder %s26, 0
    %p226 = por %p224, %p225
    %s228 = sadd.s32 %s227, 1
    %p231 = scmp.eq.s32.totalorder %s20, 1
    %p232 = scmp.ne.s32.totalorder %s227, %s229
    %p233 = scmp.eq.s32.totalorder %s20, 0
    %p234 = por %p232, %p233
    %p235 = scmp.ne.s32.totalorder %s227, %s229
    %p236 = scmp.eq.s32.totalorder %s25, 1
    %p237 = por %p235, %p236
    %p238 = scmp.ne.s32.totalorder %s229, %s230
    %p239 = scmp.eq.s32.totalorder %s25, 0
    %p240 = por %p238, %p239
    %p241 = scmp.ne.s32.totalorder %s229, %s230
    %p242 = scmp.eq.s32.totalorder %s26, 1
    %p243 = por %p241, %p242
    %p245 = scmp.ne.s32.totalorder %s230, %s244
    %p246 = scmp.eq.s32.totalorder %s26, 0
    %p247 = por %p245, %p246
    %s249 = sadd.s32 %s248, 1
    %p252 = scmp.eq.s32.totalorder %s20, 1
    %p253 = scmp.ne.s32.totalorder %s248, %s250
    %p254 = scmp.eq.s32.totalorder %s20, 0
    %p255 = por %p253, %p254
    %p256 = scmp.ne.s32.totalorder %s248, %s250
    %p257 = scmp.eq.s32.totalorder %s25, 1
    %p258 = por %p256, %p257
    %p259 = scmp.ne.s32.totalorder %s250, %s251
    %p260 = scmp.eq.s32.totalorder %s25, 0
    %p261 = por %p259, %p260
    %p262 = scmp.ne.s32.totalorder %s250, %s251
    %p263 = scmp.eq.s32.totalorder %s26, 1
    %p264 = por %p262, %p263
    %p266 = scmp.ne.s32.totalorder %s251, %s265
    %p267 = scmp.eq.s32.totalorder %s26, 0
    %p268 = por %p266, %p267
    %s270 = sadd.s32 %s269, 1
    %p273 = scmp.eq.s32.totalorder %s20, 1
    %p274 = scmp.ne.s32.totalorder %s269, %s271
    %p275 = scmp.eq.s32.totalorder %s20, 0
    %p276 = por %p274, %p275
    %p277 = scmp.ne.s32.totalorder %s269, %s271
    %p278 = scmp.eq.s32.totalorder %s25, 1
    %p279 = por %p277, %p278
    %p280 = scmp.ne.s32.totalorder %s271, %s272
    %p281 = scmp.eq.s32.totalorder %s25, 0
    %p282 = por %p280, %p281
    %p283 = scmp.ne.s32.totalorder %s271, %s272
    %p284 = scmp.eq.s32.totalorder %s26, 1
    %p285 = por %p283, %p284
    %p287 = scmp.ne.s32.totalorder %s272, %s286
    %p288 = scmp.eq.s32.totalorder %s26, 0
    %p289 = por %p287, %p288
    %s290 = ssub.s32 %s20, %s27
    %p291 = scmp.eq.s32.totalorder %s290, 0
    %s293 = sadd.s32 %s292, 1
    %s294 = scalar_select %p291, %s292, %s293
    %p297 = pneg %p291
    %p298 = scmp.eq.s32.totalorder %s20, 1
    %p299 = por %p297, %p298
    %p300 = scmp.ne.s32.totalorder %s292, %s295
    %p301 = scmp.eq.s32.totalorder %s20, 0
    %p302 = por %p300, %p301
    %p303 = scmp.ne.s32.totalorder %s292, %s295
    %p304 = scmp.eq.s32.totalorder %s25, 1
    %p305 = por %p303, %p304
    %p306 = scmp.ne.s32.totalorder %s295, %s296
    %p307 = scmp.eq.s32.totalorder %s25, 0
    %p308 = por %p306, %p307
    %p309 = scmp.ne.s32.totalorder %s295, %s296
    %p310 = scmp.eq.s32.totalorder %s26, 1
    %p311 = por %p309, %p310
    %p313 = scmp.ne.s32.totalorder %s296, %s312
    %p314 = scmp.eq.s32.totalorder %s26, 0
    %p315 = por %p313, %p314
    %s316 = ssub.s32 %s20, %s27
    %p317 = scmp.eq.s32.totalorder %s316, 0
    %s319 = sadd.s32 %s318, 1
    %s320 = scalar_select %p317, %s318, %s319
    %p323 = pneg %p317
    %p324 = scmp.eq.s32.totalorder %s20, 1
    %p325 = por %p323, %p324
    %p326 = scmp.ne.s32.totalorder %s318, %s321
    %p327 = scmp.eq.s32.totalorder %s20, 0
    %p328 = por %p326, %p327
    %p329 = scmp.ne.s32.totalorder %s318, %s321
    %p330 = scmp.eq.s32.totalorder %s25, 1
    %p331 = por %p329, %p330
    %p332 = scmp.ne.s32.totalorder %s321, %s322
    %p333 = scmp.eq.s32.totalorder %s25, 0
    %p334 = por %p332, %p333
    %p335 = scmp.ne.s32.totalorder %s321, %s322
    %p336 = scmp.eq.s32.totalorder %s26, 1
    %p337 = por %p335, %p336
    %p339 = scmp.ne.s32.totalorder %s322, %s338
    %p340 = scmp.eq.s32.totalorder %s26, 0
    %p341 = por %p339, %p340
    %p342 = scmp.le.s32.totalorder 1, %s20
    %p343 = scmp.lt.s32.totalorder %s20, 3
    %p344 = pnand %p342, %p343
    %p345 = pneg %p344
    // Predicated region
    $region9: #{stacked_residual_pallas.2} parent=5 // pred_check
      _
    $region10: #{stacked_residual_pallas.2} parent=5 // pred_check_branch
      %347 = sbr.rel (%p344) target = $region12
    $region11: #{stacked_residual_pallas.2} parent=5 // pred_region
      %s348 = ssub.s32 %s20, 1
      // Predicated region
      $region13: #{stacked_residual_pallas.2} parent=11 // pred_check
        %p349 = pneg %p93
      $region14: #{stacked_residual_pallas.2} parent=11 // pred_check_branch
        %351 = sbr.rel (%p349) target = $region16
      $region15: #{stacked_residual_pallas.2} parent=11 // pred_region
        _
      $region16: #{stacked_residual_pallas.2} parent=11 // pred_fallthru
        _
      // Predicated region
      $region17: #{stacked_residual_pallas.2} parent=11 // pred_check
        %p352 = pneg %p114
      $region18: #{stacked_residual_pallas.2} parent=11 // pred_check_branch
        %354 = sbr.rel (%p352) target = $region20
      $region19: #{stacked_residual_pallas.2} parent=11 // pred_region
        _
      $region20: #{stacked_residual_pallas.2} parent=11 // pred_fallthru
        _
      // Predicated region
      $region21: #{stacked_residual_pallas.2} parent=11 // pred_check
        %p355 = pneg %p135
      $region22: #{stacked_residual_pallas.2} parent=11 // pred_check_branch
        %357 = sbr.rel (%p355) target = $region24
      $region23: #{stacked_residual_pallas.2} parent=11 // pred_region
        _
      $region24: #{stacked_residual_pallas.2} parent=11 // pred_fallthru
        _
      // Predicated region
      $region25: #{stacked_residual_pallas.2} parent=11 // pred_check
        %p358 = pneg %p156
      $region26: #{stacked_residual_pallas.2} parent=11 // pred_check_branch
        %360 = sbr.rel (%p358) target = $region28
      $region27: #{stacked_residual_pallas.2} parent=11 // pred_region
        _
      $region28: #{stacked_residual_pallas.2} parent=11 // pred_fallthru
        _
      // Predicated region
      $region29: #{stacked_residual_pallas.2} parent=11 // pred_check
        %p361 = pneg %p177
      $region30: #{stacked_residual_pallas.2} parent=11 // pred_check_branch
        %363 = sbr.rel (%p361) target = $region32
      $region31: #{stacked_residual_pallas.2} parent=11 // pred_region
        _
      $region32: #{stacked_residual_pallas.2} parent=11 // pred_fallthru
        _
      // Predicated region
      $region33: #{stacked_residual_pallas.2} parent=11 // pred_check
        %p364 = pneg %p198
      $region34: #{stacked_residual_pallas.2} parent=11 // pred_check_branch
        %366 = sbr.rel (%p364) target = $region36
      $region35: #{stacked_residual_pallas.2} parent=11 // pred_region
        _
      $region36: #{stacked_residual_pallas.2} parent=11 // pred_fallthru
        _
      // Predicated region
      $region37: #{stacked_residual_pallas.2} parent=11 // pred_check
        %p367 = pneg %p219
      $region38: #{stacked_residual_pallas.2} parent=11 // pred_check_branch
        %369 = sbr.rel (%p367) target = $region40
      $region39: #{stacked_residual_pallas.2} parent=11 // pred_region
        _
      $region40: #{stacked_residual_pallas.2} parent=11 // pred_fallthru
        _
      // Predicated region
      $region41: #{stacked_residual_pallas.2} parent=11 // pred_check
        %p370 = pneg %p240
      $region42: #{stacked_residual_pallas.2} parent=11 // pred_check_branch
        %372 = sbr.rel (%p370) target = $region44
      $region43: #{stacked_residual_pallas.2} parent=11 // pred_region
        _
      $region44: #{stacked_residual_pallas.2} parent=11 // pred_fallthru
        _
      // Predicated region
      $region45: #{stacked_residual_pallas.2} parent=11 // pred_check
        %p373 = pneg %p261
      $region46: #{stacked_residual_pallas.2} parent=11 // pred_check_branch
        %375 = sbr.rel (%p373) target = $region48
      $region47: #{stacked_residual_pallas.2} parent=11 // pred_region
        _
      $region48: #{stacked_residual_pallas.2} parent=11 // pred_fallthru
        _
      // Predicated region
      $region49: #{stacked_residual_pallas.2} parent=11 // pred_check
        %p376 = pneg %p282
      $region50: #{stacked_residual_pallas.2} parent=11 // pred_check_branch
        %378 = sbr.rel (%p376) target = $region52
      $region51: #{stacked_residual_pallas.2} parent=11 // pred_region
        _
      $region52: #{stacked_residual_pallas.2} parent=11 // pred_fallthru
        _
    $region12: #{stacked_residual_pallas.2} parent=5 // pred_fallthru
      _
    %p379 = scmp.lt.s32.totalorder %s20, 2
    // Predicated region
    $region53: #{stacked_residual_pallas.2} parent=5 // pred_check
      %p380 = pneg %p379
    $region54: #{stacked_residual_pallas.2} parent=5 // pred_check_branch
      %382 = sbr.rel (%p380) target = $region56
    $region55: #{stacked_residual_pallas.2} parent=5 // pred_region
      // Predicated region
      $region57: #{stacked_residual_pallas.2} parent=55 // pred_check
        %p383 = pneg %p40
      $region58: #{stacked_residual_pallas.2} parent=55 // pred_check_branch
        %385 = sbr.rel (%p383) target = $region60
      $region59: #{stacked_residual_pallas.2} parent=55 // pred_region
        %p386 = scmp.lt.s32.totalorder %s20, 1
        %s387 = scalar_select %p386, %s20, 1
        %s388 = smul.addr %s387, 10
        %s389 = smul.addr %s388, 8
        %s390 = scalar_lea.vmem %s0, %s389
      $region60: #{stacked_residual_pallas.2} parent=55 // pred_fallthru
        _
      // Predicated region
      $region61: #{stacked_residual_pallas.2} parent=55 // pred_check
        %p391 = pneg %p66
      $region62: #{stacked_residual_pallas.2} parent=55 // pred_check_branch
        %393 = sbr.rel (%p391) target = $region64
      $region63: #{stacked_residual_pallas.2} parent=55 // pred_region
        %p394 = scmp.lt.s32.totalorder %s20, 1
        %s395 = scalar_select %p394, %s20, 1
        %s396 = smul.addr %s395, 10
        %s397 = smul.addr %s396, 8
        %s398 = scalar_lea.vmem %s1, %s397
      $region64: #{stacked_residual_pallas.2} parent=55 // pred_fallthru
        _
    $region56: #{stacked_residual_pallas.2} parent=5 // pred_fallthru
      _
    %p399 = scmp.le.s32.totalorder 1, %s20
    %p400 = scmp.lt.s32.totalorder %s20, 3
    %p401 = pnand %p399, %p400
    %p402 = pneg %p401
    // Predicated region
    $region65: #{stacked_residual_pallas.2} parent=5 // pred_check
      _
    $region66: #{stacked_residual_pallas.2} parent=5 // pred_check_branch
      %404 = sbr.rel (%p401) target = $region68
    $region67: #{stacked_residual_pallas.2} parent=5 // pred_region
      %s405 = ssub.s32 %s20, 1
      %p406 = scmp.lt.s32.totalorder %s25, 1
      %s407 = scalar_select %p406, %s25, 1
      %s408 = smul.addr %s407, 10
      %s409 = smul.addr %s408, 8
      %s410 = scalar_lea.vmem %s0, %s409
      %p411 = pneg %p46
      %p412 = pneg %p43
      %p413 = scmp.lt.s32.totalorder %s25, 1
      %s414 = scalar_select %p413, %s25, 1
      %s415 = smul.addr %s414, 10
      %s416 = smul.addr %s415, 8
      %s417 = scalar_lea.vmem %s1, %s416
      %p418 = pneg %p72
      %p419 = pneg %p69
      %p420 = pneg %p93
      %p421 = pneg %p90
      %p422 = pneg %p114
      %p423 = pneg %p111
      %p424 = pneg %p135
      %p425 = pneg %p132
      %p426 = pneg %p156
      %p427 = pneg %p153
      %p428 = pneg %p177
      %p429 = pneg %p174
      %p430 = pneg %p198
      %p431 = pneg %p195
      %p432 = pneg %p219
      %p433 = pneg %p216
      %p434 = pneg %p240
      %p435 = pneg %p237
      %p436 = pneg %p261
      %p437 = pneg %p258
      %p438 = pneg %p282
      %p439 = pneg %p279
      %p440 = pneg %p308
      %p441 = pneg %p305
      %p442 = scmp.lt.s32.totalorder %s25, 1
      %s443 = scalar_select %p442, %s25, 1
      %s444 = smul.addr %s443, 4
      %s445 = smul.addr %s444, 8
      %s446 = scalar_lea.vmem %s12, %s445
      %p447 = pneg %p334
      %p448 = pneg %p331
      %p449 = scmp.lt.s32.totalorder %s25, 1
      %s450 = scalar_select %p449, %s25, 1
      %s451 = smul.addr %s450, 4
      %s452 = smul.addr %s451, 8
      %s453 = scalar_lea.vmem %s13, %s452
      %p454 = scmp.lt.s32.totalorder %s25, 1
      %s455 = scalar_select %p454, %s25, 1
      %s456 = smul.addr %s455, 10
      %s457 = smul.addr %s456, 8
      %s458 = scalar_lea.vmem %s0, %s457
      %p459 = scmp.lt.s32.totalorder %s25, 1
      %s460 = scalar_select %p459, %s25, 1
      %s461 = smul.addr %s460, 10
      %s462 = smul.addr %s461, 8
      %s463 = scalar_lea.vmem %s1, %s462
      %p464 = scmp.lt.s32.totalorder %s25, 1
      %s465 = scalar_select %p464, %s25, 1
      %s466 = smul.addr %s465, 4
      %s467 = smul.addr %s466, 8
      %s468 = scalar_lea.vmem %s12, %s467
      %p469 = scmp.lt.s32.totalorder %s25, 1
      %s470 = scalar_select %p469, %s25, 1
      %s471 = smul.addr %s470, 4
      %s472 = smul.addr %s471, 8
      %s473 = scalar_lea.vmem %s13, %s472
      %v474 = vld [vmem:[%s458] sm:$0xff]
      %v475 = vld [vmem:[%s458 + $0x8] sm:$0xff]
      %v476 = vld [vmem:[%s458 + $0x10] sm:$0xff]
      %v477 = vld [vmem:[%s458 + $0x18] sm:$0xff]
      %v478 = vld [vmem:[%s458 + $0x20] sm:$0xff]
      %v479 = vld [vmem:[%s458 + $0x28] sm:$0xff]
      %v480 = vld [vmem:[%s458 + $0x30] sm:$0xff]
      %v481 = vld [vmem:[%s458 + $0x38] sm:$0xff]
      %v482 = vld [vmem:[%s458 + $0x1] sm:$0xff]
      %v483 = vld [vmem:[%s458 + $0x9] sm:$0xff]
      %v484 = vld [vmem:[%s458 + $0x11] sm:$0xff]
      %v485 = vld [vmem:[%s458 + $0x19] sm:$0xff]
      %v486 = vld [vmem:[%s458 + $0x21] sm:$0xff]
      %v487 = vld [vmem:[%s458 + $0x29] sm:$0xff]
      %v488 = vld [vmem:[%s458 + $0x31] sm:$0xff]
      %v489 = vld [vmem:[%s458 + $0x39] sm:$0xff]
      %v490 = vld [vmem:[%s458 + $0x2] sm:$0xff]
      %v491 = vld [vmem:[%s458 + $0xa] sm:$0xff]
      %v492 = vld [vmem:[%s458 + $0x12] sm:$0xff]
      %v493 = vld [vmem:[%s458 + $0x1a] sm:$0xff]
      %v494 = vld [vmem:[%s458 + $0x22] sm:$0xff]
      %v495 = vld [vmem:[%s458 + $0x2a] sm:$0xff]
      %v496 = vld [vmem:[%s458 + $0x32] sm:$0xff]
      %v497 = vld [vmem:[%s458 + $0x3a] sm:$0xff]
      %v498 = vld [vmem:[%s458 + $0x3] sm:$0xff]
      %v499 = vld [vmem:[%s458 + $0xb] sm:$0xff]
      %v500 = vld [vmem:[%s458 + $0x13] sm:$0xff]
      %v501 = vld [vmem:[%s458 + $0x1b] sm:$0xff]
      %v502 = vld [vmem:[%s458 + $0x23] sm:$0xff]
      %v503 = vld [vmem:[%s458 + $0x2b] sm:$0xff]
      %v504 = vld [vmem:[%s458 + $0x33] sm:$0xff]
      %v505 = vld [vmem:[%s458 + $0x3b] sm:$0xff]
      %v506 = vld [vmem:[%s458 + $0x4] sm:$0xff]
      %v507 = vld [vmem:[%s458 + $0xc] sm:$0xff]
      %v508 = vld [vmem:[%s458 + $0x14] sm:$0xff]
      %v509 = vld [vmem:[%s458 + $0x1c] sm:$0xff]
      %v510 = vld [vmem:[%s458 + $0x24] sm:$0xff]
      %v511 = vld [vmem:[%s458 + $0x2c] sm:$0xff]
      %v512 = vld [vmem:[%s458 + $0x34] sm:$0xff]
      %v513 = vld [vmem:[%s458 + $0x3c] sm:$0xff]
      %v514 = vld [vmem:[%s458 + $0x5] sm:$0xff]
      %v515 = vld [vmem:[%s458 + $0xd] sm:$0xff]
      %v516 = vld [vmem:[%s458 + $0x15] sm:$0xff]
      %v517 = vld [vmem:[%s458 + $0x1d] sm:$0xff]
      %v518 = vld [vmem:[%s458 + $0x25] sm:$0xff]
      %v519 = vld [vmem:[%s458 + $0x2d] sm:$0xff]
      %v520 = vld [vmem:[%s458 + $0x35] sm:$0xff]
      %v521 = vld [vmem:[%s458 + $0x3d] sm:$0xff]
      %v522 = vld [vmem:[%s458 + $0x6] sm:$0xff]
      %v523 = vld [vmem:[%s458 + $0xe] sm:$0xff]
      %v524 = vld [vmem:[%s458 + $0x16] sm:$0xff]
      %v525 = vld [vmem:[%s458 + $0x1e] sm:$0xff]
      %v526 = vld [vmem:[%s458 + $0x26] sm:$0xff]
      %v527 = vld [vmem:[%s458 + $0x2e] sm:$0xff]
      %v528 = vld [vmem:[%s458 + $0x36] sm:$0xff]
      %v529 = vld [vmem:[%s458 + $0x3e] sm:$0xff]
      %v530 = vld [vmem:[%s458 + $0x7] sm:$0xff]
      %v531 = vld [vmem:[%s458 + $0xf] sm:$0xff]
      %v532 = vld [vmem:[%s458 + $0x17] sm:$0xff]
      %v533 = vld [vmem:[%s458 + $0x1f] sm:$0xff]
      %v534 = vld [vmem:[%s458 + $0x27] sm:$0xff]
      %v535 = vld [vmem:[%s458 + $0x2f] sm:$0xff]
      %v536 = vld [vmem:[%s458 + $0x37] sm:$0xff]
      %v537 = vld [vmem:[%s458 + $0x3f] sm:$0xff]
      %v538 = vld [vmem:[%s458 + $0x40] sm:$0xff]
      %v539 = vld [vmem:[%s458 + $0x41] sm:$0xff]
      %v540 = vld [vmem:[%s458 + $0x42] sm:$0xff]
      %v541 = vld [vmem:[%s458 + $0x43] sm:$0xff]
      %v542 = vld [vmem:[%s458 + $0x44] sm:$0xff]
      %v543 = vld [vmem:[%s458 + $0x45] sm:$0xff]
      %v544 = vld [vmem:[%s458 + $0x46] sm:$0xff]
      %v545 = vld [vmem:[%s458 + $0x47] sm:$0xff]
      %v546 = vld [vmem:[%s458 + $0x10] sm:$0xff]
      %v547 = vld [vmem:[%s458 + $0x18] sm:$0xff]
      %v548 = vld [vmem:[%s458 + $0x20] sm:$0xff]
      %v549 = vld [vmem:[%s458 + $0x28] sm:$0xff]
      %v550 = vld [vmem:[%s458 + $0x30] sm:$0xff]
      %v551 = vld [vmem:[%s458 + $0x38] sm:$0xff]
      %v552 = vld [vmem:[%s458 + $0x40] sm:$0xff]
      %v553 = vld [vmem:[%s458 + $0x48] sm:$0xff]
      %v554 = vld [vmem:[%s2] sm:$0xff]
      %v555 = vld [vmem:[%s2 + $0x8] sm:$0xff]
      %v556 = vld [vmem:[%s2 + $0x10] sm:$0xff]
      %v557 = vld [vmem:[%s2 + $0x18] sm:$0xff]
      %v558 = vld [vmem:[%s2 + $0x20] sm:$0xff]
      %v559 = vld [vmem:[%s2 + $0x28] sm:$0xff]
      %v560 = vld [vmem:[%s2 + $0x30] sm:$0xff]
      %v561 = vld [vmem:[%s2 + $0x38] sm:$0xff]
      %v562 = vld [vmem:[%s2 + $0x40] sm:$0xff]
      %v563 = vld [vmem:[%s2 + $0x48] sm:$0xff]
      %v564 = vld [vmem:[%s2 + $0x50] sm:$0xff]
      %v565 = vld [vmem:[%s2 + $0x58] sm:$0xff]
      %v566 = vld [vmem:[%s2 + $0x60] sm:$0xff]
      %v567 = vld [vmem:[%s2 + $0x68] sm:$0xff]
      %v568 = vld [vmem:[%s2 + $0x70] sm:$0xff]
      %v569 = vld [vmem:[%s2 + $0x78] sm:$0xff]
      %v570 = vld [vmem:[%s2 + $0x80] sm:$0xff]
      %v571 = vld [vmem:[%s2 + $0x88] sm:$0xff]
      %v572 = vld [vmem:[%s2 + $0x90] sm:$0xff]
      %v573 = vld [vmem:[%s2 + $0x98] sm:$0xff]
      %v574 = vld [vmem:[%s2 + $0xa0] sm:$0xff]
      %v575 = vld [vmem:[%s2 + $0xa8] sm:$0xff]
      %v576 = vld [vmem:[%s2 + $0xb0] sm:$0xff]
      %v577 = vld [vmem:[%s2 + $0xb8] sm:$0xff]
      %v578 = vld [vmem:[%s2 + $0xc0] sm:$0xff]
      %v579 = vld [vmem:[%s2 + $0xc8] sm:$0xff]
      %v580 = vld [vmem:[%s2 + $0xd0] sm:$0xff]
      %v581 = vld [vmem:[%s2 + $0xd8] sm:$0xff]
      %v582 = vld [vmem:[%s2 + $0xe0] sm:$0xff]
      %v583 = vld [vmem:[%s2 + $0xe8] sm:$0xff]
      %v584 = vld [vmem:[%s2 + $0xf0] sm:$0xff]
      %v585 = vld [vmem:[%s2 + $0xf8] sm:$0xff]
      %v586 = vld [vmem:[%s2 + $0x100] sm:$0xff]
      %v587 = vld [vmem:[%s2 + $0x108] sm:$0xff]
      %v588 = vld [vmem:[%s2 + $0x110] sm:$0xff]
      %v589 = vld [vmem:[%s2 + $0x118] sm:$0xff]
      %v590 = vld [vmem:[%s2 + $0x120] sm:$0xff]
      %v591 = vld [vmem:[%s2 + $0x128] sm:$0xff]
      %v592 = vld [vmem:[%s2 + $0x130] sm:$0xff]
      %v593 = vld [vmem:[%s2 + $0x138] sm:$0xff]
      %v594 = vld [vmem:[%s2 + $0x140] sm:$0xff]
      %v595 = vld [vmem:[%s2 + $0x148] sm:$0xff]
      %v596 = vld [vmem:[%s2 + $0x150] sm:$0xff]
      %v597 = vld [vmem:[%s2 + $0x158] sm:$0xff]
      %v598 = vld [vmem:[%s2 + $0x160] sm:$0xff]
      %v599 = vld [vmem:[%s2 + $0x168] sm:$0xff]
      %v600 = vld [vmem:[%s2 + $0x170] sm:$0xff]
      %v601 = vld [vmem:[%s2 + $0x178] sm:$0xff]
      %v602 = vld [vmem:[%s2 + $0x180] sm:$0xff]
      %v603 = vld [vmem:[%s2 + $0x188] sm:$0xff]
      %v604 = vld [vmem:[%s2 + $0x190] sm:$0xff]
      %v605 = vld [vmem:[%s2 + $0x198] sm:$0xff]
      %v606 = vld [vmem:[%s2 + $0x1a0] sm:$0xff]
      %v607 = vld [vmem:[%s2 + $0x1a8] sm:$0xff]
      %v608 = vld [vmem:[%s2 + $0x1b0] sm:$0xff]
      %v609 = vld [vmem:[%s2 + $0x1b8] sm:$0xff]
      %v610 = vld [vmem:[%s2 + $0x1c0] sm:$0xff]
      %v611 = vld [vmem:[%s2 + $0x1c8] sm:$0xff]
      %v612 = vld [vmem:[%s2 + $0x1d0] sm:$0xff]
      %v613 = vld [vmem:[%s2 + $0x1d8] sm:$0xff]
      %v614 = vld [vmem:[%s2 + $0x1e0] sm:$0xff]
      %v615 = vld [vmem:[%s2 + $0x1e8] sm:$0xff]
      %v616 = vld [vmem:[%s2 + $0x1f0] sm:$0xff]
      %v617 = vld [vmem:[%s2 + $0x1f8] sm:$0xff]
      %v618 = vld [vmem:[%s2 + $0x200] sm:$0xff]
      %v619 = vld [vmem:[%s2 + $0x208] sm:$0xff]
      %v620 = vld [vmem:[%s2 + $0x210] sm:$0xff]
      %v621 = vld [vmem:[%s2 + $0x218] sm:$0xff]
      %v622 = vld [vmem:[%s2 + $0x220] sm:$0xff]
      %v623 = vld [vmem:[%s2 + $0x228] sm:$0xff]
      %v624 = vld [vmem:[%s2 + $0x230] sm:$0xff]
      %v625 = vld [vmem:[%s2 + $0x238] sm:$0xff]
      %v626 = vld [vmem:[%s2 + $0x240] sm:$0xff]
      %v627 = vld [vmem:[%s2 + $0x248] sm:$0xff]
      %v628 = vld [vmem:[%s2 + $0x250] sm:$0xff]
      %v629 = vld [vmem:[%s2 + $0x258] sm:$0xff]
      %v630 = vld [vmem:[%s2 + $0x260] sm:$0xff]
      %v631 = vld [vmem:[%s2 + $0x268] sm:$0xff]
      %v632 = vld [vmem:[%s2 + $0x270] sm:$0xff]
      %v633 = vld [vmem:[%s2 + $0x278] sm:$0xff]
      %v634 = vld [vmem:[%s2 + $0x280] sm:$0xff]
      %v635 = vld [vmem:[%s2 + $0x288] sm:$0xff]
      %v636 = vld [vmem:[%s2 + $0x290] sm:$0xff]
      %v637 = vld [vmem:[%s2 + $0x298] sm:$0xff]
      %v638 = vld [vmem:[%s2 + $0x2a0] sm:$0xff]
      %v639 = vld [vmem:[%s2 + $0x2a8] sm:$0xff]
      %v640 = vld [vmem:[%s2 + $0x2b0] sm:$0xff]
      %v641 = vld [vmem:[%s2 + $0x2b8] sm:$0xff]
      %v642 = vld [vmem:[%s2 + $0x2c0] sm:$0xff]
      %v643 = vld [vmem:[%s2 + $0x2c8] sm:$0xff]
      %v644 = vld [vmem:[%s2 + $0x2d0] sm:$0xff]
      %v645 = vld [vmem:[%s2 + $0x2d8] sm:$0xff]
      %v646 = vld [vmem:[%s2 + $0x2e0] sm:$0xff]
      %v647 = vld [vmem:[%s2 + $0x2e8] sm:$0xff]
      %v648 = vld [vmem:[%s2 + $0x2f0] sm:$0xff]
      %v649 = vld [vmem:[%s2 + $0x2f8] sm:$0xff]
      %v650 = vld [vmem:[%s2 + $0x300] sm:$0xff]
      %v651 = vld [vmem:[%s2 + $0x308] sm:$0xff]
      %v652 = vld [vmem:[%s2 + $0x310] sm:$0xff]
      %v653 = vld [vmem:[%s2 + $0x318] sm:$0xff]
      %v654 = vld [vmem:[%s2 + $0x320] sm:$0xff]
      %v655 = vld [vmem:[%s2 + $0x328] sm:$0xff]
      %v656 = vld [vmem:[%s2 + $0x330] sm:$0xff]
      %v657 = vld [vmem:[%s2 + $0x338] sm:$0xff]
      %v658 = vld [vmem:[%s2 + $0x340] sm:$0xff]
      %v659 = vld [vmem:[%s2 + $0x348] sm:$0xff]
      %v660 = vld [vmem:[%s2 + $0x350] sm:$0xff]
      %v661 = vld [vmem:[%s2 + $0x358] sm:$0xff]
      %v662 = vld [vmem:[%s2 + $0x360] sm:$0xff]
      %v663 = vld [vmem:[%s2 + $0x368] sm:$0xff]
      %v664 = vld [vmem:[%s2 + $0x370] sm:$0xff]
      %v665 = vld [vmem:[%s2 + $0x378] sm:$0xff]
      %v666 = vld [vmem:[%s2 + $0x380] sm:$0xff]
      %v667 = vld [vmem:[%s2 + $0x388] sm:$0xff]
      %v668 = vld [vmem:[%s2 + $0x390] sm:$0xff]
      %v669 = vld [vmem:[%s2 + $0x398] sm:$0xff]
      %v670 = vld [vmem:[%s2 + $0x3a0] sm:$0xff]
      %v671 = vld [vmem:[%s2 + $0x3a8] sm:$0xff]
      %v672 = vld [vmem:[%s2 + $0x3b0] sm:$0xff]
      %v673 = vld [vmem:[%s2 + $0x3b8] sm:$0xff]
      %v674 = vld [vmem:[%s2 + $0x3c0] sm:$0xff]
      %v675 = vld [vmem:[%s2 + $0x3c8] sm:$0xff]
      %v676 = vld [vmem:[%s2 + $0x3d0] sm:$0xff]
      %v677 = vld [vmem:[%s2 + $0x3d8] sm:$0xff]
      %v678 = vld [vmem:[%s2 + $0x3e0] sm:$0xff]
      %v679 = vld [vmem:[%s2 + $0x3e8] sm:$0xff]
      %v680 = vld [vmem:[%s2 + $0x3f0] sm:$0xff]
      %v681 = vld [vmem:[%s2 + $0x3f8] sm:$0xff]
      %v682 = vld [vmem:[%s2 + $0x400] sm:$0xff]
      %v683 = vld [vmem:[%s2 + $0x408] sm:$0xff]
      %v684 = vld [vmem:[%s2 + $0x410] sm:$0xff]
      %v685 = vld [vmem:[%s2 + $0x418] sm:$0xff]
      %v686 = vld [vmem:[%s2 + $0x420] sm:$0xff]
      %v687 = vld [vmem:[%s2 + $0x428] sm:$0xff]
      %v688 = vld [vmem:[%s2 + $0x430] sm:$0xff]
      %v689 = vld [vmem:[%s2 + $0x438] sm:$0xff]
      %v690 = vld [vmem:[%s2 + $0x440] sm:$0xff]
      %v691 = vld [vmem:[%s2 + $0x448] sm:$0xff]
      %v692 = vld [vmem:[%s2 + $0x450] sm:$0xff]
      %v693 = vld [vmem:[%s2 + $0x458] sm:$0xff]
      %v694 = vld [vmem:[%s2 + $0x460] sm:$0xff]
      %v695 = vld [vmem:[%s2 + $0x468] sm:$0xff]
      %v696 = vld [vmem:[%s2 + $0x470] sm:$0xff]
      %v697 = vld [vmem:[%s2 + $0x478] sm:$0xff]
      %v698 = vld [vmem:[%s2 + $0x480] sm:$0xff]
      %v699 = vld [vmem:[%s2 + $0x488] sm:$0xff]
      %v700 = vld [vmem:[%s2 + $0x490] sm:$0xff]
      %v701 = vld [vmem:[%s2 + $0x498] sm:$0xff]
      %v702 = vld [vmem:[%s2 + $0x4a0] sm:$0xff]
      %v703 = vld [vmem:[%s2 + $0x4a8] sm:$0xff]
      %v704 = vld [vmem:[%s2 + $0x4b0] sm:$0xff]
      %v705 = vld [vmem:[%s2 + $0x4b8] sm:$0xff]
      %v706 = vld [vmem:[%s2 + $0x4c0] sm:$0xff]
      %v707 = vld [vmem:[%s2 + $0x4c8] sm:$0xff]
      %v708 = vld [vmem:[%s2 + $0x4d0] sm:$0xff]
      %v709 = vld [vmem:[%s2 + $0x4d8] sm:$0xff]
      %v710 = vld [vmem:[%s2 + $0x4e0] sm:$0xff]
      %v711 = vld [vmem:[%s2 + $0x4e8] sm:$0xff]
      %v712 = vld [vmem:[%s2 + $0x4f0] sm:$0xff]
      %v713 = vld [vmem:[%s2 + $0x4f8] sm:$0xff]
      %v714 = vld [vmem:[%s2 + $0x500] sm:$0xff]
      %v715 = vld [vmem:[%s2 + $0x508] sm:$0xff]
      %v716 = vld [vmem:[%s2 + $0x510] sm:$0xff]
      %v717 = vld [vmem:[%s2 + $0x518] sm:$0xff]
      %v718 = vld [vmem:[%s2 + $0x520] sm:$0xff]
      %v719 = vld [vmem:[%s2 + $0x528] sm:$0xff]
      %v720 = vld [vmem:[%s2 + $0x530] sm:$0xff]
      %v721 = vld [vmem:[%s2 + $0x538] sm:$0xff]
      %v722 = vld [vmem:[%s2 + $0x540] sm:$0xff]
      %v723 = vld [vmem:[%s2 + $0x548] sm:$0xff]
      %v724 = vld [vmem:[%s2 + $0x550] sm:$0xff]
      %v725 = vld [vmem:[%s2 + $0x558] sm:$0xff]
      %v726 = vld [vmem:[%s2 + $0x560] sm:$0xff]
      %v727 = vld [vmem:[%s2 + $0x568] sm:$0xff]
      %v728 = vld [vmem:[%s2 + $0x570] sm:$0xff]
      %v729 = vld [vmem:[%s2 + $0x578] sm:$0xff]
      %v730 = vld [vmem:[%s2 + $0x580] sm:$0xff]
      %v731 = vld [vmem:[%s2 + $0x588] sm:$0xff]
      %v732 = vld [vmem:[%s2 + $0x590] sm:$0xff]
      %v733 = vld [vmem:[%s2 + $0x598] sm:$0xff]
      %v734 = vld [vmem:[%s2 + $0x5a0] sm:$0xff]
      %v735 = vld [vmem:[%s2 + $0x5a8] sm:$0xff]
      %v736 = vld [vmem:[%s2 + $0x5b0] sm:$0xff]
      %v737 = vld [vmem:[%s2 + $0x5b8] sm:$0xff]
      %v738 = vld [vmem:[%s2 + $0x5c0] sm:$0xff]
      %v739 = vld [vmem:[%s2 + $0x5c8] sm:$0xff]
      %v740 = vld [vmem:[%s2 + $0x5d0] sm:$0xff]
      %v741 = vld [vmem:[%s2 + $0x5d8] sm:$0xff]
      %v742 = vld [vmem:[%s2 + $0x5e0] sm:$0xff]
      %v743 = vld [vmem:[%s2 + $0x5e8] sm:$0xff]
      %v744 = vld [vmem:[%s2 + $0x5f0] sm:$0xff]
      %v745 = vld [vmem:[%s2 + $0x5f8] sm:$0xff]
      %v746 = vld [vmem:[%s2 + $0x600] sm:$0xff]
      %v747 = vld [vmem:[%s2 + $0x608] sm:$0xff]
      %v748 = vld [vmem:[%s2 + $0x610] sm:$0xff]
      %v749 = vld [vmem:[%s2 + $0x618] sm:$0xff]
      %v750 = vld [vmem:[%s2 + $0x620] sm:$0xff]
      %v751 = vld [vmem:[%s2 + $0x628] sm:$0xff]
      %v752 = vld [vmem:[%s2 + $0x630] sm:$0xff]
      %v753 = vld [vmem:[%s2 + $0x638] sm:$0xff]
      %v754 = vld [vmem:[%s2 + $0x640] sm:$0xff]
      %v755 = vld [vmem:[%s2 + $0x648] sm:$0xff]
      %v756 = vld [vmem:[%s2 + $0x650] sm:$0xff]
      %v757 = vld [vmem:[%s2 + $0x658] sm:$0xff]
      %v758 = vld [vmem:[%s2 + $0x660] sm:$0xff]
      %v759 = vld [vmem:[%s2 + $0x668] sm:$0xff]
      %v760 = vld [vmem:[%s2 + $0x670] sm:$0xff]
      %v761 = vld [vmem:[%s2 + $0x678] sm:$0xff]
      %v762 = vld [vmem:[%s2 + $0x680] sm:$0xff]
      %v763 = vld [vmem:[%s2 + $0x688] sm:$0xff]
      %v764 = vld [vmem:[%s2 + $0x690] sm:$0xff]
      %v765 = vld [vmem:[%s2 + $0x698] sm:$0xff]
      %v766 = vld [vmem:[%s2 + $0x6a0] sm:$0xff]
      %v767 = vld [vmem:[%s2 + $0x6a8] sm:$0xff]
      %v768 = vld [vmem:[%s2 + $0x6b0] sm:$0xff]
      %v769 = vld [vmem:[%s2 + $0x6b8] sm:$0xff]
      %v770 = vld [vmem:[%s2 + $0x6c0] sm:$0xff]
      %v771 = vld [vmem:[%s2 + $0x6c8] sm:$0xff]
      %v772 = vld [vmem:[%s2 + $0x6d0] sm:$0xff]
      %v773 = vld [vmem:[%s2 + $0x6d8] sm:$0xff]
      %v774 = vld [vmem:[%s2 + $0x6e0] sm:$0xff]
      %v775 = vld [vmem:[%s2 + $0x6e8] sm:$0xff]
      %v776 = vld [vmem:[%s2 + $0x6f0] sm:$0xff]
      %v777 = vld [vmem:[%s2 + $0x6f8] sm:$0xff]
      %v778 = vld [vmem:[%s2 + $0x700] sm:$0xff]
      %v779 = vld [vmem:[%s2 + $0x708] sm:$0xff]
      %v780 = vld [vmem:[%s2 + $0x710] sm:$0xff]
      %v781 = vld [vmem:[%s2 + $0x718] sm:$0xff]
      %v782 = vld [vmem:[%s2 + $0x720] sm:$0xff]
      %v783 = vld [vmem:[%s2 + $0x728] sm:$0xff]
      %v784 = vld [vmem:[%s2 + $0x730] sm:$0xff]
      %v785 = vld [vmem:[%s2 + $0x738] sm:$0xff]
      %v786 = vld [vmem:[%s2 + $0x740] sm:$0xff]
      %v787 = vld [vmem:[%s2 + $0x748] sm:$0xff]
      %v788 = vld [vmem:[%s2 + $0x750] sm:$0xff]
      %v789 = vld [vmem:[%s2 + $0x758] sm:$0xff]
      %v790 = vld [vmem:[%s2 + $0x760] sm:$0xff]
      %v791 = vld [vmem:[%s2 + $0x768] sm:$0xff]
      %v792 = vld [vmem:[%s2 + $0x770] sm:$0xff]
      %v793 = vld [vmem:[%s2 + $0x778] sm:$0xff]
      %v794 = vld [vmem:[%s2 + $0x780] sm:$0xff]
      %v795 = vld [vmem:[%s2 + $0x788] sm:$0xff]
      %v796 = vld [vmem:[%s2 + $0x790] sm:$0xff]
      %v797 = vld [vmem:[%s2 + $0x798] sm:$0xff]
      %v798 = vld [vmem:[%s2 + $0x7a0] sm:$0xff]
      %v799 = vld [vmem:[%s2 + $0x7a8] sm:$0xff]
      %v800 = vld [vmem:[%s2 + $0x7b0] sm:$0xff]
      %v801 = vld [vmem:[%s2 + $0x7b8] sm:$0xff]
      %v802 = vld [vmem:[%s2 + $0x7c0] sm:$0xff]
      %v803 = vld [vmem:[%s2 + $0x7c8] sm:$0xff]
      %v804 = vld [vmem:[%s2 + $0x7d0] sm:$0xff]
      %v805 = vld [vmem:[%s2 + $0x7d8] sm:$0xff]
      %v806 = vld [vmem:[%s2 + $0x7e0] sm:$0xff]
      %v807 = vld [vmem:[%s2 + $0x7e8] sm:$0xff]
      %v808 = vld [vmem:[%s2 + $0x7f0] sm:$0xff]
      %v809 = vld [vmem:[%s2 + $0x7f8] sm:$0xff]
      %v810 = vld [vmem:[%s2 + $0x800] sm:$0xff]
      %v811 = vld [vmem:[%s2 + $0x808] sm:$0xff]
      %v812 = vld [vmem:[%s2 + $0x810] sm:$0xff]
      %v813 = vld [vmem:[%s2 + $0x818] sm:$0xff]
      %v814 = vld [vmem:[%s2 + $0x820] sm:$0xff]
      %v815 = vld [vmem:[%s2 + $0x828] sm:$0xff]
      %v816 = vld [vmem:[%s2 + $0x830] sm:$0xff]
      %v817 = vld [vmem:[%s2 + $0x838] sm:$0xff]
      %v818 = vld [vmem:[%s2 + $0x840] sm:$0xff]
      %v819 = vld [vmem:[%s2 + $0x848] sm:$0xff]
      %v820 = vld [vmem:[%s2 + $0x850] sm:$0xff]
      %v821 = vld [vmem:[%s2 + $0x858] sm:$0xff]
      %v822 = vld [vmem:[%s2 + $0x860] sm:$0xff]
      %v823 = vld [vmem:[%s2 + $0x868] sm:$0xff]
      %v824 = vld [vmem:[%s2 + $0x870] sm:$0xff]
      %v825 = vld [vmem:[%s2 + $0x878] sm:$0xff]
      %826 = vmatprep.subr.mxu0 0.0
      %827 = vmatpush1.msra.mxu0 %v554
      %828 = vmatprep.subr.mxu0 0.0
      %829 = vmatpush1.msra.mxu0 %v555
      %830 = vmatprep.subr.mxu0 0.0
      %831 = vmatpush1.msra.mxu0 %v556
      %832 = vmatprep.subr.mxu0 0.0
      %833 = vmatpush1.msra.mxu0 %v557
      %834 = vmatprep.subr.mxu0 0.0
      %835 = vmatpush1.msra.mxu0 %v558
      %836 = vmatprep.subr.mxu0 0.0
      %837 = vmatpush1.msra.mxu0 %v559
      %838 = vmatprep.subr.mxu0 0.0
      %839 = vmatpush1.msra.mxu0 %v560
      %840 = vmatprep.subr.mxu0 0.0
      %841 = vmatpush1.msra.mxu0 %v561
      %842 = vmatprep.subr.mxu0 0.0
      %843 = vmatpush1.msra.mxu0 %v562
      %844 = vmatprep.subr.mxu0 0.0
      %845 = vmatpush1.msra.mxu0 %v563
      %846 = vmatprep.subr.mxu0 0.0
      %847 = vmatpush1.msra.mxu0 %v564
      %848 = vmatprep.subr.mxu0 0.0
      %849 = vmatpush1.msra.mxu0 %v565
      %850 = vmatprep.subr.mxu0 0.0
      %851 = vmatpush1.msra.mxu0 %v566
      %852 = vmatprep.subr.mxu0 0.0
      %853 = vmatpush1.msra.mxu0 %v567
      %854 = vmatprep.subr.mxu0 0.0
      %855 = vmatpush1.msra.mxu0 %v568
      %856 = vmatprep.subr.mxu0 0.0
      %857 = vmatpush1.msra.mxu0 %v569
      %858 = vmatprep.subr.mxu0 0.0
      %859 = vmatpush1.msra.mxu0 %v570
      %860 = vmatprep.subr.mxu0 0.0
      %861 = vmatpush1.msra.mxu0 %v571
      %862 = vmatprep.subr.mxu0 0.0
      %863 = vmatpush1.msra.mxu0 %v572
      %864 = vmatprep.subr.mxu0 0.0
      %865 = vmatpush1.msra.mxu0 %v573
      %866 = vmatprep.subr.mxu0 0.0
      %867 = vmatpush1.msra.mxu0 %v574
      %868 = vmatprep.subr.mxu0 0.0
      %869 = vmatpush1.msra.mxu0 %v575
      %870 = vmatprep.subr.mxu0 0.0
      %871 = vmatpush1.msra.mxu0 %v576
      %872 = vmatprep.subr.mxu0 0.0
      %873 = vmatpush1.msra.mxu0 %v577
      %874 = vmatprep.subr.mxu0 0.0
      %875 = vmatpush1.msra.mxu0 %v578
      %876 = vmatprep.subr.mxu0 0.0
      %877 = vmatpush1.msra.mxu0 %v579
      %878 = vmatprep.subr.mxu0 0.0
      %879 = vmatpush1.msra.mxu0 %v580
      %880 = vmatprep.subr.mxu0 0.0
      %881 = vmatpush1.msra.mxu0 %v581
      %882 = vmatprep.subr.mxu0 0.0
      %883 = vmatpush1.msra.mxu0 %v582
      %884 = vmatprep.subr.mxu0 0.0
      %885 = vmatpush1.msra.mxu0 %v583
      %886 = vmatprep.subr.mxu0 0.0
      %887 = vmatpush1.msra.mxu0 %v584
      %888 = vmatprep.subr.mxu0 0.0
      %889 = vmatpush1.msra.mxu0 %v585
      %890 = vmatprep.mubr.f32.mxu0 %v482
      %891 = vmatmul.mubr.f32.gmra.mrb[0].mxu0 %v474
      %v892 = vpop.f32.mrb[0].mxu0
      %v893 = vadd.f32 0.0, %v892
      %v894 = vpop.f32.mrb[0].mxu0
      %895 = vmatprep.mubr.f32.mxu0 %v483
      %896 = vmatmul.mubr.f32.gmra.mrb[0].mxu0 %v475
      %v897 = vpop.f32.mrb[0].mxu0
      %v898 = vadd.f32 0.0, %v897
      %v899 = vpop.f32.mrb[0].mxu0
      %900 = vmatprep.mubr.f32.mxu0 %v484
      %901 = vmatmul.mubr.f32.gmra.mrb[0].mxu0 %v476
      %v902 = vpop.f32.mrb[0].mxu0
      %v903 = vadd.f32 0.0, %v902
      %v904 = vpop.f32.mrb[0].mxu0
      %905 = vmatprep.mubr.f32.mxu0 %v485
      %906 = vmatmul.mubr.f32.gmra.mrb[0].mxu0 %v477
      %v907 = vpop.f32.mrb[0].mxu0
      %v908 = vadd.f32 0.0, %v907
      %v909 = vpop.f32.mrb[0].mxu0
      %910 = vmatprep.mubr.f32.mxu0 %v486
      %911 = vmatmul.mubr.f32.gmra.mrb[0].mxu0 %v478
      %v912 = vpop.f32.mrb[0].mxu0
      %v913 = vadd.f32 0.0, %v912
      %v914 = vpop.f32.mrb[0].mxu0
      %915 = vmatprep.mubr.f32.mxu0 %v487
      %916 = vmatmul.mubr.f32.gmra.mrb[0].mxu0 %v479
      %v917 = vpop.f32.mrb[0].mxu0
      %v918 = vadd.f32 0.0, %v917
      %v919 = vpop.f32.mrb[0].mxu0
      %920 = vmatprep.mubr.f32.mxu0 %v488
      %921 = vmatmul.mubr.f32.gmra.mrb[0].mxu0 %v480
      %v922 = vpop.f32.mrb[0].mxu0
      %v923 = vadd.f32 0.0, %v922
      %v924 = vpop.f32.mrb[0].mxu0
      %925 = vmatprep.mubr.f32.mxu0 %v489
      %926 = vmatmul.mubr.f32.gmra.mrb[0].mxu0 %v481
      %v927 = vpop.f32.mrb[0].mxu0
      %v928 = vadd.f32 0.0, %v927
      %v929 = vpop.f32.mrb[0].mxu0
      %930 = vdwg.mxu0
      %931 = vmatprep.subr.mxu0 0.0
      %932 = vmatpush1.msra.mxu0 %v586
      %933 = vmatprep.subr.mxu0 0.0
      %934 = vmatpush1.msra.mxu0 %v587
      %935 = vmatprep.subr.mxu0 0.0
      %936 = vmatpush1.msra.mxu0 %v588
      %937 = vmatprep.subr.mxu0 0.0
      %938 = vmatpush1.msra.mxu0 %v589
      %939 = vmatprep.subr.mxu0 0.0
      %940 = vmatpush1.msra.mxu0 %v590
      %941 = vmatprep.subr.mxu0 0.0
      %942 = vmatpush1.msra.mxu0 %v591
      %943 = vmatprep.subr.mxu0 0.0
      %944 = vmatpush1.msra.mxu0 %v592
      %945 = vmatprep.subr.mxu0 0.0
      %946 = vmatpush1.msra.mxu0 %v593
      %947 = vmatprep.subr.mxu0 0.0
      %948 = vmatpush1.msra.mxu0 %v594
      %949 = vmatprep.subr.mxu0 0.0
      %950 = vmatpush1.msra.mxu0 %v595
      %951 = vmatprep.subr.mxu0 0.0
      %952 = vmatpush1.msra.mxu0 %v596
      %953 = vmatprep.subr.mxu0 0.0
      %954 = vmatpush1.msra.mxu0 %v597
      %955 = vmatprep.subr.mxu0 0.0
      %956 = vmatpush1.msra.mxu0 %v598
      %957 = vmatprep.subr.mxu0 0.0
      %958 = vmatpush1.msra.mxu0 %v599
      %959 = vmatprep.subr.mxu0 0.0
      %960 = vmatpush1.msra.mxu0 %v600
      %961 = vmatprep.subr.mxu0 0.0
      %962 = vmatpush1.msra.mxu0 %v601
      %963 = vmatprep.subr.mxu0 0.0
      %964 = vmatpush1.msra.mxu0 %v602
      %965 = vmatprep.subr.mxu0 0.0
      %966 = vmatpush1.msra.mxu0 %v603
      %967 = vmatprep.subr.mxu0 0.0
      %968 = vmatpush1.msra.mxu0 %v604
      %969 = vmatprep.subr.mxu0 0.0
      %970 = vmatpush1.msra.mxu0 %v605
      %971 = vmatprep.subr.mxu0 0.0
      %972 = vmatpush1.msra.mxu0 %v606
      %973 = vmatprep.subr.mxu0 0.0
      %974 = vmatpush1.msra.mxu0 %v607
      %975 = vmatprep.subr.mxu0 0.0
      %976 = vmatpush1.msra.mxu0 %v608
      %977 = vmatprep.subr.mxu0 0.0
      %978 = vmatpush1.msra.mxu0 %v609
      %979 = vmatprep.subr.mxu0 0.0
      %980 = vmatpush1.msra.mxu0 %v610
      %981 = vmatprep.subr.mxu0 0.0
      %982 = vmatpush1.msra.mxu0 %v611
      %983 = vmatprep.subr.mxu0 0.0
      %984 = vmatpush1.msra.mxu0 %v612
      %985 = vmatprep.subr.mxu0 0.0
      %986 = vmatpush1.msra.mxu0 %v613
      %987 = vmatprep.subr.mxu0 0.0
      %988 = vmatpush1.msra.mxu0 %v614
      %989 = vmatprep.subr.mxu0 0.0
      %990 = vmatpush1.msra.mxu0 %v615
      %991 = vmatprep.subr.mxu0 0.0
      %992 = vmatpush1.msra.mxu0 %v616
      %993 = vmatprep.subr.mxu0 0.0
      %994 = vmatpush1.msra.mxu0 %v617
      %995 = vmatprep.mubr.f32.mxu0 %v498
      %996 = vmatmul.mubr.f32.gmra.mrb[0].mxu0 %v490
      %v997 = vpop.f32.mrb[0].mxu0
      %v998 = vadd.f32 %v893, %v997
      %v999 = vpop.f32.mrb[0].mxu0
      %1000 = vmatprep.mubr.f32.mxu0 %v499
      %1001 = vmatmul.mubr.f32.gmra.mrb[0].mxu0 %v491
      %v1002 = vpop.f32.mrb[0].mxu0
      %v1003 = vadd.f32 %v898, %v1002
      %v1004 = vpop.f32.mrb[0].mxu0
      %1005 = vmatprep.mubr.f32.mxu0 %v500
      %1006 = vmatmul.mubr.f32.gmra.mrb[0].mxu0 %v492
      %v1007 = vpop.f32.mrb[0].mxu0
      %v1008 = vadd.f32 %v903, %v1007
      %v1009 = vpop.f32.mrb[0].mxu0
      %1010 = vmatprep.mubr.f32.mxu0 %v501
      %1011 = vmatmul.mubr.f32.gmra.mrb[0].mxu0 %v493
      %v1012 = vpop.f32.mrb[0].mxu0
      %v1013 = vadd.f32 %v908, %v1012
      %v1014 = vpop.f32.mrb[0].mxu0
      %1015 = vmatprep.mubr.f32.mxu0 %v502
      %1016 = vmatmul.mubr.f32.gmra.mrb[0].mxu0 %v494
      %v1017 = vpop.f32.mrb[0].mxu0
      %v1018 = vadd.f32 %v913, %v1017
      %v1019 = vpop.f32.mrb[0].mxu0
      %1020 = vmatprep.mubr.f32.mxu0 %v503
      %1021 = vmatmul.mubr.f32.gmra.mrb[0].mxu0 %v495
      %v1022 = vpop.f32.mrb[0].mxu0
      %v1023 = vadd.f32 %v918, %v1022
      %v1024 = vpop.f32.mrb[0].mxu0
      %1025 = vmatprep.mubr.f32.mxu0 %v504
      %1026 = vmatmul.mubr.f32.gmra.mrb[0].mxu0 %v496
      %v1027 = vpop.f32.mrb[0].mxu0
      %v1028 = vadd.f32 %v923, %v1027
      %v1029 = vpop.f32.mrb[0].mxu0
      %1030 = vmatprep.mubr.f32.mxu0 %v505
      %1031 = vmatmul.mubr.f32.gmra.mrb[0].mxu0 %v497
      %v1032 = vpop.f32.mrb[0].mxu0
      %v1033 = vadd.f32 %v928, %v1032
      %v1034 = vpop.f32.mrb[0].mxu0
      %1035 = vdwg.mxu0
      %1036 = vmatprep.subr.mxu0 0.0
      %1037 = vmatpush1.msra.mxu0 %v618
      %1038 = vmatprep.subr.mxu0 0.0
      %1039 = vmatpush1.msra.mxu0 %v619
      %1040 = vmatprep.subr.mxu0 0.0
      %1041 = vmatpush1.msra.mxu0 %v620
      %1042 = vmatprep.subr.mxu0 0.0
      %1043 = vmatpush1.msra.mxu0 %v621
      %1044 = vmatprep.subr.mxu0 0.0
      %1045 = vmatpush1.msra.mxu0 %v622
      %1046 = vmatprep.subr.mxu0 0.0
      %1047 = vmatpush1.msra.mxu0 %v623
      %1048 = vmatprep.subr.mxu0 0.0
      %1049 = vmatpush1.msra.mxu0 %v624
      %1050 = vmatprep.subr.mxu0 0.0
      %1051 = vmatpush1.msra.mxu0 %v625
      %1052 = vmatprep.subr.mxu0 0.0
      %1053 = vmatpush1.msra.mxu0 %v626
      %1054 = vmatprep.subr.mxu0 0.0
      %1055 = vmatpush1.msra.mxu0 %v627
      %1056 = vmatprep.subr.mxu0 0.0
      %1057 = vmatpush1.msra.mxu0 %v628
      %1058 = vmatprep.subr.mxu0 0.0
      %1059 = vmatpush1.msra.mxu0 %v629
      %1060 = vmatprep.subr.mxu0 0.0
      %1061 = vmatpush1.msra.mxu0 %v630
      %1062 = vmatprep.subr.mxu0 0.0
      %1063 = vmatpush1.msra.mxu0 %v631
      %1064 = vmatprep.subr.mxu0 0.0
      %1065 = vmatpush1.msra.mxu0 %v632
      %1066 = vmatprep.subr.mxu0 0.0
      %1067 = vmatpush1.msra.mxu0 %v633
      %1068 = vmatprep.subr.mxu0 0.0
      %1069 = vmatpush1.msra.mxu0 %v634
      %1070 = vmatprep.subr.mxu0 0.0
      %1071 = vmatpush1.msra.mxu0 %v635
      %1072 = vmatprep.subr.mxu0 0.0
      %1073 = vmatpush1.msra.mxu0 %v636
      %1074 = vmatprep.subr.mxu0 0.0
      %1075 = vmatpush1.msra.mxu0 %v637
      %1076 = vmatprep.subr.mxu0 0.0
      %1077 = vmatpush1.msra.mxu0 %v638
      %1078 = vmatprep.subr.mxu0 0.0
      %1079 = vmatpush1.msra.mxu0 %v639
      %1080 = vmatprep.subr.mxu0 0.0
      %1081 = vmatpush1.msra.mxu0 %v640
      %1082 = vmatprep.subr.mxu0 0.0
      %1083 = vmatpush1.msra.mxu0 %v641
      %1084 = vmatprep.subr.mxu0 0.0
      %1085 = vmatpush1.msra.mxu0 %v642
      %1086 = vmatprep.subr.mxu0 0.0
      %1087 = vmatpush1.msra.mxu0 %v643
      %1088 = vmatprep.subr.mxu0 0.0
      %1089 = vmatpush1.msra.mxu0 %v644
      %1090 = vmatprep.subr.mxu0 0.0
      %1091 = vmatpush1.msra.mxu0 %v645
      %1092 = vmatprep.subr.mxu0 0.0
      %1093 = vmatpush1.msra.mxu0 %v646
      %1094 = vmatprep.subr.mxu0 0.0
      %1095 = vmatpush1.msra.mxu0 %v647
      %1096 = vmatprep.subr.mxu0 0.0
      %1097 = vmatpush1.msra.mxu0 %v648
      %1098 = vmatprep.subr.mxu0 0.0
      %1099 = vmatpush1.msra.mxu0 %v649
      %1100 = vmatprep.mubr.f32.mxu0 %v514
      %1101 = vmatmul.mubr.f32.gmra.mrb[0].mxu0 %v506
      %v1102 = vpop.f32.mrb[0].mxu0
      %v1103 = vadd.f32 %v998, %v1102
      %v1104 = vpop.f32.mrb[0].mxu0
      %1105 = vmatprep.mubr.f32.mxu0 %v515
      %1106 = vmatmul.mubr.f32.gmra.mrb[0].mxu0 %v507
      %v1107 = vpop.f32.mrb[0].mxu0
      %v1108 = vadd.f32 %v1003, %v1107
      %v1109 = vpop.f32.mrb[0].mxu0
      %1110 = vmatprep.mubr.f32.mxu0 %v516
      %1111 = vmatmul.mubr.f32.gmra.mrb[0].mxu0 %v508
      %v1112 = vpop.f32.mrb[0].mxu0
      %v1113 = vadd.f32 %v1008, %v1112
      %v1114 = vpop.f32.mrb[0].mxu0
      %1115 = vmatprep.mubr.f32.mxu0 %v517
      %1116 = vmatmul.mubr.f32.gmra.mrb[0].mxu0 %v509
      %v1117 = vpop.f32.mrb[0].mxu0
      %v1118 = vadd.f32 %v1013, %v1117
      %v1119 = vpop.f32.mrb[0].mxu0
      %1120 = vmatprep.mubr.f32.mxu0 %v518
      %1121 = vmatmul.mubr.f32.gmra.mrb[0].mxu0 %v510
      %v1122 = vpop.f32.mrb[0].mxu0
      %v1123 = vadd.f32 %v1018, %v1122
      %v1124 = vpop.f32.mrb[0].mxu0
      %1125 = vmatprep.mubr.f32.mxu0 %v519
      %1126 = vmatmul.mubr.f32.gmra.mrb[0].mxu0 %v511
      %v1127 = vpop.f32.mrb[0].mxu0
      %v1128 = vadd.f32 %v1023, %v1127
      %v1129 = vpop.f32.mrb[0].mxu0
      %1130 = vmatprep.mubr.f32.mxu0 %v520
      %1131 = vmatmul.mubr.f32.gmra.mrb[0].mxu0 %v512
      %v1132 = vpop.f32.mrb[0].mxu0
      %v1133 = vadd.f32 %v1028, %v1132
      %v1134 = vpop.f32.mrb[0].mxu0
      %1135 = vmatprep.mubr.f32.mxu0 %v521
      %1136 = vmatmul.mubr.f32.gmra.mrb[0].mxu0 %v513
      %v1137 = vpop.f32.mrb[0].mxu0
      %v1138 = vadd.f32 %v1033, %v1137
      %v1139 = vpop.f32.mrb[0].mxu0
      %1140 = vdwg.mxu0
      %1141 = vmatprep.subr.mxu0 0.0
      %1142 = vmatpush1.msra.mxu0 %v650
      %1143 = vmatprep.subr.mxu0 0.0
      %1144 = vmatpush1.msra.mxu0 %v651
      %1145 = vmatprep.subr.mxu0 0.0
      %1146 = vmatpush1.msra.mxu0 %v652
      %1147 = vmatprep.subr.mxu0 0.0
      %1148 = vmatpush1.msra.mxu0 %v653
      %1149 = vmatprep.subr.mxu0 0.0
      %1150 = vmatpush1.msra.mxu0 %v654
      %1151 = vmatprep.subr.mxu0 0.0
      %1152 = vmatpush1.msra.mxu0 %v655
      %1153 = vmatprep.subr.mxu0 0.0
      %1154 = vmatpush1.msra.mxu0 %v656
      %1155 = vmatprep.subr.mxu0 0.0
      %1156 = vmatpush1.msra.mxu0 %v657
      %1157 = vmatprep.subr.mxu0 0.0
      %1158 = vmatpush1.msra.mxu0 %v658
      %1159 = vmatprep.subr.mxu0 0.0
      %1160 = vmatpush1.msra.mxu0 %v659
      %1161 = vmatprep.subr.mxu0 0.0
      %1162 = vmatpush1.msra.mxu0 %v660
      %1163 = vmatprep.subr.mxu0 0.0
      %1164 = vmatpush1.msra.mxu0 %v661
      %1165 = vmatprep.subr.mxu0 0.0
      %1166 = vmatpush1.msra.mxu0 %v662
      %1167 = vmatprep.subr.mxu0 0.0
      %1168 = vmatpush1.msra.mxu0 %v663
      %1169 = vmatprep.subr.mxu0 0.0
      %1170 = vmatpush1.msra.mxu0 %v664
      %1171 = vmatprep.subr.mxu0 0.0
      %1172 = vmatpush1.msra.mxu0 %v665
      %1173 = vmatprep.subr.mxu0 0.0
      %1174 = vmatpush1.msra.mxu0 %v666
      %1175 = vmatprep.subr.mxu0 0.0
      %1176 = vmatpush1.msra.mxu0 %v667
      %1177 = vmatprep.subr.mxu0 0.0
      %1178 = vmatpush1.msra.mxu0 %v668
      %1179 = vmatprep.subr.mxu0 0.0
      %1180 = vmatpush1.msra.mxu0 %v669
      %1181 = vmatprep.subr.mxu0 0.0
      %1182 = vmatpush1.msra.mxu0 %v670
      %1183 = vmatprep.subr.mxu0 0.0
      %1184 = vmatpush1.msra.mxu0 %v671
      %1185 = vmatprep.subr.mxu0 0.0
      %1186 = vmatpush1.msra.mxu0 %v672
      %1187 = vmatprep.subr.mxu0 0.0
      %1188 = vmatpush1.msra.mxu0 %v673
      %1189 = vmatprep.subr.mxu0 0.0
      %1190 = vmatpush1.msra.mxu0 %v674
      %1191 = vmatprep.subr.mxu0 0.0
      %1192 = vmatpush1.msra.mxu0 %v675
      %1193 = vmatprep.subr.mxu0 0.0
      %1194 = vmatpush1.msra.mxu0 %v676
      %1195 = vmatprep.subr.mxu0 0.0
      %1196 = vmatpush1.msra.mxu0 %v677
      %1197 = vmatprep.subr.mxu0 0.0
      %1198 = vmatpush1.msra.mxu0 %v678
      %1199 = vmatprep.subr.mxu0 0.0
      %1200 = vmatpush1.msra.mxu0 %v679
      %1201 = vmatprep.subr.mxu0 0.0
      %1202 = vmatpush1.msra.mxu0 %v680
      %1203 = vmatprep.subr.mxu0 0.0
      %1204 = vmatpush1.msra.mxu0 %v681
      %1205 = vmatprep.mubr.f32.mxu0 %v530
      %1206 = vmatmul.mubr.f32.gmra.mrb[0].mxu0 %v522
      %v1207 = vpop.f32.mrb[0].mxu0
      %v1208 = vadd.f32 %v1103, %v1207
      %v1209 = vpop.f32.mrb[0].mxu0
      %1210 = vmatprep.mubr.f32.mxu0 %v531
      %1211 = vmatmul.mubr.f32.gmra.mrb[0].mxu0 %v523
      %v1212 = vpop.f32.mrb[0].mxu0
      %v1213 = vadd.f32 %v1108, %v1212
      %v1214 = vpop.f32.mrb[0].mxu0
      %1215 = vmatprep.mubr.f32.mxu0 %v532
      %1216 = vmatmul.mubr.f32.gmra.mrb[0].mxu0 %v524
      %v1217 = vpop.f32.mrb[0].mxu0
      %v1218 = vadd.f32 %v1113, %v1217
      %v1219 = vpop.f32.mrb[0].mxu0
      %1220 = vmatprep.mubr.f32.mxu0 %v533
      %1221 = vmatmul.mubr.f32.gmra.mrb[0].mxu0 %v525
      %v1222 = vpop.f32.mrb[0].mxu0
      %v1223 = vadd.f32 %v1118, %v1222
      %v1224 = vpop.f32.mrb[0].mxu0
      %1225 = vmatprep.mubr.f32.mxu0 %v534
      %1226 = vmatmul.mubr.f32.gmra.mrb[0].mxu0 %v526
      %v1227 = vpop.f32.mrb[0].mxu0
      %v1228 = vadd.f32 %v1123, %v1227
      %v1229 = vpop.f32.mrb[0].mxu0
      %1230 = vmatprep.mubr.f32.mxu0 %v535
      %1231 = vmatmul.mubr.f32.gmra.mrb[0].mxu0 %v527
      %v1232 = vpop.f32.mrb[0].mxu0
      %v1233 = vadd.f32 %v1128, %v1232
      %v1234 = vpop.f32.mrb[0].mxu0
      %1235 = vmatprep.mubr.f32.mxu0 %v536
      %1236 = vmatmul.mubr.f32.gmra.mrb[0].mxu0 %v528
      %v1237 = vpop.f32.mrb[0].mxu0
      %v1238 = vadd.f32 %v1133, %v1237
      %v1239 = vpop.f32.mrb[0].mxu0
      %1240 = vmatprep.mubr.f32.mxu0 %v537
      %1241 = vmatmul.mubr.f32.gmra.mrb[0].mxu0 %v529
      %v1242 = vpop.f32.mrb[0].mxu0
      %v1243 = vadd.f32 %v1138, %v1242
      %v1244 = vpop.f32.mrb[0].mxu0
      %1245 = vdwg.mxu0
      %1246 = vmatprep.subr.mxu0 0.0
      %1247 = vmatpush1.msra.mxu0 %v682
      %1248 = vmatprep.subr.mxu0 0.0
      %1249 = vmatpush1.msra.mxu0 %v683
      %1250 = vmatprep.subr.mxu0 0.0
      %1251 = vmatpush1.msra.mxu0 %v684
      %1252 = vmatprep.subr.mxu0 0.0
      %1253 = vmatpush1.msra.mxu0 %v685
      %1254 = vmatprep.subr.mxu0 0.0
      %1255 = vmatpush1.msra.mxu0 %v686
      %1256 = vmatprep.subr.mxu0 0.0
      %1257 = vmatpush1.msra.mxu0 %v687
      %1258 = vmatprep.subr.mxu0 0.0
      %1259 = vmatpush1.msra.mxu0 %v688
      %1260 = vmatprep.subr.mxu0 0.0
      %1261 = vmatpush1.msra.mxu0 %v689
      %1262 = vmatprep.subr.mxu0 0.0
      %1263 = vmatpush1.msra.mxu0 %v690
      %1264 = vmatprep.subr.mxu0 0.0
      %1265 = vmatpush1.msra.mxu0 %v691
      %1266 = vmatprep.subr.mxu0 0.0
      %1267 = vmatpush1.msra.mxu0 %v692
      %1268 = vmatprep.subr.mxu0 0.0
      %1269 = vmatpush1.msra.mxu0 %v693
      %1270 = vmatprep.subr.mxu0 0.0
      %1271 = vmatpush1.msra.mxu0 %v694
      %1272 = vmatprep.subr.mxu0 0.0
      %1273 = vmatpush1.msra.mxu0 %v695
      %1274 = vmatprep.subr.mxu0 0.0
      %1275 = vmatpush1.msra.mxu0 %v696
      %1276 = vmatprep.subr.mxu0 0.0
      %1277 = vmatpush1.msra.mxu0 %v697
      %1278 = vmatprep.subr.mxu0 0.0
      %1279 = vmatpush1.msra.mxu0 %v698
      %1280 = vmatprep.subr.mxu0 0.0
      %1281 = vmatpush1.msra.mxu0 %v699
      %1282 = vmatprep.subr.mxu0 0.0
      %1283 = vmatpush1.msra.mxu0 %v700
      %1284 = vmatprep.subr.mxu0 0.0
      %1285 = vmatpush1.msra.mxu0 %v701
      %1286 = vmatprep.subr.mxu0 0.0
      %1287 = vmatpush1.msra.mxu0 %v702
      %1288 = vmatprep.subr.mxu0 0.0
      %1289 = vmatpush1.msra.mxu0 %v703
      %1290 = vmatprep.subr.mxu0 0.0
      %1291 = vmatpush1.msra.mxu0 %v704
      %1292 = vmatprep.subr.mxu0 0.0
      %1293 = vmatpush1.msra.mxu0 %v705
      %1294 = vmatprep.subr.mxu0 0.0
      %1295 = vmatpush1.msra.mxu0 %v706
      %1296 = vmatprep.subr.mxu0 0.0
      %1297 = vmatpush1.msra.mxu0 %v707
      %1298 = vmatprep.subr.mxu0 0.0
      %1299 = vmatpush1.msra.mxu0 %v708
      %1300 = vmatprep.subr.mxu0 0.0
      %1301 = vmatpush1.msra.mxu0 %v709
      %1302 = vmatprep.subr.mxu0 0.0
      %1303 = vmatpush1.msra.mxu0 %v710
      %1304 = vmatprep.subr.mxu0 0.0
      %1305 = vmatpush1.msra.mxu0 %v711
      %1306 = vmatprep.subr.mxu0 0.0
      %1307 = vmatpush1.msra.mxu0 %v712
      %1308 = vmatprep.subr.mxu0 0.0
      %1309 = vmatpush1.msra.mxu0 %v713
      %1310 = vmatprep.mubr.f32.mxu0 %v483
      %1311 = vmatmul.mubr.f32.gmra.mrb[0].mxu0 %v475
      %v1312 = vpop.f32.mrb[0].mxu0
      %v1313 = vadd.f32 %v1208, %v1312
      %v1314 = vpop.f32.mrb[0].mxu0
      %1315 = vmatprep.mubr.f32.mxu0 %v484
      %1316 = vmatmul.mubr.f32.gmra.mrb[0].mxu0 %v476
      %v1317 = vpop.f32.mrb[0].mxu0
      %v1318 = vadd.f32 %v1213, %v1317
      %v1319 = vpop.f32.mrb[0].mxu0
      %1320 = vmatprep.mubr.f32.mxu0 %v485
      %1321 = vmatmul.mubr.f32.gmra.mrb[0].mxu0 %v477
      %v1322 = vpop.f32.mrb[0].mxu0
      %v1323 = vadd.f32 %v1218, %v1322
      %v1324 = vpop.f32.mrb[0].mxu0
      %1325 = vmatprep.mubr.f32.mxu0 %v486
      %1326 = vmatmul.mubr.f32.gmra.mrb[0].mxu0 %v478
      %v1327 = vpop.f32.mrb[0].mxu0
      %v1328 = vadd.f32 %v1223, %v1327
      %v1329 = vpop.f32.mrb[0].mxu0
      %1330 = vmatprep.mubr.f32.mxu0 %v487
      %1331 = vmatmul.mubr.f32.gmra.mrb[0].mxu0 %v479
      %v1332 = vpop.f32.mrb[0].mxu0
      %v1333 = vadd.f32 %v1228, %v1332
      %v1334 = vpop.f32.mrb[0].mxu0
      %1335 = vmatprep.mubr.f32.mxu0 %v488
      %1336 = vmatmul.mubr.f32.gmra.mrb[0].mxu0 %v480
      %v1337 = vpop.f32.mrb[0].mxu0
      %v1338 = vadd.f32 %v1233, %v1337
      %v1339 = vpop.f32.mrb[0].mxu0
      %1340 = vmatprep.mubr.f32.mxu0 %v489
      %1341 = vmatmul.mubr.f32.gmra.mrb[0].mxu0 %v481
      %v1342 = vpop.f32.mrb[0].mxu0
      %v1343 = vadd.f32 %v1238, %v1342
      %v1344 = vpop.f32.mrb[0].mxu0
      %1345 = vmatprep.mubr.f32.mxu0 %v539
      %1346 = vmatmul.mubr.f32.gmra.mrb[0].mxu0 %v538
      %v1347 = vpop.f32.mrb[0].mxu0
      %v1348 = vadd.f32 %v1243, %v1347
      %v1349 = vpop.f32.mrb[0].mxu0
      %1350 = vdwg.mxu0
      %1351 = vmatprep.subr.mxu0 0.0
      %1352 = vmatpush1.msra.mxu0 %v714
      %1353 = vmatprep.subr.mxu0 0.0
      %1354 = vmatpush1.msra.mxu0 %v715
      %1355 = vmatprep.subr.mxu0 0.0
      %1356 = vmatpush1.msra.mxu0 %v716
      %1357 = vmatprep.subr.mxu0 0.0
      %1358 = vmatpush1.msra.mxu0 %v717
      %1359 = vmatprep.subr.mxu0 0.0
      %1360 = vmatpush1.msra.mxu0 %v718
      %1361 = vmatprep.subr.mxu0 0.0
      %1362 = vmatpush1.msra.mxu0 %v719
      %1363 = vmatprep.subr.mxu0 0.0
      %1364 = vmatpush1.msra.mxu0 %v720
      %1365 = vmatprep.subr.mxu0 0.0
      %1366 = vmatpush1.msra.mxu0 %v721
      %1367 = vmatprep.subr.mxu0 0.0
      %1368 = vmatpush1.msra.mxu0 %v722
      %1369 = vmatprep.subr.mxu0 0.0
      %1370 = vmatpush1.msra.mxu0 %v723
      %1371 = vmatprep.subr.mxu0 0.0
      %1372 = vmatpush1.msra.mxu0 %v724
      %1373 = vmatprep.subr.mxu0 0.0
      %1374 = vmatpush1.msra.mxu0 %v725
      %1375 = vmatprep.subr.mxu0 0.0
      %1376 = vmatpush1.msra.mxu0 %v726
      %1377 = vmatprep.subr.mxu0 0.0
      %1378 = vmatpush1.msra.mxu0 %v727
      %1379 = vmatprep.subr.mxu0 0.0
      %1380 = vmatpush1.msra.mxu0 %v728
      %1381 = vmatprep.subr.mxu0 0.0
      %1382 = vmatpush1.msra.mxu0 %v729
      %1383 = vmatprep.subr.mxu0 0.0
      %1384 = vmatpush1.msra.mxu0 %v730
      %1385 = vmatprep.subr.mxu0 0.0
      %1386 = vmatpush1.msra.mxu0 %v731
      %1387 = vmatprep.subr.mxu0 0.0
      %1388 = vmatpush1.msra.mxu0 %v732
      %1389 = vmatprep.subr.mxu0 0.0
      %1390 = vmatpush1.msra.mxu0 %v733
      %1391 = vmatprep.subr.mxu0 0.0
      %1392 = vmatpush1.msra.mxu0 %v734
      %1393 = vmatprep.subr.mxu0 0.0
      %1394 = vmatpush1.msra.mxu0 %v735
      %1395 = vmatprep.subr.mxu0 0.0
      %1396 = vmatpush1.msra.mxu0 %v736
      %1397 = vmatprep.subr.mxu0 0.0
      %1398 = vmatpush1.msra.mxu0 %v737
      %1399 = vmatprep.subr.mxu0 0.0
      %1400 = vmatpush1.msra.mxu0 %v738
      %1401 = vmatprep.subr.mxu0 0.0
      %1402 = vmatpush1.msra.mxu0 %v739
      %1403 = vmatprep.subr.mxu0 0.0
      %1404 = vmatpush1.msra.mxu0 %v740
      %1405 = vmatprep.subr.mxu0 0.0
      %1406 = vmatpush1.msra.mxu0 %v741
      %1407 = vmatprep.subr.mxu0 0.0
      %1408 = vmatpush1.msra.mxu0 %v742
      %1409 = vmatprep.subr.mxu0 0.0
      %1410 = vmatpush1.msra.mxu0 %v743
      %1411 = vmatprep.subr.mxu0 0.0
      %1412 = vmatpush1.msra.mxu0 %v744
      %1413 = vmatprep.subr.mxu0 0.0
      %1414 = vmatpush1.msra.mxu0 %v745
      %1415 = vmatprep.mubr.f32.mxu0 %v499
      %1416 = vmatmul.mubr.f32.gmra.mrb[0].mxu0 %v491
      %v1417 = vpop.f32.mrb[0].mxu0
      %v1418 = vadd.f32 %v1313, %v1417
      %v1419 = vpop.f32.mrb[0].mxu0
      %1420 = vmatprep.mubr.f32.mxu0 %v500
      %1421 = vmatmul.mubr.f32.gmra.mrb[0].mxu0 %v492
      %v1422 = vpop.f32.mrb[0].mxu0
      %v1423 = vadd.f32 %v1318, %v1422
      %v1424 = vpop.f32.mrb[0].mxu0
      %1425 = vmatprep.mubr.f32.mxu0 %v501
      %1426 = vmatmul.mubr.f32.gmra.mrb[0].mxu0 %v493
      %v1427 = vpop.f32.mrb[0].mxu0
      %v1428 = vadd.f32 %v1323, %v1427
      %v1429 = vpop.f32.mrb[0].mxu0
      %1430 = vmatprep.mubr.f32.mxu0 %v502
      %1431 = vmatmul.mubr.f32.gmra.mrb[0].mxu0 %v494
      %v1432 = vpop.f32.mrb[0].mxu0
      %v1433 = vadd.f32 %v1328, %v1432
      %v1434 = vpop.f32.mrb[0].mxu0
      %1435 = vmatprep.mubr.f32.mxu0 %v503
      %1436 = vmatmul.mubr.f32.gmra.mrb[0].mxu0 %v495
      %v1437 = vpop.f32.mrb[0].mxu0
      %v1438 = vadd.f32 %v1333, %v1437
      %v1439 = vpop.f32.mrb[0].mxu0
      %1440 = vmatprep.mubr.f32.mxu0 %v504
      %1441 = vmatmul.mubr.f32.gmra.mrb[0].mxu0 %v496
      %v1442 = vpop.f32.mrb[0].mxu0
      %v1443 = vadd.f32 %v1338, %v1442
      %v1444 = vpop.f32.mrb[0].mxu0
      %1445 = vmatprep.mubr.f32.mxu0 %v505
      %1446 = vmatmul.mubr.f32.gmra.mrb[0].mxu0 %v497
      %v1447 = vpop.f32.mrb[0].mxu0
      %v1448 = vadd.f32 %v1343, %v1447
      %v1449 = vpop.f32.mrb[0].mxu0
      %1450 = vmatprep.mubr.f32.mxu0 %v541
      %1451 = vmatmul.mubr.f32.gmra.mrb[0].mxu0 %v540
      %v1452 = vpop.f32.mrb[0].mxu0
      %v1453 = vadd.f32 %v1348, %v1452
      %v1454 = vpop.f32.mrb[0].mxu0
      %1455 = vdwg.mxu0
      %1456 = vmatprep.subr.mxu0 0.0
      %1457 = vmatpush1.msra.mxu0 %v746
      %1458 = vmatprep.subr.mxu0 0.0
      %1459 = vmatpush1.msra.mxu0 %v747
      %1460 = vmatprep.subr.mxu0 0.0
      %1461 = vmatpush1.msra.mxu0 %v748
      %1462 = vmatprep.subr.mxu0 0.0
      %1463 = vmatpush1.msra.mxu0 %v749
      %1464 = vmatprep.subr.mxu0 0.0
      %1465 = vmatpush1.msra.mxu0 %v750
      %1466 = vmatprep.subr.mxu0 0.0
      %1467 = vmatpush1.msra.mxu0 %v751
      %1468 = vmatprep.subr.mxu0 0.0
      %1469 = vmatpush1.msra.mxu0 %v752
      %1470 = vmatprep.subr.mxu0 0.0
      %1471 = vmatpush1.msra.mxu0 %v753
      %1472 = vmatprep.subr.mxu0 0.0
      %1473 = vmatpush1.msra.mxu0 %v754
      %1474 = vmatprep.subr.mxu0 0.0
      %1475 = vmatpush1.msra.mxu0 %v755
      %1476 = vmatprep.subr.mxu0 0.0
      %1477 = vmatpush1.msra.mxu0 %v756
      %1478 = vmatprep.subr.mxu0 0.0
      %1479 = vmatpush1.msra.mxu0 %v757
      %1480 = vmatprep.subr.mxu0 0.0
      %1481 = vmatpush1.msra.mxu0 %v758
      %1482 = vmatprep.subr.mxu0 0.0
      %1483 = vmatpush1.msra.mxu0 %v759
      %1484 = vmatprep.subr.mxu0 0.0
      %1485 = vmatpush1.msra.mxu0 %v760
      %1486 = vmatprep.subr.mxu0 0.0
      %1487 = vmatpush1.msra.mxu0 %v761
      %1488 = vmatprep.subr.mxu0 0.0
      %1489 = vmatpush1.msra.mxu0 %v762
      %1490 = vmatprep.subr.mxu0 0.0
      %1491 = vmatpush1.msra.mxu0 %v763
      %1492 = vmatprep.subr.mxu0 0.0
      %1493 = vmatpush1.msra.mxu0 %v764
      %1494 = vmatprep.subr.mxu0 0.0
      %1495 = vmatpush1.msra.mxu0 %v765
      %1496 = vmatprep.subr.mxu0 0.0
      %1497 = vmatpush1.msra.mxu0 %v766
      %1498 = vmatprep.subr.mxu0 0.0
      %1499 = vmatpush1.msra.mxu0 %v767
      %1500 = vmatprep.subr.mxu0 0.0
      %1501 = vmatpush1.msra.mxu0 %v768
      %1502 = vmatprep.subr.mxu0 0.0
      %1503 = vmatpush1.msra.mxu0 %v769
      %1504 = vmatprep.subr.mxu0 0.0
      %1505 = vmatpush1.msra.mxu0 %v770
      %1506 = vmatprep.subr.mxu0 0.0
      %1507 = vmatpush1.msra.mxu0 %v771
      %1508 = vmatprep.subr.mxu0 0.0
      %1509 = vmatpush1.msra.mxu0 %v772
      %1510 = vmatprep.subr.mxu0 0.0
      %1511 = vmatpush1.msra.mxu0 %v773
      %1512 = vmatprep.subr.mxu0 0.0
      %1513 = vmatpush1.msra.mxu0 %v774
      %1514 = vmatprep.subr.mxu0 0.0
      %1515 = vmatpush1.msra.mxu0 %v775
      %1516 = vmatprep.subr.mxu0 0.0
      %1517 = vmatpush1.msra.mxu0 %v776
      %1518 = vmatprep.subr.mxu0 0.0
      %1519 = vmatpush1.msra.mxu0 %v777
      %1520 = vmatprep.mubr.f32.mxu0 %v515
      %1521 = vmatmul.mubr.f32.gmra.mrb[0].mxu0 %v507
      %v1522 = vpop.f32.mrb[0].mxu0
      %v1523 = vadd.f32 %v1418, %v1522
      %v1524 = vpop.f32.mrb[0].mxu0
      %1525 = vmatprep.mubr.f32.mxu0 %v516
      %1526 = vmatmul.mubr.f32.gmra.mrb[0].mxu0 %v508
      %v1527 = vpop.f32.mrb[0].mxu0
      %v1528 = vadd.f32 %v1423, %v1527
      %v1529 = vpop.f32.mrb[0].mxu0
      %1530 = vmatprep.mubr.f32.mxu0 %v517
      %1531 = vmatmul.mubr.f32.gmra.mrb[0].mxu0 %v509
      %v1532 = vpop.f32.mrb[0].mxu0
      %v1533 = vadd.f32 %v1428, %v1532
      %v1534 = vpop.f32.mrb[0].mxu0
      %1535 = vmatprep.mubr.f32.mxu0 %v518
      %1536 = vmatmul.mubr.f32.gmra.mrb[0].mxu0 %v510
      %v1537 = vpop.f32.mrb[0].mxu0
      %v1538 = vadd.f32 %v1433, %v1537
      %v1539 = vpop.f32.mrb[0].mxu0
      %1540 = vmatprep.mubr.f32.mxu0 %v519
      %1541 = vmatmul.mubr.f32.gmra.mrb[0].mxu0 %v511
      %v1542 = vpop.f32.mrb[0].mxu0
      %v1543 = vadd.f32 %v1438, %v1542
      %v1544 = vpop.f32.mrb[0].mxu0
      %1545 = vmatprep.mubr.f32.mxu0 %v520
      %1546 = vmatmul.mubr.f32.gmra.mrb[0].mxu0 %v512
      %v1547 = vpop.f32.mrb[0].mxu0
      %v1548 = vadd.f32 %v1443, %v1547
      %v1549 = vpop.f32.mrb[0].mxu0
      %1550 = vmatprep.mubr.f32.mxu0 %v521
      %1551 = vmatmul.mubr.f32.gmra.mrb[0].mxu0 %v513
      %v1552 = vpop.f32.mrb[0].mxu0
      %v1553 = vadd.f32 %v1448, %v1552
      %v1554 = vpop.f32.mrb[0].mxu0
      %1555 = vmatprep.mubr.f32.mxu0 %v543
      %1556 = vmatmul.mubr.f32.gmra.mrb[0].mxu0 %v542
      %v1557 = vpop.f32.mrb[0].mxu0
      %v1558 = vadd.f32 %v1453, %v1557
      %v1559 = vpop.f32.mrb[0].mxu0
      %1560 = vdwg.mxu0
      %1561 = vmatprep.subr.mxu0 0.0
      %1562 = vmatpush1.msra.mxu0 %v778
      %1563 = vmatprep.subr.mxu0 0.0
      %1564 = vmatpush1.msra.mxu0 %v779
      %1565 = vmatprep.subr.mxu0 0.0
      %1566 = vmatpush1.msra.mxu0 %v780
      %1567 = vmatprep.subr.mxu0 0.0
      %1568 = vmatpush1.msra.mxu0 %v781
      %1569 = vmatprep.subr.mxu0 0.0
      %1570 = vmatpush1.msra.mxu0 %v782
      %1571 = vmatprep.subr.mxu0 0.0
      %1572 = vmatpush1.msra.mxu0 %v783
      %1573 = vmatprep.subr.mxu0 0.0
      %1574 = vmatpush1.msra.mxu0 %v784
      %1575 = vmatprep.subr.mxu0 0.0
      %1576 = vmatpush1.msra.mxu0 %v785
      %1577 = vmatprep.subr.mxu0 0.0
      %1578 = vmatpush1.msra.mxu0 %v786
      %1579 = vmatprep.subr.mxu0 0.0
      %1580 = vmatpush1.msra.mxu0 %v787
      %1581 = vmatprep.subr.mxu0 0.0
      %1582 = vmatpush1.msra.mxu0 %v788
      %1583 = vmatprep.subr.mxu0 0.0
      %1584 = vmatpush1.msra.mxu0 %v789
      %1585 = vmatprep.subr.mxu0 0.0
      %1586 = vmatpush1.msra.mxu0 %v790
      %1587 = vmatprep.subr.mxu0 0.0
      %1588 = vmatpush1.msra.mxu0 %v791
      %1589 = vmatprep.subr.mxu0 0.0
      %1590 = vmatpush1.msra.mxu0 %v792
      %1591 = vmatprep.subr.mxu0 0.0
      %1592 = vmatpush1.msra.mxu0 %v793
      %1593 = vmatprep.subr.mxu0 0.0
      %1594 = vmatpush1.msra.mxu0 %v794
      %1595 = vmatprep.subr.mxu0 0.0
      %1596 = vmatpush1.msra.mxu0 %v795
      %1597 = vmatprep.subr.mxu0 0.0
      %1598 = vmatpush1.msra.mxu0 %v796
      %1599 = vmatprep.subr.mxu0 0.0
      %1600 = vmatpush1.msra.mxu0 %v797
      %1601 = vmatprep.subr.mxu0 0.0
      %1602 = vmatpush1.msra.mxu0 %v798
      %1603 = vmatprep.subr.mxu0 0.0
      %1604 = vmatpush1.msra.mxu0 %v799
      %1605 = vmatprep.subr.mxu0 0.0
      %1606 = vmatpush1.msra.mxu0 %v800
      %1607 = vmatprep.subr.mxu0 0.0
      %1608 = vmatpush1.msra.mxu0 %v801
      %1609 = vmatprep.subr.mxu0 0.0
      %1610 = vmatpush1.msra.mxu0 %v802
      %1611 = vmatprep.subr.mxu0 0.0
      %1612 = vmatpush1.msra.mxu0 %v803
      %1613 = vmatprep.subr.mxu0 0.0
      %1614 = vmatpush1.msra.mxu0 %v804
      %1615 = vmatprep.subr.mxu0 0.0
      %1616 = vmatpush1.msra.mxu0 %v805
      %1617 = vmatprep.subr.mxu0 0.0
      %1618 = vmatpush1.msra.mxu0 %v806
      %1619 = vmatprep.subr.mxu0 0.0
      %1620 = vmatpush1.msra.mxu0 %v807
      %1621 = vmatprep.subr.mxu0 0.0
      %1622 = vmatpush1.msra.mxu0 %v808
      %1623 = vmatprep.subr.mxu0 0.0
      %1624 = vmatpush1.msra.mxu0 %v809
      %1625 = vmatprep.mubr.f32.mxu0 %v531
      %1626 = vmatmul.mubr.f32.gmra.mrb[0].mxu0 %v523
      %v1627 = vpop.f32.mrb[0].mxu0
      %v1628 = vadd.f32 %v1523, %v1627
      %v1629 = vpop.f32.mrb[0].mxu0
      %1630 = vmatprep.mubr.f32.mxu0 %v532
      %1631 = vmatmul.mubr.f32.gmra.mrb[0].mxu0 %v524
      %v1632 = vpop.f32.mrb[0].mxu0
      %v1633 = vadd.f32 %v1528, %v1632
      %v1634 = vpop.f32.mrb[0].mxu0
      %1635 = vmatprep.mubr.f32.mxu0 %v533
      %1636 = vmatmul.mubr.f32.gmra.mrb[0].mxu0 %v525
      %v1637 = vpop.f32.mrb[0].mxu0
      %v1638 = vadd.f32 %v1533, %v1637
      %v1639 = vpop.f32.mrb[0].mxu0
      %1640 = vmatprep.mubr.f32.mxu0 %v534
      %1641 = vmatmul.mubr.f32.gmra.mrb[0].mxu0 %v526
      %v1642 = vpop.f32.mrb[0].mxu0
      %v1643 = vadd.f32 %v1538, %v1642
      %v1644 = vpop.f32.mrb[0].mxu0
      %1645 = vmatprep.mubr.f32.mxu0 %v535
      %1646 = vmatmul.mubr.f32.gmra.mrb[0].mxu0 %v527
      %v1647 = vpop.f32.mrb[0].mxu0
      %v1648 = vadd.f32 %v1543, %v1647
      %v1649 = vpop.f32.mrb[0].mxu0
      %1650 = vmatprep.mubr.f32.mxu0 %v536
      %1651 = vmatmul.mubr.f32.gmra.mrb[0].mxu0 %v528
      %v1652 = vpop.f32.mrb[0].mxu0
      %v1653 = vadd.f32 %v1548, %v1652
      %v1654 = vpop.f32.mrb[0].mxu0
      %1655 = vmatprep.mubr.f32.mxu0 %v537
      %1656 = vmatmul.mubr.f32.gmra.mrb[0].mxu0 %v529
      %v1657 = vpop.f32.mrb[0].mxu0
      %v1658 = vadd.f32 %v1553, %v1657
      %v1659 = vpop.f32.mrb[0].mxu0
      %1660 = vmatprep.mubr.f32.mxu0 %v545
      %1661 = vmatmul.mubr.f32.gmra.mrb[0].mxu0 %v544
      %v1662 = vpop.f32.mrb[0].mxu0
      %v1663 = vadd.f32 %v1558, %v1662
      %v1664 = vpop.f32.mrb[0].mxu0
      %1665 = vdwg.mxu0
      %1666 = vmatprep.subr.mxu0 0.0
      %1667 = vmatpush1.msra.mxu0 %v810
      %1668 = vmatprep.subr.mxu0 0.0
      %1669 = vmatpush1.msra.mxu0 %v811
      %1670 = vmatprep.subr.mxu0 0.0
      %1671 = vmatpush1.msra.mxu0 %v812
      %1672 = vmatprep.subr.mxu0 0.0
      %1673 = vmatpush1.msra.mxu0 %v813
      %1674 = vmatprep.subr.mxu0 0.0
      %1675 = vmatpush1.msra.mxu0 %v814
      %1676 = vmatprep.subr.mxu0 0.0
      %1677 = vmatpush1.msra.mxu0 %v815
      %1678 = vmatprep.subr.mxu0 0.0
      %1679 = vmatpush1.msra.mxu0 %v816
      %1680 = vmatprep.subr.mxu0 0.0
      %1681 = vmatpush1.msra.mxu0 %v817
      %1682 = vmatprep.subr.mxu0 0.0
      %1683 = vmatpush1.msra.mxu0 %v818
      %1684 = vmatprep.subr.mxu0 0.0
      %1685 = vmatpush1.msra.mxu0 %v819
      %1686 = vmatprep.subr.mxu0 0.0
      %1687 = vmatpush1.msra.mxu0 %v820
      %1688 = vmatprep.subr.mxu0 0.0
      %1689 = vmatpush1.msra.mxu0 %v821
      %1690 = vmatprep.subr.mxu0 0.0
      %1691 = vmatpush1.msra.mxu0 %v822
      %1692 = vmatprep.subr.mxu0 0.0
      %1693 = vmatpush1.msra.mxu0 %v823
      %1694 = vmatprep.subr.mxu0 0.0
      %1695 = vmatpush1.msra.mxu0 %v824
      %1696 = vmatprep.subr.mxu0 0.0
      %1697 = vmatpush1.msra.mxu0 %v825
      %1698 = vmatprep.subr.mxu0 0.0
      %1699 = vmatpush1.msra.mxu0 0.0
      %1700 = vmatprep.subr.mxu0 0.0
      %1701 = vmatpush1.msra.mxu0 0.0
      %1702 = vmatprep.subr.mxu0 0.0
      %1703 = vmatpush1.msra.mxu0 0.0
      %1704 = vmatprep.subr.mxu0 0.0
      %1705 = vmatpush1.msra.mxu0 0.0
      %1706 = vmatprep.subr.mxu0 0.0
      %1707 = vmatpush1.msra.mxu0 0.0
      %1708 = vmatprep.subr.mxu0 0.0
      %1709 = vmatpush1.msra.mxu0 0.0
      %1710 = vmatprep.subr.mxu0 0.0
      %1711 = vmatpush1.msra.mxu0 0.0
      %1712 = vmatprep.subr.mxu0 0.0
      %1713 = vmatpush1.msra.mxu0 0.0
      %1714 = vmatprep.subr.mxu0 0.0
      %1715 = vmatpush1.msra.mxu0 0.0
      %1716 = vmatprep.subr.mxu0 0.0
      %1717 = vmatpush1.msra.mxu0 0.0
      %1718 = vmatprep.subr.mxu0 0.0
      %1719 = vmatpush1.msra.mxu0 0.0
      %1720 = vmatprep.subr.mxu0 0.0
      %1721 = vmatpush1.msra.mxu0 0.0
      %1722 = vmatprep.subr.mxu0 0.0
      %1723 = vmatpush1.msra.mxu0 0.0
      %1724 = vmatprep.subr.mxu0 0.0
      %1725 = vmatpush1.msra.mxu0 0.0
      %1726 = vmatprep.subr.mxu0 0.0
      %1727 = vmatpush1.msra.mxu0 0.0
      %1728 = vmatprep.subr.mxu0 0.0
      %1729 = vmatpush1.msra.mxu0 0.0
      %1730 = vmatprep.mubr.f32.mxu0 0.0
      %1731 = vmatmul.mubr.f32.gmra.mrb[0].mxu0 %v546
      %v1732 = vpop.f32.mrb[0].mxu0
      %v1733 = vadd.f32 %v1628, %v1732
      %v1734 = vpop.f32.mrb[0].mxu0
      %1735 = vmatprep.mubr.f32.mxu0 0.0
      %1736 = vmatmul.mubr.f32.gmra.mrb[0].mxu0 %v547
      %v1737 = vpop.f32.mrb[0].mxu0
      %v1738 = vadd.f32 %v1633, %v1737
      %v1739 = vpop.f32.mrb[0].mxu0
      %1740 = vmatprep.mubr.f32.mxu0 0.0
      %1741 = vmatmul.mubr.f32.gmra.mrb[0].mxu0 %v548
      %v1742 = vpop.f32.mrb[0].mxu0
      %v1743 = vadd.f32 %v1638, %v1742
      %v1744 = vpop.f32.mrb[0].mxu0
      %1745 = vmatprep.mubr.f32.mxu0 0.0
      %1746 = vmatmul.mubr.f32.gmra.mrb[0].mxu0 %v549
      %v1747 = vpop.f32.mrb[0].mxu0
      %v1748 = vadd.f32 %v1643, %v1747
      %v1749 = vpop.f32.mrb[0].mxu0
      %1750 = vmatprep.mubr.f32.mxu0 0.0
      %1751 = vmatmul.mubr.f32.gmra.mrb[0].mxu0 %v550
      %v1752 = vpop.f32.mrb[0].mxu0
      %v1753 = vadd.f32 %v1648, %v1752
      %v1754 = vpop.f32.mrb[0].mxu0
      %1755 = vmatprep.mubr.f32.mxu0 0.0
      %1756 = vmatmul.mubr.f32.gmra.mrb[0].mxu0 %v551
      %v1757 = vpop.f32.mrb[0].mxu0
      %v1758 = vadd.f32 %v1653, %v1757
      %v1759 = vpop.f32.mrb[0].mxu0
      %1760 = vmatprep.mubr.f32.mxu0 0.0
      %1761 = vmatmul.mubr.f32.gmra.mrb[0].mxu0 %v552
      %v1762 = vpop.f32.mrb[0].mxu0
      %v1763 = vadd.f32 %v1658, %v1762
      %v1764 = vpop.f32.mrb[0].mxu0
      %1765 = vmatprep.mubr.f32.mxu0 0.0
      %1766 = vmatmul.mubr.f32.gmra.mrb[0].mxu0 %v553
      %v1767 = vpop.f32.mrb[0].mxu0
      %v1768 = vadd.f32 %v1663, %v1767
      %v1769 = vpop.f32.mrb[0].mxu0
      %1770 = vdwg.mxu0
      %v1771 = vld [vmem:[%s7] sm:$0x1]
      %v1773 = vlaneseq
      %v1774 = vshrl.u32 %v1773, 7
      %v1775 = vsub.s32 0, %v1774
      %v1776 = vrot.slane %v1771, %v1775
      %v1778 = vmul.f32 %v1733, %v1776
      %v1779 = vmul.f32 %v1738, %v1776
      %v1780 = vmul.f32 %v1743, %v1776
      %v1781 = vmul.f32 %v1748, %v1776
      %v1782 = vmul.f32 %v1753, %v1776
      %v1783 = vmul.f32 %v1758, %v1776
      %v1784 = vmul.f32 %v1763, %v1776
      %v1785 = vmul.f32 %v1768, %v1776
      %v1786 = vld [vmem:[%s8] sm:$0x1]
      %v1788 = vlaneseq
      %v1789 = vshrl.u32 %v1788, 7
      %v1790 = vsub.s32 0, %v1789
      %v1791 = vrot.slane %v1786, %v1790
      %v1793 = vadd.f32 %v1778, %v1791
      %v1794 = vadd.f32 %v1779, %v1791
      %v1795 = vadd.f32 %v1780, %v1791
      %v1796 = vadd.f32 %v1781, %v1791
      %v1797 = vadd.f32 %v1782, %v1791
      %v1798 = vadd.f32 %v1783, %v1791
      %v1799 = vadd.f32 %v1784, %v1791
      %v1800 = vadd.f32 %v1785, %v1791
      %v1801 = vmax.f32 %v1793, 0.0
      %v1802 = vmax.f32 %v1794, 0.0
      %v1803 = vmax.f32 %v1795, 0.0
      %v1804 = vmax.f32 %v1796, 0.0
      %v1805 = vmax.f32 %v1797, 0.0
      %v1806 = vmax.f32 %v1798, 0.0
      %v1807 = vmax.f32 %v1799, 0.0
      %v1808 = vmax.f32 %v1800, 0.0
      %v1809 = vld [vmem:[%s5] sm:$0xff]
      %v1810 = vld [vmem:[%s5 + $0x8] sm:$0xff]
      %v1811 = vld [vmem:[%s5 + $0x10] sm:$0xff]
      %v1812 = vld [vmem:[%s5 + $0x18] sm:$0xff]
      %v1813 = vld [vmem:[%s5 + $0x20] sm:$0xff]
      %v1814 = vld [vmem:[%s5 + $0x28] sm:$0xff]
      %v1815 = vld [vmem:[%s5 + $0x30] sm:$0xff]
      %v1816 = vld [vmem:[%s5 + $0x38] sm:$0xff]
      %v1817 = vld [vmem:[%s5 + $0x40] sm:$0xff]
      %v1818 = vld [vmem:[%s5 + $0x48] sm:$0xff]
      %vm1819 = vcmask 523264
      %v1821 = vsel %vm1819, %v1809, 0
      %v1824 = vsel %vm1819, %v1810, 0
      %v1827 = vsel %vm1819, %v1811, 0
      %v1830 = vsel %vm1819, %v1812, 0
      %v1833 = vsel %vm1819, %v1813, 0
      %v1836 = vsel %vm1819, %v1814, 0
      %v1839 = vsel %vm1819, %v1815, 0
      %v1842 = vsel %vm1819, %v1816, 0
      %v1845 = vsel %vm1819, %v1817, 0
      %v1848 = vsel %vm1819, %v1818, 0
      %1850 = vmatprep.subr.mxu0 0.0
      %1851 = vmatpush1.msra.mxu0 %v1801
      %1852 = vmatprep.subr.mxu0 0.0
      %1853 = vmatpush1.msra.mxu0 %v1802
      %1854 = vmatprep.subr.mxu0 0.0
      %1855 = vmatpush1.msra.mxu0 %v1803
      %1856 = vmatprep.subr.mxu0 0.0
      %1857 = vmatpush1.msra.mxu0 %v1804
      %1858 = vmatprep.subr.mxu0 0.0
      %1859 = vmatpush1.msra.mxu0 %v1805
      %1860 = vmatprep.subr.mxu0 0.0
      %1861 = vmatpush1.msra.mxu0 %v1806
      %1862 = vmatprep.subr.mxu0 0.0
      %1863 = vmatpush1.msra.mxu0 %v1807
      %1864 = vmatprep.subr.mxu0 0.0
      %1865 = vmatpush1.msra.mxu0 %v1808
      %1866 = vmatprep.subr.mxu0 0.0
      %1867 = vmatpush1.msra.mxu0 0.0
      %1868 = vmatprep.subr.mxu0 0.0
      %1869 = vmatpush1.msra.mxu0 0.0
      %1870 = vmatprep.subr.mxu0 0.0
      %1871 = vmatpush1.msra.mxu0 0.0
      %1872 = vmatprep.subr.mxu0 0.0
      %1873 = vmatpush1.msra.mxu0 0.0
      %1874 = vmatprep.subr.mxu0 0.0
      %1875 = vmatpush1.msra.mxu0 0.0
      %1876 = vmatprep.subr.mxu0 0.0
      %1877 = vmatpush1.msra.mxu0 0.0
      %1878 = vmatprep.subr.mxu0 0.0
      %1879 = vmatpush1.msra.mxu0 0.0
      %1880 = vmatprep.subr.mxu0 0.0
      %1881 = vmatpush1.msra.mxu0 0.0
      %1882 = vmatprep.subr.mxu0 0.0
      %1883 = vmatpush1.msra.mxu0 0.0
      %1884 = vmatprep.subr.mxu0 0.0
      %1885 = vmatpush1.msra.mxu0 0.0
      %1886 = vmatprep.subr.mxu0 0.0
      %1887 = vmatpush1.msra.mxu0 0.0
      %1888 = vmatprep.subr.mxu0 0.0
      %1889 = vmatpush1.msra.mxu0 0.0
      %1890 = vmatprep.subr.mxu0 0.0
      %1891 = vmatpush1.msra.mxu0 0.0
      %1892 = vmatprep.subr.mxu0 0.0
      %1893 = vmatpush1.msra.mxu0 0.0
      %1894 = vmatprep.subr.mxu0 0.0
      %1895 = vmatpush1.msra.mxu0 0.0
      %1896 = vmatprep.subr.mxu0 0.0
      %1897 = vmatpush1.msra.mxu0 0.0
      %1898 = vmatprep.subr.mxu0 0.0
      %1899 = vmatpush1.msra.mxu0 0.0
      %1900 = vmatprep.subr.mxu0 0.0
      %1901 = vmatpush1.msra.mxu0 0.0
      %1902 = vmatprep.subr.mxu0 0.0
      %1903 = vmatpush1.msra.mxu0 0.0
      %1904 = vmatprep.subr.mxu0 0.0
      %1905 = vmatpush1.msra.mxu0 0.0
      %1906 = vmatprep.subr.mxu0 0.0
      %1907 = vmatpush1.msra.mxu0 0.0
      %1908 = vmatprep.subr.mxu0 0.0
      %1909 = vmatpush1.msra.mxu0 0.0
      %1910 = vmatprep.subr.mxu0 0.0
      %1911 = vmatpush1.msra.mxu0 0.0
      %1912 = vmatprep.subr.mxu0 0.0
      %1913 = vmatpush1.msra.mxu0 0.0
      %1914 = vmatprep.mubr.f32.mxu0 0.0
      %1915 = vmatmul.mubr.f32.gmra.mrb[0].mxu0 %v1821
      %v1916 = vpop.f32.mrb[0].mxu0
      %v1917 = vadd.f32 0.0, %v1916
      %v1918 = vpop.f32.mrb[0].mxu0
      %1919 = vmatprep.mubr.f32.mxu0 0.0
      %1920 = vmatmul.mubr.f32.gmra.mrb[0].mxu0 %v1824
      %v1921 = vpop.f32.mrb[0].mxu0
      %v1922 = vadd.f32 0.0, %v1921
      %v1923 = vpop.f32.mrb[0].mxu0
      %1924 = vmatprep.mubr.f32.mxu0 0.0
      %1925 = vmatmul.mubr.f32.gmra.mrb[0].mxu0 %v1827
      %v1926 = vpop.f32.mrb[0].mxu0
      %v1927 = vadd.f32 0.0, %v1926
      %v1928 = vpop.f32.mrb[0].mxu0
      %1929 = vmatprep.mubr.f32.mxu0 0.0
      %1930 = vmatmul.mubr.f32.gmra.mrb[0].mxu0 %v1830
      %v1931 = vpop.f32.mrb[0].mxu0
      %v1932 = vadd.f32 0.0, %v1931
      %v1933 = vpop.f32.mrb[0].mxu0
      %1934 = vmatprep.mubr.f32.mxu0 0.0
      %1935 = vmatmul.mubr.f32.gmra.mrb[0].mxu0 %v1833
      %v1936 = vpop.f32.mrb[0].mxu0
      %v1937 = vadd.f32 0.0, %v1936
      %v1938 = vpop.f32.mrb[0].mxu0
      %1939 = vmatprep.mubr.f32.mxu0 0.0
      %1940 = vmatmul.mubr.f32.gmra.mrb[0].mxu0 %v1836
      %v1941 = vpop.f32.mrb[0].mxu0
      %v1942 = vadd.f32 0.0, %v1941
      %v1943 = vpop.f32.mrb[0].mxu0
      %1944 = vmatprep.mubr.f32.mxu0 0.0
      %1945 = vmatmul.mubr.f32.gmra.mrb[0].mxu0 %v1839
      %v1946 = vpop.f32.mrb[0].mxu0
      %v1947 = vadd.f32 0.0, %v1946
      %v1948 = vpop.f32.mrb[0].mxu0
      %1949 = vmatprep.mubr.f32.mxu0 0.0
      %1950 = vmatmul.mubr.f32.gmra.mrb[0].mxu0 %v1842
      %v1951 = vpop.f32.mrb[0].mxu0
      %v1952 = vadd.f32 0.0, %v1951
      %v1953 = vpop.f32.mrb[0].mxu0
      %1954 = vmatprep.mubr.f32.mxu0 0.0
      %1955 = vmatmul.mubr.f32.gmra.mrb[0].mxu0 %v1845
      %v1956 = vpop.f32.mrb[0].mxu0
      %v1957 = vadd.f32 0.0, %v1956
      %v1958 = vpop.f32.mrb[0].mxu0
      %1959 = vmatprep.mubr.f32.mxu0 0.0
      %1960 = vmatmul.mubr.f32.gmra.mrb[0].mxu0 %v1848
      %v1961 = vpop.f32.mrb[0].mxu0
      %v1962 = vadd.f32 0.0, %v1961
      %v1963 = vpop.f32.mrb[0].mxu0
      %1964 = vdwg.mxu0
      %vm1968 = vcmask 1043456
      %v1969 = vrot.slane %v1927, 4
      %v1970 = vrot.slane %v1932, 4
      %v1971 = vsel %vm1968, %v1969, %v1970
      %v1972 = vrot.slane %v1937, 4
      %v1973 = vsel %vm1968, %v1970, %v1972
      %v1979 = vrot.slane %v1952, 4
      %v1980 = vrot.slane %v1957, 4
      %v1981 = vsel %vm1968, %v1979, %v1980
      %v1982 = vrot.slane %v1962, 4
      %v1983 = vsel %vm1968, %v1980, %v1982
      %vm1988 = vcmask 1046528
      %v1989 = vrot.slane %v1917, 1
      %v1990 = vrot.slane %v1922, 1
      %v1991 = vsel %vm1988, %v1989, %v1990
      %v1992 = vrot.slane %v1927, 1
      %v1993 = vsel %vm1988, %v1990, %v1992
      %vm1996 = vcmask 1042432
      %v1997 = vrot.slane %v1927, 5
      %v1998 = vrot.slane %v1932, 5
      %v1999 = vsel %vm1996, %v1997, %v1998
      %v2000 = vrot.slane %v1937, 5
      %v2001 = vsel %vm1996, %v1998, %v2000
      %v2006 = vrot.slane %v1942, 1
      %v2007 = vrot.slane %v1947, 1
      %v2008 = vsel %vm1988, %v2006, %v2007
      %v2009 = vrot.slane %v1952, 1
      %v2010 = vsel %vm1988, %v2007, %v2009
      %v2013 = vrot.slane %v1952, 5
      %v2014 = vrot.slane %v1957, 5
      %v2015 = vsel %vm1996, %v2013, %v2014
      %v2016 = vrot.slane %v1962, 5
      %v2017 = vsel %vm1996, %v2014, %v2016
      %vm2020 = vcmask 1045504
      %v2021 = vrot.slane %v1917, 2
      %v2022 = vrot.slane %v1922, 2
      %v2023 = vsel %vm2020, %v2021, %v2022
      %v2024 = vrot.slane %v1927, 2
      %v2025 = vsel %vm2020, %v2022, %v2024
      %vm2028 = vcmask 1041408
      %v2029 = vrot.slane %v1927, 6
      %v2030 = vrot.slane %v1932, 6
      %v2031 = vsel %vm2028, %v2029, %v2030
      %v2032 = vrot.slane %v1937, 6
      %v2033 = vsel %vm2028, %v2030, %v2032
      %v2036 = vrot.slane %v1942, 2
      %v2037 = vrot.slane %v1947, 2
      %v2038 = vsel %vm2020, %v2036, %v2037
      %v2039 = vrot.slane %v1952, 2
      %v2040 = vsel %vm2020, %v2037, %v2039
      %v2043 = vrot.slane %v1952, 6
      %v2044 = vrot.slane %v1957, 6
      %v2045 = vsel %vm2028, %v2043, %v2044
      %v2046 = vrot.slane %v1962, 6
      %v2047 = vsel %vm2028, %v2044, %v2046
      %vm2050 = vcmask 1044480
      %v2051 = vrot.slane %v1917, 3
      %v2052 = vrot.slane %v1922, 3
      %v2053 = vsel %vm2050, %v2051, %v2052
      %v2054 = vrot.slane %v1927, 3
      %v2055 = vsel %vm2050, %v2052, %v2054
      %vm2058 = vcmask 1040384
      %v2059 = vrot.slane %v1927, 7
      %v2060 = vrot.slane %v1932, 7
      %v2061 = vsel %vm2058, %v2059, %v2060
      %v2062 = vrot.slane %v1937, 7
      %v2063 = vsel %vm2058, %v2060, %v2062
      %v2066 = vrot.slane %v1942, 3
      %v2067 = vrot.slane %v1947, 3
      %v2068 = vsel %vm2050, %v2066, %v2067
      %v2069 = vrot.slane %v1952, 3
      %v2070 = vsel %vm2050, %v2067, %v2069
      %v2073 = vrot.slane %v1952, 7
      %v2074 = vrot.slane %v1957, 7
      %v2075 = vsel %vm2058, %v2073, %v2074
      %v2076 = vrot.slane %v1962, 7
      %v2077 = vsel %vm2058, %v2074, %v2076
      %v2080 = vrot.slane %v1917, 4
      %v2081 = vrot.slane %v1922, 4
      %v2082 = vsel %vm1968, %v2080, %v2081
      %v2083 = vrot.slane %v1970, 4
      %v2084 = vrot.slane %v1973, 4
      %v2085 = vsel %vm1968, %v2083, %v2084
      %v2086 = vrot.slane %v1942, 4
      %v2087 = vrot.slane %v1947, 4
      %v2088 = vsel %vm1968, %v2086, %v2087
      %v2089 = vrot.slane %v1980, 4
      %v2090 = vrot.slane %v1983, 4
      %v2091 = vsel %vm1968, %v2089, %v2090
      %v2092 = vsel %vm1968, %v2081, %v1969
      %v2093 = vrot.slane %v1972, 4
      %v2094 = vsel %vm1968, %v2084, %v2093
      %v2095 = vsel %vm1968, %v2087, %v1979
      %v2096 = vrot.slane %v1982, 4
      %v2097 = vsel %vm1968, %v2090, %v2096
      %v2106 = vld [vmem:[%s3] sm:$0xff]
      %v2107 = vld [vmem:[%s3 + $0x8] sm:$0xff]
      %v2108 = vld [vmem:[%s3 + $0x10] sm:$0xff]
      %v2109 = vld [vmem:[%s3 + $0x18] sm:$0xff]
      %v2110 = vld [vmem:[%s3 + $0x20] sm:$0xff]
      %v2111 = vld [vmem:[%s3 + $0x28] sm:$0xff]
      %v2112 = vld [vmem:[%s3 + $0x30] sm:$0xff]
      %v2113 = vld [vmem:[%s3 + $0x38] sm:$0xff]
      %v2114 = vld [vmem:[%s3 + $0x40] sm:$0xff]
      %v2115 = vld [vmem:[%s3 + $0x48] sm:$0xff]
      %v2116 = vld [vmem:[%s3 + $0x50] sm:$0xff]
      %v2117 = vld [vmem:[%s3 + $0x58] sm:$0xff]
      %v2118 = vld [vmem:[%s3 + $0x60] sm:$0xff]
      %v2119 = vld [vmem:[%s3 + $0x68] sm:$0xff]
      %v2120 = vld [vmem:[%s3 + $0x70] sm:$0xff]
      %v2121 = vld [vmem:[%s3 + $0x78] sm:$0xff]
      %v2122 = vld [vmem:[%s3 + $0x80] sm:$0xff]
      %v2123 = vld [vmem:[%s3 + $0x88] sm:$0xff]
      %v2124 = vld [vmem:[%s3 + $0x90] sm:$0xff]
      %v2125 = vld [vmem:[%s3 + $0x98] sm:$0xff]
      %v2126 = vld [vmem:[%s3 + $0xa0] sm:$0xff]
      %v2127 = vld [vmem:[%s3 + $0xa8] sm:$0xff]
      %v2128 = vld [vmem:[%s3 + $0xb0] sm:$0xff]
      %v2129 = vld [vmem:[%s3 + $0xb8] sm:$0xff]
      %v2130 = vld [vmem:[%s3 + $0xc0] sm:$0xff]
      %v2131 = vld [vmem:[%s3 + $0xc8] sm:$0xff]
      %v2132 = vld [vmem:[%s3 + $0xd0] sm:$0xff]
      %v2133 = vld [vmem:[%s3 + $0xd8] sm:$0xff]
      %v2134 = vld [vmem:[%s3 + $0xe0] sm:$0xff]
      %v2135 = vld [vmem:[%s3 + $0xe8] sm:$0xff]
      %v2136 = vld [vmem:[%s3 + $0xf0] sm:$0xff]
      %v2137 = vld [vmem:[%s3 + $0xf8] sm:$0xff]
      %v2138 = vld [vmem:[%s3 + $0x100] sm:$0xff]
      %v2139 = vld [vmem:[%s3 + $0x108] sm:$0xff]
      %v2140 = vld [vmem:[%s3 + $0x110] sm:$0xff]
      %v2141 = vld [vmem:[%s3 + $0x118] sm:$0xff]
      %v2142 = vld [vmem:[%s3 + $0x120] sm:$0xff]
      %v2143 = vld [vmem:[%s3 + $0x128] sm:$0xff]
      %v2144 = vld [vmem:[%s3 + $0x130] sm:$0xff]
      %v2145 = vld [vmem:[%s3 + $0x138] sm:$0xff]
      %v2146 = vld [vmem:[%s3 + $0x140] sm:$0xff]
      %v2147 = vld [vmem:[%s3 + $0x148] sm:$0xff]
      %v2148 = vld [vmem:[%s3 + $0x150] sm:$0xff]
      %v2149 = vld [vmem:[%s3 + $0x158] sm:$0xff]
      %v2150 = vld [vmem:[%s3 + $0x160] sm:$0xff]
      %v2151 = vld [vmem:[%s3 + $0x168] sm:$0xff]
      %v2152 = vld [vmem:[%s3 + $0x170] sm:$0xff]
      %v2153 = vld [vmem:[%s3 + $0x178] sm:$0xff]
      %v2154 = vld [vmem:[%s3 + $0x180] sm:$0xff]
      %v2155 = vld [vmem:[%s3 + $0x188] sm:$0xff]
      %v2156 = vld [vmem:[%s3 + $0x190] sm:$0xff]
      %v2157 = vld [vmem:[%s3 + $0x198] sm:$0xff]
      %v2158 = vld [vmem:[%s3 + $0x1a0] sm:$0xff]
      %v2159 = vld [vmem:[%s3 + $0x1a8] sm:$0xff]
      %v2160 = vld [vmem:[%s3 + $0x1b0] sm:$0xff]
      %v2161 = vld [vmem:[%s3 + $0x1b8] sm:$0xff]
      %v2162 = vld [vmem:[%s3 + $0x1c0] sm:$0xff]
      %v2163 = vld [vmem:[%s3 + $0x1c8] sm:$0xff]
      %v2164 = vld [vmem:[%s3 + $0x1d0] sm:$0xff]
      %v2165 = vld [vmem:[%s3 + $0x1d8] sm:$0xff]
      %v2166 = vld [vmem:[%s3 + $0x1e0] sm:$0xff]
      %v2167 = vld [vmem:[%s3 + $0x1e8] sm:$0xff]
      %v2168 = vld [vmem:[%s3 + $0x1f0] sm:$0xff]
      %v2169 = vld [vmem:[%s3 + $0x1f8] sm:$0xff]
      %v2170 = vld [vmem:[%s3 + $0x200] sm:$0xff]
      %v2171 = vld [vmem:[%s3 + $0x208] sm:$0xff]
      %v2172 = vld [vmem:[%s3 + $0x210] sm:$0xff]
      %v2173 = vld [vmem:[%s3 + $0x218] sm:$0xff]
      %v2174 = vld [vmem:[%s3 + $0x220] sm:$0xff]
      %v2175 = vld [vmem:[%s3 + $0x228] sm:$0xff]
      %v2176 = vld [vmem:[%s3 + $0x230] sm:$0xff]
      %v2177 = vld [vmem:[%s3 + $0x238] sm:$0xff]
      %v2178 = vld [vmem:[%s3 + $0x240] sm:$0xff]
      %v2179 = vld [vmem:[%s3 + $0x248] sm:$0xff]
      %v2180 = vld [vmem:[%s3 + $0x250] sm:$0xff]
      %v2181 = vld [vmem:[%s3 + $0x258] sm:$0xff]
      %v2182 = vld [vmem:[%s3 + $0x260] sm:$0xff]
      %v2183 = vld [vmem:[%s3 + $0x268] sm:$0xff]
      %v2184 = vld [vmem:[%s3 + $0x270] sm:$0xff]
      %v2185 = vld [vmem:[%s3 + $0x278] sm:$0xff]
      %v2186 = vld [vmem:[%s3 + $0x280] sm:$0xff]
      %v2187 = vld [vmem:[%s3 + $0x288] sm:$0xff]
      %v2188 = vld [vmem:[%s3 + $0x290] sm:$0xff]
      %v2189 = vld [vmem:[%s3 + $0x298] sm:$0xff]
      %v2190 = vld [vmem:[%s3 + $0x2a0] sm:$0xff]
      %v2191 = vld [vmem:[%s3 + $0x2a8] sm:$0xff]
      %v2192 = vld [vmem:[%s3 + $0x2b0] sm:$0xff]
      %v2193 = vld [vmem:[%s3 + $0x2b8] sm:$0xff]
      %v2194 = vld [vmem:[%s3 + $0x2c0] sm:$0xff]
      %v2195 = vld [vmem:[%s3 + $0x2c8] sm:$0xff]
      %v2196 = vld [vmem:[%s3 + $0x2d0] sm:$0xff]
      %v2197 = vld [vmem:[%s3 + $0x2d8] sm:$0xff]
      %v2198 = vld [vmem:[%s3 + $0x2e0] sm:$0xff]
      %v2199 = vld [vmem:[%s3 + $0x2e8] sm:$0xff]
      %v2200 = vld [vmem:[%s3 + $0x2f0] sm:$0xff]
      %v2201 = vld [vmem:[%s3 + $0x2f8] sm:$0xff]
      %v2202 = vld [vmem:[%s3 + $0x300] sm:$0xff]
      %v2203 = vld [vmem:[%s3 + $0x308] sm:$0xff]
      %v2204 = vld [vmem:[%s3 + $0x310] sm:$0xff]
      %v2205 = vld [vmem:[%s3 + $0x318] sm:$0xff]
      %v2206 = vld [vmem:[%s3 + $0x320] sm:$0xff]
      %v2207 = vld [vmem:[%s3 + $0x328] sm:$0xff]
      %v2208 = vld [vmem:[%s3 + $0x330] sm:$0xff]
      %v2209 = vld [vmem:[%s3 + $0x338] sm:$0xff]
      %v2210 = vld [vmem:[%s3 + $0x340] sm:$0xff]
      %v2211 = vld [vmem:[%s3 + $0x348] sm:$0xff]
      %v2212 = vld [vmem:[%s3 + $0x350] sm:$0xff]
      %v2213 = vld [vmem:[%s3 + $0x358] sm:$0xff]
      %v2214 = vld [vmem:[%s3 + $0x360] sm:$0xff]
      %v2215 = vld [vmem:[%s3 + $0x368] sm:$0xff]
      %v2216 = vld [vmem:[%s3 + $0x370] sm:$0xff]
      %v2217 = vld [vmem:[%s3 + $0x378] sm:$0xff]
      %v2218 = vld [vmem:[%s3 + $0x380] sm:$0xff]
      %v2219 = vld [vmem:[%s3 + $0x388] sm:$0xff]
      %v2220 = vld [vmem:[%s3 + $0x390] sm:$0xff]
      %v2221 = vld [vmem:[%s3 + $0x398] sm:$0xff]
      %v2222 = vld [vmem:[%s3 + $0x3a0] sm:$0xff]
      %v2223 = vld [vmem:[%s3 + $0x3a8] sm:$0xff]
      %v2224 = vld [vmem:[%s3 + $0x3b0] sm:$0xff]
      %v2225 = vld [vmem:[%s3 + $0x3b8] sm:$0xff]
      %v2226 = vld [vmem:[%s3 + $0x3c0] sm:$0xff]
      %v2227 = vld [vmem:[%s3 + $0x3c8] sm:$0xff]
      %v2228 = vld [vmem:[%s3 + $0x3d0] sm:$0xff]
      %v2229 = vld [vmem:[%s3 + $0x3d8] sm:$0xff]
      %v2230 = vld [vmem:[%s3 + $0x3e0] sm:$0xff]
      %v2231 = vld [vmem:[%s3 + $0x3e8] sm:$0xff]
      %v2232 = vld [vmem:[%s3 + $0x3f0] sm:$0xff]
      %v2233 = vld [vmem:[%s3 + $0x3f8] sm:$0xff]
      %v2234 = vld [vmem:[%s3 + $0x400] sm:$0xff]
      %v2235 = vld [vmem:[%s3 + $0x408] sm:$0xff]
      %v2236 = vld [vmem:[%s3 + $0x410] sm:$0xff]
      %v2237 = vld [vmem:[%s3 + $0x418] sm:$0xff]
      %v2238 = vld [vmem:[%s3 + $0x420] sm:$0xff]
      %v2239 = vld [vmem:[%s3 + $0x428] sm:$0xff]
      %v2240 = vld [vmem:[%s3 + $0x430] sm:$0xff]
      %v2241 = vld [vmem:[%s3 + $0x438] sm:$0xff]
      %v2242 = vld [vmem:[%s3 + $0x440] sm:$0xff]
      %v2243 = vld [vmem:[%s3 + $0x448] sm:$0xff]
      %v2244 = vld [vmem:[%s3 + $0x450] sm:$0xff]
      %v2245 = vld [vmem:[%s3 + $0x458] sm:$0xff]
      %v2246 = vld [vmem:[%s3 + $0x460] sm:$0xff]
      %v2247 = vld [vmem:[%s3 + $0x468] sm:$0xff]
      %v2248 = vld [vmem:[%s3 + $0x470] sm:$0xff]
      %v2249 = vld [vmem:[%s3 + $0x478] sm:$0xff]
      %v2250 = vld [vmem:[%s3 + $0x480] sm:$0xff]
      %v2251 = vld [vmem:[%s3 + $0x488] sm:$0xff]
      %v2252 = vld [vmem:[%s3 + $0x490] sm:$0xff]
      %v2253 = vld [vmem:[%s3 + $0x498] sm:$0xff]
      %v2254 = vld [vmem:[%s3 + $0x4a0] sm:$0xff]
      %v2255 = vld [vmem:[%s3 + $0x4a8] sm:$0xff]
      %v2256 = vld [vmem:[%s3 + $0x4b0] sm:$0xff]
      %v2257 = vld [vmem:[%s3 + $0x4b8] sm:$0xff]
      %v2258 = vld [vmem:[%s3 + $0x4c0] sm:$0xff]
      %v2259 = vld [vmem:[%s3 + $0x4c8] sm:$0xff]
      %v2260 = vld [vmem:[%s3 + $0x4d0] sm:$0xff]
      %v2261 = vld [vmem:[%s3 + $0x4d8] sm:$0xff]
      %v2262 = vld [vmem:[%s3 + $0x4e0] sm:$0xff]
      %v2263 = vld [vmem:[%s3 + $0x4e8] sm:$0xff]
      %v2264 = vld [vmem:[%s3 + $0x4f0] sm:$0xff]
      %v2265 = vld [vmem:[%s3 + $0x4f8] sm:$0xff]
      %v2266 = vld [vmem:[%s3 + $0x500] sm:$0xff]
      %v2267 = vld [vmem:[%s3 + $0x508] sm:$0xff]
      %v2268 = vld [vmem:[%s3 + $0x510] sm:$0xff]
      %v2269 = vld [vmem:[%s3 + $0x518] sm:$0xff]
      %v2270 = vld [vmem:[%s3 + $0x520] sm:$0xff]
      %v2271 = vld [vmem:[%s3 + $0x528] sm:$0xff]
      %v2272 = vld [vmem:[%s3 + $0x530] sm:$0xff]
      %v2273 = vld [vmem:[%s3 + $0x538] sm:$0xff]
      %v2274 = vld [vmem:[%s3 + $0x540] sm:$0xff]
      %v2275 = vld [vmem:[%s3 + $0x548] sm:$0xff]
      %v2276 = vld [vmem:[%s3 + $0x550] sm:$0xff]
      %v2277 = vld [vmem:[%s3 + $0x558] sm:$0xff]
      %v2278 = vld [vmem:[%s3 + $0x560] sm:$0xff]
      %v2279 = vld [vmem:[%s3 + $0x568] sm:$0xff]
      %v2280 = vld [vmem:[%s3 + $0x570] sm:$0xff]
      %v2281 = vld [vmem:[%s3 + $0x578] sm:$0xff]
      %v2282 = vld [vmem:[%s3 + $0x580] sm:$0xff]
      %v2283 = vld [vmem:[%s3 + $0x588] sm:$0xff]
      %v2284 = vld [vmem:[%s3 + $0x590] sm:$0xff]
      %v2285 = vld [vmem:[%s3 + $0x598] sm:$0xff]
      %v2286 = vld [vmem:[%s3 + $0x5a0] sm:$0xff]
      %v2287 = vld [vmem:[%s3 + $0x5a8] sm:$0xff]
      %v2288 = vld [vmem:[%s3 + $0x5b0] sm:$0xff]
      %v2289 = vld [vmem:[%s3 + $0x5b8] sm:$0xff]
      %v2290 = vld [vmem:[%s3 + $0x5c0] sm:$0xff]
      %v2291 = vld [vmem:[%s3 + $0x5c8] sm:$0xff]
      %v2292 = vld [vmem:[%s3 + $0x5d0] sm:$0xff]
      %v2293 = vld [vmem:[%s3 + $0x5d8] sm:$0xff]
      %v2294 = vld [vmem:[%s3 + $0x5e0] sm:$0xff]
      %v2295 = vld [vmem:[%s3 + $0x5e8] sm:$0xff]
      %v2296 = vld [vmem:[%s3 + $0x5f0] sm:$0xff]
      %v2297 = vld [vmem:[%s3 + $0x5f8] sm:$0xff]
      %v2298 = vld [vmem:[%s3 + $0x600] sm:$0xff]
      %v2299 = vld [vmem:[%s3 + $0x608] sm:$0xff]
      %v2300 = vld [vmem:[%s3 + $0x610] sm:$0xff]
      %v2301 = vld [vmem:[%s3 + $0x618] sm:$0xff]
      %v2302 = vld [vmem:[%s3 + $0x620] sm:$0xff]
      %v2303 = vld [vmem:[%s3 + $0x628] sm:$0xff]
      %v2304 = vld [vmem:[%s3 + $0x630] sm:$0xff]
      %v2305 = vld [vmem:[%s3 + $0x638] sm:$0xff]
      %v2306 = vld [vmem:[%s3 + $0x640] sm:$0xff]
      %v2307 = vld [vmem:[%s3 + $0x648] sm:$0xff]
      %v2308 = vld [vmem:[%s3 + $0x650] sm:$0xff]
      %v2309 = vld [vmem:[%s3 + $0x658] sm:$0xff]
      %v2310 = vld [vmem:[%s3 + $0x660] sm:$0xff]
      %v2311 = vld [vmem:[%s3 + $0x668] sm:$0xff]
      %v2312 = vld [vmem:[%s3 + $0x670] sm:$0xff]
      %v2313 = vld [vmem:[%s3 + $0x678] sm:$0xff]
      %v2314 = vld [vmem:[%s3 + $0x680] sm:$0xff]
      %v2315 = vld [vmem:[%s3 + $0x688] sm:$0xff]
      %v2316 = vld [vmem:[%s3 + $0x690] sm:$0xff]
      %v2317 = vld [vmem:[%s3 + $0x698] sm:$0xff]
      %v2318 = vld [vmem:[%s3 + $0x6a0] sm:$0xff]
      %v2319 = vld [vmem:[%s3 + $0x6a8] sm:$0xff]
      %v2320 = vld [vmem:[%s3 + $0x6b0] sm:$0xff]
      %v2321 = vld [vmem:[%s3 + $0x6b8] sm:$0xff]
      %v2322 = vld [vmem:[%s3 + $0x6c0] sm:$0xff]
      %v2323 = vld [vmem:[%s3 + $0x6c8] sm:$0xff]
      %v2324 = vld [vmem:[%s3 + $0x6d0] sm:$0xff]
      %v2325 = vld [vmem:[%s3 + $0x6d8] sm:$0xff]
      %v2326 = vld [vmem:[%s3 + $0x6e0] sm:$0xff]
      %v2327 = vld [vmem:[%s3 + $0x6e8] sm:$0xff]
      %v2328 = vld [vmem:[%s3 + $0x6f0] sm:$0xff]
      %v2329 = vld [vmem:[%s3 + $0x6f8] sm:$0xff]
      %v2330 = vld [vmem:[%s3 + $0x700] sm:$0xff]
      %v2331 = vld [vmem:[%s3 + $0x708] sm:$0xff]
      %v2332 = vld [vmem:[%s3 + $0x710] sm:$0xff]
      %v2333 = vld [vmem:[%s3 + $0x718] sm:$0xff]
      %v2334 = vld [vmem:[%s3 + $0x720] sm:$0xff]
      %v2335 = vld [vmem:[%s3 + $0x728] sm:$0xff]
      %v2336 = vld [vmem:[%s3 + $0x730] sm:$0xff]
      %v2337 = vld [vmem:[%s3 + $0x738] sm:$0xff]
      %v2338 = vld [vmem:[%s3 + $0x740] sm:$0xff]
      %v2339 = vld [vmem:[%s3 + $0x748] sm:$0xff]
      %v2340 = vld [vmem:[%s3 + $0x750] sm:$0xff]
      %v2341 = vld [vmem:[%s3 + $0x758] sm:$0xff]
      %v2342 = vld [vmem:[%s3 + $0x760] sm:$0xff]
      %v2343 = vld [vmem:[%s3 + $0x768] sm:$0xff]
      %v2344 = vld [vmem:[%s3 + $0x770] sm:$0xff]
      %v2345 = vld [vmem:[%s3 + $0x778] sm:$0xff]
      %v2346 = vld [vmem:[%s3 + $0x780] sm:$0xff]
      %v2347 = vld [vmem:[%s3 + $0x788] sm:$0xff]
      %v2348 = vld [vmem:[%s3 + $0x790] sm:$0xff]
      %v2349 = vld [vmem:[%s3 + $0x798] sm:$0xff]
      %v2350 = vld [vmem:[%s3 + $0x7a0] sm:$0xff]
      %v2351 = vld [vmem:[%s3 + $0x7a8] sm:$0xff]
      %v2352 = vld [vmem:[%s3 + $0x7b0] sm:$0xff]
      %v2353 = vld [vmem:[%s3 + $0x7b8] sm:$0xff]
      %v2354 = vld [vmem:[%s3 + $0x7c0] sm:$0xff]
      %v2355 = vld [vmem:[%s3 + $0x7c8] sm:$0xff]
      %v2356 = vld [vmem:[%s3 + $0x7d0] sm:$0xff]
      %v2357 = vld [vmem:[%s3 + $0x7d8] sm:$0xff]
      %v2358 = vld [vmem:[%s3 + $0x7e0] sm:$0xff]
      %v2359 = vld [vmem:[%s3 + $0x7e8] sm:$0xff]
      %v2360 = vld [vmem:[%s3 + $0x7f0] sm:$0xff]
      %v2361 = vld [vmem:[%s3 + $0x7f8] sm:$0xff]
      %v2362 = vld [vmem:[%s3 + $0x800] sm:$0xff]
      %v2363 = vld [vmem:[%s3 + $0x808] sm:$0xff]
      %v2364 = vld [vmem:[%s3 + $0x810] sm:$0xff]
      %v2365 = vld [vmem:[%s3 + $0x818] sm:$0xff]
      %v2366 = vld [vmem:[%s3 + $0x820] sm:$0xff]
      %v2367 = vld [vmem:[%s3 + $0x828] sm:$0xff]
      %v2368 = vld [vmem:[%s3 + $0x830] sm:$0xff]
      %v2369 = vld [vmem:[%s3 + $0x838] sm:$0xff]
      %v2370 = vld [vmem:[%s3 + $0x840] sm:$0xff]
      %v2371 = vld [vmem:[%s3 + $0x848] sm:$0xff]
      %v2372 = vld [vmem:[%s3 + $0x850] sm:$0xff]
      %v2373 = vld [vmem:[%s3 + $0x858] sm:$0xff]
      %v2374 = vld [vmem:[%s3 + $0x860] sm:$0xff]
      %v2375 = vld [vmem:[%s3 + $0x868] sm:$0xff]
      %v2376 = vld [vmem:[%s3 + $0x870] sm:$0xff]
      %v2377 = vld [vmem:[%s3 + $0x878] sm:$0xff]
      %v2378 = vld [vmem:[%s3 + $0x880] sm:$0xff]
      %v2379 = vld [vmem:[%s3 + $0x888] sm:$0xff]
      %v2380 = vld [vmem:[%s3 + $0x890] sm:$0xff]
      %v2381 = vld [vmem:[%s3 + $0x898] sm:$0xff]
      %v2382 = vld [vmem:[%s3 + $0x8a0] sm:$0xff]
      %v2383 = vld [vmem:[%s3 + $0x8a8] sm:$0xff]
      %v2384 = vld [vmem:[%s3 + $0x8b0] sm:$0xff]
      %v2385 = vld [vmem:[%s3 + $0x8b8] sm:$0xff]
      %v2386 = vld [vmem:[%s3 + $0x8c0] sm:$0xff]
      %v2387 = vld [vmem:[%s3 + $0x8c8] sm:$0xff]
      %v2388 = vld [vmem:[%s3 + $0x8d0] sm:$0xff]
      %v2389 = vld [vmem:[%s3 + $0x8d8] sm:$0xff]
      %v2390 = vld [vmem:[%s3 + $0x8e0] sm:$0xff]
      %v2391 = vld [vmem:[%s3 + $0x8e8] sm:$0xff]
      %v2392 = vld [vmem:[%s3 + $0x8f0] sm:$0xff]
      %v2393 = vld [vmem:[%s3 + $0x8f8] sm:$0xff]
      %v2394 = vld [vmem:[%s3 + $0x900] sm:$0xff]
      %v2395 = vld [vmem:[%s3 + $0x908] sm:$0xff]
      %v2396 = vld [vmem:[%s3 + $0x910] sm:$0xff]
      %v2397 = vld [vmem:[%s3 + $0x918] sm:$0xff]
      %v2398 = vld [vmem:[%s3 + $0x920] sm:$0xff]
      %v2399 = vld [vmem:[%s3 + $0x928] sm:$0xff]
      %v2400 = vld [vmem:[%s3 + $0x930] sm:$0xff]
      %v2401 = vld [vmem:[%s3 + $0x938] sm:$0xff]
      %v2402 = vld [vmem:[%s3 + $0x940] sm:$0xff]
      %v2403 = vld [vmem:[%s3 + $0x948] sm:$0xff]
      %v2404 = vld [vmem:[%s3 + $0x950] sm:$0xff]
      %v2405 = vld [vmem:[%s3 + $0x958] sm:$0xff]
      %v2406 = vld [vmem:[%s3 + $0x960] sm:$0xff]
      %v2407 = vld [vmem:[%s3 + $0x968] sm:$0xff]
      %v2408 = vld [vmem:[%s3 + $0x970] sm:$0xff]
      %v2409 = vld [vmem:[%s3 + $0x978] sm:$0xff]
      %v2410 = vld [vmem:[%s3 + $0x980] sm:$0xff]
      %v2411 = vld [vmem:[%s3 + $0x988] sm:$0xff]
      %v2412 = vld [vmem:[%s3 + $0x990] sm:$0xff]
      %v2413 = vld [vmem:[%s3 + $0x998] sm:$0xff]
      %v2414 = vld [vmem:[%s3 + $0x9a0] sm:$0xff]
      %v2415 = vld [vmem:[%s3 + $0x9a8] sm:$0xff]
      %v2416 = vld [vmem:[%s3 + $0x9b0] sm:$0xff]
      %v2417 = vld [vmem:[%s3 + $0x9b8] sm:$0xff]
      %v2418 = vld [vmem:[%s3 + $0x9c0] sm:$0xff]
      %v2419 = vld [vmem:[%s3 + $0x9c8] sm:$0xff]
      %v2420 = vld [vmem:[%s3 + $0x9d0] sm:$0xff]
      %v2421 = vld [vmem:[%s3 + $0x9d8] sm:$0xff]
      %v2422 = vld [vmem:[%s3 + $0x9e0] sm:$0xff]
      %v2423 = vld [vmem:[%s3 + $0x9e8] sm:$0xff]
      %v2424 = vld [vmem:[%s3 + $0x9f0] sm:$0xff]
      %v2425 = vld [vmem:[%s3 + $0x9f8] sm:$0xff]
      %v2426 = vld [vmem:[%s463 + $0x8] sm:$0xff]
      %v2427 = vld [vmem:[%s463 + $0x10] sm:$0xff]
      %v2428 = vld [vmem:[%s463 + $0x18] sm:$0xff]
      %v2429 = vld [vmem:[%s463 + $0x20] sm:$0xff]
      %v2430 = vld [vmem:[%s463 + $0x28] sm:$0xff]
      %v2431 = vld [vmem:[%s463 + $0x30] sm:$0xff]
      %v2432 = vld [vmem:[%s463 + $0x38] sm:$0xff]
      %v2433 = vld [vmem:[%s463 + $0x40] sm:$0xff]
      %v2434 = vld [vmem:[%s6] sm:$0xff]
      %v2435 = vld [vmem:[%s6 + $0x8] sm:$0xff]
      %v2436 = vld [vmem:[%s6 + $0x10] sm:$0xff]
      %v2437 = vld [vmem:[%s6 + $0x18] sm:$0xff]
      %v2438 = vld [vmem:[%s6 + $0x20] sm:$0xff]
      %v2439 = vld [vmem:[%s6 + $0x28] sm:$0xff]
      %v2440 = vld [vmem:[%s6 + $0x30] sm:$0xff]
      %v2441 = vld [vmem:[%s6 + $0x38] sm:$0xff]
      %v2443 = vsel %vm1819, %v2434, 0
      %v2446 = vsel %vm1819, %v2435, 0
      %v2449 = vsel %vm1819, %v2436, 0
      %v2452 = vsel %vm1819, %v2437, 0
      %v2455 = vsel %vm1819, %v2438, 0
      %v2458 = vsel %vm1819, %v2439, 0
      %v2461 = vsel %vm1819, %v2440, 0
      %v2464 = vsel %vm1819, %v2441, 0
      %2466 = vmatprep.subr.mxu0 0.0
      %2467 = vmatpush1.msra.mxu0 %v2426
      %2468 = vmatprep.subr.mxu0 0.0
      %2469 = vmatpush1.msra.mxu0 %v2427
      %2470 = vmatprep.subr.mxu0 0.0
      %2471 = vmatpush1.msra.mxu0 %v2428
      %2472 = vmatprep.subr.mxu0 0.0
      %2473 = vmatpush1.msra.mxu0 %v2429
      %2474 = vmatprep.subr.mxu0 0.0
      %2475 = vmatpush1.msra.mxu0 %v2430
      %2476 = vmatprep.subr.mxu0 0.0
      %2477 = vmatpush1.msra.mxu0 %v2431
      %2478 = vmatprep.subr.mxu0 0.0
      %2479 = vmatpush1.msra.mxu0 %v2432
      %2480 = vmatprep.subr.mxu0 0.0
      %2481 = vmatpush1.msra.mxu0 %v2433
      %2482 = vmatprep.subr.mxu0 0.0
      %2483 = vmatpush1.msra.mxu0 0.0
      %2484 = vmatprep.subr.mxu0 0.0
      %2485 = vmatpush1.msra.mxu0 0.0
      %2486 = vmatprep.subr.mxu0 0.0
      %2487 = vmatpush1.msra.mxu0 0.0
      %2488 = vmatprep.subr.mxu0 0.0
      %2489 = vmatpush1.msra.mxu0 0.0
      %2490 = vmatprep.subr.mxu0 0.0
      %2491 = vmatpush1.msra.mxu0 0.0
      %2492 = vmatprep.subr.mxu0 0.0
      %2493 = vmatpush1.msra.mxu0 0.0
      %2494 = vmatprep.subr.mxu0 0.0
      %2495 = vmatpush1.msra.mxu0 0.0
      %2496 = vmatprep.subr.mxu0 0.0
      %2497 = vmatpush1.msra.mxu0 0.0
      %2498 = vmatprep.subr.mxu0 0.0
      %2499 = vmatpush1.msra.mxu0 0.0
      %2500 = vmatprep.subr.mxu0 0.0
      %2501 = vmatpush1.msra.mxu0 0.0
      %2502 = vmatprep.subr.mxu0 0.0
      %2503 = vmatpush1.msra.mxu0 0.0
      %2504 = vmatprep.subr.mxu0 0.0
      %2505 = vmatpush1.msra.mxu0 0.0
      %2506 = vmatprep.subr.mxu0 0.0
      %2507 = vmatpush1.msra.mxu0 0.0
      %2508 = vmatprep.subr.mxu0 0.0
      %2509 = vmatpush1.msra.mxu0 0.0
      %2510 = vmatprep.subr.mxu0 0.0
      %2511 = vmatpush1.msra.mxu0 0.0
      %2512 = vmatprep.subr.mxu0 0.0
      %2513 = vmatpush1.msra.mxu0 0.0
      %2514 = vmatprep.subr.mxu0 0.0
      %2515 = vmatpush1.msra.mxu0 0.0
      %2516 = vmatprep.subr.mxu0 0.0
      %2517 = vmatpush1.msra.mxu0 0.0
      %2518 = vmatprep.subr.mxu0 0.0
      %2519 = vmatpush1.msra.mxu0 0.0
      %2520 = vmatprep.subr.mxu0 0.0
      %2521 = vmatpush1.msra.mxu0 0.0
      %2522 = vmatprep.subr.mxu0 0.0
      %2523 = vmatpush1.msra.mxu0 0.0
      %2524 = vmatprep.subr.mxu0 0.0
      %2525 = vmatpush1.msra.mxu0 0.0
      %2526 = vmatprep.subr.mxu0 0.0
      %2527 = vmatpush1.msra.mxu0 0.0
      %2528 = vmatprep.subr.mxu0 0.0
      %2529 = vmatpush1.msra.mxu0 0.0
      %2530 = vmatprep.mubr.f32.mxu0 0.0
      %2531 = vmatmul.mubr.f32.gmra.mrb[0].mxu0 %v2443
      %v2532 = vpop.f32.mrb[0].mxu0
      %v2533 = vadd.f32 0.0, %v2532
      %v2534 = vpop.f32.mrb[0].mxu0
      %2535 = vmatprep.mubr.f32.mxu0 0.0
      %2536 = vmatmul.mubr.f32.gmra.mrb[0].mxu0 %v2446
      %v2537 = vpop.f32.mrb[0].mxu0
      %v2538 = vadd.f32 0.0, %v2537
      %v2539 = vpop.f32.mrb[0].mxu0
      %2540 = vmatprep.mubr.f32.mxu0 0.0
      %2541 = vmatmul.mubr.f32.gmra.mrb[0].mxu0 %v2449
      %v2542 = vpop.f32.mrb[0].mxu0
      %v2543 = vadd.f32 0.0, %v2542
      %v2544 = vpop.f32.mrb[0].mxu0
      %2545 = vmatprep.mubr.f32.mxu0 0.0
      %2546 = vmatmul.mubr.f32.gmra.mrb[0].mxu0 %v2452
      %v2547 = vpop.f32.mrb[0].mxu0
      %v2548 = vadd.f32 0.0, %v2547
      %v2549 = vpop.f32.mrb[0].mxu0
      %2550 = vmatprep.mubr.f32.mxu0 0.0
      %2551 = vmatmul.mubr.f32.gmra.mrb[0].mxu0 %v2455
      %v2552 = vpop.f32.mrb[0].mxu0
      %v2553 = vadd.f32 0.0, %v2552
      %v2554 = vpop.f32.mrb[0].mxu0
      %2555 = vmatprep.mubr.f32.mxu0 0.0
      %2556 = vmatmul.mubr.f32.gmra.mrb[0].mxu0 %v2458
      %v2557 = vpop.f32.mrb[0].mxu0
      %v2558 = vadd.f32 0.0, %v2557
      %v2559 = vpop.f32.mrb[0].mxu0
      %2560 = vmatprep.mubr.f32.mxu0 0.0
      %2561 = vmatmul.mubr.f32.gmra.mrb[0].mxu0 %v2461
      %v2562 = vpop.f32.mrb[0].mxu0
      %v2563 = vadd.f32 0.0, %v2562
      %v2564 = vpop.f32.mrb[0].mxu0
      %2565 = vmatprep.mubr.f32.mxu0 0.0
      %2566 = vmatmul.mubr.f32.gmra.mrb[0].mxu0 %v2464
      %v2567 = vpop.f32.mrb[0].mxu0
      %v2568 = vadd.f32 0.0, %v2567
      %v2569 = vpop.f32.mrb[0].mxu0
      %2570 = vdwg.mxu0
      %v2571 = vmax.f32 %v2533, %v2543
      %v2572 = vmax.f32 %v2538, %v2548
      %v2573 = vmax.f32 %v2553, %v2563
      %v2574 = vmax.f32 %v2558, %v2568
      %v2575 = vmax.f32 %v2571, %v2573
      %v2576 = vmax.f32 %v2572, %v2574
      %v2577 = vld [vmem:[%s4] sm:$0xff]
      %v2578 = vld [vmem:[%s4 + $0x8] sm:$0xff]
      %v2579 = vld [vmem:[%s4 + $0x10] sm:$0xff]
      %v2580 = vld [vmem:[%s4 + $0x18] sm:$0xff]
      %v2581 = vld [vmem:[%s4 + $0x20] sm:$0xff]
      %v2582 = vld [vmem:[%s4 + $0x28] sm:$0xff]
      %v2583 = vld [vmem:[%s4 + $0x30] sm:$0xff]
      %v2584 = vld [vmem:[%s4 + $0x38] sm:$0xff]
      %v2585 = vld [vmem:[%s4 + $0x40] sm:$0xff]
      %v2586 = vld [vmem:[%s4 + $0x48] sm:$0xff]
      %v2587 = vld [vmem:[%s4 + $0x50] sm:$0xff]
      %v2588 = vld [vmem:[%s4 + $0x58] sm:$0xff]
      %v2589 = vld [vmem:[%s4 + $0x60] sm:$0xff]
      %v2590 = vld [vmem:[%s4 + $0x68] sm:$0xff]
      %v2591 = vld [vmem:[%s4 + $0x70] sm:$0xff]
      %v2592 = vld [vmem:[%s4 + $0x78] sm:$0xff]
      %2593 = vmatprep.subr.mxu0 0.0
      %2594 = vmatpush1.msra.mxu0 %v2577
      %2595 = vmatprep.subr.mxu0 0.0
      %2596 = vmatpush1.msra.mxu0 %v2578
      %2597 = vmatprep.subr.mxu0 0.0
      %2598 = vmatpush1.msra.mxu0 %v2579
      %2599 = vmatprep.subr.mxu0 0.0
      %2600 = vmatpush1.msra.mxu0 %v2580
      %2601 = vmatprep.subr.mxu0 0.0
      %2602 = vmatpush1.msra.mxu0 %v2581
      %2603 = vmatprep.subr.mxu0 0.0
      %2604 = vmatpush1.msra.mxu0 %v2582
      %2605 = vmatprep.subr.mxu0 0.0
      %2606 = vmatpush1.msra.mxu0 %v2583
      %2607 = vmatprep.subr.mxu0 0.0
      %2608 = vmatpush1.msra.mxu0 %v2584
      %2609 = vmatprep.subr.mxu0 0.0
      %2610 = vmatpush1.msra.mxu0 %v2585
      %2611 = vmatprep.subr.mxu0 0.0
      %2612 = vmatpush1.msra.mxu0 %v2586
      %2613 = vmatprep.subr.mxu0 0.0
      %2614 = vmatpush1.msra.mxu0 %v2587
      %2615 = vmatprep.subr.mxu0 0.0
      %2616 = vmatpush1.msra.mxu0 %v2588
      %2617 = vmatprep.subr.mxu0 0.0
      %2618 = vmatpush1.msra.mxu0 %v2589
      %2619 = vmatprep.subr.mxu0 0.0
      %2620 = vmatpush1.msra.mxu0 %v2590
      %2621 = vmatprep.subr.mxu0 0.0
      %2622 = vmatpush1.msra.mxu0 %v2591
      %2623 = vmatprep.subr.mxu0 0.0
      %2624 = vmatpush1.msra.mxu0 %v2592
      %2625 = vmatprep.subr.mxu0 0.0
      %2626 = vmatpush1.msra.mxu0 0.0
      %2627 = vmatprep.subr.mxu0 0.0
      %2628 = vmatpush1.msra.mxu0 0.0
      %2629 = vmatprep.subr.mxu0 0.0
      %2630 = vmatpush1.msra.mxu0 0.0
      %2631 = vmatprep.subr.mxu0 0.0
      %2632 = vmatpush1.msra.mxu0 0.0
      %2633 = vmatprep.subr.mxu0 0.0
      %2634 = vmatpush1.msra.mxu0 0.0
      %2635 = vmatprep.subr.mxu0 0.0
      %2636 = vmatpush1.msra.mxu0 0.0
      %2637 = vmatprep.subr.mxu0 0.0
      %2638 = vmatpush1.msra.mxu0 0.0
      %2639 = vmatprep.subr.mxu0 0.0
      %2640 = vmatpush1.msra.mxu0 0.0
      %2641 = vmatprep.subr.mxu0 0.0
      %2642 = vmatpush1.msra.mxu0 0.0
      %2643 = vmatprep.subr.mxu0 0.0
      %2644 = vmatpush1.msra.mxu0 0.0
      %2645 = vmatprep.subr.mxu0 0.0
      %2646 = vmatpush1.msra.mxu0 0.0
      %2647 = vmatprep.subr.mxu0 0.0
      %2648 = vmatpush1.msra.mxu0 0.0
      %2649 = vmatprep.subr.mxu0 0.0
      %2650 = vmatpush1.msra.mxu0 0.0
      %2651 = vmatprep.subr.mxu0 0.0
      %2652 = vmatpush1.msra.mxu0 0.0
      %2653 = vmatprep.subr.mxu0 0.0
      %2654 = vmatpush1.msra.mxu0 0.0
      %2655 = vmatprep.subr.mxu0 0.0
      %2656 = vmatpush1.msra.mxu0 0.0
      %2657 = vmatprep.mubr.f32.mxu0 0.0
      %2658 = vmatmul.mubr.f32.gmra.mrb[0].mxu0 %v2575
      %v2659 = vpop.f32.mrb[0].mxu0
      %v2660 = vadd.f32 0.0, %v2659
      %v2661 = vpop.f32.mrb[0].mxu0
      %2662 = vmatprep.mubr.f32.mxu0 0.0
      %2663 = vmatmul.mubr.f32.gmra.mrb[0].mxu0 %v2576
      %v2664 = vpop.f32.mrb[0].mxu0
      %v2665 = vadd.f32 0.0, %v2664
      %v2666 = vpop.f32.mrb[0].mxu0
      %2667 = vdwg.mxu0
      %2668 = vmatprep.subr.mxu0 0.0
      %2669 = vmatpush1.msra.mxu0 %v2106
      %2670 = vmatprep.subr.mxu0 0.0
      %2671 = vmatpush1.msra.mxu0 %v2107
      %2672 = vmatprep.subr.mxu0 0.0
      %2673 = vmatpush1.msra.mxu0 %v2108
      %2674 = vmatprep.subr.mxu0 0.0
      %2675 = vmatpush1.msra.mxu0 %v2109
      %2676 = vmatprep.subr.mxu0 0.0
      %2677 = vmatpush1.msra.mxu0 %v2110
      %2678 = vmatprep.subr.mxu0 0.0
      %2679 = vmatpush1.msra.mxu0 %v2111
      %2680 = vmatprep.subr.mxu0 0.0
      %2681 = vmatpush1.msra.mxu0 %v2112
      %2682 = vmatprep.subr.mxu0 0.0
      %2683 = vmatpush1.msra.mxu0 %v2113
      %2684 = vmatprep.subr.mxu0 0.0
      %2685 = vmatpush1.msra.mxu0 %v2114
      %2686 = vmatprep.subr.mxu0 0.0
      %2687 = vmatpush1.msra.mxu0 %v2115
      %2688 = vmatprep.subr.mxu0 0.0
      %2689 = vmatpush1.msra.mxu0 %v2116
      %2690 = vmatprep.subr.mxu0 0.0
      %2691 = vmatpush1.msra.mxu0 %v2117
      %2692 = vmatprep.subr.mxu0 0.0
      %2693 = vmatpush1.msra.mxu0 %v2118
      %2694 = vmatprep.subr.mxu0 0.0
      %2695 = vmatpush1.msra.mxu0 %v2119
      %2696 = vmatprep.subr.mxu0 0.0
      %2697 = vmatpush1.msra.mxu0 %v2120
      %2698 = vmatprep.subr.mxu0 0.0
      %2699 = vmatpush1.msra.mxu0 %v2121
      %2700 = vmatprep.subr.mxu0 0.0
      %2701 = vmatpush1.msra.mxu0 %v2122
      %2702 = vmatprep.subr.mxu0 0.0
      %2703 = vmatpush1.msra.mxu0 %v2123
      %2704 = vmatprep.subr.mxu0 0.0
      %2705 = vmatpush1.msra.mxu0 %v2124
      %2706 = vmatprep.subr.mxu0 0.0
      %2707 = vmatpush1.msra.mxu0 %v2125
      %2708 = vmatprep.subr.mxu0 0.0
      %2709 = vmatpush1.msra.mxu0 %v2126
      %2710 = vmatprep.subr.mxu0 0.0
      %2711 = vmatpush1.msra.mxu0 %v2127
      %2712 = vmatprep.subr.mxu0 0.0
      %2713 = vmatpush1.msra.mxu0 %v2128
      %2714 = vmatprep.subr.mxu0 0.0
      %2715 = vmatpush1.msra.mxu0 %v2129
      %2716 = vmatprep.subr.mxu0 0.0
      %2717 = vmatpush1.msra.mxu0 %v2130
      %2718 = vmatprep.subr.mxu0 0.0
      %2719 = vmatpush1.msra.mxu0 %v2131
      %2720 = vmatprep.subr.mxu0 0.0
      %2721 = vmatpush1.msra.mxu0 %v2132
      %2722 = vmatprep.subr.mxu0 0.0
      %2723 = vmatpush1.msra.mxu0 %v2133
      %2724 = vmatprep.subr.mxu0 0.0
      %2725 = vmatpush1.msra.mxu0 %v2134
      %2726 = vmatprep.subr.mxu0 0.0
      %2727 = vmatpush1.msra.mxu0 %v2135
      %2728 = vmatprep.subr.mxu0 0.0
      %2729 = vmatpush1.msra.mxu0 %v2136
      %2730 = vmatprep.subr.mxu0 0.0
      %2731 = vmatpush1.msra.mxu0 %v2137
      %2732 = vmatprep.mubr.f32.mxu0 %v1971
      %2733 = vmatmul.mubr.f32.gmra.mrb[0].mxu0 %v1917
      %v2734 = vpop.f32.mrb[0].mxu0
      %v2735 = vadd.f32 %v2660, %v2734
      %v2736 = vpop.f32.mrb[0].mxu0
      %2737 = vmatprep.mubr.f32.mxu0 %v1973
      %2738 = vmatmul.mubr.f32.gmra.mrb[0].mxu0 %v1922
      %v2739 = vpop.f32.mrb[0].mxu0
      %v2740 = vadd.f32 %v2665, %v2739
      %v2741 = vpop.f32.mrb[0].mxu0
      %2742 = vdwg.mxu0
      %2743 = vmatprep.subr.mxu0 0.0
      %2744 = vmatpush1.msra.mxu0 %v2138
      %2745 = vmatprep.subr.mxu0 0.0
      %2746 = vmatpush1.msra.mxu0 %v2139
      %2747 = vmatprep.subr.mxu0 0.0
      %2748 = vmatpush1.msra.mxu0 %v2140
      %2749 = vmatprep.subr.mxu0 0.0
      %2750 = vmatpush1.msra.mxu0 %v2141
      %2751 = vmatprep.subr.mxu0 0.0
      %2752 = vmatpush1.msra.mxu0 %v2142
      %2753 = vmatprep.subr.mxu0 0.0
      %2754 = vmatpush1.msra.mxu0 %v2143
      %2755 = vmatprep.subr.mxu0 0.0
      %2756 = vmatpush1.msra.mxu0 %v2144
      %2757 = vmatprep.subr.mxu0 0.0
      %2758 = vmatpush1.msra.mxu0 %v2145
      %2759 = vmatprep.subr.mxu0 0.0
      %2760 = vmatpush1.msra.mxu0 %v2146
      %2761 = vmatprep.subr.mxu0 0.0
      %2762 = vmatpush1.msra.mxu0 %v2147
      %2763 = vmatprep.subr.mxu0 0.0
      %2764 = vmatpush1.msra.mxu0 %v2148
      %2765 = vmatprep.subr.mxu0 0.0
      %2766 = vmatpush1.msra.mxu0 %v2149
      %2767 = vmatprep.subr.mxu0 0.0
      %2768 = vmatpush1.msra.mxu0 %v2150
      %2769 = vmatprep.subr.mxu0 0.0
      %2770 = vmatpush1.msra.mxu0 %v2151
      %2771 = vmatprep.subr.mxu0 0.0
      %2772 = vmatpush1.msra.mxu0 %v2152
      %2773 = vmatprep.subr.mxu0 0.0
      %2774 = vmatpush1.msra.mxu0 %v2153
      %2775 = vmatprep.subr.mxu0 0.0
      %2776 = vmatpush1.msra.mxu0 %v2154
      %2777 = vmatprep.subr.mxu0 0.0
      %2778 = vmatpush1.msra.mxu0 %v2155
      %2779 = vmatprep.subr.mxu0 0.0
      %2780 = vmatpush1.msra.mxu0 %v2156
      %2781 = vmatprep.subr.mxu0 0.0
      %2782 = vmatpush1.msra.mxu0 %v2157
      %2783 = vmatprep.subr.mxu0 0.0
      %2784 = vmatpush1.msra.mxu0 %v2158
      %2785 = vmatprep.subr.mxu0 0.0
      %2786 = vmatpush1.msra.mxu0 %v2159
      %2787 = vmatprep.subr.mxu0 0.0
      %2788 = vmatpush1.msra.mxu0 %v2160
      %2789 = vmatprep.subr.mxu0 0.0
      %2790 = vmatpush1.msra.mxu0 %v2161
      %2791 = vmatprep.subr.mxu0 0.0
      %2792 = vmatpush1.msra.mxu0 %v2162
      %2793 = vmatprep.subr.mxu0 0.0
      %2794 = vmatpush1.msra.mxu0 %v2163
      %2795 = vmatprep.subr.mxu0 0.0
      %2796 = vmatpush1.msra.mxu0 %v2164
      %2797 = vmatprep.subr.mxu0 0.0
      %2798 = vmatpush1.msra.mxu0 %v2165
      %2799 = vmatprep.subr.mxu0 0.0
      %2800 = vmatpush1.msra.mxu0 %v2166
      %2801 = vmatprep.subr.mxu0 0.0
      %2802 = vmatpush1.msra.mxu0 %v2167
      %2803 = vmatprep.subr.mxu0 0.0
      %2804 = vmatpush1.msra.mxu0 %v2168
      %2805 = vmatprep.subr.mxu0 0.0
      %2806 = vmatpush1.msra.mxu0 %v2169
      %2807 = vmatprep.mubr.f32.mxu0 %v1981
      %2808 = vmatmul.mubr.f32.gmra.mrb[0].mxu0 %v1942
      %v2809 = vpop.f32.mrb[0].mxu0
      %v2810 = vadd.f32 %v2735, %v2809
      %v2811 = vpop.f32.mrb[0].mxu0
      %2812 = vmatprep.mubr.f32.mxu0 %v1983
      %2813 = vmatmul.mubr.f32.gmra.mrb[0].mxu0 %v1947
      %v2814 = vpop.f32.mrb[0].mxu0
      %v2815 = vadd.f32 %v2740, %v2814
      %v2816 = vpop.f32.mrb[0].mxu0
      %2817 = vdwg.mxu0
      %2818 = vmatprep.subr.mxu0 0.0
      %2819 = vmatpush1.msra.mxu0 %v2170
      %2820 = vmatprep.subr.mxu0 0.0
      %2821 = vmatpush1.msra.mxu0 %v2171
      %2822 = vmatprep.subr.mxu0 0.0
      %2823 = vmatpush1.msra.mxu0 %v2172
      %2824 = vmatprep.subr.mxu0 0.0
      %2825 = vmatpush1.msra.mxu0 %v2173
      %2826 = vmatprep.subr.mxu0 0.0
      %2827 = vmatpush1.msra.mxu0 %v2174
      %2828 = vmatprep.subr.mxu0 0.0
      %2829 = vmatpush1.msra.mxu0 %v2175
      %2830 = vmatprep.subr.mxu0 0.0
      %2831 = vmatpush1.msra.mxu0 %v2176
      %2832 = vmatprep.subr.mxu0 0.0
      %2833 = vmatpush1.msra.mxu0 %v2177
      %2834 = vmatprep.subr.mxu0 0.0
      %2835 = vmatpush1.msra.mxu0 %v2178
      %2836 = vmatprep.subr.mxu0 0.0
      %2837 = vmatpush1.msra.mxu0 %v2179
      %2838 = vmatprep.subr.mxu0 0.0
      %2839 = vmatpush1.msra.mxu0 %v2180
      %2840 = vmatprep.subr.mxu0 0.0
      %2841 = vmatpush1.msra.mxu0 %v2181
      %2842 = vmatprep.subr.mxu0 0.0
      %2843 = vmatpush1.msra.mxu0 %v2182
      %2844 = vmatprep.subr.mxu0 0.0
      %2845 = vmatpush1.msra.mxu0 %v2183
      %2846 = vmatprep.subr.mxu0 0.0
      %2847 = vmatpush1.msra.mxu0 %v2184
      %2848 = vmatprep.subr.mxu0 0.0
      %2849 = vmatpush1.msra.mxu0 %v2185
      %2850 = vmatprep.subr.mxu0 0.0
      %2851 = vmatpush1.msra.mxu0 %v2186
      %2852 = vmatprep.subr.mxu0 0.0
      %2853 = vmatpush1.msra.mxu0 %v2187
      %2854 = vmatprep.subr.mxu0 0.0
      %2855 = vmatpush1.msra.mxu0 %v2188
      %2856 = vmatprep.subr.mxu0 0.0
      %2857 = vmatpush1.msra.mxu0 %v2189
      %2858 = vmatprep.subr.mxu0 0.0
      %2859 = vmatpush1.msra.mxu0 %v2190
      %2860 = vmatprep.subr.mxu0 0.0
      %2861 = vmatpush1.msra.mxu0 %v2191
      %2862 = vmatprep.subr.mxu0 0.0
      %2863 = vmatpush1.msra.mxu0 %v2192
      %2864 = vmatprep.subr.mxu0 0.0
      %2865 = vmatpush1.msra.mxu0 %v2193
      %2866 = vmatprep.subr.mxu0 0.0
      %2867 = vmatpush1.msra.mxu0 %v2194
      %2868 = vmatprep.subr.mxu0 0.0
      %2869 = vmatpush1.msra.mxu0 %v2195
      %2870 = vmatprep.subr.mxu0 0.0
      %2871 = vmatpush1.msra.mxu0 %v2196
      %2872 = vmatprep.subr.mxu0 0.0
      %2873 = vmatpush1.msra.mxu0 %v2197
      %2874 = vmatprep.subr.mxu0 0.0
      %2875 = vmatpush1.msra.mxu0 %v2198
      %2876 = vmatprep.subr.mxu0 0.0
      %2877 = vmatpush1.msra.mxu0 %v2199
      %2878 = vmatprep.subr.mxu0 0.0
      %2879 = vmatpush1.msra.mxu0 %v2200
      %2880 = vmatprep.subr.mxu0 0.0
      %2881 = vmatpush1.msra.mxu0 %v2201
      %2882 = vmatprep.mubr.f32.mxu0 %v1999
      %2883 = vmatmul.mubr.f32.gmra.mrb[0].mxu0 %v1991
      %v2884 = vpop.f32.mrb[0].mxu0
      %v2885 = vadd.f32 %v2810, %v2884
      %v2886 = vpop.f32.mrb[0].mxu0
      %2887 = vmatprep.mubr.f32.mxu0 %v2001
      %2888 = vmatmul.mubr.f32.gmra.mrb[0].mxu0 %v1993
      %v2889 = vpop.f32.mrb[0].mxu0
      %v2890 = vadd.f32 %v2815, %v2889
      %v2891 = vpop.f32.mrb[0].mxu0
      %2892 = vdwg.mxu0
      %2893 = vmatprep.subr.mxu0 0.0
      %2894 = vmatpush1.msra.mxu0 %v2202
      %2895 = vmatprep.subr.mxu0 0.0
      %2896 = vmatpush1.msra.mxu0 %v2203
      %2897 = vmatprep.subr.mxu0 0.0
      %2898 = vmatpush1.msra.mxu0 %v2204
      %2899 = vmatprep.subr.mxu0 0.0
      %2900 = vmatpush1.msra.mxu0 %v2205
      %2901 = vmatprep.subr.mxu0 0.0
      %2902 = vmatpush1.msra.mxu0 %v2206
      %2903 = vmatprep.subr.mxu0 0.0
      %2904 = vmatpush1.msra.mxu0 %v2207
      %2905 = vmatprep.subr.mxu0 0.0
      %2906 = vmatpush1.msra.mxu0 %v2208
      %2907 = vmatprep.subr.mxu0 0.0
      %2908 = vmatpush1.msra.mxu0 %v2209
      %2909 = vmatprep.subr.mxu0 0.0
      %2910 = vmatpush1.msra.mxu0 %v2210
      %2911 = vmatprep.subr.mxu0 0.0
      %2912 = vmatpush1.msra.mxu0 %v2211
      %2913 = vmatprep.subr.mxu0 0.0
      %2914 = vmatpush1.msra.mxu0 %v2212
      %2915 = vmatprep.subr.mxu0 0.0
      %2916 = vmatpush1.msra.mxu0 %v2213
      %2917 = vmatprep.subr.mxu0 0.0
      %2918 = vmatpush1.msra.mxu0 %v2214
      %2919 = vmatprep.subr.mxu0 0.0
      %2920 = vmatpush1.msra.mxu0 %v2215
      %2921 = vmatprep.subr.mxu0 0.0
      %2922 = vmatpush1.msra.mxu0 %v2216
      %2923 = vmatprep.subr.mxu0 0.0
      %2924 = vmatpush1.msra.mxu0 %v2217
      %2925 = vmatprep.subr.mxu0 0.0
      %2926 = vmatpush1.msra.mxu0 %v2218
      %2927 = vmatprep.subr.mxu0 0.0
      %2928 = vmatpush1.msra.mxu0 %v2219
      %2929 = vmatprep.subr.mxu0 0.0
      %2930 = vmatpush1.msra.mxu0 %v2220
      %2931 = vmatprep.subr.mxu0 0.0
      %2932 = vmatpush1.msra.mxu0 %v2221
      %2933 = vmatprep.subr.mxu0 0.0
      %2934 = vmatpush1.msra.mxu0 %v2222
      %2935 = vmatprep.subr.mxu0 0.0
      %2936 = vmatpush1.msra.mxu0 %v2223
      %2937 = vmatprep.subr.mxu0 0.0
      %2938 = vmatpush1.msra.mxu0 %v2224
      %2939 = vmatprep.subr.mxu0 0.0
      %2940 = vmatpush1.msra.mxu0 %v2225
      %2941 = vmatprep.subr.mxu0 0.0
      %2942 = vmatpush1.msra.mxu0 %v2226
      %2943 = vmatprep.subr.mxu0 0.0
      %2944 = vmatpush1.msra.mxu0 %v2227
      %2945 = vmatprep.subr.mxu0 0.0
      %2946 = vmatpush1.msra.mxu0 %v2228
      %2947 = vmatprep.subr.mxu0 0.0
      %2948 = vmatpush1.msra.mxu0 %v2229
      %2949 = vmatprep.subr.mxu0 0.0
      %2950 = vmatpush1.msra.mxu0 %v2230
      %2951 = vmatprep.subr.mxu0 0.0
      %2952 = vmatpush1.msra.mxu0 %v2231
      %2953 = vmatprep.subr.mxu0 0.0
      %2954 = vmatpush1.msra.mxu0 %v2232
      %2955 = vmatprep.subr.mxu0 0.0
      %2956 = vmatpush1.msra.mxu0 %v2233
      %2957 = vmatprep.mubr.f32.mxu0 %v2015
      %2958 = vmatmul.mubr.f32.gmra.mrb[0].mxu0 %v2008
      %v2959 = vpop.f32.mrb[0].mxu0
      %v2960 = vadd.f32 %v2885, %v2959
      %v2961 = vpop.f32.mrb[0].mxu0
      %2962 = vmatprep.mubr.f32.mxu0 %v2017
      %2963 = vmatmul.mubr.f32.gmra.mrb[0].mxu0 %v2010
      %v2964 = vpop.f32.mrb[0].mxu0
      %v2965 = vadd.f32 %v2890, %v2964
      %v2966 = vpop.f32.mrb[0].mxu0
      %2967 = vdwg.mxu0
      %2968 = vmatprep.subr.mxu0 0.0
      %2969 = vmatpush1.msra.mxu0 %v2234
      %2970 = vmatprep.subr.mxu0 0.0
      %2971 = vmatpush1.msra.mxu0 %v2235
      %2972 = vmatprep.subr.mxu0 0.0
      %2973 = vmatpush1.msra.mxu0 %v2236
      %2974 = vmatprep.subr.mxu0 0.0
      %2975 = vmatpush1.msra.mxu0 %v2237
      %2976 = vmatprep.subr.mxu0 0.0
      %2977 = vmatpush1.msra.mxu0 %v2238
      %2978 = vmatprep.subr.mxu0 0.0
      %2979 = vmatpush1.msra.mxu0 %v2239
      %2980 = vmatprep.subr.mxu0 0.0
      %2981 = vmatpush1.msra.mxu0 %v2240
      %2982 = vmatprep.subr.mxu0 0.0
      %2983 = vmatpush1.msra.mxu0 %v2241
      %2984 = vmatprep.subr.mxu0 0.0
      %2985 = vmatpush1.msra.mxu0 %v2242
      %2986 = vmatprep.subr.mxu0 0.0
      %2987 = vmatpush1.msra.mxu0 %v2243
      %2988 = vmatprep.subr.mxu0 0.0
      %2989 = vmatpush1.msra.mxu0 %v2244
      %2990 = vmatprep.subr.mxu0 0.0
      %2991 = vmatpush1.msra.mxu0 %v2245
      %2992 = vmatprep.subr.mxu0 0.0
      %2993 = vmatpush1.msra.mxu0 %v2246
      %2994 = vmatprep.subr.mxu0 0.0
      %2995 = vmatpush1.msra.mxu0 %v2247
      %2996 = vmatprep.subr.mxu0 0.0
      %2997 = vmatpush1.msra.mxu0 %v2248
      %2998 = vmatprep.subr.mxu0 0.0
      %2999 = vmatpush1.msra.mxu0 %v2249
      %3000 = vmatprep.subr.mxu0 0.0
      %3001 = vmatpush1.msra.mxu0 %v2250
      %3002 = vmatprep.subr.mxu0 0.0
      %3003 = vmatpush1.msra.mxu0 %v2251
      %3004 = vmatprep.subr.mxu0 0.0
      %3005 = vmatpush1.msra.mxu0 %v2252
      %3006 = vmatprep.subr.mxu0 0.0
      %3007 = vmatpush1.msra.mxu0 %v2253
      %3008 = vmatprep.subr.mxu0 0.0
      %3009 = vmatpush1.msra.mxu0 %v2254
      %3010 = vmatprep.subr.mxu0 0.0
      %3011 = vmatpush1.msra.mxu0 %v2255
      %3012 = vmatprep.subr.mxu0 0.0
      %3013 = vmatpush1.msra.mxu0 %v2256
      %3014 = vmatprep.subr.mxu0 0.0
      %3015 = vmatpush1.msra.mxu0 %v2257
      %3016 = vmatprep.subr.mxu0 0.0
      %3017 = vmatpush1.msra.mxu0 %v2258
      %3018 = vmatprep.subr.mxu0 0.0
      %3019 = vmatpush1.msra.mxu0 %v2259
      %3020 = vmatprep.subr.mxu0 0.0
      %3021 = vmatpush1.msra.mxu0 %v2260
      %3022 = vmatprep.subr.mxu0 0.0
      %3023 = vmatpush1.msra.mxu0 %v2261
      %3024 = vmatprep.subr.mxu0 0.0
      %3025 = vmatpush1.msra.mxu0 %v2262
      %3026 = vmatprep.subr.mxu0 0.0
      %3027 = vmatpush1.msra.mxu0 %v2263
      %3028 = vmatprep.subr.mxu0 0.0
      %3029 = vmatpush1.msra.mxu0 %v2264
      %3030 = vmatprep.subr.mxu0 0.0
      %3031 = vmatpush1.msra.mxu0 %v2265
      %3032 = vmatprep.mubr.f32.mxu0 %v2031
      %3033 = vmatmul.mubr.f32.gmra.mrb[0].mxu0 %v2023
      %v3034 = vpop.f32.mrb[0].mxu0
      %v3035 = vadd.f32 %v2960, %v3034
      %v3036 = vpop.f32.mrb[0].mxu0
      %3037 = vmatprep.mubr.f32.mxu0 %v2033
      %3038 = vmatmul.mubr.f32.gmra.mrb[0].mxu0 %v2025
      %v3039 = vpop.f32.mrb[0].mxu0
      %v3040 = vadd.f32 %v2965, %v3039
      %v3041 = vpop.f32.mrb[0].mxu0
      %3042 = vdwg.mxu0
      %3043 = vmatprep.subr.mxu0 0.0
      %3044 = vmatpush1.msra.mxu0 %v2266
      %3045 = vmatprep.subr.mxu0 0.0
      %3046 = vmatpush1.msra.mxu0 %v2267
      %3047 = vmatprep.subr.mxu0 0.0
      %3048 = vmatpush1.msra.mxu0 %v2268
      %3049 = vmatprep.subr.mxu0 0.0
      %3050 = vmatpush1.msra.mxu0 %v2269
      %3051 = vmatprep.subr.mxu0 0.0
      %3052 = vmatpush1.msra.mxu0 %v2270
      %3053 = vmatprep.subr.mxu0 0.0
      %3054 = vmatpush1.msra.mxu0 %v2271
      %3055 = vmatprep.subr.mxu0 0.0
      %3056 = vmatpush1.msra.mxu0 %v2272
      %3057 = vmatprep.subr.mxu0 0.0
      %3058 = vmatpush1.msra.mxu0 %v2273
      %3059 = vmatprep.subr.mxu0 0.0
      %3060 = vmatpush1.msra.mxu0 %v2274
      %3061 = vmatprep.subr.mxu0 0.0
      %3062 = vmatpush1.msra.mxu0 %v2275
      %3063 = vmatprep.subr.mxu0 0.0
      %3064 = vmatpush1.msra.mxu0 %v2276
      %3065 = vmatprep.subr.mxu0 0.0
      %3066 = vmatpush1.msra.mxu0 %v2277
      %3067 = vmatprep.subr.mxu0 0.0
      %3068 = vmatpush1.msra.mxu0 %v2278
      %3069 = vmatprep.subr.mxu0 0.0
      %3070 = vmatpush1.msra.mxu0 %v2279
      %3071 = vmatprep.subr.mxu0 0.0
      %3072 = vmatpush1.msra.mxu0 %v2280
      %3073 = vmatprep.subr.mxu0 0.0
      %3074 = vmatpush1.msra.mxu0 %v2281
      %3075 = vmatprep.subr.mxu0 0.0
      %3076 = vmatpush1.msra.mxu0 %v2282
      %3077 = vmatprep.subr.mxu0 0.0
      %3078 = vmatpush1.msra.mxu0 %v2283
      %3079 = vmatprep.subr.mxu0 0.0
      %3080 = vmatpush1.msra.mxu0 %v2284
      %3081 = vmatprep.subr.mxu0 0.0
      %3082 = vmatpush1.msra.mxu0 %v2285
      %3083 = vmatprep.subr.mxu0 0.0
      %3084 = vmatpush1.msra.mxu0 %v2286
      %3085 = vmatprep.subr.mxu0 0.0
      %3086 = vmatpush1.msra.mxu0 %v2287
      %3087 = vmatprep.subr.mxu0 0.0
      %3088 = vmatpush1.msra.mxu0 %v2288
      %3089 = vmatprep.subr.mxu0 0.0
      %3090 = vmatpush1.msra.mxu0 %v2289
      %3091 = vmatprep.subr.mxu0 0.0
      %3092 = vmatpush1.msra.mxu0 %v2290
      %3093 = vmatprep.subr.mxu0 0.0
      %3094 = vmatpush1.msra.mxu0 %v2291
      %3095 = vmatprep.subr.mxu0 0.0
      %3096 = vmatpush1.msra.mxu0 %v2292
      %3097 = vmatprep.subr.mxu0 0.0
      %3098 = vmatpush1.msra.mxu0 %v2293
      %3099 = vmatprep.subr.mxu0 0.0
      %3100 = vmatpush1.msra.mxu0 %v2294
      %3101 = vmatprep.subr.mxu0 0.0
      %3102 = vmatpush1.msra.mxu0 %v2295
      %3103 = vmatprep.subr.mxu0 0.0
      %3104 = vmatpush1.msra.mxu0 %v2296
      %3105 = vmatprep.subr.mxu0 0.0
      %3106 = vmatpush1.msra.mxu0 %v2297
      %3107 = vmatprep.mubr.f32.mxu0 %v2045
      %3108 = vmatmul.mubr.f32.gmra.mrb[0].mxu0 %v2038
      %v3109 = vpop.f32.mrb[0].mxu0
      %v3110 = vadd.f32 %v3035, %v3109
      %v3111 = vpop.f32.mrb[0].mxu0
      %3112 = vmatprep.mubr.f32.mxu0 %v2047
      %3113 = vmatmul.mubr.f32.gmra.mrb[0].mxu0 %v2040
      %v3114 = vpop.f32.mrb[0].mxu0
      %v3115 = vadd.f32 %v3040, %v3114
      %v3116 = vpop.f32.mrb[0].mxu0
      %3117 = vdwg.mxu0
      %3118 = vmatprep.subr.mxu0 0.0
      %3119 = vmatpush1.msra.mxu0 %v2298
      %3120 = vmatprep.subr.mxu0 0.0
      %3121 = vmatpush1.msra.mxu0 %v2299
      %3122 = vmatprep.subr.mxu0 0.0
      %3123 = vmatpush1.msra.mxu0 %v2300
      %3124 = vmatprep.subr.mxu0 0.0
      %3125 = vmatpush1.msra.mxu0 %v2301
      %3126 = vmatprep.subr.mxu0 0.0
      %3127 = vmatpush1.msra.mxu0 %v2302
      %3128 = vmatprep.subr.mxu0 0.0
      %3129 = vmatpush1.msra.mxu0 %v2303
      %3130 = vmatprep.subr.mxu0 0.0
      %3131 = vmatpush1.msra.mxu0 %v2304
      %3132 = vmatprep.subr.mxu0 0.0
      %3133 = vmatpush1.msra.mxu0 %v2305
      %3134 = vmatprep.subr.mxu0 0.0
      %3135 = vmatpush1.msra.mxu0 %v2306
      %3136 = vmatprep.subr.mxu0 0.0
      %3137 = vmatpush1.msra.mxu0 %v2307
      %3138 = vmatprep.subr.mxu0 0.0
      %3139 = vmatpush1.msra.mxu0 %v2308
      %3140 = vmatprep.subr.mxu0 0.0
      %3141 = vmatpush1.msra.mxu0 %v2309
      %3142 = vmatprep.subr.mxu0 0.0
      %3143 = vmatpush1.msra.mxu0 %v2310
      %3144 = vmatprep.subr.mxu0 0.0
      %3145 = vmatpush1.msra.mxu0 %v2311
      %3146 = vmatprep.subr.mxu0 0.0
      %3147 = vmatpush1.msra.mxu0 %v2312
      %3148 = vmatprep.subr.mxu0 0.0
      %3149 = vmatpush1.msra.mxu0 %v2313
      %3150 = vmatprep.subr.mxu0 0.0
      %3151 = vmatpush1.msra.mxu0 %v2314
      %3152 = vmatprep.subr.mxu0 0.0
      %3153 = vmatpush1.msra.mxu0 %v2315
      %3154 = vmatprep.subr.mxu0 0.0
      %3155 = vmatpush1.msra.mxu0 %v2316
      %3156 = vmatprep.subr.mxu0 0.0
      %3157 = vmatpush1.msra.mxu0 %v2317
      %3158 = vmatprep.subr.mxu0 0.0
      %3159 = vmatpush1.msra.mxu0 %v2318
      %3160 = vmatprep.subr.mxu0 0.0
      %3161 = vmatpush1.msra.mxu0 %v2319
      %3162 = vmatprep.subr.mxu0 0.0
      %3163 = vmatpush1.msra.mxu0 %v2320
      %3164 = vmatprep.subr.mxu0 0.0
      %3165 = vmatpush1.msra.mxu0 %v2321
      %3166 = vmatprep.subr.mxu0 0.0
      %3167 = vmatpush1.msra.mxu0 %v2322
      %3168 = vmatprep.subr.mxu0 0.0
      %3169 = vmatpush1.msra.mxu0 %v2323
      %3170 = vmatprep.subr.mxu0 0.0
      %3171 = vmatpush1.msra.mxu0 %v2324
      %3172 = vmatprep.subr.mxu0 0.0
      %3173 = vmatpush1.msra.mxu0 %v2325
      %3174 = vmatprep.subr.mxu0 0.0
      %3175 = vmatpush1.msra.mxu0 %v2326
      %3176 = vmatprep.subr.mxu0 0.0
      %3177 = vmatpush1.msra.mxu0 %v2327
      %3178 = vmatprep.subr.mxu0 0.0
      %3179 = vmatpush1.msra.mxu0 %v2328
      %3180 = vmatprep.subr.mxu0 0.0
      %3181 = vmatpush1.msra.mxu0 %v2329
      %3182 = vmatprep.mubr.f32.mxu0 %v2061
      %3183 = vmatmul.mubr.f32.gmra.mrb[0].mxu0 %v2053
      %v3184 = vpop.f32.mrb[0].mxu0
      %v3185 = vadd.f32 %v3110, %v3184
      %v3186 = vpop.f32.mrb[0].mxu0
      %3187 = vmatprep.mubr.f32.mxu0 %v2063
      %3188 = vmatmul.mubr.f32.gmra.mrb[0].mxu0 %v2055
      %v3189 = vpop.f32.mrb[0].mxu0
      %v3190 = vadd.f32 %v3115, %v3189
      %v3191 = vpop.f32.mrb[0].mxu0
      %3192 = vdwg.mxu0
      %3193 = vmatprep.subr.mxu0 0.0
      %3194 = vmatpush1.msra.mxu0 %v2330
      %3195 = vmatprep.subr.mxu0 0.0
      %3196 = vmatpush1.msra.mxu0 %v2331
      %3197 = vmatprep.subr.mxu0 0.0
      %3198 = vmatpush1.msra.mxu0 %v2332
      %3199 = vmatprep.subr.mxu0 0.0
      %3200 = vmatpush1.msra.mxu0 %v2333
      %3201 = vmatprep.subr.mxu0 0.0
      %3202 = vmatpush1.msra.mxu0 %v2334
      %3203 = vmatprep.subr.mxu0 0.0
      %3204 = vmatpush1.msra.mxu0 %v2335
      %3205 = vmatprep.subr.mxu0 0.0
      %3206 = vmatpush1.msra.mxu0 %v2336
      %3207 = vmatprep.subr.mxu0 0.0
      %3208 = vmatpush1.msra.mxu0 %v2337
      %3209 = vmatprep.subr.mxu0 0.0
      %3210 = vmatpush1.msra.mxu0 %v2338
      %3211 = vmatprep.subr.mxu0 0.0
      %3212 = vmatpush1.msra.mxu0 %v2339
      %3213 = vmatprep.subr.mxu0 0.0
      %3214 = vmatpush1.msra.mxu0 %v2340
      %3215 = vmatprep.subr.mxu0 0.0
      %3216 = vmatpush1.msra.mxu0 %v2341
      %3217 = vmatprep.subr.mxu0 0.0
      %3218 = vmatpush1.msra.mxu0 %v2342
      %3219 = vmatprep.subr.mxu0 0.0
      %3220 = vmatpush1.msra.mxu0 %v2343
      %3221 = vmatprep.subr.mxu0 0.0
      %3222 = vmatpush1.msra.mxu0 %v2344
      %3223 = vmatprep.subr.mxu0 0.0
      %3224 = vmatpush1.msra.mxu0 %v2345
      %3225 = vmatprep.subr.mxu0 0.0
      %3226 = vmatpush1.msra.mxu0 %v2346
      %3227 = vmatprep.subr.mxu0 0.0
      %3228 = vmatpush1.msra.mxu0 %v2347
      %3229 = vmatprep.subr.mxu0 0.0
      %3230 = vmatpush1.msra.mxu0 %v2348
      %3231 = vmatprep.subr.mxu0 0.0
      %3232 = vmatpush1.msra.mxu0 %v2349
      %3233 = vmatprep.subr.mxu0 0.0
      %3234 = vmatpush1.msra.mxu0 %v2350
      %3235 = vmatprep.subr.mxu0 0.0
      %3236 = vmatpush1.msra.mxu0 %v2351
      %3237 = vmatprep.subr.mxu0 0.0
      %3238 = vmatpush1.msra.mxu0 %v2352
      %3239 = vmatprep.subr.mxu0 0.0
      %3240 = vmatpush1.msra.mxu0 %v2353
      %3241 = vmatprep.subr.mxu0 0.0
      %3242 = vmatpush1.msra.mxu0 %v2354
      %3243 = vmatprep.subr.mxu0 0.0
      %3244 = vmatpush1.msra.mxu0 %v2355
      %3245 = vmatprep.subr.mxu0 0.0
      %3246 = vmatpush1.msra.mxu0 %v2356
      %3247 = vmatprep.subr.mxu0 0.0
      %3248 = vmatpush1.msra.mxu0 %v2357
      %3249 = vmatprep.subr.mxu0 0.0
      %3250 = vmatpush1.msra.mxu0 %v2358
      %3251 = vmatprep.subr.mxu0 0.0
      %3252 = vmatpush1.msra.mxu0 %v2359
      %3253 = vmatprep.subr.mxu0 0.0
      %3254 = vmatpush1.msra.mxu0 %v2360
      %3255 = vmatprep.subr.mxu0 0.0
      %3256 = vmatpush1.msra.mxu0 %v2361
      %3257 = vmatprep.mubr.f32.mxu0 %v2075
      %3258 = vmatmul.mubr.f32.gmra.mrb[0].mxu0 %v2068
      %v3259 = vpop.f32.mrb[0].mxu0
      %v3260 = vadd.f32 %v3185, %v3259
      %v3261 = vpop.f32.mrb[0].mxu0
      %3262 = vmatprep.mubr.f32.mxu0 %v2077
      %3263 = vmatmul.mubr.f32.gmra.mrb[0].mxu0 %v2070
      %v3264 = vpop.f32.mrb[0].mxu0
      %v3265 = vadd.f32 %v3190, %v3264
      %v3266 = vpop.f32.mrb[0].mxu0
      %3267 = vdwg.mxu0
      %3268 = vmatprep.subr.mxu0 0.0
      %3269 = vmatpush1.msra.mxu0 %v2362
      %3270 = vmatprep.subr.mxu0 0.0
      %3271 = vmatpush1.msra.mxu0 %v2363
      %3272 = vmatprep.subr.mxu0 0.0
      %3273 = vmatpush1.msra.mxu0 %v2364
      %3274 = vmatprep.subr.mxu0 0.0
      %3275 = vmatpush1.msra.mxu0 %v2365
      %3276 = vmatprep.subr.mxu0 0.0
      %3277 = vmatpush1.msra.mxu0 %v2366
      %3278 = vmatprep.subr.mxu0 0.0
      %3279 = vmatpush1.msra.mxu0 %v2367
      %3280 = vmatprep.subr.mxu0 0.0
      %3281 = vmatpush1.msra.mxu0 %v2368
      %3282 = vmatprep.subr.mxu0 0.0
      %3283 = vmatpush1.msra.mxu0 %v2369
      %3284 = vmatprep.subr.mxu0 0.0
      %3285 = vmatpush1.msra.mxu0 %v2370
      %3286 = vmatprep.subr.mxu0 0.0
      %3287 = vmatpush1.msra.mxu0 %v2371
      %3288 = vmatprep.subr.mxu0 0.0
      %3289 = vmatpush1.msra.mxu0 %v2372
      %3290 = vmatprep.subr.mxu0 0.0
      %3291 = vmatpush1.msra.mxu0 %v2373
      %3292 = vmatprep.subr.mxu0 0.0
      %3293 = vmatpush1.msra.mxu0 %v2374
      %3294 = vmatprep.subr.mxu0 0.0
      %3295 = vmatpush1.msra.mxu0 %v2375
      %3296 = vmatprep.subr.mxu0 0.0
      %3297 = vmatpush1.msra.mxu0 %v2376
      %3298 = vmatprep.subr.mxu0 0.0
      %3299 = vmatpush1.msra.mxu0 %v2377
      %3300 = vmatprep.subr.mxu0 0.0
      %3301 = vmatpush1.msra.mxu0 %v2378
      %3302 = vmatprep.subr.mxu0 0.0
      %3303 = vmatpush1.msra.mxu0 %v2379
      %3304 = vmatprep.subr.mxu0 0.0
      %3305 = vmatpush1.msra.mxu0 %v2380
      %3306 = vmatprep.subr.mxu0 0.0
      %3307 = vmatpush1.msra.mxu0 %v2381
      %3308 = vmatprep.subr.mxu0 0.0
      %3309 = vmatpush1.msra.mxu0 %v2382
      %3310 = vmatprep.subr.mxu0 0.0
      %3311 = vmatpush1.msra.mxu0 %v2383
      %3312 = vmatprep.subr.mxu0 0.0
      %3313 = vmatpush1.msra.mxu0 %v2384
      %3314 = vmatprep.subr.mxu0 0.0
      %3315 = vmatpush1.msra.mxu0 %v2385
      %3316 = vmatprep.subr.mxu0 0.0
      %3317 = vmatpush1.msra.mxu0 %v2386
      %3318 = vmatprep.subr.mxu0 0.0
      %3319 = vmatpush1.msra.mxu0 %v2387
      %3320 = vmatprep.subr.mxu0 0.0
      %3321 = vmatpush1.msra.mxu0 %v2388
      %3322 = vmatprep.subr.mxu0 0.0
      %3323 = vmatpush1.msra.mxu0 %v2389
      %3324 = vmatprep.subr.mxu0 0.0
      %3325 = vmatpush1.msra.mxu0 %v2390
      %3326 = vmatprep.subr.mxu0 0.0
      %3327 = vmatpush1.msra.mxu0 %v2391
      %3328 = vmatprep.subr.mxu0 0.0
      %3329 = vmatpush1.msra.mxu0 %v2392
      %3330 = vmatprep.subr.mxu0 0.0
      %3331 = vmatpush1.msra.mxu0 %v2393
      %3332 = vmatprep.mubr.f32.mxu0 %v2085
      %3333 = vmatmul.mubr.f32.gmra.mrb[0].mxu0 %v2082
      %v3334 = vpop.f32.mrb[0].mxu0
      %v3335 = vadd.f32 %v3260, %v3334
      %v3336 = vpop.f32.mrb[0].mxu0
      %3337 = vmatprep.mubr.f32.mxu0 %v2094
      %3338 = vmatmul.mubr.f32.gmra.mrb[0].mxu0 %v2092
      %v3339 = vpop.f32.mrb[0].mxu0
      %v3340 = vadd.f32 %v3265, %v3339
      %v3341 = vpop.f32.mrb[0].mxu0
      %3342 = vdwg.mxu0
      %3343 = vmatprep.subr.mxu0 0.0
      %3344 = vmatpush1.msra.mxu0 %v2394
      %3345 = vmatprep.subr.mxu0 0.0
      %3346 = vmatpush1.msra.mxu0 %v2395
      %3347 = vmatprep.subr.mxu0 0.0
      %3348 = vmatpush1.msra.mxu0 %v2396
      %3349 = vmatprep.subr.mxu0 0.0
      %3350 = vmatpush1.msra.mxu0 %v2397
      %3351 = vmatprep.subr.mxu0 0.0
      %3352 = vmatpush1.msra.mxu0 %v2398
      %3353 = vmatprep.subr.mxu0 0.0
      %3354 = vmatpush1.msra.mxu0 %v2399
      %3355 = vmatprep.subr.mxu0 0.0
      %3356 = vmatpush1.msra.mxu0 %v2400
      %3357 = vmatprep.subr.mxu0 0.0
      %3358 = vmatpush1.msra.mxu0 %v2401
      %3359 = vmatprep.subr.mxu0 0.0
      %3360 = vmatpush1.msra.mxu0 %v2402
      %3361 = vmatprep.subr.mxu0 0.0
      %3362 = vmatpush1.msra.mxu0 %v2403
      %3363 = vmatprep.subr.mxu0 0.0
      %3364 = vmatpush1.msra.mxu0 %v2404
      %3365 = vmatprep.subr.mxu0 0.0
      %3366 = vmatpush1.msra.mxu0 %v2405
      %3367 = vmatprep.subr.mxu0 0.0
      %3368 = vmatpush1.msra.mxu0 %v2406
      %3369 = vmatprep.subr.mxu0 0.0
      %3370 = vmatpush1.msra.mxu0 %v2407
      %3371 = vmatprep.subr.mxu0 0.0
      %3372 = vmatpush1.msra.mxu0 %v2408
      %3373 = vmatprep.subr.mxu0 0.0
      %3374 = vmatpush1.msra.mxu0 %v2409
      %3375 = vmatprep.subr.mxu0 0.0
      %3376 = vmatpush1.msra.mxu0 %v2410
      %3377 = vmatprep.subr.mxu0 0.0
      %3378 = vmatpush1.msra.mxu0 %v2411
      %3379 = vmatprep.subr.mxu0 0.0
      %3380 = vmatpush1.msra.mxu0 %v2412
      %3381 = vmatprep.subr.mxu0 0.0
      %3382 = vmatpush1.msra.mxu0 %v2413
      %3383 = vmatprep.subr.mxu0 0.0
      %3384 = vmatpush1.msra.mxu0 %v2414
      %3385 = vmatprep.subr.mxu0 0.0
      %3386 = vmatpush1.msra.mxu0 %v2415
      %3387 = vmatprep.subr.mxu0 0.0
      %3388 = vmatpush1.msra.mxu0 %v2416
      %3389 = vmatprep.subr.mxu0 0.0
      %3390 = vmatpush1.msra.mxu0 %v2417
      %3391 = vmatprep.subr.mxu0 0.0
      %3392 = vmatpush1.msra.mxu0 %v2418
      %3393 = vmatprep.subr.mxu0 0.0
      %3394 = vmatpush1.msra.mxu0 %v2419
      %3395 = vmatprep.subr.mxu0 0.0
      %3396 = vmatpush1.msra.mxu0 %v2420
      %3397 = vmatprep.subr.mxu0 0.0
      %3398 = vmatpush1.msra.mxu0 %v2421
      %3399 = vmatprep.subr.mxu0 0.0
      %3400 = vmatpush1.msra.mxu0 %v2422
      %3401 = vmatprep.subr.mxu0 0.0
      %3402 = vmatpush1.msra.mxu0 %v2423
      %3403 = vmatprep.subr.mxu0 0.0
      %3404 = vmatpush1.msra.mxu0 %v2424
      %3405 = vmatprep.subr.mxu0 0.0
      %3406 = vmatpush1.msra.mxu0 %v2425
      %3407 = vmatprep.mubr.f32.mxu0 %v2091
      %3408 = vmatmul.mubr.f32.gmra.mrb[0].mxu0 %v2088
      %v3409 = vpop.f32.mrb[0].mxu0
      %v3410 = vadd.f32 %v3335, %v3409
      %v3411 = vpop.f32.mrb[0].mxu0
      %3412 = vmatprep.mubr.f32.mxu0 %v2097
      %3413 = vmatmul.mubr.f32.gmra.mrb[0].mxu0 %v2095
      %v3414 = vpop.f32.mrb[0].mxu0
      %v3415 = vadd.f32 %v3340, %v3414
      %v3416 = vpop.f32.mrb[0].mxu0
      %3417 = vdwg.mxu0
      %v3418 = vld [vmem:[%s9] sm:$0x1]
      %v3420 = vlaneseq
      %v3421 = vshrl.u32 %v3420, 7
      %v3422 = vsub.s32 0, %v3421
      %v3423 = vrot.slane %v3418, %v3422
      %v3425 = vadd.f32 %v3410, %v3423
      %v3426 = vadd.f32 %v3415, %v3423
      %v3427 = vld [vmem:[%s10] sm:$0x1]
      %v3429 = vlaneseq
      %v3430 = vshrl.u32 %v3429, 7
      %v3431 = vsub.s32 0, %v3430
      %v3432 = vrot.slane %v3427, %v3431
      %v3434 = vmul.f32 %v3425, %v3432
      %v3435 = vmul.f32 %v3426, %v3432
      %v3436 = vld [vmem:[%s11] sm:$0x1]
      %v3438 = vlaneseq
      %v3439 = vshrl.u32 %v3438, 7
      %v3440 = vsub.s32 0, %v3439
      %v3441 = vrot.slane %v3436, %v3440
      %v3443 = vadd.f32 %v3434, %v3441
      %v3444 = vadd.f32 %v3435, %v3441
      %v3445 = vmax.f32 %v3443, 0.0
      %v3446 = vmax.f32 %v3444, 0.0
      %3447 = vst [vmem:[%s473] sm:$0xff] 0.0
      %3448 = vst [vmem:[%s473 + $0x8] sm:$0xff] %v3425
      %3449 = vst [vmem:[%s473 + $0x10] sm:$0xff] %v3426
      %3450 = vst [vmem:[%s473 + $0x18] sm:$0xff] 0.0
      %3451 = vst [vmem:[%s468] sm:$0xff] 0.0
      %3452 = vst [vmem:[%s468 + $0x8] sm:$0xff] %v3445
      %3453 = vst [vmem:[%s468 + $0x10] sm:$0xff] %v3446
      %3454 = vst [vmem:[%s468 + $0x18] sm:$0xff] 0.0
      %p3455 = scmp.lt.s32.totalorder %s25, 1
      %s3456 = scalar_select %p3455, %s25, 1
      %s3457 = smul.addr %s3456, 4
      %s3458 = smul.addr %s3457, 8
      %s3459 = scalar_lea.vmem %s12, %s3458
      %p3460 = scmp.lt.s32.totalorder %s25, 1
      %s3461 = scalar_select %p3460, %s25, 1
      %s3462 = smul.addr %s3461, 4
      %s3463 = smul.addr %s3462, 8
      %s3464 = scalar_lea.vmem %s13, %s3463
      // Predicated region
      $region69: #{stacked_residual_pallas.2} parent=67 // pred_check
        %p3465 = pneg %p305
      $region70: #{stacked_residual_pallas.2} parent=67 // pred_check_branch
        %3467 = sbr.rel (%p3465) target = $region72
      $region71: #{stacked_residual_pallas.2} parent=67 // pred_region
        _
      $region72: #{stacked_residual_pallas.2} parent=67 // pred_fallthru
        _
      // Predicated region
      $region73: #{stacked_residual_pallas.2} parent=67 // pred_check
        %p3468 = pneg %p331
      $region74: #{stacked_residual_pallas.2} parent=67 // pred_check_branch
        %3470 = sbr.rel (%p3468) target = $region76
      $region75: #{stacked_residual_pallas.2} parent=67 // pred_region
        _
      $region76: #{stacked_residual_pallas.2} parent=67 // pred_fallthru
        _
    $region68: #{stacked_residual_pallas.2} parent=5 // pred_fallthru
      _
    %p3471 = scmp.le.s32.totalorder 2, %s20
    // Predicated region
    $region77: #{stacked_residual_pallas.2} parent=5 // pred_check
      %p3472 = pneg %p3471
    $region78: #{stacked_residual_pallas.2} parent=5 // pred_check_branch
      %3474 = sbr.rel (%p3472) target = $region80
    $region79: #{stacked_residual_pallas.2} parent=5 // pred_region
      %s3475 = ssub.s32 %s20, 2
      // Predicated region
      $region81: #{stacked_residual_pallas.2} parent=79 // pred_check
        %p3476 = pneg %p311
      $region82: #{stacked_residual_pallas.2} parent=79 // pred_check_branch
        %3478 = sbr.rel (%p3476) target = $region84
      $region83: #{stacked_residual_pallas.2} parent=79 // pred_region
        %p3479 = scmp.lt.s32.totalorder %s26, 1
        %s3480 = scalar_select %p3479, %s26, 1
        %s3481 = smul.addr %s3480, 4
        %s3482 = smul.addr %s3481, 8
        %s3483 = scalar_lea.vmem %s12, %s3482
      $region84: #{stacked_residual_pallas.2} parent=79 // pred_fallthru
        _
      // Predicated region
      $region85: #{stacked_residual_pallas.2} parent=79 // pred_check
        %p3484 = pneg %p337
      $region86: #{stacked_residual_pallas.2} parent=79 // pred_check_branch
        %3486 = sbr.rel (%p3484) target = $region88
      $region87: #{stacked_residual_pallas.2} parent=79 // pred_region
        %p3487 = scmp.lt.s32.totalorder %s26, 1
        %s3488 = scalar_select %p3487, %s26, 1
        %s3489 = smul.addr %s3488, 4
        %s3490 = smul.addr %s3489, 8
        %s3491 = scalar_lea.vmem %s13, %s3490
      $region88: #{stacked_residual_pallas.2} parent=79 // pred_fallthru
        _
    $region80: #{stacked_residual_pallas.2} parent=5 // pred_fallthru
      _
  $region6: #{stacked_residual_pallas.2} parent=0 // loop_footer
    %s24 = sadd.s32 1, %s20
  $region7: #{stacked_residual_pallas.2} parent=0 // loop_footer_branch
    %19 = sbr.rel target = $region3
  $region8: #{stacked_residual_pallas.2} parent=0 // loop_exit
    _

// kernel: stacked_residual_pallas.3
$region0: #{stacked_residual_pallas.3}
  #allocation0 [shape = 'u32[]', space=smem, size = 0x4, offset = 0x4, fixed_abs, tag = 'smem constant byte address 0x4 - core index']
  #allocation1 [shape = 'u32[144,128]{1,0:T(1,128)}', space=vmem, size = 0x12000, scoped, tag = 'internal scratch']
  %s0 = inlined_call_operand.vmem [shape: f32[2,32,128], index: 0, kind: input, shape index: {}]
  %s1 = inlined_call_operand.vmem [shape: f32[2,32,128], index: 1, kind: input, shape index: {}]
  %s2 = inlined_call_operand.vmem [shape: f32[2176,256], index: 2, kind: input, shape index: {}]
  %s3 = inlined_call_operand.vmem [shape: f32[5120,256], index: 3, kind: input, shape index: {}]
  %s4 = inlined_call_operand.vmem [shape: f32[128,256], index: 4, kind: input, shape index: {}]
  %s5 = inlined_call_operand.vmem [shape: f32[32,16], index: 5, kind: input, shape index: {}]
  %s6 = inlined_call_operand.vmem [shape: f32[16,16], index: 6, kind: input, shape index: {}]
  %s7 = inlined_call_operand.vmem [shape: f32[1,256], index: 7, kind: input, shape index: {}]
  %s8 = inlined_call_operand.vmem [shape: f32[1,256], index: 8, kind: input, shape index: {}]
  %s9 = inlined_call_operand.vmem [shape: f32[1,256], index: 9, kind: input, shape index: {}]
  %s10 = inlined_call_operand.vmem [shape: f32[1,256], index: 10, kind: input, shape index: {}]
  %s11 = inlined_call_operand.vmem [shape: f32[1,256], index: 11, kind: input, shape index: {}]
  %s12 = inlined_call_operand.vmem [shape: f32[2,20,256], index: 12, kind: output, shape index: {0}]
  %s13 = inlined_call_operand.hbm [shape: f32[2,20,256], index: 13, kind: output, shape index: {1}]
  %14 = xla_tuple %s12, %s13
  %s15 = sld [smem:[#allocation0]]
  $region89: #{stacked_residual_pallas.3} parent=0
    _
  %s17 = ssub.s32 1, %s15
  %s18 = scalar_select 0, %s17, %s15
  $region1: #{stacked_residual_pallas.3} parent=0
    #allocation2 [shape = 'u8[49152]{0}', space=vmem, size = 0xc000, scoped, tag = 'output window, operand 1']
    #allocation3 [shape = 's32[2]{0}', space=sflag, size = 0x8, scoped, tag = 'scoped memory for stacked_residual_pallas.3']
    %19 = vsyncpa [#allocation3], 0
    %s20 = scalar_lea.sflag [#allocation3], 1
    %21 = vsyncpa %s20, 0
    loop: start=0, step=1, limit=4
    $region2: #{stacked_residual_pallas.3} parent=1 // loop_pre_header
      _
    $region3: #{stacked_residual_pallas.3} parent=1 // loop_header
      %s23 = sphi 0, %s27
      %p24 = scmp.ge.s32.totalorder %s23, 4
      %s33 = sphi 0, %s35
      %s36 = sphi 0, %s33
      %s37 = sphi 0, %s36
      %s53 = sphi 0, %s37
      %s59 = sphi 0, %s61
      %s62 = sphi 0, %s59
      %s63 = sphi 0, %s62
      %s79 = sphi 0, %s63
      %s83 = sphi 0, %s83
      %s85 = sphi 0, %s83
      %s86 = sphi 0, %s85
      %s100 = sphi 0, %s86
      %s104 = sphi 0, %s104
      %s106 = sphi 0, %s104
      %s107 = sphi 0, %s106
      %s121 = sphi 0, %s107
      %s125 = sphi 0, %s125
      %s127 = sphi 0, %s125
      %s128 = sphi 0, %s127
      %s142 = sphi 0, %s128
      %s146 = sphi 0, %s146
      %s148 = sphi 0, %s146
      %s149 = sphi 0, %s148
      %s163 = sphi 0, %s149
      %s167 = sphi 0, %s167
      %s169 = sphi 0, %s167
      %s170 = sphi 0, %s169
      %s184 = sphi 0, %s170
      %s188 = sphi 0, %s188
      %s190 = sphi 0, %s188
      %s191 = sphi 0, %s190
      %s205 = sphi 0, %s191
      %s209 = sphi 0, %s209
      %s211 = sphi 0, %s209
      %s212 = sphi 0, %s211
      %s226 = sphi 0, %s212
      %s230 = sphi 0, %s230
      %s232 = sphi 0, %s230
      %s233 = sphi 0, %s232
      %s247 = sphi 0, %s233
      %s251 = sphi 0, %s251
      %s253 = sphi 0, %s251
      %s254 = sphi 0, %s253
      %s268 = sphi 0, %s254
      %s272 = sphi 0, %s272
      %s274 = sphi 0, %s272
      %s275 = sphi 0, %s274
      %s289 = sphi 0, %s275
      %s295 = sphi 0, %s297
      %s298 = sphi 0, %s295
      %s299 = sphi 0, %s298
      %s315 = sphi 0, %s299
      %s321 = sphi 0, %s323
      %s324 = sphi 0, %s321
      %s325 = sphi 0, %s324
      %s341 = sphi 0, %s325
    $region4: #{stacked_residual_pallas.3} parent=1 // loop_header_branch
      %26 = sbr.rel (%p24) target = $region8
    $region5: #{stacked_residual_pallas.3} parent=1 // loop_body
      %s28 = ssub.s32 %s23, 1
      %s29 = ssub.s32 %s23, 2
      %s30 = sadd.s32 %s23, 1
      %s31 = ssub.s32 %s23, %s30
      %p32 = scmp.eq.s32.totalorder %s31, 0
      %s34 = sadd.s32 %s33, 1
      %s35 = scalar_select %p32, %s33, %s34
      %p38 = pneg %p32
      %p39 = scmp.eq.s32.totalorder %s23, 1
      %p40 = por %p38, %p39
      %p41 = scmp.ne.s32.totalorder %s33, %s36
      %p42 = scmp.eq.s32.totalorder %s23, 0
      %p43 = por %p41, %p42
      %p44 = scmp.ne.s32.totalorder %s33, %s36
      %p45 = scmp.eq.s32.totalorder %s28, 1
      %p46 = por %p44, %p45
      %p47 = scmp.ne.s32.totalorder %s36, %s37
      %p48 = scmp.eq.s32.totalorder %s28, 0
      %p49 = por %p47, %p48
      %p50 = scmp.ne.s32.totalorder %s36, %s37
      %p51 = scmp.eq.s32.totalorder %s29, 1
      %p52 = por %p50, %p51
      %p54 = scmp.ne.s32.totalorder %s37, %s53
      %p55 = scmp.eq.s32.totalorder %s29, 0
      %p56 = por %p54, %p55
      %s57 = ssub.s32 %s23, %s30
      %p58 = scmp.eq.s32.totalorder %s57, 0
      %s60 = sadd.s32 %s59, 1
      %s61 = scalar_select %p58, %s59, %s60
      %p64 = pneg %p58
      %p65 = scmp.eq.s32.totalorder %s23, 1
      %p66 = por %p64, %p65
      %p67 = scmp.ne.s32.totalorder %s59, %s62
      %p68 = scmp.eq.s32.totalorder %s23, 0
      %p69 = por %p67, %p68
      %p70 = scmp.ne.s32.totalorder %s59, %s62
      %p71 = scmp.eq.s32.totalorder %s28, 1
      %p72 = por %p70, %p71
      %p73 = scmp.ne.s32.totalorder %s62, %s63
      %p74 = scmp.eq.s32.totalorder %s28, 0
      %p75 = por %p73, %p74
      %p76 = scmp.ne.s32.totalorder %s62, %s63
      %p77 = scmp.eq.s32.totalorder %s29, 1
      %p78 = por %p76, %p77
      %p80 = scmp.ne.s32.totalorder %s63, %s79
      %p81 = scmp.eq.s32.totalorder %s29, 0
      %p82 = por %p80, %p81
      %s84 = sadd.s32 %s83, 1
      %p87 = scmp.eq.s32.totalorder %s23, 1
      %p88 = scmp.ne.s32.totalorder %s83, %s85
      %p89 = scmp.eq.s32.totalorder %s23, 0
      %p90 = por %p88, %p89
      %p91 = scmp.ne.s32.totalorder %s83, %s85
      %p92 = scmp.eq.s32.totalorder %s28, 1
      %p93 = por %p91, %p92
      %p94 = scmp.ne.s32.totalorder %s85, %s86
      %p95 = scmp.eq.s32.totalorder %s28, 0
      %p96 = por %p94, %p95
      %p97 = scmp.ne.s32.totalorder %s85, %s86
      %p98 = scmp.eq.s32.totalorder %s29, 1
      %p99 = por %p97, %p98
      %p101 = scmp.ne.s32.totalorder %s86, %s100
      %p102 = scmp.eq.s32.totalorder %s29, 0
      %p103 = por %p101, %p102
      %s105 = sadd.s32 %s104, 1
      %p108 = scmp.eq.s32.totalorder %s23, 1
      %p109 = scmp.ne.s32.totalorder %s104, %s106
      %p110 = scmp.eq.s32.totalorder %s23, 0
      %p111 = por %p109, %p110
      %p112 = scmp.ne.s32.totalorder %s104, %s106
      %p113 = scmp.eq.s32.totalorder %s28, 1
      %p114 = por %p112, %p113
      %p115 = scmp.ne.s32.totalorder %s106, %s107
      %p116 = scmp.eq.s32.totalorder %s28, 0
      %p117 = por %p115, %p116
      %p118 = scmp.ne.s32.totalorder %s106, %s107
      %p119 = scmp.eq.s32.totalorder %s29, 1
      %p120 = por %p118, %p119
      %p122 = scmp.ne.s32.totalorder %s107, %s121
      %p123 = scmp.eq.s32.totalorder %s29, 0
      %p124 = por %p122, %p123
      %s126 = sadd.s32 %s125, 1
      %p129 = scmp.eq.s32.totalorder %s23, 1
      %p130 = scmp.ne.s32.totalorder %s125, %s127
      %p131 = scmp.eq.s32.totalorder %s23, 0
      %p132 = por %p130, %p131
      %p133 = scmp.ne.s32.totalorder %s125, %s127
      %p134 = scmp.eq.s32.totalorder %s28, 1
      %p135 = por %p133, %p134
      %p136 = scmp.ne.s32.totalorder %s127, %s128
      %p137 = scmp.eq.s32.totalorder %s28, 0
      %p138 = por %p136, %p137
      %p139 = scmp.ne.s32.totalorder %s127, %s128
      %p140 = scmp.eq.s32.totalorder %s29, 1
      %p141 = por %p139, %p140
      %p143 = scmp.ne.s32.totalorder %s128, %s142
      %p144 = scmp.eq.s32.totalorder %s29, 0
      %p145 = por %p143, %p144
      %s147 = sadd.s32 %s146, 1
      %p150 = scmp.eq.s32.totalorder %s23, 1
      %p151 = scmp.ne.s32.totalorder %s146, %s148
      %p152 = scmp.eq.s32.totalorder %s23, 0
      %p153 = por %p151, %p152
      %p154 = scmp.ne.s32.totalorder %s146, %s148
      %p155 = scmp.eq.s32.totalorder %s28, 1
      %p156 = por %p154, %p155
      %p157 = scmp.ne.s32.totalorder %s148, %s149
      %p158 = scmp.eq.s32.totalorder %s28, 0
      %p159 = por %p157, %p158
      %p160 = scmp.ne.s32.totalorder %s148, %s149
      %p161 = scmp.eq.s32.totalorder %s29, 1
      %p162 = por %p160, %p161
      %p164 = scmp.ne.s32.totalorder %s149, %s163
      %p165 = scmp.eq.s32.totalorder %s29, 0
      %p166 = por %p164, %p165
      %s168 = sadd.s32 %s167, 1
      %p171 = scmp.eq.s32.totalorder %s23, 1
      %p172 = scmp.ne.s32.totalorder %s167, %s169
      %p173 = scmp.eq.s32.totalorder %s23, 0
      %p174 = por %p172, %p173
      %p175 = scmp.ne.s32.totalorder %s167, %s169
      %p176 = scmp.eq.s32.totalorder %s28, 1
      %p177 = por %p175, %p176
      %p178 = scmp.ne.s32.totalorder %s169, %s170
      %p179 = scmp.eq.s32.totalorder %s28, 0
      %p180 = por %p178, %p179
      %p181 = scmp.ne.s32.totalorder %s169, %s170
      %p182 = scmp.eq.s32.totalorder %s29, 1
      %p183 = por %p181, %p182
      %p185 = scmp.ne.s32.totalorder %s170, %s184
      %p186 = scmp.eq.s32.totalorder %s29, 0
      %p187 = por %p185, %p186
      %s189 = sadd.s32 %s188, 1
      %p192 = scmp.eq.s32.totalorder %s23, 1
      %p193 = scmp.ne.s32.totalorder %s188, %s190
      %p194 = scmp.eq.s32.totalorder %s23, 0
      %p195 = por %p193, %p194
      %p196 = scmp.ne.s32.totalorder %s188, %s190
      %p197 = scmp.eq.s32.totalorder %s28, 1
      %p198 = por %p196, %p197
      %p199 = scmp.ne.s32.totalorder %s190, %s191
      %p200 = scmp.eq.s32.totalorder %s28, 0
      %p201 = por %p199, %p200
      %p202 = scmp.ne.s32.totalorder %s190, %s191
      %p203 = scmp.eq.s32.totalorder %s29, 1
      %p204 = por %p202, %p203
      %p206 = scmp.ne.s32.totalorder %s191, %s205
      %p207 = scmp.eq.s32.totalorder %s29, 0
      %p208 = por %p206, %p207
      %s210 = sadd.s32 %s209, 1
      %p213 = scmp.eq.s32.totalorder %s23, 1
      %p214 = scmp.ne.s32.totalorder %s209, %s211
      %p215 = scmp.eq.s32.totalorder %s23, 0
      %p216 = por %p214, %p215
      %p217 = scmp.ne.s32.totalorder %s209, %s211
      %p218 = scmp.eq.s32.totalorder %s28, 1
      %p219 = por %p217, %p218
      %p220 = scmp.ne.s32.totalorder %s211, %s212
      %p221 = scmp.eq.s32.totalorder %s28, 0
      %p222 = por %p220, %p221
      %p223 = scmp.ne.s32.totalorder %s211, %s212
      %p224 = scmp.eq.s32.totalorder %s29, 1
      %p225 = por %p223, %p224
      %p227 = scmp.ne.s32.totalorder %s212, %s226
      %p228 = scmp.eq.s32.totalorder %s29, 0
      %p229 = por %p227, %p228
      %s231 = sadd.s32 %s230, 1
      %p234 = scmp.eq.s32.totalorder %s23, 1
      %p235 = scmp.ne.s32.totalorder %s230, %s232
      %p236 = scmp.eq.s32.totalorder %s23, 0
      %p237 = por %p235, %p236
      %p238 = scmp.ne.s32.totalorder %s230, %s232
      %p239 = scmp.eq.s32.totalorder %s28, 1
      %p240 = por %p238, %p239
      %p241 = scmp.ne.s32.totalorder %s232, %s233
      %p242 = scmp.eq.s32.totalorder %s28, 0
      %p243 = por %p241, %p242
      %p244 = scmp.ne.s32.totalorder %s232, %s233
      %p245 = scmp.eq.s32.totalorder %s29, 1
      %p246 = por %p244, %p245
      %p248 = scmp.ne.s32.totalorder %s233, %s247
      %p249 = scmp.eq.s32.totalorder %s29, 0
      %p250 = por %p248, %p249
      %s252 = sadd.s32 %s251, 1
      %p255 = scmp.eq.s32.totalorder %s23, 1
      %p256 = scmp.ne.s32.totalorder %s251, %s253
      %p257 = scmp.eq.s32.totalorder %s23, 0
      %p258 = por %p256, %p257
      %p259 = scmp.ne.s32.totalorder %s251, %s253
      %p260 = scmp.eq.s32.totalorder %s28, 1
      %p261 = por %p259, %p260
      %p262 = scmp.ne.s32.totalorder %s253, %s254
      %p263 = scmp.eq.s32.totalorder %s28, 0
      %p264 = por %p262, %p263
      %p265 = scmp.ne.s32.totalorder %s253, %s254
      %p266 = scmp.eq.s32.totalorder %s29, 1
      %p267 = por %p265, %p266
      %p269 = scmp.ne.s32.totalorder %s254, %s268
      %p270 = scmp.eq.s32.totalorder %s29, 0
      %p271 = por %p269, %p270
      %s273 = sadd.s32 %s272, 1
      %p276 = scmp.eq.s32.totalorder %s23, 1
      %p277 = scmp.ne.s32.totalorder %s272, %s274
      %p278 = scmp.eq.s32.totalorder %s23, 0
      %p279 = por %p277, %p278
      %p280 = scmp.ne.s32.totalorder %s272, %s274
      %p281 = scmp.eq.s32.totalorder %s28, 1
      %p282 = por %p280, %p281
      %p283 = scmp.ne.s32.totalorder %s274, %s275
      %p284 = scmp.eq.s32.totalorder %s28, 0
      %p285 = por %p283, %p284
      %p286 = scmp.ne.s32.totalorder %s274, %s275
      %p287 = scmp.eq.s32.totalorder %s29, 1
      %p288 = por %p286, %p287
      %p290 = scmp.ne.s32.totalorder %s275, %s289
      %p291 = scmp.eq.s32.totalorder %s29, 0
      %p292 = por %p290, %p291
      %s293 = ssub.s32 %s23, %s30
      %p294 = scmp.eq.s32.totalorder %s293, 0
      %s296 = sadd.s32 %s295, 1
      %s297 = scalar_select %p294, %s295, %s296
      %p300 = pneg %p294
      %p301 = scmp.eq.s32.totalorder %s23, 1
      %p302 = por %p300, %p301
      %p303 = scmp.ne.s32.totalorder %s295, %s298
      %p304 = scmp.eq.s32.totalorder %s23, 0
      %p305 = por %p303, %p304
      %p306 = scmp.ne.s32.totalorder %s295, %s298
      %p307 = scmp.eq.s32.totalorder %s28, 1
      %p308 = por %p306, %p307
      %p309 = scmp.ne.s32.totalorder %s298, %s299
      %p310 = scmp.eq.s32.totalorder %s28, 0
      %p311 = por %p309, %p310
      %p312 = scmp.ne.s32.totalorder %s298, %s299
      %p313 = scmp.eq.s32.totalorder %s29, 1
      %p314 = por %p312, %p313
      %p316 = scmp.ne.s32.totalorder %s299, %s315
      %p317 = scmp.eq.s32.totalorder %s29, 0
      %p318 = por %p316, %p317
      %s319 = ssub.s32 %s23, %s30
      %p320 = scmp.eq.s32.totalorder %s319, 0
      %s322 = sadd.s32 %s321, 1
      %s323 = scalar_select %p320, %s321, %s322
      %p326 = pneg %p320
      %p327 = scmp.eq.s32.totalorder %s23, 1
      %p328 = por %p326, %p327
      %p329 = scmp.ne.s32.totalorder %s321, %s324
      %p330 = scmp.eq.s32.totalorder %s23, 0
      %p331 = por %p329, %p330
      %p332 = scmp.ne.s32.totalorder %s321, %s324
      %p333 = scmp.eq.s32.totalorder %s28, 1
      %p334 = por %p332, %p333
      %p335 = scmp.ne.s32.totalorder %s324, %s325
      %p336 = scmp.eq.s32.totalorder %s28, 0
      %p337 = por %p335, %p336
      %p338 = scmp.ne.s32.totalorder %s324, %s325
      %p339 = scmp.eq.s32.totalorder %s29, 1
      %p340 = por %p338, %p339
      %p342 = scmp.ne.s32.totalorder %s325, %s341
      %p343 = scmp.eq.s32.totalorder %s29, 0
      %p344 = por %p342, %p343
      %p345 = scmp.le.s32.totalorder 1, %s23
      %p346 = scmp.lt.s32.totalorder %s23, 3
      %p347 = pnand %p345, %p346
      %p348 = pneg %p347
      // Predicated region
      $region9: #{stacked_residual_pallas.3} parent=5 // pred_check
        _
      $region10: #{stacked_residual_pallas.3} parent=5 // pred_check_branch
        %350 = sbr.rel (%p347) target = $region12
      $region11: #{stacked_residual_pallas.3} parent=5 // pred_region
        %s351 = ssub.s32 %s23, 1
        // Predicated region
        $region13: #{stacked_residual_pallas.3} parent=11 // pred_check
          %p352 = pneg %p96
        $region14: #{stacked_residual_pallas.3} parent=11 // pred_check_branch
          %354 = sbr.rel (%p352) target = $region16
        $region15: #{stacked_residual_pallas.3} parent=11 // pred_region
          _
        $region16: #{stacked_residual_pallas.3} parent=11 // pred_fallthru
          _
        // Predicated region
        $region17: #{stacked_residual_pallas.3} parent=11 // pred_check
          %p355 = pneg %p117
        $region18: #{stacked_residual_pallas.3} parent=11 // pred_check_branch
          %357 = sbr.rel (%p355) target = $region20
        $region19: #{stacked_residual_pallas.3} parent=11 // pred_region
          _
        $region20: #{stacked_residual_pallas.3} parent=11 // pred_fallthru
          _
        // Predicated region
        $region21: #{stacked_residual_pallas.3} parent=11 // pred_check
          %p358 = pneg %p138
        $region22: #{stacked_residual_pallas.3} parent=11 // pred_check_branch
          %360 = sbr.rel (%p358) target = $region24
        $region23: #{stacked_residual_pallas.3} parent=11 // pred_region
          _
        $region24: #{stacked_residual_pallas.3} parent=11 // pred_fallthru
          _
        // Predicated region
        $region25: #{stacked_residual_pallas.3} parent=11 // pred_check
          %p361 = pneg %p159
        $region26: #{stacked_residual_pallas.3} parent=11 // pred_check_branch
          %363 = sbr.rel (%p361) target = $region28
        $region27: #{stacked_residual_pallas.3} parent=11 // pred_region
          _
        $region28: #{stacked_residual_pallas.3} parent=11 // pred_fallthru
          _
        // Predicated region
        $region29: #{stacked_residual_pallas.3} parent=11 // pred_check
          %p364 = pneg %p180
        $region30: #{stacked_residual_pallas.3} parent=11 // pred_check_branch
          %366 = sbr.rel (%p364) target = $region32
        $region31: #{stacked_residual_pallas.3} parent=11 // pred_region
          _
        $region32: #{stacked_residual_pallas.3} parent=11 // pred_fallthru
          _
        // Predicated region
        $region33: #{stacked_residual_pallas.3} parent=11 // pred_check
          %p367 = pneg %p201
        $region34: #{stacked_residual_pallas.3} parent=11 // pred_check_branch
          %369 = sbr.rel (%p367) target = $region36
        $region35: #{stacked_residual_pallas.3} parent=11 // pred_region
          _
        $region36: #{stacked_residual_pallas.3} parent=11 // pred_fallthru
          _
        // Predicated region
        $region37: #{stacked_residual_pallas.3} parent=11 // pred_check
          %p370 = pneg %p222
        $region38: #{stacked_residual_pallas.3} parent=11 // pred_check_branch
          %372 = sbr.rel (%p370) target = $region40
        $region39: #{stacked_residual_pallas.3} parent=11 // pred_region
          _
        $region40: #{stacked_residual_pallas.3} parent=11 // pred_fallthru
          _
        // Predicated region
        $region41: #{stacked_residual_pallas.3} parent=11 // pred_check
          %p373 = pneg %p243
        $region42: #{stacked_residual_pallas.3} parent=11 // pred_check_branch
          %375 = sbr.rel (%p373) target = $region44
        $region43: #{stacked_residual_pallas.3} parent=11 // pred_region
          _
        $region44: #{stacked_residual_pallas.3} parent=11 // pred_fallthru
          _
        // Predicated region
        $region45: #{stacked_residual_pallas.3} parent=11 // pred_check
          %p376 = pneg %p264
        $region46: #{stacked_residual_pallas.3} parent=11 // pred_check_branch
          %378 = sbr.rel (%p376) target = $region48
        $region47: #{stacked_residual_pallas.3} parent=11 // pred_region
          _
        $region48: #{stacked_residual_pallas.3} parent=11 // pred_fallthru
          _
        // Predicated region
        $region49: #{stacked_residual_pallas.3} parent=11 // pred_check
          %p379 = pneg %p285
        $region50: #{stacked_residual_pallas.3} parent=11 // pred_check_branch
          %381 = sbr.rel (%p379) target = $region52
        $region51: #{stacked_residual_pallas.3} parent=11 // pred_region
          _
        $region52: #{stacked_residual_pallas.3} parent=11 // pred_fallthru
          _
      $region12: #{stacked_residual_pallas.3} parent=5 // pred_fallthru
        _
      %p382 = scmp.lt.s32.totalorder %s23, 2
      // Predicated region
      $region53: #{stacked_residual_pallas.3} parent=5 // pred_check
        %p383 = pneg %p382
      $region54: #{stacked_residual_pallas.3} parent=5 // pred_check_branch
        %385 = sbr.rel (%p383) target = $region56
      $region55: #{stacked_residual_pallas.3} parent=5 // pred_region
        // Predicated region
        $region57: #{stacked_residual_pallas.3} parent=55 // pred_check
          %p386 = pneg %p43
        $region58: #{stacked_residual_pallas.3} parent=55 // pred_check_branch
          %388 = sbr.rel (%p386) target = $region60
        $region59: #{stacked_residual_pallas.3} parent=55 // pred_region
          %p389 = scmp.lt.s32.totalorder %s23, 1
          %s390 = scalar_select %p389, %s23, 1
          %s391 = smul.addr %s390, 4
          %s392 = smul.addr %s391, 8
          %s393 = scalar_lea.vmem %s0, %s392
        $region60: #{stacked_residual_pallas.3} parent=55 // pred_fallthru
          _
        // Predicated region
        $region61: #{stacked_residual_pallas.3} parent=55 // pred_check
          %p394 = pneg %p69
        $region62: #{stacked_residual_pallas.3} parent=55 // pred_check_branch
          %396 = sbr.rel (%p394) target = $region64
        $region63: #{stacked_residual_pallas.3} parent=55 // pred_region
          %p397 = scmp.lt.s32.totalorder %s23, 1
          %s398 = scalar_select %p397, %s23, 1
          %s399 = smul.addr %s398, 4
          %s400 = smul.addr %s399, 8
          %s401 = scalar_lea.vmem %s1, %s400
        $region64: #{stacked_residual_pallas.3} parent=55 // pred_fallthru
          _
      $region56: #{stacked_residual_pallas.3} parent=5 // pred_fallthru
        _
      %p402 = scmp.le.s32.totalorder 1, %s23
      %p403 = scmp.lt.s32.totalorder %s23, 3
      %p404 = pnand %p402, %p403
      %p405 = pneg %p404
      // Predicated region
      $region65: #{stacked_residual_pallas.3} parent=5 // pred_check
        _
      $region66: #{stacked_residual_pallas.3} parent=5 // pred_check_branch
        %407 = sbr.rel (%p404) target = $region68
      $region67: #{stacked_residual_pallas.3} parent=5 // pred_region
        %s408 = ssub.s32 %s23, 1
        %p409 = scmp.lt.s32.totalorder %s28, 1
        %s410 = scalar_select %p409, %s28, 1
        %s411 = smul.addr %s410, 4
        %s412 = smul.addr %s411, 8
        %s413 = scalar_lea.vmem %s0, %s412
        %p414 = pneg %p49
        %p415 = pneg %p46
        %p416 = scmp.lt.s32.totalorder %s28, 1
        %s417 = scalar_select %p416, %s28, 1
        %s418 = smul.addr %s417, 4
        %s419 = smul.addr %s418, 8
        %s420 = scalar_lea.vmem %s1, %s419
        %p421 = pneg %p75
        %p422 = pneg %p72
        %p423 = pneg %p96
        %p424 = pneg %p93
        %p425 = pneg %p117
        %p426 = pneg %p114
        %p427 = pneg %p138
        %p428 = pneg %p135
        %p429 = pneg %p159
        %p430 = pneg %p156
        %p431 = pneg %p180
        %p432 = pneg %p177
        %p433 = pneg %p201
        %p434 = pneg %p198
        %p435 = pneg %p222
        %p436 = pneg %p219
        %p437 = pneg %p243
        %p438 = pneg %p240
        %p439 = pneg %p264
        %p440 = pneg %p261
        %p441 = pneg %p285
        %p442 = pneg %p282
        %p443 = pneg %p311
        %p444 = pneg %p308
        %p445 = scmp.lt.s32.totalorder %s28, 1
        %s446 = scalar_select %p445, %s28, 1
        %s447 = smul.addr %s446, 6
        %s448 = smul.addr %s447, 8
        %s449 = scalar_lea.vmem %s12, %s448
        %p450 = pneg %p337
        %p451 = pneg %p334
        %s452 = sand.u32 %s324, 1
        %s453 = scalar_lea.sflag [#allocation3], %s452
        %s454 = sand.u32 %s324, 1
        %s455 = smul.addr %s454, 48
        %s456 = scalar_lea.vmem [#allocation2], %s455
        %p457 = scmp.lt.s32.totalorder %s28, 1
        %s458 = scalar_select %p457, %s28, 1
        %s459 = smul.addr %s458, 4
        %s460 = smul.addr %s459, 8
        %s461 = scalar_lea.vmem %s0, %s460
        %p462 = scmp.lt.s32.totalorder %s28, 1
        %s463 = scalar_select %p462, %s28, 1
        %s464 = smul.addr %s463, 4
        %s465 = smul.addr %s464, 8
        %s466 = scalar_lea.vmem %s1, %s465
        %p467 = scmp.lt.s32.totalorder %s28, 1
        %s468 = scalar_select %p467, %s28, 1
        %s469 = smul.addr %s468, 6
        %s470 = smul.addr %s469, 8
        %s471 = scalar_lea.vmem %s12, %s470
        %v472 = vld [vmem:[%s461] sm:$0xff]
        %v473 = vld [vmem:[%s461 + $0x8] sm:$0xff]
        %v474 = vld [vmem:[%s461 + $0x1] sm:$0xff]
        %v475 = vld [vmem:[%s461 + $0x9] sm:$0xff]
        %v476 = vld [vmem:[%s461 + $0x2] sm:$0xff]
        %v477 = vld [vmem:[%s461 + $0xa] sm:$0xff]
        %v478 = vld [vmem:[%s461 + $0x3] sm:$0xff]
        %v479 = vld [vmem:[%s461 + $0xb] sm:$0xff]
        %v480 = vld [vmem:[%s461 + $0x4] sm:$0xff]
        %v481 = vld [vmem:[%s461 + $0xc] sm:$0xff]
        %v482 = vld [vmem:[%s461 + $0x5] sm:$0xff]
        %v483 = vld [vmem:[%s461 + $0xd] sm:$0xff]
        %v484 = vld [vmem:[%s461 + $0x6] sm:$0xff]
        %v485 = vld [vmem:[%s461 + $0xe] sm:$0xff]
        %v486 = vld [vmem:[%s461 + $0x7] sm:$0xff]
        %v487 = vld [vmem:[%s461 + $0xf] sm:$0xff]
        %v488 = vld [vmem:[%s461 + $0x10] sm:$0xff]
        %v489 = vld [vmem:[%s461 + $0x11] sm:$0xff]
        %v490 = vld [vmem:[%s461 + $0x12] sm:$0xff]
        %v491 = vld [vmem:[%s461 + $0x13] sm:$0xff]
        %v492 = vld [vmem:[%s461 + $0x14] sm:$0xff]
        %v493 = vld [vmem:[%s461 + $0x15] sm:$0xff]
        %v494 = vld [vmem:[%s461 + $0x16] sm:$0xff]
        %v495 = vld [vmem:[%s461 + $0x17] sm:$0xff]
        %v496 = vld [vmem:[%s461 + $0x10] sm:$0xff]
        %v497 = vld [vmem:[%s461 + $0x18] sm:$0xff]
        %v498 = vld [vmem:[%s2] sm:$0xff]
        %v499 = vld [vmem:[%s2 + $0x8] sm:$0xff]
        %v500 = vld [vmem:[%s2 + $0x10] sm:$0xff]
        %v501 = vld [vmem:[%s2 + $0x18] sm:$0xff]
        %v502 = vld [vmem:[%s2 + $0x20] sm:$0xff]
        %v503 = vld [vmem:[%s2 + $0x28] sm:$0xff]
        %v504 = vld [vmem:[%s2 + $0x30] sm:$0xff]
        %v505 = vld [vmem:[%s2 + $0x38] sm:$0xff]
        %v506 = vld [vmem:[%s2 + $0x40] sm:$0xff]
        %v507 = vld [vmem:[%s2 + $0x48] sm:$0xff]
        %v508 = vld [vmem:[%s2 + $0x50] sm:$0xff]
        %v509 = vld [vmem:[%s2 + $0x58] sm:$0xff]
        %v510 = vld [vmem:[%s2 + $0x60] sm:$0xff]
        %v511 = vld [vmem:[%s2 + $0x68] sm:$0xff]
        %v512 = vld [vmem:[%s2 + $0x70] sm:$0xff]
        %v513 = vld [vmem:[%s2 + $0x78] sm:$0xff]
        %v514 = vld [vmem:[%s2 + $0x80] sm:$0xff]
        %v515 = vld [vmem:[%s2 + $0x88] sm:$0xff]
        %v516 = vld [vmem:[%s2 + $0x90] sm:$0xff]
        %v517 = vld [vmem:[%s2 + $0x98] sm:$0xff]
        %v518 = vld [vmem:[%s2 + $0xa0] sm:$0xff]
        %v519 = vld [vmem:[%s2 + $0xa8] sm:$0xff]
        %v520 = vld [vmem:[%s2 + $0xb0] sm:$0xff]
        %v521 = vld [vmem:[%s2 + $0xb8] sm:$0xff]
        %v522 = vld [vmem:[%s2 + $0xc0] sm:$0xff]
        %v523 = vld [vmem:[%s2 + $0xc8] sm:$0xff]
        %v524 = vld [vmem:[%s2 + $0xd0] sm:$0xff]
        %v525 = vld [vmem:[%s2 + $0xd8] sm:$0xff]
        %v526 = vld [vmem:[%s2 + $0xe0] sm:$0xff]
        %v527 = vld [vmem:[%s2 + $0xe8] sm:$0xff]
        %v528 = vld [vmem:[%s2 + $0xf0] sm:$0xff]
        %v529 = vld [vmem:[%s2 + $0xf8] sm:$0xff]
        %v530 = vld [vmem:[%s2 + $0x100] sm:$0xff]
        %v531 = vld [vmem:[%s2 + $0x108] sm:$0xff]
        %v532 = vld [vmem:[%s2 + $0x110] sm:$0xff]
        %v533 = vld [vmem:[%s2 + $0x118] sm:$0xff]
        %v534 = vld [vmem:[%s2 + $0x120] sm:$0xff]
        %v535 = vld [vmem:[%s2 + $0x128] sm:$0xff]
        %v536 = vld [vmem:[%s2 + $0x130] sm:$0xff]
        %v537 = vld [vmem:[%s2 + $0x138] sm:$0xff]
        %v538 = vld [vmem:[%s2 + $0x140] sm:$0xff]
        %v539 = vld [vmem:[%s2 + $0x148] sm:$0xff]
        %v540 = vld [vmem:[%s2 + $0x150] sm:$0xff]
        %v541 = vld [vmem:[%s2 + $0x158] sm:$0xff]
        %v542 = vld [vmem:[%s2 + $0x160] sm:$0xff]
        %v543 = vld [vmem:[%s2 + $0x168] sm:$0xff]
        %v544 = vld [vmem:[%s2 + $0x170] sm:$0xff]
        %v545 = vld [vmem:[%s2 + $0x178] sm:$0xff]
        %v546 = vld [vmem:[%s2 + $0x180] sm:$0xff]
        %v547 = vld [vmem:[%s2 + $0x188] sm:$0xff]
        %v548 = vld [vmem:[%s2 + $0x190] sm:$0xff]
        %v549 = vld [vmem:[%s2 + $0x198] sm:$0xff]
        %v550 = vld [vmem:[%s2 + $0x1a0] sm:$0xff]
        %v551 = vld [vmem:[%s2 + $0x1a8] sm:$0xff]
        %v552 = vld [vmem:[%s2 + $0x1b0] sm:$0xff]
        %v553 = vld [vmem:[%s2 + $0x1b8] sm:$0xff]
        %v554 = vld [vmem:[%s2 + $0x1c0] sm:$0xff]
        %v555 = vld [vmem:[%s2 + $0x1c8] sm:$0xff]
        %v556 = vld [vmem:[%s2 + $0x1d0] sm:$0xff]
        %v557 = vld [vmem:[%s2 + $0x1d8] sm:$0xff]
        %v558 = vld [vmem:[%s2 + $0x1e0] sm:$0xff]
        %v559 = vld [vmem:[%s2 + $0x1e8] sm:$0xff]
        %v560 = vld [vmem:[%s2 + $0x1f0] sm:$0xff]
        %v561 = vld [vmem:[%s2 + $0x1f8] sm:$0xff]
        %v562 = vld [vmem:[%s2 + $0x200] sm:$0xff]
        %v563 = vld [vmem:[%s2 + $0x208] sm:$0xff]
        %v564 = vld [vmem:[%s2 + $0x210] sm:$0xff]
        %v565 = vld [vmem:[%s2 + $0x218] sm:$0xff]
        %v566 = vld [vmem:[%s2 + $0x220] sm:$0xff]
        %v567 = vld [vmem:[%s2 + $0x228] sm:$0xff]
        %v568 = vld [vmem:[%s2 + $0x230] sm:$0xff]
        %v569 = vld [vmem:[%s2 + $0x238] sm:$0xff]
        %v570 = vld [vmem:[%s2 + $0x240] sm:$0xff]
        %v571 = vld [vmem:[%s2 + $0x248] sm:$0xff]
        %v572 = vld [vmem:[%s2 + $0x250] sm:$0xff]
        %v573 = vld [vmem:[%s2 + $0x258] sm:$0xff]
        %v574 = vld [vmem:[%s2 + $0x260] sm:$0xff]
        %v575 = vld [vmem:[%s2 + $0x268] sm:$0xff]
        %v576 = vld [vmem:[%s2 + $0x270] sm:$0xff]
        %v577 = vld [vmem:[%s2 + $0x278] sm:$0xff]
        %v578 = vld [vmem:[%s2 + $0x280] sm:$0xff]
        %v579 = vld [vmem:[%s2 + $0x288] sm:$0xff]
        %v580 = vld [vmem:[%s2 + $0x290] sm:$0xff]
        %v581 = vld [vmem:[%s2 + $0x298] sm:$0xff]
        %v582 = vld [vmem:[%s2 + $0x2a0] sm:$0xff]
        %v583 = vld [vmem:[%s2 + $0x2a8] sm:$0xff]
        %v584 = vld [vmem:[%s2 + $0x2b0] sm:$0xff]
        %v585 = vld [vmem:[%s2 + $0x2b8] sm:$0xff]
        %v586 = vld [vmem:[%s2 + $0x2c0] sm:$0xff]
        %v587 = vld [vmem:[%s2 + $0x2c8] sm:$0xff]
        %v588 = vld [vmem:[%s2 + $0x2d0] sm:$0xff]
        %v589 = vld [vmem:[%s2 + $0x2d8] sm:$0xff]
        %v590 = vld [vmem:[%s2 + $0x2e0] sm:$0xff]
        %v591 = vld [vmem:[%s2 + $0x2e8] sm:$0xff]
        %v592 = vld [vmem:[%s2 + $0x2f0] sm:$0xff]
        %v593 = vld [vmem:[%s2 + $0x2f8] sm:$0xff]
        %v594 = vld [vmem:[%s2 + $0x300] sm:$0xff]
        %v595 = vld [vmem:[%s2 + $0x308] sm:$0xff]
        %v596 = vld [vmem:[%s2 + $0x310] sm:$0xff]
        %v597 = vld [vmem:[%s2 + $0x318] sm:$0xff]
        %v598 = vld [vmem:[%s2 + $0x320] sm:$0xff]
        %v599 = vld [vmem:[%s2 + $0x328] sm:$0xff]
        %v600 = vld [vmem:[%s2 + $0x330] sm:$0xff]
        %v601 = vld [vmem:[%s2 + $0x338] sm:$0xff]
        %v602 = vld [vmem:[%s2 + $0x340] sm:$0xff]
        %v603 = vld [vmem:[%s2 + $0x348] sm:$0xff]
        %v604 = vld [vmem:[%s2 + $0x350] sm:$0xff]
        %v605 = vld [vmem:[%s2 + $0x358] sm:$0xff]
        %v606 = vld [vmem:[%s2 + $0x360] sm:$0xff]
        %v607 = vld [vmem:[%s2 + $0x368] sm:$0xff]
        %v608 = vld [vmem:[%s2 + $0x370] sm:$0xff]
        %v609 = vld [vmem:[%s2 + $0x378] sm:$0xff]
        %v610 = vld [vmem:[%s2 + $0x380] sm:$0xff]
        %v611 = vld [vmem:[%s2 + $0x388] sm:$0xff]
        %v612 = vld [vmem:[%s2 + $0x390] sm:$0xff]
        %v613 = vld [vmem:[%s2 + $0x398] sm:$0xff]
        %v614 = vld [vmem:[%s2 + $0x3a0] sm:$0xff]
        %v615 = vld [vmem:[%s2 + $0x3a8] sm:$0xff]
        %v616 = vld [vmem:[%s2 + $0x3b0] sm:$0xff]
        %v617 = vld [vmem:[%s2 + $0x3b8] sm:$0xff]
        %v618 = vld [vmem:[%s2 + $0x3c0] sm:$0xff]
        %v619 = vld [vmem:[%s2 + $0x3c8] sm:$0xff]
        %v620 = vld [vmem:[%s2 + $0x3d0] sm:$0xff]
        %v621 = vld [vmem:[%s2 + $0x3d8] sm:$0xff]
        %v622 = vld [vmem:[%s2 + $0x3e0] sm:$0xff]
        %v623 = vld [vmem:[%s2 + $0x3e8] sm:$0xff]
        %v624 = vld [vmem:[%s2 + $0x3f0] sm:$0xff]
        %v625 = vld [vmem:[%s2 + $0x3f8] sm:$0xff]
        %v626 = vld [vmem:[%s2 + $0x400] sm:$0xff]
        %v627 = vld [vmem:[%s2 + $0x408] sm:$0xff]
        %v628 = vld [vmem:[%s2 + $0x410] sm:$0xff]
        %v629 = vld [vmem:[%s2 + $0x418] sm:$0xff]
        %v630 = vld [vmem:[%s2 + $0x420] sm:$0xff]
        %v631 = vld [vmem:[%s2 + $0x428] sm:$0xff]
        %v632 = vld [vmem:[%s2 + $0x430] sm:$0xff]
        %v633 = vld [vmem:[%s2 + $0x438] sm:$0xff]
        %v634 = vld [vmem:[%s2 + $0x440] sm:$0xff]
        %v635 = vld [vmem:[%s2 + $0x448] sm:$0xff]
        %v636 = vld [vmem:[%s2 + $0x450] sm:$0xff]
        %v637 = vld [vmem:[%s2 + $0x458] sm:$0xff]
        %v638 = vld [vmem:[%s2 + $0x460] sm:$0xff]
        %v639 = vld [vmem:[%s2 + $0x468] sm:$0xff]
        %v640 = vld [vmem:[%s2 + $0x470] sm:$0xff]
        %v641 = vld [vmem:[%s2 + $0x478] sm:$0xff]
        %v642 = vld [vmem:[%s2 + $0x480] sm:$0xff]
        %v643 = vld [vmem:[%s2 + $0x488] sm:$0xff]
        %v644 = vld [vmem:[%s2 + $0x490] sm:$0xff]
        %v645 = vld [vmem:[%s2 + $0x498] sm:$0xff]
        %v646 = vld [vmem:[%s2 + $0x4a0] sm:$0xff]
        %v647 = vld [vmem:[%s2 + $0x4a8] sm:$0xff]
        %v648 = vld [vmem:[%s2 + $0x4b0] sm:$0xff]
        %v649 = vld [vmem:[%s2 + $0x4b8] sm:$0xff]
        %v650 = vld [vmem:[%s2 + $0x4c0] sm:$0xff]
        %v651 = vld [vmem:[%s2 + $0x4c8] sm:$0xff]
        %v652 = vld [vmem:[%s2 + $0x4d0] sm:$0xff]
        %v653 = vld [vmem:[%s2 + $0x4d8] sm:$0xff]
        %v654 = vld [vmem:[%s2 + $0x4e0] sm:$0xff]
        %v655 = vld [vmem:[%s2 + $0x4e8] sm:$0xff]
        %v656 = vld [vmem:[%s2 + $0x4f0] sm:$0xff]
        %v657 = vld [vmem:[%s2 + $0x4f8] sm:$0xff]
        %v658 = vld [vmem:[%s2 + $0x500] sm:$0xff]
        %v659 = vld [vmem:[%s2 + $0x508] sm:$0xff]
        %v660 = vld [vmem:[%s2 + $0x510] sm:$0xff]
        %v661 = vld [vmem:[%s2 + $0x518] sm:$0xff]
        %v662 = vld [vmem:[%s2 + $0x520] sm:$0xff]
        %v663 = vld [vmem:[%s2 + $0x528] sm:$0xff]
        %v664 = vld [vmem:[%s2 + $0x530] sm:$0xff]
        %v665 = vld [vmem:[%s2 + $0x538] sm:$0xff]
        %v666 = vld [vmem:[%s2 + $0x540] sm:$0xff]
        %v667 = vld [vmem:[%s2 + $0x548] sm:$0xff]
        %v668 = vld [vmem:[%s2 + $0x550] sm:$0xff]
        %v669 = vld [vmem:[%s2 + $0x558] sm:$0xff]
        %v670 = vld [vmem:[%s2 + $0x560] sm:$0xff]
        %v671 = vld [vmem:[%s2 + $0x568] sm:$0xff]
        %v672 = vld [vmem:[%s2 + $0x570] sm:$0xff]
        %v673 = vld [vmem:[%s2 + $0x578] sm:$0xff]
        %v674 = vld [vmem:[%s2 + $0x580] sm:$0xff]
        %v675 = vld [vmem:[%s2 + $0x588] sm:$0xff]
        %v676 = vld [vmem:[%s2 + $0x590] sm:$0xff]
        %v677 = vld [vmem:[%s2 + $0x598] sm:$0xff]
        %v678 = vld [vmem:[%s2 + $0x5a0] sm:$0xff]
        %v679 = vld [vmem:[%s2 + $0x5a8] sm:$0xff]
        %v680 = vld [vmem:[%s2 + $0x5b0] sm:$0xff]
        %v681 = vld [vmem:[%s2 + $0x5b8] sm:$0xff]
        %v682 = vld [vmem:[%s2 + $0x5c0] sm:$0xff]
        %v683 = vld [vmem:[%s2 + $0x5c8] sm:$0xff]
        %v684 = vld [vmem:[%s2 + $0x5d0] sm:$0xff]
        %v685 = vld [vmem:[%s2 + $0x5d8] sm:$0xff]
        %v686 = vld [vmem:[%s2 + $0x5e0] sm:$0xff]
        %v687 = vld [vmem:[%s2 + $0x5e8] sm:$0xff]
        %v688 = vld [vmem:[%s2 + $0x5f0] sm:$0xff]
        %v689 = vld [vmem:[%s2 + $0x5f8] sm:$0xff]
        %v690 = vld [vmem:[%s2 + $0x600] sm:$0xff]
        %v691 = vld [vmem:[%s2 + $0x608] sm:$0xff]
        %v692 = vld [vmem:[%s2 + $0x610] sm:$0xff]
        %v693 = vld [vmem:[%s2 + $0x618] sm:$0xff]
        %v694 = vld [vmem:[%s2 + $0x620] sm:$0xff]
        %v695 = vld [vmem:[%s2 + $0x628] sm:$0xff]
        %v696 = vld [vmem:[%s2 + $0x630] sm:$0xff]
        %v697 = vld [vmem:[%s2 + $0x638] sm:$0xff]
        %v698 = vld [vmem:[%s2 + $0x640] sm:$0xff]
        %v699 = vld [vmem:[%s2 + $0x648] sm:$0xff]
        %v700 = vld [vmem:[%s2 + $0x650] sm:$0xff]
        %v701 = vld [vmem:[%s2 + $0x658] sm:$0xff]
        %v702 = vld [vmem:[%s2 + $0x660] sm:$0xff]
        %v703 = vld [vmem:[%s2 + $0x668] sm:$0xff]
        %v704 = vld [vmem:[%s2 + $0x670] sm:$0xff]
        %v705 = vld [vmem:[%s2 + $0x678] sm:$0xff]
        %v706 = vld [vmem:[%s2 + $0x680] sm:$0xff]
        %v707 = vld [vmem:[%s2 + $0x688] sm:$0xff]
        %v708 = vld [vmem:[%s2 + $0x690] sm:$0xff]
        %v709 = vld [vmem:[%s2 + $0x698] sm:$0xff]
        %v710 = vld [vmem:[%s2 + $0x6a0] sm:$0xff]
        %v711 = vld [vmem:[%s2 + $0x6a8] sm:$0xff]
        %v712 = vld [vmem:[%s2 + $0x6b0] sm:$0xff]
        %v713 = vld [vmem:[%s2 + $0x6b8] sm:$0xff]
        %v714 = vld [vmem:[%s2 + $0x6c0] sm:$0xff]
        %v715 = vld [vmem:[%s2 + $0x6c8] sm:$0xff]
        %v716 = vld [vmem:[%s2 + $0x6d0] sm:$0xff]
        %v717 = vld [vmem:[%s2 + $0x6d8] sm:$0xff]
        %v718 = vld [vmem:[%s2 + $0x6e0] sm:$0xff]
        %v719 = vld [vmem:[%s2 + $0x6e8] sm:$0xff]
        %v720 = vld [vmem:[%s2 + $0x6f0] sm:$0xff]
        %v721 = vld [vmem:[%s2 + $0x6f8] sm:$0xff]
        %v722 = vld [vmem:[%s2 + $0x700] sm:$0xff]
        %v723 = vld [vmem:[%s2 + $0x708] sm:$0xff]
        %v724 = vld [vmem:[%s2 + $0x710] sm:$0xff]
        %v725 = vld [vmem:[%s2 + $0x718] sm:$0xff]
        %v726 = vld [vmem:[%s2 + $0x720] sm:$0xff]
        %v727 = vld [vmem:[%s2 + $0x728] sm:$0xff]
        %v728 = vld [vmem:[%s2 + $0x730] sm:$0xff]
        %v729 = vld [vmem:[%s2 + $0x738] sm:$0xff]
        %v730 = vld [vmem:[%s2 + $0x740] sm:$0xff]
        %v731 = vld [vmem:[%s2 + $0x748] sm:$0xff]
        %v732 = vld [vmem:[%s2 + $0x750] sm:$0xff]
        %v733 = vld [vmem:[%s2 + $0x758] sm:$0xff]
        %v734 = vld [vmem:[%s2 + $0x760] sm:$0xff]
        %v735 = vld [vmem:[%s2 + $0x768] sm:$0xff]
        %v736 = vld [vmem:[%s2 + $0x770] sm:$0xff]
        %v737 = vld [vmem:[%s2 + $0x778] sm:$0xff]
        %v738 = vld [vmem:[%s2 + $0x780] sm:$0xff]
        %v739 = vld [vmem:[%s2 + $0x788] sm:$0xff]
        %v740 = vld [vmem:[%s2 + $0x790] sm:$0xff]
        %v741 = vld [vmem:[%s2 + $0x798] sm:$0xff]
        %v742 = vld [vmem:[%s2 + $0x7a0] sm:$0xff]
        %v743 = vld [vmem:[%s2 + $0x7a8] sm:$0xff]
        %v744 = vld [vmem:[%s2 + $0x7b0] sm:$0xff]
        %v745 = vld [vmem:[%s2 + $0x7b8] sm:$0xff]
        %v746 = vld [vmem:[%s2 + $0x7c0] sm:$0xff]
        %v747 = vld [vmem:[%s2 + $0x7c8] sm:$0xff]
        %v748 = vld [vmem:[%s2 + $0x7d0] sm:$0xff]
        %v749 = vld [vmem:[%s2 + $0x7d8] sm:$0xff]
        %v750 = vld [vmem:[%s2 + $0x7e0] sm:$0xff]
        %v751 = vld [vmem:[%s2 + $0x7e8] sm:$0xff]
        %v752 = vld [vmem:[%s2 + $0x7f0] sm:$0xff]
        %v753 = vld [vmem:[%s2 + $0x7f8] sm:$0xff]
        %v754 = vld [vmem:[%s2 + $0x800] sm:$0xff]
        %v755 = vld [vmem:[%s2 + $0x808] sm:$0xff]
        %v756 = vld [vmem:[%s2 + $0x810] sm:$0xff]
        %v757 = vld [vmem:[%s2 + $0x818] sm:$0xff]
        %v758 = vld [vmem:[%s2 + $0x820] sm:$0xff]
        %v759 = vld [vmem:[%s2 + $0x828] sm:$0xff]
        %v760 = vld [vmem:[%s2 + $0x830] sm:$0xff]
        %v761 = vld [vmem:[%s2 + $0x838] sm:$0xff]
        %v762 = vld [vmem:[%s2 + $0x840] sm:$0xff]
        %v763 = vld [vmem:[%s2 + $0x848] sm:$0xff]
        %v764 = vld [vmem:[%s2 + $0x850] sm:$0xff]
        %v765 = vld [vmem:[%s2 + $0x858] sm:$0xff]
        %v766 = vld [vmem:[%s2 + $0x860] sm:$0xff]
        %v767 = vld [vmem:[%s2 + $0x868] sm:$0xff]
        %v768 = vld [vmem:[%s2 + $0x870] sm:$0xff]
        %v769 = vld [vmem:[%s2 + $0x878] sm:$0xff]
        %v770 = vld [vmem:[%s2 + $0x880] sm:$0xff]
        %v771 = vld [vmem:[%s2 + $0x888] sm:$0xff]
        %v772 = vld [vmem:[%s2 + $0x890] sm:$0xff]
        %v773 = vld [vmem:[%s2 + $0x898] sm:$0xff]
        %v774 = vld [vmem:[%s2 + $0x8a0] sm:$0xff]
        %v775 = vld [vmem:[%s2 + $0x8a8] sm:$0xff]
        %v776 = vld [vmem:[%s2 + $0x8b0] sm:$0xff]
        %v777 = vld [vmem:[%s2 + $0x8b8] sm:$0xff]
        %v778 = vld [vmem:[%s2 + $0x8c0] sm:$0xff]
        %v779 = vld [vmem:[%s2 + $0x8c8] sm:$0xff]
        %v780 = vld [vmem:[%s2 + $0x8d0] sm:$0xff]
        %v781 = vld [vmem:[%s2 + $0x8d8] sm:$0xff]
        %v782 = vld [vmem:[%s2 + $0x8e0] sm:$0xff]
        %v783 = vld [vmem:[%s2 + $0x8e8] sm:$0xff]
        %v784 = vld [vmem:[%s2 + $0x8f0] sm:$0xff]
        %v785 = vld [vmem:[%s2 + $0x8f8] sm:$0xff]
        %v786 = vld [vmem:[%s2 + $0x900] sm:$0xff]
        %v787 = vld [vmem:[%s2 + $0x908] sm:$0xff]
        %v788 = vld [vmem:[%s2 + $0x910] sm:$0xff]
        %v789 = vld [vmem:[%s2 + $0x918] sm:$0xff]
        %v790 = vld [vmem:[%s2 + $0x920] sm:$0xff]
        %v791 = vld [vmem:[%s2 + $0x928] sm:$0xff]
        %v792 = vld [vmem:[%s2 + $0x930] sm:$0xff]
        %v793 = vld [vmem:[%s2 + $0x938] sm:$0xff]
        %v794 = vld [vmem:[%s2 + $0x940] sm:$0xff]
        %v795 = vld [vmem:[%s2 + $0x948] sm:$0xff]
        %v796 = vld [vmem:[%s2 + $0x950] sm:$0xff]
        %v797 = vld [vmem:[%s2 + $0x958] sm:$0xff]
        %v798 = vld [vmem:[%s2 + $0x960] sm:$0xff]
        %v799 = vld [vmem:[%s2 + $0x968] sm:$0xff]
        %v800 = vld [vmem:[%s2 + $0x970] sm:$0xff]
        %v801 = vld [vmem:[%s2 + $0x978] sm:$0xff]
        %v802 = vld [vmem:[%s2 + $0x980] sm:$0xff]
        %v803 = vld [vmem:[%s2 + $0x988] sm:$0xff]
        %v804 = vld [vmem:[%s2 + $0x990] sm:$0xff]
        %v805 = vld [vmem:[%s2 + $0x998] sm:$0xff]
        %v806 = vld [vmem:[%s2 + $0x9a0] sm:$0xff]
        %v807 = vld [vmem:[%s2 + $0x9a8] sm:$0xff]
        %v808 = vld [vmem:[%s2 + $0x9b0] sm:$0xff]
        %v809 = vld [vmem:[%s2 + $0x9b8] sm:$0xff]
        %v810 = vld [vmem:[%s2 + $0x9c0] sm:$0xff]
        %v811 = vld [vmem:[%s2 + $0x9c8] sm:$0xff]
        %v812 = vld [vmem:[%s2 + $0x9d0] sm:$0xff]
        %v813 = vld [vmem:[%s2 + $0x9d8] sm:$0xff]
        %v814 = vld [vmem:[%s2 + $0x9e0] sm:$0xff]
        %v815 = vld [vmem:[%s2 + $0x9e8] sm:$0xff]
        %v816 = vld [vmem:[%s2 + $0x9f0] sm:$0xff]
        %v817 = vld [vmem:[%s2 + $0x9f8] sm:$0xff]
        %v818 = vld [vmem:[%s2 + $0xa00] sm:$0xff]
        %v819 = vld [vmem:[%s2 + $0xa08] sm:$0xff]
        %v820 = vld [vmem:[%s2 + $0xa10] sm:$0xff]
        %v821 = vld [vmem:[%s2 + $0xa18] sm:$0xff]
        %v822 = vld [vmem:[%s2 + $0xa20] sm:$0xff]
        %v823 = vld [vmem:[%s2 + $0xa28] sm:$0xff]
        %v824 = vld [vmem:[%s2 + $0xa30] sm:$0xff]
        %v825 = vld [vmem:[%s2 + $0xa38] sm:$0xff]
        %v826 = vld [vmem:[%s2 + $0xa40] sm:$0xff]
        %v827 = vld [vmem:[%s2 + $0xa48] sm:$0xff]
        %v828 = vld [vmem:[%s2 + $0xa50] sm:$0xff]
        %v829 = vld [vmem:[%s2 + $0xa58] sm:$0xff]
        %v830 = vld [vmem:[%s2 + $0xa60] sm:$0xff]
        %v831 = vld [vmem:[%s2 + $0xa68] sm:$0xff]
        %v832 = vld [vmem:[%s2 + $0xa70] sm:$0xff]
        %v833 = vld [vmem:[%s2 + $0xa78] sm:$0xff]
        %v834 = vld [vmem:[%s2 + $0xa80] sm:$0xff]
        %v835 = vld [vmem:[%s2 + $0xa88] sm:$0xff]
        %v836 = vld [vmem:[%s2 + $0xa90] sm:$0xff]
        %v837 = vld [vmem:[%s2 + $0xa98] sm:$0xff]
        %v838 = vld [vmem:[%s2 + $0xaa0] sm:$0xff]
        %v839 = vld [vmem:[%s2 + $0xaa8] sm:$0xff]
        %v840 = vld [vmem:[%s2 + $0xab0] sm:$0xff]
        %v841 = vld [vmem:[%s2 + $0xab8] sm:$0xff]
        %v842 = vld [vmem:[%s2 + $0xac0] sm:$0xff]
        %v843 = vld [vmem:[%s2 + $0xac8] sm:$0xff]
        %v844 = vld [vmem:[%s2 + $0xad0] sm:$0xff]
        %v845 = vld [vmem:[%s2 + $0xad8] sm:$0xff]
        %v846 = vld [vmem:[%s2 + $0xae0] sm:$0xff]
        %v847 = vld [vmem:[%s2 + $0xae8] sm:$0xff]
        %v848 = vld [vmem:[%s2 + $0xaf0] sm:$0xff]
        %v849 = vld [vmem:[%s2 + $0xaf8] sm:$0xff]
        %v850 = vld [vmem:[%s2 + $0xb00] sm:$0xff]
        %v851 = vld [vmem:[%s2 + $0xb08] sm:$0xff]
        %v852 = vld [vmem:[%s2 + $0xb10] sm:$0xff]
        %v853 = vld [vmem:[%s2 + $0xb18] sm:$0xff]
        %v854 = vld [vmem:[%s2 + $0xb20] sm:$0xff]
        %v855 = vld [vmem:[%s2 + $0xb28] sm:$0xff]
        %v856 = vld [vmem:[%s2 + $0xb30] sm:$0xff]
        %v857 = vld [vmem:[%s2 + $0xb38] sm:$0xff]
        %v858 = vld [vmem:[%s2 + $0xb40] sm:$0xff]
        %v859 = vld [vmem:[%s2 + $0xb48] sm:$0xff]
        %v860 = vld [vmem:[%s2 + $0xb50] sm:$0xff]
        %v861 = vld [vmem:[%s2 + $0xb58] sm:$0xff]
        %v862 = vld [vmem:[%s2 + $0xb60] sm:$0xff]
        %v863 = vld [vmem:[%s2 + $0xb68] sm:$0xff]
        %v864 = vld [vmem:[%s2 + $0xb70] sm:$0xff]
        %v865 = vld [vmem:[%s2 + $0xb78] sm:$0xff]
        %v866 = vld [vmem:[%s2 + $0xb80] sm:$0xff]
        %v867 = vld [vmem:[%s2 + $0xb88] sm:$0xff]
        %v868 = vld [vmem:[%s2 + $0xb90] sm:$0xff]
        %v869 = vld [vmem:[%s2 + $0xb98] sm:$0xff]
        %v870 = vld [vmem:[%s2 + $0xba0] sm:$0xff]
        %v871 = vld [vmem:[%s2 + $0xba8] sm:$0xff]
        %v872 = vld [vmem:[%s2 + $0xbb0] sm:$0xff]
        %v873 = vld [vmem:[%s2 + $0xbb8] sm:$0xff]
        %v874 = vld [vmem:[%s2 + $0xbc0] sm:$0xff]
        %v875 = vld [vmem:[%s2 + $0xbc8] sm:$0xff]
        %v876 = vld [vmem:[%s2 + $0xbd0] sm:$0xff]
        %v877 = vld [vmem:[%s2 + $0xbd8] sm:$0xff]
        %v878 = vld [vmem:[%s2 + $0xbe0] sm:$0xff]
        %v879 = vld [vmem:[%s2 + $0xbe8] sm:$0xff]
        %v880 = vld [vmem:[%s2 + $0xbf0] sm:$0xff]
        %v881 = vld [vmem:[%s2 + $0xbf8] sm:$0xff]
        %v882 = vld [vmem:[%s2 + $0xc00] sm:$0xff]
        %v883 = vld [vmem:[%s2 + $0xc08] sm:$0xff]
        %v884 = vld [vmem:[%s2 + $0xc10] sm:$0xff]
        %v885 = vld [vmem:[%s2 + $0xc18] sm:$0xff]
        %v886 = vld [vmem:[%s2 + $0xc20] sm:$0xff]
        %v887 = vld [vmem:[%s2 + $0xc28] sm:$0xff]
        %v888 = vld [vmem:[%s2 + $0xc30] sm:$0xff]
        %v889 = vld [vmem:[%s2 + $0xc38] sm:$0xff]
        %v890 = vld [vmem:[%s2 + $0xc40] sm:$0xff]
        %v891 = vld [vmem:[%s2 + $0xc48] sm:$0xff]
        %v892 = vld [vmem:[%s2 + $0xc50] sm:$0xff]
        %v893 = vld [vmem:[%s2 + $0xc58] sm:$0xff]
        %v894 = vld [vmem:[%s2 + $0xc60] sm:$0xff]
        %v895 = vld [vmem:[%s2 + $0xc68] sm:$0xff]
        %v896 = vld [vmem:[%s2 + $0xc70] sm:$0xff]
        %v897 = vld [vmem:[%s2 + $0xc78] sm:$0xff]
        %v898 = vld [vmem:[%s2 + $0xc80] sm:$0xff]
        %v899 = vld [vmem:[%s2 + $0xc88] sm:$0xff]
        %v900 = vld [vmem:[%s2 + $0xc90] sm:$0xff]
        %v901 = vld [vmem:[%s2 + $0xc98] sm:$0xff]
        %v902 = vld [vmem:[%s2 + $0xca0] sm:$0xff]
        %v903 = vld [vmem:[%s2 + $0xca8] sm:$0xff]
        %v904 = vld [vmem:[%s2 + $0xcb0] sm:$0xff]
        %v905 = vld [vmem:[%s2 + $0xcb8] sm:$0xff]
        %v906 = vld [vmem:[%s2 + $0xcc0] sm:$0xff]
        %v907 = vld [vmem:[%s2 + $0xcc8] sm:$0xff]
        %v908 = vld [vmem:[%s2 + $0xcd0] sm:$0xff]
        %v909 = vld [vmem:[%s2 + $0xcd8] sm:$0xff]
        %v910 = vld [vmem:[%s2 + $0xce0] sm:$0xff]
        %v911 = vld [vmem:[%s2 + $0xce8] sm:$0xff]
        %v912 = vld [vmem:[%s2 + $0xcf0] sm:$0xff]
        %v913 = vld [vmem:[%s2 + $0xcf8] sm:$0xff]
        %v914 = vld [vmem:[%s2 + $0xd00] sm:$0xff]
        %v915 = vld [vmem:[%s2 + $0xd08] sm:$0xff]
        %v916 = vld [vmem:[%s2 + $0xd10] sm:$0xff]
        %v917 = vld [vmem:[%s2 + $0xd18] sm:$0xff]
        %v918 = vld [vmem:[%s2 + $0xd20] sm:$0xff]
        %v919 = vld [vmem:[%s2 + $0xd28] sm:$0xff]
        %v920 = vld [vmem:[%s2 + $0xd30] sm:$0xff]
        %v921 = vld [vmem:[%s2 + $0xd38] sm:$0xff]
        %v922 = vld [vmem:[%s2 + $0xd40] sm:$0xff]
        %v923 = vld [vmem:[%s2 + $0xd48] sm:$0xff]
        %v924 = vld [vmem:[%s2 + $0xd50] sm:$0xff]
        %v925 = vld [vmem:[%s2 + $0xd58] sm:$0xff]
        %v926 = vld [vmem:[%s2 + $0xd60] sm:$0xff]
        %v927 = vld [vmem:[%s2 + $0xd68] sm:$0xff]
        %v928 = vld [vmem:[%s2 + $0xd70] sm:$0xff]
        %v929 = vld [vmem:[%s2 + $0xd78] sm:$0xff]
        %v930 = vld [vmem:[%s2 + $0xd80] sm:$0xff]
        %v931 = vld [vmem:[%s2 + $0xd88] sm:$0xff]
        %v932 = vld [vmem:[%s2 + $0xd90] sm:$0xff]
        %v933 = vld [vmem:[%s2 + $0xd98] sm:$0xff]
        %v934 = vld [vmem:[%s2 + $0xda0] sm:$0xff]
        %v935 = vld [vmem:[%s2 + $0xda8] sm:$0xff]
        %v936 = vld [vmem:[%s2 + $0xdb0] sm:$0xff]
        %v937 = vld [vmem:[%s2 + $0xdb8] sm:$0xff]
        %v938 = vld [vmem:[%s2 + $0xdc0] sm:$0xff]
        %v939 = vld [vmem:[%s2 + $0xdc8] sm:$0xff]
        %v940 = vld [vmem:[%s2 + $0xdd0] sm:$0xff]
        %v941 = vld [vmem:[%s2 + $0xdd8] sm:$0xff]
        %v942 = vld [vmem:[%s2 + $0xde0] sm:$0xff]
        %v943 = vld [vmem:[%s2 + $0xde8] sm:$0xff]
        %v944 = vld [vmem:[%s2 + $0xdf0] sm:$0xff]
        %v945 = vld [vmem:[%s2 + $0xdf8] sm:$0xff]
        %v946 = vld [vmem:[%s2 + $0xe00] sm:$0xff]
        %v947 = vld [vmem:[%s2 + $0xe08] sm:$0xff]
        %v948 = vld [vmem:[%s2 + $0xe10] sm:$0xff]
        %v949 = vld [vmem:[%s2 + $0xe18] sm:$0xff]
        %v950 = vld [vmem:[%s2 + $0xe20] sm:$0xff]
        %v951 = vld [vmem:[%s2 + $0xe28] sm:$0xff]
        %v952 = vld [vmem:[%s2 + $0xe30] sm:$0xff]
        %v953 = vld [vmem:[%s2 + $0xe38] sm:$0xff]
        %v954 = vld [vmem:[%s2 + $0xe40] sm:$0xff]
        %v955 = vld [vmem:[%s2 + $0xe48] sm:$0xff]
        %v956 = vld [vmem:[%s2 + $0xe50] sm:$0xff]
        %v957 = vld [vmem:[%s2 + $0xe58] sm:$0xff]
        %v958 = vld [vmem:[%s2 + $0xe60] sm:$0xff]
        %v959 = vld [vmem:[%s2 + $0xe68] sm:$0xff]
        %v960 = vld [vmem:[%s2 + $0xe70] sm:$0xff]
        %v961 = vld [vmem:[%s2 + $0xe78] sm:$0xff]
        %v962 = vld [vmem:[%s2 + $0xe80] sm:$0xff]
        %v963 = vld [vmem:[%s2 + $0xe88] sm:$0xff]
        %v964 = vld [vmem:[%s2 + $0xe90] sm:$0xff]
        %v965 = vld [vmem:[%s2 + $0xe98] sm:$0xff]
        %v966 = vld [vmem:[%s2 + $0xea0] sm:$0xff]
        %v967 = vld [vmem:[%s2 + $0xea8] sm:$0xff]
        %v968 = vld [vmem:[%s2 + $0xeb0] sm:$0xff]
        %v969 = vld [vmem:[%s2 + $0xeb8] sm:$0xff]
        %v970 = vld [vmem:[%s2 + $0xec0] sm:$0xff]
        %v971 = vld [vmem:[%s2 + $0xec8] sm:$0xff]
        %v972 = vld [vmem:[%s2 + $0xed0] sm:$0xff]
        %v973 = vld [vmem:[%s2 + $0xed8] sm:$0xff]
        %v974 = vld [vmem:[%s2 + $0xee0] sm:$0xff]
        %v975 = vld [vmem:[%s2 + $0xee8] sm:$0xff]
        %v976 = vld [vmem:[%s2 + $0xef0] sm:$0xff]
        %v977 = vld [vmem:[%s2 + $0xef8] sm:$0xff]
        %v978 = vld [vmem:[%s2 + $0xf00] sm:$0xff]
        %v979 = vld [vmem:[%s2 + $0xf08] sm:$0xff]
        %v980 = vld [vmem:[%s2 + $0xf10] sm:$0xff]
        %v981 = vld [vmem:[%s2 + $0xf18] sm:$0xff]
        %v982 = vld [vmem:[%s2 + $0xf20] sm:$0xff]
        %v983 = vld [vmem:[%s2 + $0xf28] sm:$0xff]
        %v984 = vld [vmem:[%s2 + $0xf30] sm:$0xff]
        %v985 = vld [vmem:[%s2 + $0xf38] sm:$0xff]
        %v986 = vld [vmem:[%s2 + $0xf40] sm:$0xff]
        %v987 = vld [vmem:[%s2 + $0xf48] sm:$0xff]
        %v988 = vld [vmem:[%s2 + $0xf50] sm:$0xff]
        %v989 = vld [vmem:[%s2 + $0xf58] sm:$0xff]
        %v990 = vld [vmem:[%s2 + $0xf60] sm:$0xff]
        %v991 = vld [vmem:[%s2 + $0xf68] sm:$0xff]
        %v992 = vld [vmem:[%s2 + $0xf70] sm:$0xff]
        %v993 = vld [vmem:[%s2 + $0xf78] sm:$0xff]
        %v994 = vld [vmem:[%s2 + $0xf80] sm:$0xff]
        %v995 = vld [vmem:[%s2 + $0xf88] sm:$0xff]
        %v996 = vld [vmem:[%s2 + $0xf90] sm:$0xff]
        %v997 = vld [vmem:[%s2 + $0xf98] sm:$0xff]
        %v998 = vld [vmem:[%s2 + $0xfa0] sm:$0xff]
        %v999 = vld [vmem:[%s2 + $0xfa8] sm:$0xff]
        %v1000 = vld [vmem:[%s2 + $0xfb0] sm:$0xff]
        %v1001 = vld [vmem:[%s2 + $0xfb8] sm:$0xff]
        %v1002 = vld [vmem:[%s2 + $0xfc0] sm:$0xff]
        %v1003 = vld [vmem:[%s2 + $0xfc8] sm:$0xff]
        %v1004 = vld [vmem:[%s2 + $0xfd0] sm:$0xff]
        %v1005 = vld [vmem:[%s2 + $0xfd8] sm:$0xff]
        %v1006 = vld [vmem:[%s2 + $0xfe0] sm:$0xff]
        %v1007 = vld [vmem:[%s2 + $0xfe8] sm:$0xff]
        %v1008 = vld [vmem:[%s2 + $0xff0] sm:$0xff]
        %v1009 = vld [vmem:[%s2 + $0xff8] sm:$0xff]
        %v1010 = vld [vmem:[%s2 + $0x1000] sm:$0xff]
        %v1011 = vld [vmem:[%s2 + $0x1008] sm:$0xff]
        %v1012 = vld [vmem:[%s2 + $0x1010] sm:$0xff]
        %v1013 = vld [vmem:[%s2 + $0x1018] sm:$0xff]
        %v1014 = vld [vmem:[%s2 + $0x1020] sm:$0xff]
        %v1015 = vld [vmem:[%s2 + $0x1028] sm:$0xff]
        %v1016 = vld [vmem:[%s2 + $0x1030] sm:$0xff]
        %v1017 = vld [vmem:[%s2 + $0x1038] sm:$0xff]
        %v1018 = vld [vmem:[%s2 + $0x1040] sm:$0xff]
        %v1019 = vld [vmem:[%s2 + $0x1048] sm:$0xff]
        %v1020 = vld [vmem:[%s2 + $0x1050] sm:$0xff]
        %v1021 = vld [vmem:[%s2 + $0x1058] sm:$0xff]
        %v1022 = vld [vmem:[%s2 + $0x1060] sm:$0xff]
        %v1023 = vld [vmem:[%s2 + $0x1068] sm:$0xff]
        %v1024 = vld [vmem:[%s2 + $0x1070] sm:$0xff]
        %v1025 = vld [vmem:[%s2 + $0x1078] sm:$0xff]
        %v1026 = vld [vmem:[%s2 + $0x1080] sm:$0xff]
        %v1027 = vld [vmem:[%s2 + $0x1088] sm:$0xff]
        %v1028 = vld [vmem:[%s2 + $0x1090] sm:$0xff]
        %v1029 = vld [vmem:[%s2 + $0x1098] sm:$0xff]
        %v1030 = vld [vmem:[%s2 + $0x10a0] sm:$0xff]
        %v1031 = vld [vmem:[%s2 + $0x10a8] sm:$0xff]
        %v1032 = vld [vmem:[%s2 + $0x10b0] sm:$0xff]
        %v1033 = vld [vmem:[%s2 + $0x10b8] sm:$0xff]
        %v1034 = vld [vmem:[%s2 + $0x10c0] sm:$0xff]
        %v1035 = vld [vmem:[%s2 + $0x10c8] sm:$0xff]
        %v1036 = vld [vmem:[%s2 + $0x10d0] sm:$0xff]
        %v1037 = vld [vmem:[%s2 + $0x10d8] sm:$0xff]
        %v1038 = vld [vmem:[%s2 + $0x10e0] sm:$0xff]
        %v1039 = vld [vmem:[%s2 + $0x10e8] sm:$0xff]
        %v1040 = vld [vmem:[%s2 + $0x10f0] sm:$0xff]
        %v1041 = vld [vmem:[%s2 + $0x10f8] sm:$0xff]
        %1042 = vmatprep.subr.mxu0 %v499
        %1043 = vmatpush1.msra.mxu0 %v498
        %1044 = vmatprep.subr.mxu0 %v501
        %1045 = vmatpush1.msra.mxu0 %v500
        %1046 = vmatprep.subr.mxu0 %v503
        %1047 = vmatpush1.msra.mxu0 %v502
        %1048 = vmatprep.subr.mxu0 %v505
        %1049 = vmatpush1.msra.mxu0 %v504
        %1050 = vmatprep.subr.mxu0 %v507
        %1051 = vmatpush1.msra.mxu0 %v506
        %1052 = vmatprep.subr.mxu0 %v509
        %1053 = vmatpush1.msra.mxu0 %v508
        %1054 = vmatprep.subr.mxu0 %v511
        %1055 = vmatpush1.msra.mxu0 %v510
        %1056 = vmatprep.subr.mxu0 %v513
        %1057 = vmatpush1.msra.mxu0 %v512
        %1058 = vmatprep.subr.mxu0 %v515
        %1059 = vmatpush1.msra.mxu0 %v514
        %1060 = vmatprep.subr.mxu0 %v517
        %1061 = vmatpush1.msra.mxu0 %v516
        %1062 = vmatprep.subr.mxu0 %v519
        %1063 = vmatpush1.msra.mxu0 %v518
        %1064 = vmatprep.subr.mxu0 %v521
        %1065 = vmatpush1.msra.mxu0 %v520
        %1066 = vmatprep.subr.mxu0 %v523
        %1067 = vmatpush1.msra.mxu0 %v522
        %1068 = vmatprep.subr.mxu0 %v525
        %1069 = vmatpush1.msra.mxu0 %v524
        %1070 = vmatprep.subr.mxu0 %v527
        %1071 = vmatpush1.msra.mxu0 %v526
        %1072 = vmatprep.subr.mxu0 %v529
        %1073 = vmatpush1.msra.mxu0 %v528
        %1074 = vmatprep.subr.mxu0 %v531
        %1075 = vmatpush1.msra.mxu0 %v530
        %1076 = vmatprep.subr.mxu0 %v533
        %1077 = vmatpush1.msra.mxu0 %v532
        %1078 = vmatprep.subr.mxu0 %v535
        %1079 = vmatpush1.msra.mxu0 %v534
        %1080 = vmatprep.subr.mxu0 %v537
        %1081 = vmatpush1.msra.mxu0 %v536
        %1082 = vmatprep.subr.mxu0 %v539
        %1083 = vmatpush1.msra.mxu0 %v538
        %1084 = vmatprep.subr.mxu0 %v541
        %1085 = vmatpush1.msra.mxu0 %v540
        %1086 = vmatprep.subr.mxu0 %v543
        %1087 = vmatpush1.msra.mxu0 %v542
        %1088 = vmatprep.subr.mxu0 %v545
        %1089 = vmatpush1.msra.mxu0 %v544
        %1090 = vmatprep.subr.mxu0 %v547
        %1091 = vmatpush1.msra.mxu0 %v546
        %1092 = vmatprep.subr.mxu0 %v549
        %1093 = vmatpush1.msra.mxu0 %v548
        %1094 = vmatprep.subr.mxu0 %v551
        %1095 = vmatpush1.msra.mxu0 %v550
        %1096 = vmatprep.subr.mxu0 %v553
        %1097 = vmatpush1.msra.mxu0 %v552
        %1098 = vmatprep.subr.mxu0 %v555
        %1099 = vmatpush1.msra.mxu0 %v554
        %1100 = vmatprep.subr.mxu0 %v557
        %1101 = vmatpush1.msra.mxu0 %v556
        %1102 = vmatprep.subr.mxu0 %v559
        %1103 = vmatpush1.msra.mxu0 %v558
        %1104 = vmatprep.subr.mxu0 %v561
        %1105 = vmatpush1.msra.mxu0 %v560
        %1106 = vmatprep.mubr.f32.mxu0 %v474
        %1107 = vmatmul.mubr.f32.gmra.mrb[0].mxu0 %v472
        %v1108 = vpop.f32.mrb[0].mxu0
        %v1109 = vadd.f32 0.0, %v1108
        %v1110 = vpop.f32.mrb[0].mxu0
        %v1111 = vadd.f32 0.0, %v1110
        %1112 = vmatprep.mubr.f32.mxu0 %v475
        %1113 = vmatmul.mubr.f32.gmra.mrb[0].mxu0 %v473
        %v1114 = vpop.f32.mrb[0].mxu0
        %v1115 = vadd.f32 0.0, %v1114
        %v1116 = vpop.f32.mrb[0].mxu0
        %v1117 = vadd.f32 0.0, %v1116
        %1118 = vdwg.mxu0
        %1119 = vmatprep.subr.mxu0 %v563
        %1120 = vmatpush1.msra.mxu0 %v562
        %1121 = vmatprep.subr.mxu0 %v565
        %1122 = vmatpush1.msra.mxu0 %v564
        %1123 = vmatprep.subr.mxu0 %v567
        %1124 = vmatpush1.msra.mxu0 %v566
        %1125 = vmatprep.subr.mxu0 %v569
        %1126 = vmatpush1.msra.mxu0 %v568
        %1127 = vmatprep.subr.mxu0 %v571
        %1128 = vmatpush1.msra.mxu0 %v570
        %1129 = vmatprep.subr.mxu0 %v573
        %1130 = vmatpush1.msra.mxu0 %v572
        %1131 = vmatprep.subr.mxu0 %v575
        %1132 = vmatpush1.msra.mxu0 %v574
        %1133 = vmatprep.subr.mxu0 %v577
        %1134 = vmatpush1.msra.mxu0 %v576
        %1135 = vmatprep.subr.mxu0 %v579
        %1136 = vmatpush1.msra.mxu0 %v578
        %1137 = vmatprep.subr.mxu0 %v581
        %1138 = vmatpush1.msra.mxu0 %v580
        %1139 = vmatprep.subr.mxu0 %v583
        %1140 = vmatpush1.msra.mxu0 %v582
        %1141 = vmatprep.subr.mxu0 %v585
        %1142 = vmatpush1.msra.mxu0 %v584
        %1143 = vmatprep.subr.mxu0 %v587
        %1144 = vmatpush1.msra.mxu0 %v586
        %1145 = vmatprep.subr.mxu0 %v589
        %1146 = vmatpush1.msra.mxu0 %v588
        %1147 = vmatprep.subr.mxu0 %v591
        %1148 = vmatpush1.msra.mxu0 %v590
        %1149 = vmatprep.subr.mxu0 %v593
        %1150 = vmatpush1.msra.mxu0 %v592
        %1151 = vmatprep.subr.mxu0 %v595
        %1152 = vmatpush1.msra.mxu0 %v594
        %1153 = vmatprep.subr.mxu0 %v597
        %1154 = vmatpush1.msra.mxu0 %v596
        %1155 = vmatprep.subr.mxu0 %v599
        %1156 = vmatpush1.msra.mxu0 %v598
        %1157 = vmatprep.subr.mxu0 %v601
        %1158 = vmatpush1.msra.mxu0 %v600
        %1159 = vmatprep.subr.mxu0 %v603
        %1160 = vmatpush1.msra.mxu0 %v602
        %1161 = vmatprep.subr.mxu0 %v605
        %1162 = vmatpush1.msra.mxu0 %v604
        %1163 = vmatprep.subr.mxu0 %v607
        %1164 = vmatpush1.msra.mxu0 %v606
        %1165 = vmatprep.subr.mxu0 %v609
        %1166 = vmatpush1.msra.mxu0 %v608
        %1167 = vmatprep.subr.mxu0 %v611
        %1168 = vmatpush1.msra.mxu0 %v610
        %1169 = vmatprep.subr.mxu0 %v613
        %1170 = vmatpush1.msra.mxu0 %v612
        %1171 = vmatprep.subr.mxu0 %v615
        %1172 = vmatpush1.msra.mxu0 %v614
        %1173 = vmatprep.subr.mxu0 %v617
        %1174 = vmatpush1.msra.mxu0 %v616
        %1175 = vmatprep.subr.mxu0 %v619
        %1176 = vmatpush1.msra.mxu0 %v618
        %1177 = vmatprep.subr.mxu0 %v621
        %1178 = vmatpush1.msra.mxu0 %v620
        %1179 = vmatprep.subr.mxu0 %v623
        %1180 = vmatpush1.msra.mxu0 %v622
        %1181 = vmatprep.subr.mxu0 %v625
        %1182 = vmatpush1.msra.mxu0 %v624
        %1183 = vmatprep.mubr.f32.mxu0 %v478
        %1184 = vmatmul.mubr.f32.gmra.mrb[0].mxu0 %v476
        %v1185 = vpop.f32.mrb[0].mxu0
        %v1186 = vadd.f32 %v1109, %v1185
        %v1187 = vpop.f32.mrb[0].mxu0
        %v1188 = vadd.f32 %v1111, %v1187
        %1189 = vmatprep.mubr.f32.mxu0 %v479
        %1190 = vmatmul.mubr.f32.gmra.mrb[0].mxu0 %v477
        %v1191 = vpop.f32.mrb[0].mxu0
        %v1192 = vadd.f32 %v1115, %v1191
        %v1193 = vpop.f32.mrb[0].mxu0
        %v1194 = vadd.f32 %v1117, %v1193
        %1195 = vdwg.mxu0
        %1196 = vmatprep.subr.mxu0 %v627
        %1197 = vmatpush1.msra.mxu0 %v626
        %1198 = vmatprep.subr.mxu0 %v629
        %1199 = vmatpush1.msra.mxu0 %v628
        %1200 = vmatprep.subr.mxu0 %v631
        %1201 = vmatpush1.msra.mxu0 %v630
        %1202 = vmatprep.subr.mxu0 %v633
        %1203 = vmatpush1.msra.mxu0 %v632
        %1204 = vmatprep.subr.mxu0 %v635
        %1205 = vmatpush1.msra.mxu0 %v634
        %1206 = vmatprep.subr.mxu0 %v637
        %1207 = vmatpush1.msra.mxu0 %v636
        %1208 = vmatprep.subr.mxu0 %v639
        %1209 = vmatpush1.msra.mxu0 %v638
        %1210 = vmatprep.subr.mxu0 %v641
        %1211 = vmatpush1.msra.mxu0 %v640
        %1212 = vmatprep.subr.mxu0 %v643
        %1213 = vmatpush1.msra.mxu0 %v642
        %1214 = vmatprep.subr.mxu0 %v645
        %1215 = vmatpush1.msra.mxu0 %v644
        %1216 = vmatprep.subr.mxu0 %v647
        %1217 = vmatpush1.msra.mxu0 %v646
        %1218 = vmatprep.subr.mxu0 %v649
        %1219 = vmatpush1.msra.mxu0 %v648
        %1220 = vmatprep.subr.mxu0 %v651
        %1221 = vmatpush1.msra.mxu0 %v650
        %1222 = vmatprep.subr.mxu0 %v653
        %1223 = vmatpush1.msra.mxu0 %v652
        %1224 = vmatprep.subr.mxu0 %v655
        %1225 = vmatpush1.msra.mxu0 %v654
        %1226 = vmatprep.subr.mxu0 %v657
        %1227 = vmatpush1.msra.mxu0 %v656
        %1228 = vmatprep.subr.mxu0 %v659
        %1229 = vmatpush1.msra.mxu0 %v658
        %1230 = vmatprep.subr.mxu0 %v661
        %1231 = vmatpush1.msra.mxu0 %v660
        %1232 = vmatprep.subr.mxu0 %v663
        %1233 = vmatpush1.msra.mxu0 %v662
        %1234 = vmatprep.subr.mxu0 %v665
        %1235 = vmatpush1.msra.mxu0 %v664
        %1236 = vmatprep.subr.mxu0 %v667
        %1237 = vmatpush1.msra.mxu0 %v666
        %1238 = vmatprep.subr.mxu0 %v669
        %1239 = vmatpush1.msra.mxu0 %v668
        %1240 = vmatprep.subr.mxu0 %v671
        %1241 = vmatpush1.msra.mxu0 %v670
        %1242 = vmatprep.subr.mxu0 %v673
        %1243 = vmatpush1.msra.mxu0 %v672
        %1244 = vmatprep.subr.mxu0 %v675
        %1245 = vmatpush1.msra.mxu0 %v674
        %1246 = vmatprep.subr.mxu0 %v677
        %1247 = vmatpush1.msra.mxu0 %v676
        %1248 = vmatprep.subr.mxu0 %v679
        %1249 = vmatpush1.msra.mxu0 %v678
        %1250 = vmatprep.subr.mxu0 %v681
        %1251 = vmatpush1.msra.mxu0 %v680
        %1252 = vmatprep.subr.mxu0 %v683
        %1253 = vmatpush1.msra.mxu0 %v682
        %1254 = vmatprep.subr.mxu0 %v685
        %1255 = vmatpush1.msra.mxu0 %v684
        %1256 = vmatprep.subr.mxu0 %v687
        %1257 = vmatpush1.msra.mxu0 %v686
        %1258 = vmatprep.subr.mxu0 %v689
        %1259 = vmatpush1.msra.mxu0 %v688
        %1260 = vmatprep.mubr.f32.mxu0 %v482
        %1261 = vmatmul.mubr.f32.gmra.mrb[0].mxu0 %v480
        %v1262 = vpop.f32.mrb[0].mxu0
        %v1263 = vadd.f32 %v1186, %v1262
        %v1264 = vpop.f32.mrb[0].mxu0
        %v1265 = vadd.f32 %v1188, %v1264
        %1266 = vmatprep.mubr.f32.mxu0 %v483
        %1267 = vmatmul.mubr.f32.gmra.mrb[0].mxu0 %v481
        %v1268 = vpop.f32.mrb[0].mxu0
        %v1269 = vadd.f32 %v1192, %v1268
        %v1270 = vpop.f32.mrb[0].mxu0
        %v1271 = vadd.f32 %v1194, %v1270
        %1272 = vdwg.mxu0
        %1273 = vmatprep.subr.mxu0 %v691
        %1274 = vmatpush1.msra.mxu0 %v690
        %1275 = vmatprep.subr.mxu0 %v693
        %1276 = vmatpush1.msra.mxu0 %v692
        %1277 = vmatprep.subr.mxu0 %v695
        %1278 = vmatpush1.msra.mxu0 %v694
        %1279 = vmatprep.subr.mxu0 %v697
        %1280 = vmatpush1.msra.mxu0 %v696
        %1281 = vmatprep.subr.mxu0 %v699
        %1282 = vmatpush1.msra.mxu0 %v698
        %1283 = vmatprep.subr.mxu0 %v701
        %1284 = vmatpush1.msra.mxu0 %v700
        %1285 = vmatprep.subr.mxu0 %v703
        %1286 = vmatpush1.msra.mxu0 %v702
        %1287 = vmatprep.subr.mxu0 %v705
        %1288 = vmatpush1.msra.mxu0 %v704
        %1289 = vmatprep.subr.mxu0 %v707
        %1290 = vmatpush1.msra.mxu0 %v706
        %1291 = vmatprep.subr.mxu0 %v709
        %1292 = vmatpush1.msra.mxu0 %v708
        %1293 = vmatprep.subr.mxu0 %v711
        %1294 = vmatpush1.msra.mxu0 %v710
        %1295 = vmatprep.subr.mxu0 %v713
        %1296 = vmatpush1.msra.mxu0 %v712
        %1297 = vmatprep.subr.mxu0 %v715
        %1298 = vmatpush1.msra.mxu0 %v714
        %1299 = vmatprep.subr.mxu0 %v717
        %1300 = vmatpush1.msra.mxu0 %v716
        %1301 = vmatprep.subr.mxu0 %v719
        %1302 = vmatpush1.msra.mxu0 %v718
        %1303 = vmatprep.subr.mxu0 %v721
        %1304 = vmatpush1.msra.mxu0 %v720
        %1305 = vmatprep.subr.mxu0 %v723
        %1306 = vmatpush1.msra.mxu0 %v722
        %1307 = vmatprep.subr.mxu0 %v725
        %1308 = vmatpush1.msra.mxu0 %v724
        %1309 = vmatprep.subr.mxu0 %v727
        %1310 = vmatpush1.msra.mxu0 %v726
        %1311 = vmatprep.subr.mxu0 %v729
        %1312 = vmatpush1.msra.mxu0 %v728
        %1313 = vmatprep.subr.mxu0 %v731
        %1314 = vmatpush1.msra.mxu0 %v730
        %1315 = vmatprep.subr.mxu0 %v733
        %1316 = vmatpush1.msra.mxu0 %v732
        %1317 = vmatprep.subr.mxu0 %v735
        %1318 = vmatpush1.msra.mxu0 %v734
        %1319 = vmatprep.subr.mxu0 %v737
        %1320 = vmatpush1.msra.mxu0 %v736
        %1321 = vmatprep.subr.mxu0 %v739
        %1322 = vmatpush1.msra.mxu0 %v738
        %1323 = vmatprep.subr.mxu0 %v741
        %1324 = vmatpush1.msra.mxu0 %v740
        %1325 = vmatprep.subr.mxu0 %v743
        %1326 = vmatpush1.msra.mxu0 %v742
        %1327 = vmatprep.subr.mxu0 %v745
        %1328 = vmatpush1.msra.mxu0 %v744
        %1329 = vmatprep.subr.mxu0 %v747
        %1330 = vmatpush1.msra.mxu0 %v746
        %1331 = vmatprep.subr.mxu0 %v749
        %1332 = vmatpush1.msra.mxu0 %v748
        %1333 = vmatprep.subr.mxu0 %v751
        %1334 = vmatpush1.msra.mxu0 %v750
        %1335 = vmatprep.subr.mxu0 %v753
        %1336 = vmatpush1.msra.mxu0 %v752
        %1337 = vmatprep.mubr.f32.mxu0 %v486
        %1338 = vmatmul.mubr.f32.gmra.mrb[0].mxu0 %v484
        %v1339 = vpop.f32.mrb[0].mxu0
        %v1340 = vadd.f32 %v1263, %v1339
        %v1341 = vpop.f32.mrb[0].mxu0
        %v1342 = vadd.f32 %v1265, %v1341
        %1343 = vmatprep.mubr.f32.mxu0 %v487
        %1344 = vmatmul.mubr.f32.gmra.mrb[0].mxu0 %v485
        %v1345 = vpop.f32.mrb[0].mxu0
        %v1346 = vadd.f32 %v1269, %v1345
        %v1347 = vpop.f32.mrb[0].mxu0
        %v1348 = vadd.f32 %v1271, %v1347
        %1349 = vdwg.mxu0
        %1350 = vmatprep.subr.mxu0 %v755
        %1351 = vmatpush1.msra.mxu0 %v754
        %1352 = vmatprep.subr.mxu0 %v757
        %1353 = vmatpush1.msra.mxu0 %v756
        %1354 = vmatprep.subr.mxu0 %v759
        %1355 = vmatpush1.msra.mxu0 %v758
        %1356 = vmatprep.subr.mxu0 %v761
        %1357 = vmatpush1.msra.mxu0 %v760
        %1358 = vmatprep.subr.mxu0 %v763
        %1359 = vmatpush1.msra.mxu0 %v762
        %1360 = vmatprep.subr.mxu0 %v765
        %1361 = vmatpush1.msra.mxu0 %v764
        %1362 = vmatprep.subr.mxu0 %v767
        %1363 = vmatpush1.msra.mxu0 %v766
        %1364 = vmatprep.subr.mxu0 %v769
        %1365 = vmatpush1.msra.mxu0 %v768
        %1366 = vmatprep.subr.mxu0 %v771
        %1367 = vmatpush1.msra.mxu0 %v770
        %1368 = vmatprep.subr.mxu0 %v773
        %1369 = vmatpush1.msra.mxu0 %v772
        %1370 = vmatprep.subr.mxu0 %v775
        %1371 = vmatpush1.msra.mxu0 %v774
        %1372 = vmatprep.subr.mxu0 %v777
        %1373 = vmatpush1.msra.mxu0 %v776
        %1374 = vmatprep.subr.mxu0 %v779
        %1375 = vmatpush1.msra.mxu0 %v778
        %1376 = vmatprep.subr.mxu0 %v781
        %1377 = vmatpush1.msra.mxu0 %v780
        %1378 = vmatprep.subr.mxu0 %v783
        %1379 = vmatpush1.msra.mxu0 %v782
        %1380 = vmatprep.subr.mxu0 %v785
        %1381 = vmatpush1.msra.mxu0 %v784
        %1382 = vmatprep.subr.mxu0 %v787
        %1383 = vmatpush1.msra.mxu0 %v786
        %1384 = vmatprep.subr.mxu0 %v789
        %1385 = vmatpush1.msra.mxu0 %v788
        %1386 = vmatprep.subr.mxu0 %v791
        %1387 = vmatpush1.msra.mxu0 %v790
        %1388 = vmatprep.subr.mxu0 %v793
        %1389 = vmatpush1.msra.mxu0 %v792
        %1390 = vmatprep.subr.mxu0 %v795
        %1391 = vmatpush1.msra.mxu0 %v794
        %1392 = vmatprep.subr.mxu0 %v797
        %1393 = vmatpush1.msra.mxu0 %v796
        %1394 = vmatprep.subr.mxu0 %v799
        %1395 = vmatpush1.msra.mxu0 %v798
        %1396 = vmatprep.subr.mxu0 %v801
        %1397 = vmatpush1.msra.mxu0 %v800
        %1398 = vmatprep.subr.mxu0 %v803
        %1399 = vmatpush1.msra.mxu0 %v802
        %1400 = vmatprep.subr.mxu0 %v805
        %1401 = vmatpush1.msra.mxu0 %v804
        %1402 = vmatprep.subr.mxu0 %v807
        %1403 = vmatpush1.msra.mxu0 %v806
        %1404 = vmatprep.subr.mxu0 %v809
        %1405 = vmatpush1.msra.mxu0 %v808
        %1406 = vmatprep.subr.mxu0 %v811
        %1407 = vmatpush1.msra.mxu0 %v810
        %1408 = vmatprep.subr.mxu0 %v813
        %1409 = vmatpush1.msra.mxu0 %v812
        %1410 = vmatprep.subr.mxu0 %v815
        %1411 = vmatpush1.msra.mxu0 %v814
        %1412 = vmatprep.subr.mxu0 %v817
        %1413 = vmatpush1.msra.mxu0 %v816
        %1414 = vmatprep.mubr.f32.mxu0 %v475
        %1415 = vmatmul.mubr.f32.gmra.mrb[0].mxu0 %v473
        %v1416 = vpop.f32.mrb[0].mxu0
        %v1417 = vadd.f32 %v1340, %v1416
        %v1418 = vpop.f32.mrb[0].mxu0
        %v1419 = vadd.f32 %v1342, %v1418
        %1420 = vmatprep.mubr.f32.mxu0 %v489
        %1421 = vmatmul.mubr.f32.gmra.mrb[0].mxu0 %v488
        %v1422 = vpop.f32.mrb[0].mxu0
        %v1423 = vadd.f32 %v1346, %v1422
        %v1424 = vpop.f32.mrb[0].mxu0
        %v1425 = vadd.f32 %v1348, %v1424
        %1426 = vdwg.mxu0
        %1427 = vmatprep.subr.mxu0 %v819
        %1428 = vmatpush1.msra.mxu0 %v818
        %1429 = vmatprep.subr.mxu0 %v821
        %1430 = vmatpush1.msra.mxu0 %v820
        %1431 = vmatprep.subr.mxu0 %v823
        %1432 = vmatpush1.msra.mxu0 %v822
        %1433 = vmatprep.subr.mxu0 %v825
        %1434 = vmatpush1.msra.mxu0 %v824
        %1435 = vmatprep.subr.mxu0 %v827
        %1436 = vmatpush1.msra.mxu0 %v826
        %1437 = vmatprep.subr.mxu0 %v829
        %1438 = vmatpush1.msra.mxu0 %v828
        %1439 = vmatprep.subr.mxu0 %v831
        %1440 = vmatpush1.msra.mxu0 %v830
        %1441 = vmatprep.subr.mxu0 %v833
        %1442 = vmatpush1.msra.mxu0 %v832
        %1443 = vmatprep.subr.mxu0 %v835
        %1444 = vmatpush1.msra.mxu0 %v834
        %1445 = vmatprep.subr.mxu0 %v837
        %1446 = vmatpush1.msra.mxu0 %v836
        %1447 = vmatprep.subr.mxu0 %v839
        %1448 = vmatpush1.msra.mxu0 %v838
        %1449 = vmatprep.subr.mxu0 %v841
        %1450 = vmatpush1.msra.mxu0 %v840
        %1451 = vmatprep.subr.mxu0 %v843
        %1452 = vmatpush1.msra.mxu0 %v842
        %1453 = vmatprep.subr.mxu0 %v845
        %1454 = vmatpush1.msra.mxu0 %v844
        %1455 = vmatprep.subr.mxu0 %v847
        %1456 = vmatpush1.msra.mxu0 %v846
        %1457 = vmatprep.subr.mxu0 %v849
        %1458 = vmatpush1.msra.mxu0 %v848
        %1459 = vmatprep.subr.mxu0 %v851
        %1460 = vmatpush1.msra.mxu0 %v850
        %1461 = vmatprep.subr.mxu0 %v853
        %1462 = vmatpush1.msra.mxu0 %v852
        %1463 = vmatprep.subr.mxu0 %v855
        %1464 = vmatpush1.msra.mxu0 %v854
        %1465 = vmatprep.subr.mxu0 %v857
        %1466 = vmatpush1.msra.mxu0 %v856
        %1467 = vmatprep.subr.mxu0 %v859
        %1468 = vmatpush1.msra.mxu0 %v858
        %1469 = vmatprep.subr.mxu0 %v861
        %1470 = vmatpush1.msra.mxu0 %v860
        %1471 = vmatprep.subr.mxu0 %v863
        %1472 = vmatpush1.msra.mxu0 %v862
        %1473 = vmatprep.subr.mxu0 %v865
        %1474 = vmatpush1.msra.mxu0 %v864
        %1475 = vmatprep.subr.mxu0 %v867
        %1476 = vmatpush1.msra.mxu0 %v866
        %1477 = vmatprep.subr.mxu0 %v869
        %1478 = vmatpush1.msra.mxu0 %v868
        %1479 = vmatprep.subr.mxu0 %v871
        %1480 = vmatpush1.msra.mxu0 %v870
        %1481 = vmatprep.subr.mxu0 %v873
        %1482 = vmatpush1.msra.mxu0 %v872
        %1483 = vmatprep.subr.mxu0 %v875
        %1484 = vmatpush1.msra.mxu0 %v874
        %1485 = vmatprep.subr.mxu0 %v877
        %1486 = vmatpush1.msra.mxu0 %v876
        %1487 = vmatprep.subr.mxu0 %v879
        %1488 = vmatpush1.msra.mxu0 %v878
        %1489 = vmatprep.subr.mxu0 %v881
        %1490 = vmatpush1.msra.mxu0 %v880
        %1491 = vmatprep.mubr.f32.mxu0 %v479
        %1492 = vmatmul.mubr.f32.gmra.mrb[0].mxu0 %v477
        %v1493 = vpop.f32.mrb[0].mxu0
        %v1494 = vadd.f32 %v1417, %v1493
        %v1495 = vpop.f32.mrb[0].mxu0
        %v1496 = vadd.f32 %v1419, %v1495
        %1497 = vmatprep.mubr.f32.mxu0 %v491
        %1498 = vmatmul.mubr.f32.gmra.mrb[0].mxu0 %v490
        %v1499 = vpop.f32.mrb[0].mxu0
        %v1500 = vadd.f32 %v1423, %v1499
        %v1501 = vpop.f32.mrb[0].mxu0
        %v1502 = vadd.f32 %v1425, %v1501
        %1503 = vdwg.mxu0
        %1504 = vmatprep.subr.mxu0 %v883
        %1505 = vmatpush1.msra.mxu0 %v882
        %1506 = vmatprep.subr.mxu0 %v885
        %1507 = vmatpush1.msra.mxu0 %v884
        %1508 = vmatprep.subr.mxu0 %v887
        %1509 = vmatpush1.msra.mxu0 %v886
        %1510 = vmatprep.subr.mxu0 %v889
        %1511 = vmatpush1.msra.mxu0 %v888
        %1512 = vmatprep.subr.mxu0 %v891
        %1513 = vmatpush1.msra.mxu0 %v890
        %1514 = vmatprep.subr.mxu0 %v893
        %1515 = vmatpush1.msra.mxu0 %v892
        %1516 = vmatprep.subr.mxu0 %v895
        %1517 = vmatpush1.msra.mxu0 %v894
        %1518 = vmatprep.subr.mxu0 %v897
        %1519 = vmatpush1.msra.mxu0 %v896
        %1520 = vmatprep.subr.mxu0 %v899
        %1521 = vmatpush1.msra.mxu0 %v898
        %1522 = vmatprep.subr.mxu0 %v901
        %1523 = vmatpush1.msra.mxu0 %v900
        %1524 = vmatprep.subr.mxu0 %v903
        %1525 = vmatpush1.msra.mxu0 %v902
        %1526 = vmatprep.subr.mxu0 %v905
        %1527 = vmatpush1.msra.mxu0 %v904
        %1528 = vmatprep.subr.mxu0 %v907
        %1529 = vmatpush1.msra.mxu0 %v906
        %1530 = vmatprep.subr.mxu0 %v909
        %1531 = vmatpush1.msra.mxu0 %v908
        %1532 = vmatprep.subr.mxu0 %v911
        %1533 = vmatpush1.msra.mxu0 %v910
        %1534 = vmatprep.subr.mxu0 %v913
        %1535 = vmatpush1.msra.mxu0 %v912
        %1536 = vmatprep.subr.mxu0 %v915
        %1537 = vmatpush1.msra.mxu0 %v914
        %1538 = vmatprep.subr.mxu0 %v917
        %1539 = vmatpush1.msra.mxu0 %v916
        %1540 = vmatprep.subr.mxu0 %v919
        %1541 = vmatpush1.msra.mxu0 %v918
        %1542 = vmatprep.subr.mxu0 %v921
        %1543 = vmatpush1.msra.mxu0 %v920
        %1544 = vmatprep.subr.mxu0 %v923
        %1545 = vmatpush1.msra.mxu0 %v922
        %1546 = vmatprep.subr.mxu0 %v925
        %1547 = vmatpush1.msra.mxu0 %v924
        %1548 = vmatprep.subr.mxu0 %v927
        %1549 = vmatpush1.msra.mxu0 %v926
        %1550 = vmatprep.subr.mxu0 %v929
        %1551 = vmatpush1.msra.mxu0 %v928
        %1552 = vmatprep.subr.mxu0 %v931
        %1553 = vmatpush1.msra.mxu0 %v930
        %1554 = vmatprep.subr.mxu0 %v933
        %1555 = vmatpush1.msra.mxu0 %v932
        %1556 = vmatprep.subr.mxu0 %v935
        %1557 = vmatpush1.msra.mxu0 %v934
        %1558 = vmatprep.subr.mxu0 %v937
        %1559 = vmatpush1.msra.mxu0 %v936
        %1560 = vmatprep.subr.mxu0 %v939
        %1561 = vmatpush1.msra.mxu0 %v938
        %1562 = vmatprep.subr.mxu0 %v941
        %1563 = vmatpush1.msra.mxu0 %v940
        %1564 = vmatprep.subr.mxu0 %v943
        %1565 = vmatpush1.msra.mxu0 %v942
        %1566 = vmatprep.subr.mxu0 %v945
        %1567 = vmatpush1.msra.mxu0 %v944
        %1568 = vmatprep.mubr.f32.mxu0 %v483
        %1569 = vmatmul.mubr.f32.gmra.mrb[0].mxu0 %v481
        %v1570 = vpop.f32.mrb[0].mxu0
        %v1571 = vadd.f32 %v1494, %v1570
        %v1572 = vpop.f32.mrb[0].mxu0
        %v1573 = vadd.f32 %v1496, %v1572
        %1574 = vmatprep.mubr.f32.mxu0 %v493
        %1575 = vmatmul.mubr.f32.gmra.mrb[0].mxu0 %v492
        %v1576 = vpop.f32.mrb[0].mxu0
        %v1577 = vadd.f32 %v1500, %v1576
        %v1578 = vpop.f32.mrb[0].mxu0
        %v1579 = vadd.f32 %v1502, %v1578
        %1580 = vdwg.mxu0
        %1581 = vmatprep.subr.mxu0 %v947
        %1582 = vmatpush1.msra.mxu0 %v946
        %1583 = vmatprep.subr.mxu0 %v949
        %1584 = vmatpush1.msra.mxu0 %v948
        %1585 = vmatprep.subr.mxu0 %v951
        %1586 = vmatpush1.msra.mxu0 %v950
        %1587 = vmatprep.subr.mxu0 %v953
        %1588 = vmatpush1.msra.mxu0 %v952
        %1589 = vmatprep.subr.mxu0 %v955
        %1590 = vmatpush1.msra.mxu0 %v954
        %1591 = vmatprep.subr.mxu0 %v957
        %1592 = vmatpush1.msra.mxu0 %v956
        %1593 = vmatprep.subr.mxu0 %v959
        %1594 = vmatpush1.msra.mxu0 %v958
        %1595 = vmatprep.subr.mxu0 %v961
        %1596 = vmatpush1.msra.mxu0 %v960
        %1597 = vmatprep.subr.mxu0 %v963
        %1598 = vmatpush1.msra.mxu0 %v962
        %1599 = vmatprep.subr.mxu0 %v965
        %1600 = vmatpush1.msra.mxu0 %v964
        %1601 = vmatprep.subr.mxu0 %v967
        %1602 = vmatpush1.msra.mxu0 %v966
        %1603 = vmatprep.subr.mxu0 %v969
        %1604 = vmatpush1.msra.mxu0 %v968
        %1605 = vmatprep.subr.mxu0 %v971
        %1606 = vmatpush1.msra.mxu0 %v970
        %1607 = vmatprep.subr.mxu0 %v973
        %1608 = vmatpush1.msra.mxu0 %v972
        %1609 = vmatprep.subr.mxu0 %v975
        %1610 = vmatpush1.msra.mxu0 %v974
        %1611 = vmatprep.subr.mxu0 %v977
        %1612 = vmatpush1.msra.mxu0 %v976
        %1613 = vmatprep.subr.mxu0 %v979
        %1614 = vmatpush1.msra.mxu0 %v978
        %1615 = vmatprep.subr.mxu0 %v981
        %1616 = vmatpush1.msra.mxu0 %v980
        %1617 = vmatprep.subr.mxu0 %v983
        %1618 = vmatpush1.msra.mxu0 %v982
        %1619 = vmatprep.subr.mxu0 %v985
        %1620 = vmatpush1.msra.mxu0 %v984
        %1621 = vmatprep.subr.mxu0 %v987
        %1622 = vmatpush1.msra.mxu0 %v986
        %1623 = vmatprep.subr.mxu0 %v989
        %1624 = vmatpush1.msra.mxu0 %v988
        %1625 = vmatprep.subr.mxu0 %v991
        %1626 = vmatpush1.msra.mxu0 %v990
        %1627 = vmatprep.subr.mxu0 %v993
        %1628 = vmatpush1.msra.mxu0 %v992
        %1629 = vmatprep.subr.mxu0 %v995
        %1630 = vmatpush1.msra.mxu0 %v994
        %1631 = vmatprep.subr.mxu0 %v997
        %1632 = vmatpush1.msra.mxu0 %v996
        %1633 = vmatprep.subr.mxu0 %v999
        %1634 = vmatpush1.msra.mxu0 %v998
        %1635 = vmatprep.subr.mxu0 %v1001
        %1636 = vmatpush1.msra.mxu0 %v1000
        %1637 = vmatprep.subr.mxu0 %v1003
        %1638 = vmatpush1.msra.mxu0 %v1002
        %1639 = vmatprep.subr.mxu0 %v1005
        %1640 = vmatpush1.msra.mxu0 %v1004
        %1641 = vmatprep.subr.mxu0 %v1007
        %1642 = vmatpush1.msra.mxu0 %v1006
        %1643 = vmatprep.subr.mxu0 %v1009
        %1644 = vmatpush1.msra.mxu0 %v1008
        %1645 = vmatprep.mubr.f32.mxu0 %v487
        %1646 = vmatmul.mubr.f32.gmra.mrb[0].mxu0 %v485
        %v1647 = vpop.f32.mrb[0].mxu0
        %v1648 = vadd.f32 %v1571, %v1647
        %v1649 = vpop.f32.mrb[0].mxu0
        %v1650 = vadd.f32 %v1573, %v1649
        %1651 = vmatprep.mubr.f32.mxu0 %v495
        %1652 = vmatmul.mubr.f32.gmra.mrb[0].mxu0 %v494
        %v1653 = vpop.f32.mrb[0].mxu0
        %v1654 = vadd.f32 %v1577, %v1653
        %v1655 = vpop.f32.mrb[0].mxu0
        %v1656 = vadd.f32 %v1579, %v1655
        %1657 = vdwg.mxu0
        %1658 = vmatprep.subr.mxu0 %v1011
        %1659 = vmatpush1.msra.mxu0 %v1010
        %1660 = vmatprep.subr.mxu0 %v1013
        %1661 = vmatpush1.msra.mxu0 %v1012
        %1662 = vmatprep.subr.mxu0 %v1015
        %1663 = vmatpush1.msra.mxu0 %v1014
        %1664 = vmatprep.subr.mxu0 %v1017
        %1665 = vmatpush1.msra.mxu0 %v1016
        %1666 = vmatprep.subr.mxu0 %v1019
        %1667 = vmatpush1.msra.mxu0 %v1018
        %1668 = vmatprep.subr.mxu0 %v1021
        %1669 = vmatpush1.msra.mxu0 %v1020
        %1670 = vmatprep.subr.mxu0 %v1023
        %1671 = vmatpush1.msra.mxu0 %v1022
        %1672 = vmatprep.subr.mxu0 %v1025
        %1673 = vmatpush1.msra.mxu0 %v1024
        %1674 = vmatprep.subr.mxu0 %v1027
        %1675 = vmatpush1.msra.mxu0 %v1026
        %1676 = vmatprep.subr.mxu0 %v1029
        %1677 = vmatpush1.msra.mxu0 %v1028
        %1678 = vmatprep.subr.mxu0 %v1031
        %1679 = vmatpush1.msra.mxu0 %v1030
        %1680 = vmatprep.subr.mxu0 %v1033
        %1681 = vmatpush1.msra.mxu0 %v1032
        %1682 = vmatprep.subr.mxu0 %v1035
        %1683 = vmatpush1.msra.mxu0 %v1034
        %1684 = vmatprep.subr.mxu0 %v1037
        %1685 = vmatpush1.msra.mxu0 %v1036
        %1686 = vmatprep.subr.mxu0 %v1039
        %1687 = vmatpush1.msra.mxu0 %v1038
        %1688 = vmatprep.subr.mxu0 %v1041
        %1689 = vmatpush1.msra.mxu0 %v1040
        %1690 = vmatprep.subr.mxu0 0.0
        %1691 = vmatpush1.msra.mxu0 0.0
        %1692 = vmatprep.subr.mxu0 0.0
        %1693 = vmatpush1.msra.mxu0 0.0
        %1694 = vmatprep.subr.mxu0 0.0
        %1695 = vmatpush1.msra.mxu0 0.0
        %1696 = vmatprep.subr.mxu0 0.0
        %1697 = vmatpush1.msra.mxu0 0.0
        %1698 = vmatprep.subr.mxu0 0.0
        %1699 = vmatpush1.msra.mxu0 0.0
        %1700 = vmatprep.subr.mxu0 0.0
        %1701 = vmatpush1.msra.mxu0 0.0
        %1702 = vmatprep.subr.mxu0 0.0
        %1703 = vmatpush1.msra.mxu0 0.0
        %1704 = vmatprep.subr.mxu0 0.0
        %1705 = vmatpush1.msra.mxu0 0.0
        %1706 = vmatprep.subr.mxu0 0.0
        %1707 = vmatpush1.msra.mxu0 0.0
        %1708 = vmatprep.subr.mxu0 0.0
        %1709 = vmatpush1.msra.mxu0 0.0
        %1710 = vmatprep.subr.mxu0 0.0
        %1711 = vmatpush1.msra.mxu0 0.0
        %1712 = vmatprep.subr.mxu0 0.0
        %1713 = vmatpush1.msra.mxu0 0.0
        %1714 = vmatprep.subr.mxu0 0.0
        %1715 = vmatpush1.msra.mxu0 0.0
        %1716 = vmatprep.subr.mxu0 0.0
        %1717 = vmatpush1.msra.mxu0 0.0
        %1718 = vmatprep.subr.mxu0 0.0
        %1719 = vmatpush1.msra.mxu0 0.0
        %1720 = vmatprep.subr.mxu0 0.0
        %1721 = vmatpush1.msra.mxu0 0.0
        %1722 = vmatprep.mubr.f32.mxu0 0.0
        %1723 = vmatmul.mubr.f32.gmra.mrb[0].mxu0 %v496
        %v1724 = vpop.f32.mrb[0].mxu0
        %v1725 = vadd.f32 %v1648, %v1724
        %v1726 = vpop.f32.mrb[0].mxu0
        %v1727 = vadd.f32 %v1650, %v1726
        %1728 = vmatprep.mubr.f32.mxu0 0.0
        %1729 = vmatmul.mubr.f32.gmra.mrb[0].mxu0 %v497
        %v1730 = vpop.f32.mrb[0].mxu0
        %v1731 = vadd.f32 %v1654, %v1730
        %v1732 = vpop.f32.mrb[0].mxu0
        %v1733 = vadd.f32 %v1656, %v1732
        %1734 = vdwg.mxu0
        %v1735 = vld [vmem:[%s7] sm:$0x3]
        %v1737 = vlaneseq
        %v1738 = vshrl.u32 %v1737, 7
        %v1739 = vsub.s32 0, %v1738
        %v1740 = vrot.slane %v1735, %v1739
        %v1741 = vlaneseq
        %v1742 = vshrl.u32 %v1741, 7
        %v1743 = vsub.s32 1, %v1742
        %v1744 = vrot.slane %v1735, %v1743
        %v1747 = vmul.f32 %v1725, %v1740
        %v1748 = vmul.f32 %v1727, %v1744
        %v1749 = vmul.f32 %v1731, %v1740
        %v1750 = vmul.f32 %v1733, %v1744
        %v1751 = vld [vmem:[%s8] sm:$0x3]
        %v1753 = vlaneseq
        %v1754 = vshrl.u32 %v1753, 7
        %v1755 = vsub.s32 0, %v1754
        %v1756 = vrot.slane %v1751, %v1755
        %v1757 = vlaneseq
        %v1758 = vshrl.u32 %v1757, 7
        %v1759 = vsub.s32 1, %v1758
        %v1760 = vrot.slane %v1751, %v1759
        %v1763 = vadd.f32 %v1747, %v1756
        %v1764 = vadd.f32 %v1748, %v1760
        %v1765 = vadd.f32 %v1749, %v1756
        %v1766 = vadd.f32 %v1750, %v1760
        %v1767 = vmax.f32 %v1763, 0.0
        %v1768 = vmax.f32 %v1764, 0.0
        %v1769 = vmax.f32 %v1765, 0.0
        %v1770 = vmax.f32 %v1766, 0.0
        %v1771 = vld [vmem:[%s5] sm:$0xff]
        %v1772 = vld [vmem:[%s5 + $0x8] sm:$0xff]
        %v1773 = vld [vmem:[%s5 + $0x10] sm:$0xff]
        %v1774 = vld [vmem:[%s5 + $0x18] sm:$0xff]
        %vm1775 = vcmask 130048
        %v1777 = vsel %vm1775, %v1771, 0
        %v1780 = vsel %vm1775, %v1772, 0
        %v1783 = vsel %vm1775, %v1773, 0
        %v1786 = vsel %vm1775, %v1774, 0
        %1788 = vmatprep.subr.mxu0 %v1768
        %1789 = vmatpush1.msra.mxu0 %v1767
        %1790 = vmatprep.subr.mxu0 %v1770
        %1791 = vmatpush1.msra.mxu0 %v1769
        %1792 = vmatprep.subr.mxu0 0.0
        %1793 = vmatpush1.msra.mxu0 0.0
        %1794 = vmatprep.subr.mxu0 0.0
        %1795 = vmatpush1.msra.mxu0 0.0
        %1796 = vmatprep.subr.mxu0 0.0
        %1797 = vmatpush1.msra.mxu0 0.0
        %1798 = vmatprep.subr.mxu0 0.0
        %1799 = vmatpush1.msra.mxu0 0.0
        %1800 = vmatprep.subr.mxu0 0.0
        %1801 = vmatpush1.msra.mxu0 0.0
        %1802 = vmatprep.subr.mxu0 0.0
        %1803 = vmatpush1.msra.mxu0 0.0
        %1804 = vmatprep.subr.mxu0 0.0
        %1805 = vmatpush1.msra.mxu0 0.0
        %1806 = vmatprep.subr.mxu0 0.0
        %1807 = vmatpush1.msra.mxu0 0.0
        %1808 = vmatprep.subr.mxu0 0.0
        %1809 = vmatpush1.msra.mxu0 0.0
        %1810 = vmatprep.subr.mxu0 0.0
        %1811 = vmatpush1.msra.mxu0 0.0
        %1812 = vmatprep.subr.mxu0 0.0
        %1813 = vmatpush1.msra.mxu0 0.0
        %1814 = vmatprep.subr.mxu0 0.0
        %1815 = vmatpush1.msra.mxu0 0.0
        %1816 = vmatprep.subr.mxu0 0.0
        %1817 = vmatpush1.msra.mxu0 0.0
        %1818 = vmatprep.subr.mxu0 0.0
        %1819 = vmatpush1.msra.mxu0 0.0
        %1820 = vmatprep.subr.mxu0 0.0
        %1821 = vmatpush1.msra.mxu0 0.0
        %1822 = vmatprep.subr.mxu0 0.0
        %1823 = vmatpush1.msra.mxu0 0.0
        %1824 = vmatprep.subr.mxu0 0.0
        %1825 = vmatpush1.msra.mxu0 0.0
        %1826 = vmatprep.subr.mxu0 0.0
        %1827 = vmatpush1.msra.mxu0 0.0
        %1828 = vmatprep.subr.mxu0 0.0
        %1829 = vmatpush1.msra.mxu0 0.0
        %1830 = vmatprep.subr.mxu0 0.0
        %1831 = vmatpush1.msra.mxu0 0.0
        %1832 = vmatprep.subr.mxu0 0.0
        %1833 = vmatpush1.msra.mxu0 0.0
        %1834 = vmatprep.subr.mxu0 0.0
        %1835 = vmatpush1.msra.mxu0 0.0
        %1836 = vmatprep.subr.mxu0 0.0
        %1837 = vmatpush1.msra.mxu0 0.0
        %1838 = vmatprep.subr.mxu0 0.0
        %1839 = vmatpush1.msra.mxu0 0.0
        %1840 = vmatprep.subr.mxu0 0.0
        %1841 = vmatpush1.msra.mxu0 0.0
        %1842 = vmatprep.subr.mxu0 0.0
        %1843 = vmatpush1.msra.mxu0 0.0
        %1844 = vmatprep.subr.mxu0 0.0
        %1845 = vmatpush1.msra.mxu0 0.0
        %1846 = vmatprep.subr.mxu0 0.0
        %1847 = vmatpush1.msra.mxu0 0.0
        %1848 = vmatprep.subr.mxu0 0.0
        %1849 = vmatpush1.msra.mxu0 0.0
        %1850 = vmatprep.subr.mxu0 0.0
        %1851 = vmatpush1.msra.mxu0 0.0
        %1852 = vmatprep.mubr.f32.mxu0 0.0
        %1853 = vmatmul.mubr.f32.gmra.mrb[0].mxu0 %v1777
        %v1854 = vpop.f32.mrb[0].mxu0
        %v1855 = vadd.f32 0.0, %v1854
        %v1856 = vpop.f32.mrb[0].mxu0
        %v1857 = vadd.f32 0.0, %v1856
        %1858 = vmatprep.mubr.f32.mxu0 0.0
        %1859 = vmatmul.mubr.f32.gmra.mrb[0].mxu0 %v1780
        %v1860 = vpop.f32.mrb[0].mxu0
        %v1861 = vadd.f32 0.0, %v1860
        %v1862 = vpop.f32.mrb[0].mxu0
        %v1863 = vadd.f32 0.0, %v1862
        %1864 = vmatprep.mubr.f32.mxu0 0.0
        %1865 = vmatmul.mubr.f32.gmra.mrb[0].mxu0 %v1783
        %v1866 = vpop.f32.mrb[0].mxu0
        %v1867 = vadd.f32 0.0, %v1866
        %v1868 = vpop.f32.mrb[0].mxu0
        %v1869 = vadd.f32 0.0, %v1868
        %1870 = vmatprep.mubr.f32.mxu0 0.0
        %1871 = vmatmul.mubr.f32.gmra.mrb[0].mxu0 %v1786
        %v1872 = vpop.f32.mrb[0].mxu0
        %v1873 = vadd.f32 0.0, %v1872
        %v1874 = vpop.f32.mrb[0].mxu0
        %v1875 = vadd.f32 0.0, %v1874
        %1876 = vdwg.mxu0
        %v1879 = vrot.slane %v1855, 1
        %v1880 = vrot.slane %v1857, 1
        %v1885 = vrot.slane %v1861, 1
        %v1886 = vrot.slane %v1863, 1
        %v1891 = vrot.slane %v1867, 1
        %v1892 = vrot.slane %v1869, 1
        %v1897 = vrot.slane %v1873, 1
        %v1898 = vrot.slane %v1875, 1
        %v1901 = vrot.slane %v1855, 2
        %v1902 = vrot.slane %v1857, 2
        %v1905 = vrot.slane %v1861, 2
        %v1906 = vrot.slane %v1863, 2
        %v1909 = vrot.slane %v1867, 2
        %v1910 = vrot.slane %v1869, 2
        %v1913 = vrot.slane %v1873, 2
        %v1914 = vrot.slane %v1875, 2
        %v1917 = vrot.slane %v1855, 3
        %v1918 = vrot.slane %v1857, 3
        %v1921 = vrot.slane %v1861, 3
        %v1922 = vrot.slane %v1863, 3
        %v1925 = vrot.slane %v1867, 3
        %v1926 = vrot.slane %v1869, 3
        %v1929 = vrot.slane %v1873, 3
        %v1930 = vrot.slane %v1875, 3
        %v1933 = vrot.slane %v1855, 4
        %v1934 = vrot.slane %v1857, 4
        %v1935 = vrot.slane %v1861, 4
        %v1936 = vrot.slane %v1863, 4
        %v1937 = vrot.slane %v1867, 4
        %v1938 = vrot.slane %v1869, 4
        %v1939 = vrot.slane %v1873, 4
        %v1940 = vrot.slane %v1875, 4
        %v1949 = vld [vmem:[%s3] sm:$0xff]
        %v1950 = vld [vmem:[%s3 + $0x8] sm:$0xff]
        %v1951 = vld [vmem:[%s3 + $0x10] sm:$0xff]
        %v1952 = vld [vmem:[%s3 + $0x18] sm:$0xff]
        %v1953 = vld [vmem:[%s3 + $0x20] sm:$0xff]
        %v1954 = vld [vmem:[%s3 + $0x28] sm:$0xff]
        %v1955 = vld [vmem:[%s3 + $0x30] sm:$0xff]
        %v1956 = vld [vmem:[%s3 + $0x38] sm:$0xff]
        %v1957 = vld [vmem:[%s3 + $0x40] sm:$0xff]
        %v1958 = vld [vmem:[%s3 + $0x48] sm:$0xff]
        %v1959 = vld [vmem:[%s3 + $0x50] sm:$0xff]
        %v1960 = vld [vmem:[%s3 + $0x58] sm:$0xff]
        %v1961 = vld [vmem:[%s3 + $0x60] sm:$0xff]
        %v1962 = vld [vmem:[%s3 + $0x68] sm:$0xff]
        %v1963 = vld [vmem:[%s3 + $0x70] sm:$0xff]
        %v1964 = vld [vmem:[%s3 + $0x78] sm:$0xff]
        %v1965 = vld [vmem:[%s3 + $0x80] sm:$0xff]
        %v1966 = vld [vmem:[%s3 + $0x88] sm:$0xff]
        %v1967 = vld [vmem:[%s3 + $0x90] sm:$0xff]
        %v1968 = vld [vmem:[%s3 + $0x98] sm:$0xff]
        %v1969 = vld [vmem:[%s3 + $0xa0] sm:$0xff]
        %v1970 = vld [vmem:[%s3 + $0xa8] sm:$0xff]
        %v1971 = vld [vmem:[%s3 + $0xb0] sm:$0xff]
        %v1972 = vld [vmem:[%s3 + $0xb8] sm:$0xff]
        %v1973 = vld [vmem:[%s3 + $0xc0] sm:$0xff]
        %v1974 = vld [vmem:[%s3 + $0xc8] sm:$0xff]
        %v1975 = vld [vmem:[%s3 + $0xd0] sm:$0xff]
        %v1976 = vld [vmem:[%s3 + $0xd8] sm:$0xff]
        %v1977 = vld [vmem:[%s3 + $0xe0] sm:$0xff]
        %v1978 = vld [vmem:[%s3 + $0xe8] sm:$0xff]
        %v1979 = vld [vmem:[%s3 + $0xf0] sm:$0xff]
        %v1980 = vld [vmem:[%s3 + $0xf8] sm:$0xff]
        %v1981 = vld [vmem:[%s3 + $0x100] sm:$0xff]
        %v1982 = vld [vmem:[%s3 + $0x108] sm:$0xff]
        %v1983 = vld [vmem:[%s3 + $0x110] sm:$0xff]
        %v1984 = vld [vmem:[%s3 + $0x118] sm:$0xff]
        %v1985 = vld [vmem:[%s3 + $0x120] sm:$0xff]
        %v1986 = vld [vmem:[%s3 + $0x128] sm:$0xff]
        %v1987 = vld [vmem:[%s3 + $0x130] sm:$0xff]
        %v1988 = vld [vmem:[%s3 + $0x138] sm:$0xff]
        %v1989 = vld [vmem:[%s3 + $0x140] sm:$0xff]
        %v1990 = vld [vmem:[%s3 + $0x148] sm:$0xff]
        %v1991 = vld [vmem:[%s3 + $0x150] sm:$0xff]
        %v1992 = vld [vmem:[%s3 + $0x158] sm:$0xff]
        %v1993 = vld [vmem:[%s3 + $0x160] sm:$0xff]
        %v1994 = vld [vmem:[%s3 + $0x168] sm:$0xff]
        %v1995 = vld [vmem:[%s3 + $0x170] sm:$0xff]
        %v1996 = vld [vmem:[%s3 + $0x178] sm:$0xff]
        %v1997 = vld [vmem:[%s3 + $0x180] sm:$0xff]
        %v1998 = vld [vmem:[%s3 + $0x188] sm:$0xff]
        %v1999 = vld [vmem:[%s3 + $0x190] sm:$0xff]
        %v2000 = vld [vmem:[%s3 + $0x198] sm:$0xff]
        %v2001 = vld [vmem:[%s3 + $0x1a0] sm:$0xff]
        %v2002 = vld [vmem:[%s3 + $0x1a8] sm:$0xff]
        %v2003 = vld [vmem:[%s3 + $0x1b0] sm:$0xff]
        %v2004 = vld [vmem:[%s3 + $0x1b8] sm:$0xff]
        %v2005 = vld [vmem:[%s3 + $0x1c0] sm:$0xff]
        %v2006 = vld [vmem:[%s3 + $0x1c8] sm:$0xff]
        %v2007 = vld [vmem:[%s3 + $0x1d0] sm:$0xff]
        %v2008 = vld [vmem:[%s3 + $0x1d8] sm:$0xff]
        %v2009 = vld [vmem:[%s3 + $0x1e0] sm:$0xff]
        %v2010 = vld [vmem:[%s3 + $0x1e8] sm:$0xff]
        %v2011 = vld [vmem:[%s3 + $0x1f0] sm:$0xff]
        %v2012 = vld [vmem:[%s3 + $0x1f8] sm:$0xff]
        %v2013 = vld [vmem:[%s3 + $0x200] sm:$0xff]
        %v2014 = vld [vmem:[%s3 + $0x208] sm:$0xff]
        %v2015 = vld [vmem:[%s3 + $0x210] sm:$0xff]
        %v2016 = vld [vmem:[%s3 + $0x218] sm:$0xff]
        %v2017 = vld [vmem:[%s3 + $0x220] sm:$0xff]
        %v2018 = vld [vmem:[%s3 + $0x228] sm:$0xff]
        %v2019 = vld [vmem:[%s3 + $0x230] sm:$0xff]
        %v2020 = vld [vmem:[%s3 + $0x238] sm:$0xff]
        %v2021 = vld [vmem:[%s3 + $0x240] sm:$0xff]
        %v2022 = vld [vmem:[%s3 + $0x248] sm:$0xff]
        %v2023 = vld [vmem:[%s3 + $0x250] sm:$0xff]
        %v2024 = vld [vmem:[%s3 + $0x258] sm:$0xff]
        %v2025 = vld [vmem:[%s3 + $0x260] sm:$0xff]
        %v2026 = vld [vmem:[%s3 + $0x268] sm:$0xff]
        %v2027 = vld [vmem:[%s3 + $0x270] sm:$0xff]
        %v2028 = vld [vmem:[%s3 + $0x278] sm:$0xff]
        %v2029 = vld [vmem:[%s3 + $0x280] sm:$0xff]
        %v2030 = vld [vmem:[%s3 + $0x288] sm:$0xff]
        %v2031 = vld [vmem:[%s3 + $0x290] sm:$0xff]
        %v2032 = vld [vmem:[%s3 + $0x298] sm:$0xff]
        %v2033 = vld [vmem:[%s3 + $0x2a0] sm:$0xff]
        %v2034 = vld [vmem:[%s3 + $0x2a8] sm:$0xff]
        %v2035 = vld [vmem:[%s3 + $0x2b0] sm:$0xff]
        %v2036 = vld [vmem:[%s3 + $0x2b8] sm:$0xff]
        %v2037 = vld [vmem:[%s3 + $0x2c0] sm:$0xff]
        %v2038 = vld [vmem:[%s3 + $0x2c8] sm:$0xff]
        %v2039 = vld [vmem:[%s3 + $0x2d0] sm:$0xff]
        %v2040 = vld [vmem:[%s3 + $0x2d8] sm:$0xff]
        %v2041 = vld [vmem:[%s3 + $0x2e0] sm:$0xff]
        %v2042 = vld [vmem:[%s3 + $0x2e8] sm:$0xff]
        %v2043 = vld [vmem:[%s3 + $0x2f0] sm:$0xff]
        %v2044 = vld [vmem:[%s3 + $0x2f8] sm:$0xff]
        %v2045 = vld [vmem:[%s3 + $0x300] sm:$0xff]
        %v2046 = vld [vmem:[%s3 + $0x308] sm:$0xff]
        %v2047 = vld [vmem:[%s3 + $0x310] sm:$0xff]
        %v2048 = vld [vmem:[%s3 + $0x318] sm:$0xff]
        %v2049 = vld [vmem:[%s3 + $0x320] sm:$0xff]
        %v2050 = vld [vmem:[%s3 + $0x328] sm:$0xff]
        %v2051 = vld [vmem:[%s3 + $0x330] sm:$0xff]
        %v2052 = vld [vmem:[%s3 + $0x338] sm:$0xff]
        %v2053 = vld [vmem:[%s3 + $0x340] sm:$0xff]
        %v2054 = vld [vmem:[%s3 + $0x348] sm:$0xff]
        %v2055 = vld [vmem:[%s3 + $0x350] sm:$0xff]
        %v2056 = vld [vmem:[%s3 + $0x358] sm:$0xff]
        %v2057 = vld [vmem:[%s3 + $0x360] sm:$0xff]
        %v2058 = vld [vmem:[%s3 + $0x368] sm:$0xff]
        %v2059 = vld [vmem:[%s3 + $0x370] sm:$0xff]
        %v2060 = vld [vmem:[%s3 + $0x378] sm:$0xff]
        %v2061 = vld [vmem:[%s3 + $0x380] sm:$0xff]
        %v2062 = vld [vmem:[%s3 + $0x388] sm:$0xff]
        %v2063 = vld [vmem:[%s3 + $0x390] sm:$0xff]
        %v2064 = vld [vmem:[%s3 + $0x398] sm:$0xff]
        %v2065 = vld [vmem:[%s3 + $0x3a0] sm:$0xff]
        %v2066 = vld [vmem:[%s3 + $0x3a8] sm:$0xff]
        %v2067 = vld [vmem:[%s3 + $0x3b0] sm:$0xff]
        %v2068 = vld [vmem:[%s3 + $0x3b8] sm:$0xff]
        %v2069 = vld [vmem:[%s3 + $0x3c0] sm:$0xff]
        %v2070 = vld [vmem:[%s3 + $0x3c8] sm:$0xff]
        %v2071 = vld [vmem:[%s3 + $0x3d0] sm:$0xff]
        %v2072 = vld [vmem:[%s3 + $0x3d8] sm:$0xff]
        %v2073 = vld [vmem:[%s3 + $0x3e0] sm:$0xff]
        %v2074 = vld [vmem:[%s3 + $0x3e8] sm:$0xff]
        %v2075 = vld [vmem:[%s3 + $0x3f0] sm:$0xff]
        %v2076 = vld [vmem:[%s3 + $0x3f8] sm:$0xff]
        %v2077 = vld [vmem:[%s3 + $0x400] sm:$0xff]
        %v2078 = vld [vmem:[%s3 + $0x408] sm:$0xff]
        %v2079 = vld [vmem:[%s3 + $0x410] sm:$0xff]
        %v2080 = vld [vmem:[%s3 + $0x418] sm:$0xff]
        %v2081 = vld [vmem:[%s3 + $0x420] sm:$0xff]
        %v2082 = vld [vmem:[%s3 + $0x428] sm:$0xff]
        %v2083 = vld [vmem:[%s3 + $0x430] sm:$0xff]
        %v2084 = vld [vmem:[%s3 + $0x438] sm:$0xff]
        %v2085 = vld [vmem:[%s3 + $0x440] sm:$0xff]
        %v2086 = vld [vmem:[%s3 + $0x448] sm:$0xff]
        %v2087 = vld [vmem:[%s3 + $0x450] sm:$0xff]
        %v2088 = vld [vmem:[%s3 + $0x458] sm:$0xff]
        %v2089 = vld [vmem:[%s3 + $0x460] sm:$0xff]
        %v2090 = vld [vmem:[%s3 + $0x468] sm:$0xff]
        %v2091 = vld [vmem:[%s3 + $0x470] sm:$0xff]
        %v2092 = vld [vmem:[%s3 + $0x478] sm:$0xff]
        %v2093 = vld [vmem:[%s3 + $0x480] sm:$0xff]
        %v2094 = vld [vmem:[%s3 + $0x488] sm:$0xff]
        %v2095 = vld [vmem:[%s3 + $0x490] sm:$0xff]
        %v2096 = vld [vmem:[%s3 + $0x498] sm:$0xff]
        %v2097 = vld [vmem:[%s3 + $0x4a0] sm:$0xff]
        %v2098 = vld [vmem:[%s3 + $0x4a8] sm:$0xff]
        %v2099 = vld [vmem:[%s3 + $0x4b0] sm:$0xff]
        %v2100 = vld [vmem:[%s3 + $0x4b8] sm:$0xff]
        %v2101 = vld [vmem:[%s3 + $0x4c0] sm:$0xff]
        %v2102 = vld [vmem:[%s3 + $0x4c8] sm:$0xff]
        %v2103 = vld [vmem:[%s3 + $0x4d0] sm:$0xff]
        %v2104 = vld [vmem:[%s3 + $0x4d8] sm:$0xff]
        %v2105 = vld [vmem:[%s3 + $0x4e0] sm:$0xff]
        %v2106 = vld [vmem:[%s3 + $0x4e8] sm:$0xff]
        %v2107 = vld [vmem:[%s3 + $0x4f0] sm:$0xff]
        %v2108 = vld [vmem:[%s3 + $0x4f8] sm:$0xff]
        %v2109 = vld [vmem:[%s3 + $0x500] sm:$0xff]
        %v2110 = vld [vmem:[%s3 + $0x508] sm:$0xff]
        %v2111 = vld [vmem:[%s3 + $0x510] sm:$0xff]
        %v2112 = vld [vmem:[%s3 + $0x518] sm:$0xff]
        %v2113 = vld [vmem:[%s3 + $0x520] sm:$0xff]
        %v2114 = vld [vmem:[%s3 + $0x528] sm:$0xff]
        %v2115 = vld [vmem:[%s3 + $0x530] sm:$0xff]
        %v2116 = vld [vmem:[%s3 + $0x538] sm:$0xff]
        %v2117 = vld [vmem:[%s3 + $0x540] sm:$0xff]
        %v2118 = vld [vmem:[%s3 + $0x548] sm:$0xff]
        %v2119 = vld [vmem:[%s3 + $0x550] sm:$0xff]
        %v2120 = vld [vmem:[%s3 + $0x558] sm:$0xff]
        %v2121 = vld [vmem:[%s3 + $0x560] sm:$0xff]
        %v2122 = vld [vmem:[%s3 + $0x568] sm:$0xff]
        %v2123 = vld [vmem:[%s3 + $0x570] sm:$0xff]
        %v2124 = vld [vmem:[%s3 + $0x578] sm:$0xff]
        %v2125 = vld [vmem:[%s3 + $0x580] sm:$0xff]
        %v2126 = vld [vmem:[%s3 + $0x588] sm:$0xff]
        %v2127 = vld [vmem:[%s3 + $0x590] sm:$0xff]
        %v2128 = vld [vmem:[%s3 + $0x598] sm:$0xff]
        %v2129 = vld [vmem:[%s3 + $0x5a0] sm:$0xff]
        %v2130 = vld [vmem:[%s3 + $0x5a8] sm:$0xff]
        %v2131 = vld [vmem:[%s3 + $0x5b0] sm:$0xff]
        %v2132 = vld [vmem:[%s3 + $0x5b8] sm:$0xff]
        %v2133 = vld [vmem:[%s3 + $0x5c0] sm:$0xff]
        %v2134 = vld [vmem:[%s3 + $0x5c8] sm:$0xff]
        %v2135 = vld [vmem:[%s3 + $0x5d0] sm:$0xff]
        %v2136 = vld [vmem:[%s3 + $0x5d8] sm:$0xff]
        %v2137 = vld [vmem:[%s3 + $0x5e0] sm:$0xff]
        %v2138 = vld [vmem:[%s3 + $0x5e8] sm:$0xff]
        %v2139 = vld [vmem:[%s3 + $0x5f0] sm:$0xff]
        %v2140 = vld [vmem:[%s3 + $0x5f8] sm:$0xff]
        %v2141 = vld [vmem:[%s3 + $0x600] sm:$0xff]
        %v2142 = vld [vmem:[%s3 + $0x608] sm:$0xff]
        %v2143 = vld [vmem:[%s3 + $0x610] sm:$0xff]
        %v2144 = vld [vmem:[%s3 + $0x618] sm:$0xff]
        %v2145 = vld [vmem:[%s3 + $0x620] sm:$0xff]
        %v2146 = vld [vmem:[%s3 + $0x628] sm:$0xff]
        %v2147 = vld [vmem:[%s3 + $0x630] sm:$0xff]
        %v2148 = vld [vmem:[%s3 + $0x638] sm:$0xff]
        %v2149 = vld [vmem:[%s3 + $0x640] sm:$0xff]
        %v2150 = vld [vmem:[%s3 + $0x648] sm:$0xff]
        %v2151 = vld [vmem:[%s3 + $0x650] sm:$0xff]
        %v2152 = vld [vmem:[%s3 + $0x658] sm:$0xff]
        %v2153 = vld [vmem:[%s3 + $0x660] sm:$0xff]
        %v2154 = vld [vmem:[%s3 + $0x668] sm:$0xff]
        %v2155 = vld [vmem:[%s3 + $0x670] sm:$0xff]
        %v2156 = vld [vmem:[%s3 + $0x678] sm:$0xff]
        %v2157 = vld [vmem:[%s3 + $0x680] sm:$0xff]
        %v2158 = vld [vmem:[%s3 + $0x688] sm:$0xff]
        %v2159 = vld [vmem:[%s3 + $0x690] sm:$0xff]
        %v2160 = vld [vmem:[%s3 + $0x698] sm:$0xff]
        %v2161 = vld [vmem:[%s3 + $0x6a0] sm:$0xff]
        %v2162 = vld [vmem:[%s3 + $0x6a8] sm:$0xff]
        %v2163 = vld [vmem:[%s3 + $0x6b0] sm:$0xff]
        %v2164 = vld [vmem:[%s3 + $0x6b8] sm:$0xff]
        %v2165 = vld [vmem:[%s3 + $0x6c0] sm:$0xff]
        %v2166 = vld [vmem:[%s3 + $0x6c8] sm:$0xff]
        %v2167 = vld [vmem:[%s3 + $0x6d0] sm:$0xff]
        %v2168 = vld [vmem:[%s3 + $0x6d8] sm:$0xff]
        %v2169 = vld [vmem:[%s3 + $0x6e0] sm:$0xff]
        %v2170 = vld [vmem:[%s3 + $0x6e8] sm:$0xff]
        %v2171 = vld [vmem:[%s3 + $0x6f0] sm:$0xff]
        %v2172 = vld [vmem:[%s3 + $0x6f8] sm:$0xff]
        %v2173 = vld [vmem:[%s3 + $0x700] sm:$0xff]
        %v2174 = vld [vmem:[%s3 + $0x708] sm:$0xff]
        %v2175 = vld [vmem:[%s3 + $0x710] sm:$0xff]
        %v2176 = vld [vmem:[%s3 + $0x718] sm:$0xff]
        %v2177 = vld [vmem:[%s3 + $0x720] sm:$0xff]
        %v2178 = vld [vmem:[%s3 + $0x728] sm:$0xff]
        %v2179 = vld [vmem:[%s3 + $0x730] sm:$0xff]
        %v2180 = vld [vmem:[%s3 + $0x738] sm:$0xff]
        %v2181 = vld [vmem:[%s3 + $0x740] sm:$0xff]
        %v2182 = vld [vmem:[%s3 + $0x748] sm:$0xff]
        %v2183 = vld [vmem:[%s3 + $0x750] sm:$0xff]
        %v2184 = vld [vmem:[%s3 + $0x758] sm:$0xff]
        %v2185 = vld [vmem:[%s3 + $0x760] sm:$0xff]
        %v2186 = vld [vmem:[%s3 + $0x768] sm:$0xff]
        %v2187 = vld [vmem:[%s3 + $0x770] sm:$0xff]
        %v2188 = vld [vmem:[%s3 + $0x778] sm:$0xff]
        %v2189 = vld [vmem:[%s3 + $0x780] sm:$0xff]
        %v2190 = vld [vmem:[%s3 + $0x788] sm:$0xff]
        %v2191 = vld [vmem:[%s3 + $0x790] sm:$0xff]
        %v2192 = vld [vmem:[%s3 + $0x798] sm:$0xff]
        %v2193 = vld [vmem:[%s3 + $0x7a0] sm:$0xff]
        %v2194 = vld [vmem:[%s3 + $0x7a8] sm:$0xff]
        %v2195 = vld [vmem:[%s3 + $0x7b0] sm:$0xff]
        %v2196 = vld [vmem:[%s3 + $0x7b8] sm:$0xff]
        %v2197 = vld [vmem:[%s3 + $0x7c0] sm:$0xff]
        %v2198 = vld [vmem:[%s3 + $0x7c8] sm:$0xff]
        %v2199 = vld [vmem:[%s3 + $0x7d0] sm:$0xff]
        %v2200 = vld [vmem:[%s3 + $0x7d8] sm:$0xff]
        %v2201 = vld [vmem:[%s3 + $0x7e0] sm:$0xff]
        %v2202 = vld [vmem:[%s3 + $0x7e8] sm:$0xff]
        %v2203 = vld [vmem:[%s3 + $0x7f0] sm:$0xff]
        %v2204 = vld [vmem:[%s3 + $0x7f8] sm:$0xff]
        %v2205 = vld [vmem:[%s3 + $0x800] sm:$0xff]
        %v2206 = vld [vmem:[%s3 + $0x808] sm:$0xff]
        %v2207 = vld [vmem:[%s3 + $0x810] sm:$0xff]
        %v2208 = vld [vmem:[%s3 + $0x818] sm:$0xff]
        %v2209 = vld [vmem:[%s3 + $0x820] sm:$0xff]
        %v2210 = vld [vmem:[%s3 + $0x828] sm:$0xff]
        %v2211 = vld [vmem:[%s3 + $0x830] sm:$0xff]
        %v2212 = vld [vmem:[%s3 + $0x838] sm:$0xff]
        %v2213 = vld [vmem:[%s3 + $0x840] sm:$0xff]
        %v2214 = vld [vmem:[%s3 + $0x848] sm:$0xff]
        %v2215 = vld [vmem:[%s3 + $0x850] sm:$0xff]
        %v2216 = vld [vmem:[%s3 + $0x858] sm:$0xff]
        %v2217 = vld [vmem:[%s3 + $0x860] sm:$0xff]
        %v2218 = vld [vmem:[%s3 + $0x868] sm:$0xff]
        %v2219 = vld [vmem:[%s3 + $0x870] sm:$0xff]
        %v2220 = vld [vmem:[%s3 + $0x878] sm:$0xff]
        %v2221 = vld [vmem:[%s3 + $0x880] sm:$0xff]
        %v2222 = vld [vmem:[%s3 + $0x888] sm:$0xff]
        %v2223 = vld [vmem:[%s3 + $0x890] sm:$0xff]
        %v2224 = vld [vmem:[%s3 + $0x898] sm:$0xff]
        %v2225 = vld [vmem:[%s3 + $0x8a0] sm:$0xff]
        %v2226 = vld [vmem:[%s3 + $0x8a8] sm:$0xff]
        %v2227 = vld [vmem:[%s3 + $0x8b0] sm:$0xff]
        %v2228 = vld [vmem:[%s3 + $0x8b8] sm:$0xff]
        %v2229 = vld [vmem:[%s3 + $0x8c0] sm:$0xff]
        %v2230 = vld [vmem:[%s3 + $0x8c8] sm:$0xff]
        %v2231 = vld [vmem:[%s3 + $0x8d0] sm:$0xff]
        %v2232 = vld [vmem:[%s3 + $0x8d8] sm:$0xff]
        %v2233 = vld [vmem:[%s3 + $0x8e0] sm:$0xff]
        %v2234 = vld [vmem:[%s3 + $0x8e8] sm:$0xff]
        %v2235 = vld [vmem:[%s3 + $0x8f0] sm:$0xff]
        %v2236 = vld [vmem:[%s3 + $0x8f8] sm:$0xff]
        %v2237 = vld [vmem:[%s3 + $0x900] sm:$0xff]
        %v2238 = vld [vmem:[%s3 + $0x908] sm:$0xff]
        %v2239 = vld [vmem:[%s3 + $0x910] sm:$0xff]
        %v2240 = vld [vmem:[%s3 + $0x918] sm:$0xff]
        %v2241 = vld [vmem:[%s3 + $0x920] sm:$0xff]
        %v2242 = vld [vmem:[%s3 + $0x928] sm:$0xff]
        %v2243 = vld [vmem:[%s3 + $0x930] sm:$0xff]
        %v2244 = vld [vmem:[%s3 + $0x938] sm:$0xff]
        %v2245 = vld [vmem:[%s3 + $0x940] sm:$0xff]
        %v2246 = vld [vmem:[%s3 + $0x948] sm:$0xff]
        %v2247 = vld [vmem:[%s3 + $0x950] sm:$0xff]
        %v2248 = vld [vmem:[%s3 + $0x958] sm:$0xff]
        %v2249 = vld [vmem:[%s3 + $0x960] sm:$0xff]
        %v2250 = vld [vmem:[%s3 + $0x968] sm:$0xff]
        %v2251 = vld [vmem:[%s3 + $0x970] sm:$0xff]
        %v2252 = vld [vmem:[%s3 + $0x978] sm:$0xff]
        %v2253 = vld [vmem:[%s3 + $0x980] sm:$0xff]
        %v2254 = vld [vmem:[%s3 + $0x988] sm:$0xff]
        %v2255 = vld [vmem:[%s3 + $0x990] sm:$0xff]
        %v2256 = vld [vmem:[%s3 + $0x998] sm:$0xff]
        %v2257 = vld [vmem:[%s3 + $0x9a0] sm:$0xff]
        %v2258 = vld [vmem:[%s3 + $0x9a8] sm:$0xff]
        %v2259 = vld [vmem:[%s3 + $0x9b0] sm:$0xff]
        %v2260 = vld [vmem:[%s3 + $0x9b8] sm:$0xff]
        %v2261 = vld [vmem:[%s3 + $0x9c0] sm:$0xff]
        %v2262 = vld [vmem:[%s3 + $0x9c8] sm:$0xff]
        %v2263 = vld [vmem:[%s3 + $0x9d0] sm:$0xff]
        %v2264 = vld [vmem:[%s3 + $0x9d8] sm:$0xff]
        %v2265 = vld [vmem:[%s3 + $0x9e0] sm:$0xff]
        %v2266 = vld [vmem:[%s3 + $0x9e8] sm:$0xff]
        %v2267 = vld [vmem:[%s3 + $0x9f0] sm:$0xff]
        %v2268 = vld [vmem:[%s3 + $0x9f8] sm:$0xff]
        %v2269 = vld [vmem:[%s3 + $0xa00] sm:$0xff]
        %v2270 = vld [vmem:[%s3 + $0xa08] sm:$0xff]
        %v2271 = vld [vmem:[%s3 + $0xa10] sm:$0xff]
        %v2272 = vld [vmem:[%s3 + $0xa18] sm:$0xff]
        %v2273 = vld [vmem:[%s3 + $0xa20] sm:$0xff]
        %v2274 = vld [vmem:[%s3 + $0xa28] sm:$0xff]
        %v2275 = vld [vmem:[%s3 + $0xa30] sm:$0xff]
        %v2276 = vld [vmem:[%s3 + $0xa38] sm:$0xff]
        %v2277 = vld [vmem:[%s3 + $0xa40] sm:$0xff]
        %v2278 = vld [vmem:[%s3 + $0xa48] sm:$0xff]
        %v2279 = vld [vmem:[%s3 + $0xa50] sm:$0xff]
        %v2280 = vld [vmem:[%s3 + $0xa58] sm:$0xff]
        %v2281 = vld [vmem:[%s3 + $0xa60] sm:$0xff]
        %v2282 = vld [vmem:[%s3 + $0xa68] sm:$0xff]
        %v2283 = vld [vmem:[%s3 + $0xa70] sm:$0xff]
        %v2284 = vld [vmem:[%s3 + $0xa78] sm:$0xff]
        %v2285 = vld [vmem:[%s3 + $0xa80] sm:$0xff]
        %v2286 = vld [vmem:[%s3 + $0xa88] sm:$0xff]
        %v2287 = vld [vmem:[%s3 + $0xa90] sm:$0xff]
        %v2288 = vld [vmem:[%s3 + $0xa98] sm:$0xff]
        %v2289 = vld [vmem:[%s3 + $0xaa0] sm:$0xff]
        %v2290 = vld [vmem:[%s3 + $0xaa8] sm:$0xff]
        %v2291 = vld [vmem:[%s3 + $0xab0] sm:$0xff]
        %v2292 = vld [vmem:[%s3 + $0xab8] sm:$0xff]
        %v2293 = vld [vmem:[%s3 + $0xac0] sm:$0xff]
        %v2294 = vld [vmem:[%s3 + $0xac8] sm:$0xff]
        %v2295 = vld [vmem:[%s3 + $0xad0] sm:$0xff]
        %v2296 = vld [vmem:[%s3 + $0xad8] sm:$0xff]
        %v2297 = vld [vmem:[%s3 + $0xae0] sm:$0xff]
        %v2298 = vld [vmem:[%s3 + $0xae8] sm:$0xff]
        %v2299 = vld [vmem:[%s3 + $0xaf0] sm:$0xff]
        %v2300 = vld [vmem:[%s3 + $0xaf8] sm:$0xff]
        %v2301 = vld [vmem:[%s3 + $0xb00] sm:$0xff]
        %v2302 = vld [vmem:[%s3 + $0xb08] sm:$0xff]
        %v2303 = vld [vmem:[%s3 + $0xb10] sm:$0xff]
        %v2304 = vld [vmem:[%s3 + $0xb18] sm:$0xff]
        %v2305 = vld [vmem:[%s3 + $0xb20] sm:$0xff]
        %v2306 = vld [vmem:[%s3 + $0xb28] sm:$0xff]
        %v2307 = vld [vmem:[%s3 + $0xb30] sm:$0xff]
        %v2308 = vld [vmem:[%s3 + $0xb38] sm:$0xff]
        %v2309 = vld [vmem:[%s3 + $0xb40] sm:$0xff]
        %v2310 = vld [vmem:[%s3 + $0xb48] sm:$0xff]
        %v2311 = vld [vmem:[%s3 + $0xb50] sm:$0xff]
        %v2312 = vld [vmem:[%s3 + $0xb58] sm:$0xff]
        %v2313 = vld [vmem:[%s3 + $0xb60] sm:$0xff]
        %v2314 = vld [vmem:[%s3 + $0xb68] sm:$0xff]
        %v2315 = vld [vmem:[%s3 + $0xb70] sm:$0xff]
        %v2316 = vld [vmem:[%s3 + $0xb78] sm:$0xff]
        %v2317 = vld [vmem:[%s3 + $0xb80] sm:$0xff]
        %v2318 = vld [vmem:[%s3 + $0xb88] sm:$0xff]
        %v2319 = vld [vmem:[%s3 + $0xb90] sm:$0xff]
        %v2320 = vld [vmem:[%s3 + $0xb98] sm:$0xff]
        %v2321 = vld [vmem:[%s3 + $0xba0] sm:$0xff]
        %v2322 = vld [vmem:[%s3 + $0xba8] sm:$0xff]
        %v2323 = vld [vmem:[%s3 + $0xbb0] sm:$0xff]
        %v2324 = vld [vmem:[%s3 + $0xbb8] sm:$0xff]
        %v2325 = vld [vmem:[%s3 + $0xbc0] sm:$0xff]
        %v2326 = vld [vmem:[%s3 + $0xbc8] sm:$0xff]
        %v2327 = vld [vmem:[%s3 + $0xbd0] sm:$0xff]
        %v2328 = vld [vmem:[%s3 + $0xbd8] sm:$0xff]
        %v2329 = vld [vmem:[%s3 + $0xbe0] sm:$0xff]
        %v2330 = vld [vmem:[%s3 + $0xbe8] sm:$0xff]
        %v2331 = vld [vmem:[%s3 + $0xbf0] sm:$0xff]
        %v2332 = vld [vmem:[%s3 + $0xbf8] sm:$0xff]
        %v2333 = vld [vmem:[%s3 + $0xc00] sm:$0xff]
        %v2334 = vld [vmem:[%s3 + $0xc08] sm:$0xff]
        %v2335 = vld [vmem:[%s3 + $0xc10] sm:$0xff]
        %v2336 = vld [vmem:[%s3 + $0xc18] sm:$0xff]
        %v2337 = vld [vmem:[%s3 + $0xc20] sm:$0xff]
        %v2338 = vld [vmem:[%s3 + $0xc28] sm:$0xff]
        %v2339 = vld [vmem:[%s3 + $0xc30] sm:$0xff]
        %v2340 = vld [vmem:[%s3 + $0xc38] sm:$0xff]
        %v2341 = vld [vmem:[%s3 + $0xc40] sm:$0xff]
        %v2342 = vld [vmem:[%s3 + $0xc48] sm:$0xff]
        %v2343 = vld [vmem:[%s3 + $0xc50] sm:$0xff]
        %v2344 = vld [vmem:[%s3 + $0xc58] sm:$0xff]
        %v2345 = vld [vmem:[%s3 + $0xc60] sm:$0xff]
        %v2346 = vld [vmem:[%s3 + $0xc68] sm:$0xff]
        %v2347 = vld [vmem:[%s3 + $0xc70] sm:$0xff]
        %v2348 = vld [vmem:[%s3 + $0xc78] sm:$0xff]
        %v2349 = vld [vmem:[%s3 + $0xc80] sm:$0xff]
        %v2350 = vld [vmem:[%s3 + $0xc88] sm:$0xff]
        %v2351 = vld [vmem:[%s3 + $0xc90] sm:$0xff]
        %v2352 = vld [vmem:[%s3 + $0xc98] sm:$0xff]
        %v2353 = vld [vmem:[%s3 + $0xca0] sm:$0xff]
        %v2354 = vld [vmem:[%s3 + $0xca8] sm:$0xff]
        %v2355 = vld [vmem:[%s3 + $0xcb0] sm:$0xff]
        %v2356 = vld [vmem:[%s3 + $0xcb8] sm:$0xff]
        %v2357 = vld [vmem:[%s3 + $0xcc0] sm:$0xff]
        %v2358 = vld [vmem:[%s3 + $0xcc8] sm:$0xff]
        %v2359 = vld [vmem:[%s3 + $0xcd0] sm:$0xff]
        %v2360 = vld [vmem:[%s3 + $0xcd8] sm:$0xff]
        %v2361 = vld [vmem:[%s3 + $0xce0] sm:$0xff]
        %v2362 = vld [vmem:[%s3 + $0xce8] sm:$0xff]
        %v2363 = vld [vmem:[%s3 + $0xcf0] sm:$0xff]
        %v2364 = vld [vmem:[%s3 + $0xcf8] sm:$0xff]
        %v2365 = vld [vmem:[%s3 + $0xd00] sm:$0xff]
        %v2366 = vld [vmem:[%s3 + $0xd08] sm:$0xff]
        %v2367 = vld [vmem:[%s3 + $0xd10] sm:$0xff]
        %v2368 = vld [vmem:[%s3 + $0xd18] sm:$0xff]
        %v2369 = vld [vmem:[%s3 + $0xd20] sm:$0xff]
        %v2370 = vld [vmem:[%s3 + $0xd28] sm:$0xff]
        %v2371 = vld [vmem:[%s3 + $0xd30] sm:$0xff]
        %v2372 = vld [vmem:[%s3 + $0xd38] sm:$0xff]
        %v2373 = vld [vmem:[%s3 + $0xd40] sm:$0xff]
        %v2374 = vld [vmem:[%s3 + $0xd48] sm:$0xff]
        %v2375 = vld [vmem:[%s3 + $0xd50] sm:$0xff]
        %v2376 = vld [vmem:[%s3 + $0xd58] sm:$0xff]
        %v2377 = vld [vmem:[%s3 + $0xd60] sm:$0xff]
        %v2378 = vld [vmem:[%s3 + $0xd68] sm:$0xff]
        %v2379 = vld [vmem:[%s3 + $0xd70] sm:$0xff]
        %v2380 = vld [vmem:[%s3 + $0xd78] sm:$0xff]
        %v2381 = vld [vmem:[%s3 + $0xd80] sm:$0xff]
        %v2382 = vld [vmem:[%s3 + $0xd88] sm:$0xff]
        %v2383 = vld [vmem:[%s3 + $0xd90] sm:$0xff]
        %v2384 = vld [vmem:[%s3 + $0xd98] sm:$0xff]
        %v2385 = vld [vmem:[%s3 + $0xda0] sm:$0xff]
        %v2386 = vld [vmem:[%s3 + $0xda8] sm:$0xff]
        %v2387 = vld [vmem:[%s3 + $0xdb0] sm:$0xff]
        %v2388 = vld [vmem:[%s3 + $0xdb8] sm:$0xff]
        %v2389 = vld [vmem:[%s3 + $0xdc0] sm:$0xff]
        %v2390 = vld [vmem:[%s3 + $0xdc8] sm:$0xff]
        %v2391 = vld [vmem:[%s3 + $0xdd0] sm:$0xff]
        %v2392 = vld [vmem:[%s3 + $0xdd8] sm:$0xff]
        %v2393 = vld [vmem:[%s3 + $0xde0] sm:$0xff]
        %v2394 = vld [vmem:[%s3 + $0xde8] sm:$0xff]
        %v2395 = vld [vmem:[%s3 + $0xdf0] sm:$0xff]
        %v2396 = vld [vmem:[%s3 + $0xdf8] sm:$0xff]
        %v2397 = vld [vmem:[%s3 + $0xe00] sm:$0xff]
        %v2398 = vld [vmem:[%s3 + $0xe08] sm:$0xff]
        %v2399 = vld [vmem:[%s3 + $0xe10] sm:$0xff]
        %v2400 = vld [vmem:[%s3 + $0xe18] sm:$0xff]
        %v2401 = vld [vmem:[%s3 + $0xe20] sm:$0xff]
        %v2402 = vld [vmem:[%s3 + $0xe28] sm:$0xff]
        %v2403 = vld [vmem:[%s3 + $0xe30] sm:$0xff]
        %v2404 = vld [vmem:[%s3 + $0xe38] sm:$0xff]
        %v2405 = vld [vmem:[%s3 + $0xe40] sm:$0xff]
        %v2406 = vld [vmem:[%s3 + $0xe48] sm:$0xff]
        %v2407 = vld [vmem:[%s3 + $0xe50] sm:$0xff]
        %v2408 = vld [vmem:[%s3 + $0xe58] sm:$0xff]
        %v2409 = vld [vmem:[%s3 + $0xe60] sm:$0xff]
        %v2410 = vld [vmem:[%s3 + $0xe68] sm:$0xff]
        %v2411 = vld [vmem:[%s3 + $0xe70] sm:$0xff]
        %v2412 = vld [vmem:[%s3 + $0xe78] sm:$0xff]
        %v2413 = vld [vmem:[%s3 + $0xe80] sm:$0xff]
        %v2414 = vld [vmem:[%s3 + $0xe88] sm:$0xff]
        %v2415 = vld [vmem:[%s3 + $0xe90] sm:$0xff]
        %v2416 = vld [vmem:[%s3 + $0xe98] sm:$0xff]
        %v2417 = vld [vmem:[%s3 + $0xea0] sm:$0xff]
        %v2418 = vld [vmem:[%s3 + $0xea8] sm:$0xff]
        %v2419 = vld [vmem:[%s3 + $0xeb0] sm:$0xff]
        %v2420 = vld [vmem:[%s3 + $0xeb8] sm:$0xff]
        %v2421 = vld [vmem:[%s3 + $0xec0] sm:$0xff]
        %v2422 = vld [vmem:[%s3 + $0xec8] sm:$0xff]
        %v2423 = vld [vmem:[%s3 + $0xed0] sm:$0xff]
        %v2424 = vld [vmem:[%s3 + $0xed8] sm:$0xff]
        %v2425 = vld [vmem:[%s3 + $0xee0] sm:$0xff]
        %v2426 = vld [vmem:[%s3 + $0xee8] sm:$0xff]
        %v2427 = vld [vmem:[%s3 + $0xef0] sm:$0xff]
        %v2428 = vld [vmem:[%s3 + $0xef8] sm:$0xff]
        %v2429 = vld [vmem:[%s3 + $0xf00] sm:$0xff]
        %v2430 = vld [vmem:[%s3 + $0xf08] sm:$0xff]
        %v2431 = vld [vmem:[%s3 + $0xf10] sm:$0xff]
        %v2432 = vld [vmem:[%s3 + $0xf18] sm:$0xff]
        %v2433 = vld [vmem:[%s3 + $0xf20] sm:$0xff]
        %v2434 = vld [vmem:[%s3 + $0xf28] sm:$0xff]
        %v2435 = vld [vmem:[%s3 + $0xf30] sm:$0xff]
        %v2436 = vld [vmem:[%s3 + $0xf38] sm:$0xff]
        %v2437 = vld [vmem:[%s3 + $0xf40] sm:$0xff]
        %v2438 = vld [vmem:[%s3 + $0xf48] sm:$0xff]
        %v2439 = vld [vmem:[%s3 + $0xf50] sm:$0xff]
        %v2440 = vld [vmem:[%s3 + $0xf58] sm:$0xff]
        %v2441 = vld [vmem:[%s3 + $0xf60] sm:$0xff]
        %v2442 = vld [vmem:[%s3 + $0xf68] sm:$0xff]
        %v2443 = vld [vmem:[%s3 + $0xf70] sm:$0xff]
        %v2444 = vld [vmem:[%s3 + $0xf78] sm:$0xff]
        %v2445 = vld [vmem:[%s3 + $0xf80] sm:$0xff]
        %v2446 = vld [vmem:[%s3 + $0xf88] sm:$0xff]
        %v2447 = vld [vmem:[%s3 + $0xf90] sm:$0xff]
        %v2448 = vld [vmem:[%s3 + $0xf98] sm:$0xff]
        %v2449 = vld [vmem:[%s3 + $0xfa0] sm:$0xff]
        %v2450 = vld [vmem:[%s3 + $0xfa8] sm:$0xff]
        %v2451 = vld [vmem:[%s3 + $0xfb0] sm:$0xff]
        %v2452 = vld [vmem:[%s3 + $0xfb8] sm:$0xff]
        %v2453 = vld [vmem:[%s3 + $0xfc0] sm:$0xff]
        %v2454 = vld [vmem:[%s3 + $0xfc8] sm:$0xff]
        %v2455 = vld [vmem:[%s3 + $0xfd0] sm:$0xff]
        %v2456 = vld [vmem:[%s3 + $0xfd8] sm:$0xff]
        %v2457 = vld [vmem:[%s3 + $0xfe0] sm:$0xff]
        %v2458 = vld [vmem:[%s3 + $0xfe8] sm:$0xff]
        %v2459 = vld [vmem:[%s3 + $0xff0] sm:$0xff]
        %v2460 = vld [vmem:[%s3 + $0xff8] sm:$0xff]
        %v2461 = vld [vmem:[%s3 + $0x1000] sm:$0xff]
        %v2462 = vld [vmem:[%s3 + $0x1008] sm:$0xff]
        %v2463 = vld [vmem:[%s3 + $0x1010] sm:$0xff]
        %v2464 = vld [vmem:[%s3 + $0x1018] sm:$0xff]
        %v2465 = vld [vmem:[%s3 + $0x1020] sm:$0xff]
        %v2466 = vld [vmem:[%s3 + $0x1028] sm:$0xff]
        %v2467 = vld [vmem:[%s3 + $0x1030] sm:$0xff]
        %v2468 = vld [vmem:[%s3 + $0x1038] sm:$0xff]
        %v2469 = vld [vmem:[%s3 + $0x1040] sm:$0xff]
        %v2470 = vld [vmem:[%s3 + $0x1048] sm:$0xff]
        %v2471 = vld [vmem:[%s3 + $0x1050] sm:$0xff]
        %v2472 = vld [vmem:[%s3 + $0x1058] sm:$0xff]
        %v2473 = vld [vmem:[%s3 + $0x1060] sm:$0xff]
        %v2474 = vld [vmem:[%s3 + $0x1068] sm:$0xff]
        %v2475 = vld [vmem:[%s3 + $0x1070] sm:$0xff]
        %v2476 = vld [vmem:[%s3 + $0x1078] sm:$0xff]
        %v2477 = vld [vmem:[%s3 + $0x1080] sm:$0xff]
        %v2478 = vld [vmem:[%s3 + $0x1088] sm:$0xff]
        %v2479 = vld [vmem:[%s3 + $0x1090] sm:$0xff]
        %v2480 = vld [vmem:[%s3 + $0x1098] sm:$0xff]
        %v2481 = vld [vmem:[%s3 + $0x10a0] sm:$0xff]
        %v2482 = vld [vmem:[%s3 + $0x10a8] sm:$0xff]
        %v2483 = vld [vmem:[%s3 + $0x10b0] sm:$0xff]
        %v2484 = vld [vmem:[%s3 + $0x10b8] sm:$0xff]
        %v2485 = vld [vmem:[%s3 + $0x10c0] sm:$0xff]
        %v2486 = vld [vmem:[%s3 + $0x10c8] sm:$0xff]
        %v2487 = vld [vmem:[%s3 + $0x10d0] sm:$0xff]
        %v2488 = vld [vmem:[%s3 + $0x10d8] sm:$0xff]
        %v2489 = vld [vmem:[%s3 + $0x10e0] sm:$0xff]
        %v2490 = vld [vmem:[%s3 + $0x10e8] sm:$0xff]
        %v2491 = vld [vmem:[%s3 + $0x10f0] sm:$0xff]
        %v2492 = vld [vmem:[%s3 + $0x10f8] sm:$0xff]
        %v2493 = vld [vmem:[%s3 + $0x1100] sm:$0xff]
        %v2494 = vld [vmem:[%s3 + $0x1108] sm:$0xff]
        %v2495 = vld [vmem:[%s3 + $0x1110] sm:$0xff]
        %v2496 = vld [vmem:[%s3 + $0x1118] sm:$0xff]
        %v2497 = vld [vmem:[%s3 + $0x1120] sm:$0xff]
        %v2498 = vld [vmem:[%s3 + $0x1128] sm:$0xff]
        %v2499 = vld [vmem:[%s3 + $0x1130] sm:$0xff]
        %v2500 = vld [vmem:[%s3 + $0x1138] sm:$0xff]
        %v2501 = vld [vmem:[%s3 + $0x1140] sm:$0xff]
        %v2502 = vld [vmem:[%s3 + $0x1148] sm:$0xff]
        %v2503 = vld [vmem:[%s3 + $0x1150] sm:$0xff]
        %v2504 = vld [vmem:[%s3 + $0x1158] sm:$0xff]
        %v2505 = vld [vmem:[%s3 + $0x1160] sm:$0xff]
        %v2506 = vld [vmem:[%s3 + $0x1168] sm:$0xff]
        %v2507 = vld [vmem:[%s3 + $0x1170] sm:$0xff]
        %v2508 = vld [vmem:[%s3 + $0x1178] sm:$0xff]
        %v2509 = vld [vmem:[%s3 + $0x1180] sm:$0xff]
        %v2510 = vld [vmem:[%s3 + $0x1188] sm:$0xff]
        %v2511 = vld [vmem:[%s3 + $0x1190] sm:$0xff]
        %v2512 = vld [vmem:[%s3 + $0x1198] sm:$0xff]
        %v2513 = vld [vmem:[%s3 + $0x11a0] sm:$0xff]
        %v2514 = vld [vmem:[%s3 + $0x11a8] sm:$0xff]
        %v2515 = vld [vmem:[%s3 + $0x11b0] sm:$0xff]
        %v2516 = vld [vmem:[%s3 + $0x11b8] sm:$0xff]
        %v2517 = vld [vmem:[%s3 + $0x11c0] sm:$0xff]
        %v2518 = vld [vmem:[%s3 + $0x11c8] sm:$0xff]
        %v2519 = vld [vmem:[%s3 + $0x11d0] sm:$0xff]
        %v2520 = vld [vmem:[%s3 + $0x11d8] sm:$0xff]
        %v2521 = vld [vmem:[%s3 + $0x11e0] sm:$0xff]
        %v2522 = vld [vmem:[%s3 + $0x11e8] sm:$0xff]
        %v2523 = vld [vmem:[%s3 + $0x11f0] sm:$0xff]
        %v2524 = vld [vmem:[%s3 + $0x11f8] sm:$0xff]
        %v2525 = vld [vmem:[%s3 + $0x1200] sm:$0xff]
        %v2526 = vld [vmem:[%s3 + $0x1208] sm:$0xff]
        %v2527 = vld [vmem:[%s3 + $0x1210] sm:$0xff]
        %v2528 = vld [vmem:[%s3 + $0x1218] sm:$0xff]
        %v2529 = vld [vmem:[%s3 + $0x1220] sm:$0xff]
        %v2530 = vld [vmem:[%s3 + $0x1228] sm:$0xff]
        %v2531 = vld [vmem:[%s3 + $0x1230] sm:$0xff]
        %v2532 = vld [vmem:[%s3 + $0x1238] sm:$0xff]
        %v2533 = vld [vmem:[%s3 + $0x1240] sm:$0xff]
        %v2534 = vld [vmem:[%s3 + $0x1248] sm:$0xff]
        %v2535 = vld [vmem:[%s3 + $0x1250] sm:$0xff]
        %v2536 = vld [vmem:[%s3 + $0x1258] sm:$0xff]
        %v2537 = vld [vmem:[%s3 + $0x1260] sm:$0xff]
        %v2538 = vld [vmem:[%s3 + $0x1268] sm:$0xff]
        %v2539 = vld [vmem:[%s3 + $0x1270] sm:$0xff]
        %v2540 = vld [vmem:[%s3 + $0x1278] sm:$0xff]
        %v2541 = vld [vmem:[%s3 + $0x1280] sm:$0xff]
        %v2542 = vld [vmem:[%s3 + $0x1288] sm:$0xff]
        %v2543 = vld [vmem:[%s3 + $0x1290] sm:$0xff]
        %v2544 = vld [vmem:[%s3 + $0x1298] sm:$0xff]
        %v2545 = vld [vmem:[%s3 + $0x12a0] sm:$0xff]
        %v2546 = vld [vmem:[%s3 + $0x12a8] sm:$0xff]
        %v2547 = vld [vmem:[%s3 + $0x12b0] sm:$0xff]
        %v2548 = vld [vmem:[%s3 + $0x12b8] sm:$0xff]
        %v2549 = vld [vmem:[%s3 + $0x12c0] sm:$0xff]
        %v2550 = vld [vmem:[%s3 + $0x12c8] sm:$0xff]
        %v2551 = vld [vmem:[%s3 + $0x12d0] sm:$0xff]
        %v2552 = vld [vmem:[%s3 + $0x12d8] sm:$0xff]
        %v2553 = vld [vmem:[%s3 + $0x12e0] sm:$0xff]
        %v2554 = vld [vmem:[%s3 + $0x12e8] sm:$0xff]
        %v2555 = vld [vmem:[%s3 + $0x12f0] sm:$0xff]
        %v2556 = vld [vmem:[%s3 + $0x12f8] sm:$0xff]
        %v2557 = vld [vmem:[%s3 + $0x1300] sm:$0xff]
        %v2558 = vld [vmem:[%s3 + $0x1308] sm:$0xff]
        %v2559 = vld [vmem:[%s3 + $0x1310] sm:$0xff]
        %v2560 = vld [vmem:[%s3 + $0x1318] sm:$0xff]
        %v2561 = vld [vmem:[%s3 + $0x1320] sm:$0xff]
        %v2562 = vld [vmem:[%s3 + $0x1328] sm:$0xff]
        %v2563 = vld [vmem:[%s3 + $0x1330] sm:$0xff]
        %v2564 = vld [vmem:[%s3 + $0x1338] sm:$0xff]
        %v2565 = vld [vmem:[%s3 + $0x1340] sm:$0xff]
        %v2566 = vld [vmem:[%s3 + $0x1348] sm:$0xff]
        %v2567 = vld [vmem:[%s3 + $0x1350] sm:$0xff]
        %v2568 = vld [vmem:[%s3 + $0x1358] sm:$0xff]
        %v2569 = vld [vmem:[%s3 + $0x1360] sm:$0xff]
        %v2570 = vld [vmem:[%s3 + $0x1368] sm:$0xff]
        %v2571 = vld [vmem:[%s3 + $0x1370] sm:$0xff]
        %v2572 = vld [vmem:[%s3 + $0x1378] sm:$0xff]
        %v2573 = vld [vmem:[%s3 + $0x1380] sm:$0xff]
        %v2574 = vld [vmem:[%s3 + $0x1388] sm:$0xff]
        %v2575 = vld [vmem:[%s3 + $0x1390] sm:$0xff]
        %v2576 = vld [vmem:[%s3 + $0x1398] sm:$0xff]
        %v2577 = vld [vmem:[%s3 + $0x13a0] sm:$0xff]
        %v2578 = vld [vmem:[%s3 + $0x13a8] sm:$0xff]
        %v2579 = vld [vmem:[%s3 + $0x13b0] sm:$0xff]
        %v2580 = vld [vmem:[%s3 + $0x13b8] sm:$0xff]
        %v2581 = vld [vmem:[%s3 + $0x13c0] sm:$0xff]
        %v2582 = vld [vmem:[%s3 + $0x13c8] sm:$0xff]
        %v2583 = vld [vmem:[%s3 + $0x13d0] sm:$0xff]
        %v2584 = vld [vmem:[%s3 + $0x13d8] sm:$0xff]
        %v2585 = vld [vmem:[%s3 + $0x13e0] sm:$0xff]
        %v2586 = vld [vmem:[%s3 + $0x13e8] sm:$0xff]
        %v2587 = vld [vmem:[%s3 + $0x13f0] sm:$0xff]
        %v2588 = vld [vmem:[%s3 + $0x13f8] sm:$0xff]
        %v2589 = vld [vmem:[%s3 + $0x1400] sm:$0xff]
        %v2590 = vld [vmem:[%s3 + $0x1408] sm:$0xff]
        %v2591 = vld [vmem:[%s3 + $0x1410] sm:$0xff]
        %v2592 = vld [vmem:[%s3 + $0x1418] sm:$0xff]
        %v2593 = vld [vmem:[%s3 + $0x1420] sm:$0xff]
        %v2594 = vld [vmem:[%s3 + $0x1428] sm:$0xff]
        %v2595 = vld [vmem:[%s3 + $0x1430] sm:$0xff]
        %v2596 = vld [vmem:[%s3 + $0x1438] sm:$0xff]
        %v2597 = vld [vmem:[%s3 + $0x1440] sm:$0xff]
        %v2598 = vld [vmem:[%s3 + $0x1448] sm:$0xff]
        %v2599 = vld [vmem:[%s3 + $0x1450] sm:$0xff]
        %v2600 = vld [vmem:[%s3 + $0x1458] sm:$0xff]
        %v2601 = vld [vmem:[%s3 + $0x1460] sm:$0xff]
        %v2602 = vld [vmem:[%s3 + $0x1468] sm:$0xff]
        %v2603 = vld [vmem:[%s3 + $0x1470] sm:$0xff]
        %v2604 = vld [vmem:[%s3 + $0x1478] sm:$0xff]
        %v2605 = vld [vmem:[%s3 + $0x1480] sm:$0xff]
        %v2606 = vld [vmem:[%s3 + $0x1488] sm:$0xff]
        %v2607 = vld [vmem:[%s3 + $0x1490] sm:$0xff]
        %v2608 = vld [vmem:[%s3 + $0x1498] sm:$0xff]
        %v2609 = vld [vmem:[%s3 + $0x14a0] sm:$0xff]
        %v2610 = vld [vmem:[%s3 + $0x14a8] sm:$0xff]
        %v2611 = vld [vmem:[%s3 + $0x14b0] sm:$0xff]
        %v2612 = vld [vmem:[%s3 + $0x14b8] sm:$0xff]
        %v2613 = vld [vmem:[%s3 + $0x14c0] sm:$0xff]
        %v2614 = vld [vmem:[%s3 + $0x14c8] sm:$0xff]
        %v2615 = vld [vmem:[%s3 + $0x14d0] sm:$0xff]
        %v2616 = vld [vmem:[%s3 + $0x14d8] sm:$0xff]
        %v2617 = vld [vmem:[%s3 + $0x14e0] sm:$0xff]
        %v2618 = vld [vmem:[%s3 + $0x14e8] sm:$0xff]
        %v2619 = vld [vmem:[%s3 + $0x14f0] sm:$0xff]
        %v2620 = vld [vmem:[%s3 + $0x14f8] sm:$0xff]
        %v2621 = vld [vmem:[%s3 + $0x1500] sm:$0xff]
        %v2622 = vld [vmem:[%s3 + $0x1508] sm:$0xff]
        %v2623 = vld [vmem:[%s3 + $0x1510] sm:$0xff]
        %v2624 = vld [vmem:[%s3 + $0x1518] sm:$0xff]
        %v2625 = vld [vmem:[%s3 + $0x1520] sm:$0xff]
        %v2626 = vld [vmem:[%s3 + $0x1528] sm:$0xff]
        %v2627 = vld [vmem:[%s3 + $0x1530] sm:$0xff]
        %v2628 = vld [vmem:[%s3 + $0x1538] sm:$0xff]
        %v2629 = vld [vmem:[%s3 + $0x1540] sm:$0xff]
        %v2630 = vld [vmem:[%s3 + $0x1548] sm:$0xff]
        %v2631 = vld [vmem:[%s3 + $0x1550] sm:$0xff]
        %v2632 = vld [vmem:[%s3 + $0x1558] sm:$0xff]
        %v2633 = vld [vmem:[%s3 + $0x1560] sm:$0xff]
        %v2634 = vld [vmem:[%s3 + $0x1568] sm:$0xff]
        %v2635 = vld [vmem:[%s3 + $0x1570] sm:$0xff]
        %v2636 = vld [vmem:[%s3 + $0x1578] sm:$0xff]
        %v2637 = vld [vmem:[%s3 + $0x1580] sm:$0xff]
        %v2638 = vld [vmem:[%s3 + $0x1588] sm:$0xff]
        %v2639 = vld [vmem:[%s3 + $0x1590] sm:$0xff]
        %v2640 = vld [vmem:[%s3 + $0x1598] sm:$0xff]
        %v2641 = vld [vmem:[%s3 + $0x15a0] sm:$0xff]
        %v2642 = vld [vmem:[%s3 + $0x15a8] sm:$0xff]
        %v2643 = vld [vmem:[%s3 + $0x15b0] sm:$0xff]
        %v2644 = vld [vmem:[%s3 + $0x15b8] sm:$0xff]
        %v2645 = vld [vmem:[%s3 + $0x15c0] sm:$0xff]
        %v2646 = vld [vmem:[%s3 + $0x15c8] sm:$0xff]
        %v2647 = vld [vmem:[%s3 + $0x15d0] sm:$0xff]
        %v2648 = vld [vmem:[%s3 + $0x15d8] sm:$0xff]
        %v2649 = vld [vmem:[%s3 + $0x15e0] sm:$0xff]
        %v2650 = vld [vmem:[%s3 + $0x15e8] sm:$0xff]
        %v2651 = vld [vmem:[%s3 + $0x15f0] sm:$0xff]
        %v2652 = vld [vmem:[%s3 + $0x15f8] sm:$0xff]
        %v2653 = vld [vmem:[%s3 + $0x1600] sm:$0xff]
        %v2654 = vld [vmem:[%s3 + $0x1608] sm:$0xff]
        %v2655 = vld [vmem:[%s3 + $0x1610] sm:$0xff]
        %v2656 = vld [vmem:[%s3 + $0x1618] sm:$0xff]
        %v2657 = vld [vmem:[%s3 + $0x1620] sm:$0xff]
        %v2658 = vld [vmem:[%s3 + $0x1628] sm:$0xff]
        %v2659 = vld [vmem:[%s3 + $0x1630] sm:$0xff]
        %v2660 = vld [vmem:[%s3 + $0x1638] sm:$0xff]
        %v2661 = vld [vmem:[%s3 + $0x1640] sm:$0xff]
        %v2662 = vld [vmem:[%s3 + $0x1648] sm:$0xff]
        %v2663 = vld [vmem:[%s3 + $0x1650] sm:$0xff]
        %v2664 = vld [vmem:[%s3 + $0x1658] sm:$0xff]
        %v2665 = vld [vmem:[%s3 + $0x1660] sm:$0xff]
        %v2666 = vld [vmem:[%s3 + $0x1668] sm:$0xff]
        %v2667 = vld [vmem:[%s3 + $0x1670] sm:$0xff]
        %v2668 = vld [vmem:[%s3 + $0x1678] sm:$0xff]
        %v2669 = vld [vmem:[%s3 + $0x1680] sm:$0xff]
        %v2670 = vld [vmem:[%s3 + $0x1688] sm:$0xff]
        %v2671 = vld [vmem:[%s3 + $0x1690] sm:$0xff]
        %v2672 = vld [vmem:[%s3 + $0x1698] sm:$0xff]
        %v2673 = vld [vmem:[%s3 + $0x16a0] sm:$0xff]
        %v2674 = vld [vmem:[%s3 + $0x16a8] sm:$0xff]
        %v2675 = vld [vmem:[%s3 + $0x16b0] sm:$0xff]
        %v2676 = vld [vmem:[%s3 + $0x16b8] sm:$0xff]
        %v2677 = vld [vmem:[%s3 + $0x16c0] sm:$0xff]
        %v2678 = vld [vmem:[%s3 + $0x16c8] sm:$0xff]
        %v2679 = vld [vmem:[%s3 + $0x16d0] sm:$0xff]
        %v2680 = vld [vmem:[%s3 + $0x16d8] sm:$0xff]
        %v2681 = vld [vmem:[%s3 + $0x16e0] sm:$0xff]
        %v2682 = vld [vmem:[%s3 + $0x16e8] sm:$0xff]
        %v2683 = vld [vmem:[%s3 + $0x16f0] sm:$0xff]
        %v2684 = vld [vmem:[%s3 + $0x16f8] sm:$0xff]
        %v2685 = vld [vmem:[%s3 + $0x1700] sm:$0xff]
        %v2686 = vld [vmem:[%s3 + $0x1708] sm:$0xff]
        %v2687 = vld [vmem:[%s3 + $0x1710] sm:$0xff]
        %v2688 = vld [vmem:[%s3 + $0x1718] sm:$0xff]
        %v2689 = vld [vmem:[%s3 + $0x1720] sm:$0xff]
        %v2690 = vld [vmem:[%s3 + $0x1728] sm:$0xff]
        %v2691 = vld [vmem:[%s3 + $0x1730] sm:$0xff]
        %v2692 = vld [vmem:[%s3 + $0x1738] sm:$0xff]
        %v2693 = vld [vmem:[%s3 + $0x1740] sm:$0xff]
        %v2694 = vld [vmem:[%s3 + $0x1748] sm:$0xff]
        %v2695 = vld [vmem:[%s3 + $0x1750] sm:$0xff]
        %v2696 = vld [vmem:[%s3 + $0x1758] sm:$0xff]
        %v2697 = vld [vmem:[%s3 + $0x1760] sm:$0xff]
        %v2698 = vld [vmem:[%s3 + $0x1768] sm:$0xff]
        %v2699 = vld [vmem:[%s3 + $0x1770] sm:$0xff]
        %v2700 = vld [vmem:[%s3 + $0x1778] sm:$0xff]
        %v2701 = vld [vmem:[%s3 + $0x1780] sm:$0xff]
        %v2702 = vld [vmem:[%s3 + $0x1788] sm:$0xff]
        %v2703 = vld [vmem:[%s3 + $0x1790] sm:$0xff]
        %v2704 = vld [vmem:[%s3 + $0x1798] sm:$0xff]
        %v2705 = vld [vmem:[%s3 + $0x17a0] sm:$0xff]
        %v2706 = vld [vmem:[%s3 + $0x17a8] sm:$0xff]
        %v2707 = vld [vmem:[%s3 + $0x17b0] sm:$0xff]
        %v2708 = vld [vmem:[%s3 + $0x17b8] sm:$0xff]
        %v2709 = vld [vmem:[%s3 + $0x17c0] sm:$0xff]
        %v2710 = vld [vmem:[%s3 + $0x17c8] sm:$0xff]
        %v2711 = vld [vmem:[%s3 + $0x17d0] sm:$0xff]
        %v2712 = vld [vmem:[%s3 + $0x17d8] sm:$0xff]
        %v2713 = vld [vmem:[%s3 + $0x17e0] sm:$0xff]
        %v2714 = vld [vmem:[%s3 + $0x17e8] sm:$0xff]
        %v2715 = vld [vmem:[%s3 + $0x17f0] sm:$0xff]
        %v2716 = vld [vmem:[%s3 + $0x17f8] sm:$0xff]
        %v2717 = vld [vmem:[%s3 + $0x1800] sm:$0xff]
        %v2718 = vld [vmem:[%s3 + $0x1808] sm:$0xff]
        %v2719 = vld [vmem:[%s3 + $0x1810] sm:$0xff]
        %v2720 = vld [vmem:[%s3 + $0x1818] sm:$0xff]
        %v2721 = vld [vmem:[%s3 + $0x1820] sm:$0xff]
        %v2722 = vld [vmem:[%s3 + $0x1828] sm:$0xff]
        %v2723 = vld [vmem:[%s3 + $0x1830] sm:$0xff]
        %v2724 = vld [vmem:[%s3 + $0x1838] sm:$0xff]
        %v2725 = vld [vmem:[%s3 + $0x1840] sm:$0xff]
        %v2726 = vld [vmem:[%s3 + $0x1848] sm:$0xff]
        %v2727 = vld [vmem:[%s3 + $0x1850] sm:$0xff]
        %v2728 = vld [vmem:[%s3 + $0x1858] sm:$0xff]
        %v2729 = vld [vmem:[%s3 + $0x1860] sm:$0xff]
        %v2730 = vld [vmem:[%s3 + $0x1868] sm:$0xff]
        %v2731 = vld [vmem:[%s3 + $0x1870] sm:$0xff]
        %v2732 = vld [vmem:[%s3 + $0x1878] sm:$0xff]
        %v2733 = vld [vmem:[%s3 + $0x1880] sm:$0xff]
        %v2734 = vld [vmem:[%s3 + $0x1888] sm:$0xff]
        %v2735 = vld [vmem:[%s3 + $0x1890] sm:$0xff]
        %v2736 = vld [vmem:[%s3 + $0x1898] sm:$0xff]
        %v2737 = vld [vmem:[%s3 + $0x18a0] sm:$0xff]
        %v2738 = vld [vmem:[%s3 + $0x18a8] sm:$0xff]
        %v2739 = vld [vmem:[%s3 + $0x18b0] sm:$0xff]
        %v2740 = vld [vmem:[%s3 + $0x18b8] sm:$0xff]
        %v2741 = vld [vmem:[%s3 + $0x18c0] sm:$0xff]
        %v2742 = vld [vmem:[%s3 + $0x18c8] sm:$0xff]
        %v2743 = vld [vmem:[%s3 + $0x18d0] sm:$0xff]
        %v2744 = vld [vmem:[%s3 + $0x18d8] sm:$0xff]
        %v2745 = vld [vmem:[%s3 + $0x18e0] sm:$0xff]
        %v2746 = vld [vmem:[%s3 + $0x18e8] sm:$0xff]
        %v2747 = vld [vmem:[%s3 + $0x18f0] sm:$0xff]
        %v2748 = vld [vmem:[%s3 + $0x18f8] sm:$0xff]
        %v2749 = vld [vmem:[%s3 + $0x1900] sm:$0xff]
        %v2750 = vld [vmem:[%s3 + $0x1908] sm:$0xff]
        %v2751 = vld [vmem:[%s3 + $0x1910] sm:$0xff]
        %v2752 = vld [vmem:[%s3 + $0x1918] sm:$0xff]
        %v2753 = vld [vmem:[%s3 + $0x1920] sm:$0xff]
        %v2754 = vld [vmem:[%s3 + $0x1928] sm:$0xff]
        %v2755 = vld [vmem:[%s3 + $0x1930] sm:$0xff]
        %v2756 = vld [vmem:[%s3 + $0x1938] sm:$0xff]
        %v2757 = vld [vmem:[%s3 + $0x1940] sm:$0xff]
        %v2758 = vld [vmem:[%s3 + $0x1948] sm:$0xff]
        %v2759 = vld [vmem:[%s3 + $0x1950] sm:$0xff]
        %v2760 = vld [vmem:[%s3 + $0x1958] sm:$0xff]
        %v2761 = vld [vmem:[%s3 + $0x1960] sm:$0xff]
        %v2762 = vld [vmem:[%s3 + $0x1968] sm:$0xff]
        %v2763 = vld [vmem:[%s3 + $0x1970] sm:$0xff]
        %v2764 = vld [vmem:[%s3 + $0x1978] sm:$0xff]
        %v2765 = vld [vmem:[%s3 + $0x1980] sm:$0xff]
        %v2766 = vld [vmem:[%s3 + $0x1988] sm:$0xff]
        %v2767 = vld [vmem:[%s3 + $0x1990] sm:$0xff]
        %v2768 = vld [vmem:[%s3 + $0x1998] sm:$0xff]
        %v2769 = vld [vmem:[%s3 + $0x19a0] sm:$0xff]
        %v2770 = vld [vmem:[%s3 + $0x19a8] sm:$0xff]
        %v2771 = vld [vmem:[%s3 + $0x19b0] sm:$0xff]
        %v2772 = vld [vmem:[%s3 + $0x19b8] sm:$0xff]
        %v2773 = vld [vmem:[%s3 + $0x19c0] sm:$0xff]
        %v2774 = vld [vmem:[%s3 + $0x19c8] sm:$0xff]
        %v2775 = vld [vmem:[%s3 + $0x19d0] sm:$0xff]
        %v2776 = vld [vmem:[%s3 + $0x19d8] sm:$0xff]
        %v2777 = vld [vmem:[%s3 + $0x19e0] sm:$0xff]
        %v2778 = vld [vmem:[%s3 + $0x19e8] sm:$0xff]
        %v2779 = vld [vmem:[%s3 + $0x19f0] sm:$0xff]
        %v2780 = vld [vmem:[%s3 + $0x19f8] sm:$0xff]
        %v2781 = vld [vmem:[%s3 + $0x1a00] sm:$0xff]
        %v2782 = vld [vmem:[%s3 + $0x1a08] sm:$0xff]
        %v2783 = vld [vmem:[%s3 + $0x1a10] sm:$0xff]
        %v2784 = vld [vmem:[%s3 + $0x1a18] sm:$0xff]
        %v2785 = vld [vmem:[%s3 + $0x1a20] sm:$0xff]
        %v2786 = vld [vmem:[%s3 + $0x1a28] sm:$0xff]
        %v2787 = vld [vmem:[%s3 + $0x1a30] sm:$0xff]
        %v2788 = vld [vmem:[%s3 + $0x1a38] sm:$0xff]
        %v2789 = vld [vmem:[%s3 + $0x1a40] sm:$0xff]
        %v2790 = vld [vmem:[%s3 + $0x1a48] sm:$0xff]
        %v2791 = vld [vmem:[%s3 + $0x1a50] sm:$0xff]
        %v2792 = vld [vmem:[%s3 + $0x1a58] sm:$0xff]
        %v2793 = vld [vmem:[%s3 + $0x1a60] sm:$0xff]
        %v2794 = vld [vmem:[%s3 + $0x1a68] sm:$0xff]
        %v2795 = vld [vmem:[%s3 + $0x1a70] sm:$0xff]
        %v2796 = vld [vmem:[%s3 + $0x1a78] sm:$0xff]
        %v2797 = vld [vmem:[%s3 + $0x1a80] sm:$0xff]
        %v2798 = vld [vmem:[%s3 + $0x1a88] sm:$0xff]
        %v2799 = vld [vmem:[%s3 + $0x1a90] sm:$0xff]
        %v2800 = vld [vmem:[%s3 + $0x1a98] sm:$0xff]
        %v2801 = vld [vmem:[%s3 + $0x1aa0] sm:$0xff]
        %v2802 = vld [vmem:[%s3 + $0x1aa8] sm:$0xff]
        %v2803 = vld [vmem:[%s3 + $0x1ab0] sm:$0xff]
        %v2804 = vld [vmem:[%s3 + $0x1ab8] sm:$0xff]
        %v2805 = vld [vmem:[%s3 + $0x1ac0] sm:$0xff]
        %v2806 = vld [vmem:[%s3 + $0x1ac8] sm:$0xff]
        %v2807 = vld [vmem:[%s3 + $0x1ad0] sm:$0xff]
        %v2808 = vld [vmem:[%s3 + $0x1ad8] sm:$0xff]
        %v2809 = vld [vmem:[%s3 + $0x1ae0] sm:$0xff]
        %v2810 = vld [vmem:[%s3 + $0x1ae8] sm:$0xff]
        %v2811 = vld [vmem:[%s3 + $0x1af0] sm:$0xff]
        %v2812 = vld [vmem:[%s3 + $0x1af8] sm:$0xff]
        %v2813 = vld [vmem:[%s3 + $0x1b00] sm:$0xff]
        %v2814 = vld [vmem:[%s3 + $0x1b08] sm:$0xff]
        %v2815 = vld [vmem:[%s3 + $0x1b10] sm:$0xff]
        %v2816 = vld [vmem:[%s3 + $0x1b18] sm:$0xff]
        %v2817 = vld [vmem:[%s3 + $0x1b20] sm:$0xff]
        %v2818 = vld [vmem:[%s3 + $0x1b28] sm:$0xff]
        %v2819 = vld [vmem:[%s3 + $0x1b30] sm:$0xff]
        %v2820 = vld [vmem:[%s3 + $0x1b38] sm:$0xff]
        %v2821 = vld [vmem:[%s3 + $0x1b40] sm:$0xff]
        %v2822 = vld [vmem:[%s3 + $0x1b48] sm:$0xff]
        %v2823 = vld [vmem:[%s3 + $0x1b50] sm:$0xff]
        %v2824 = vld [vmem:[%s3 + $0x1b58] sm:$0xff]
        %v2825 = vld [vmem:[%s3 + $0x1b60] sm:$0xff]
        %v2826 = vld [vmem:[%s3 + $0x1b68] sm:$0xff]
        %v2827 = vld [vmem:[%s3 + $0x1b70] sm:$0xff]
        %v2828 = vld [vmem:[%s3 + $0x1b78] sm:$0xff]
        %v2829 = vld [vmem:[%s3 + $0x1b80] sm:$0xff]
        %v2830 = vld [vmem:[%s3 + $0x1b88] sm:$0xff]
        %v2831 = vld [vmem:[%s3 + $0x1b90] sm:$0xff]
        %v2832 = vld [vmem:[%s3 + $0x1b98] sm:$0xff]
        %v2833 = vld [vmem:[%s3 + $0x1ba0] sm:$0xff]
        %v2834 = vld [vmem:[%s3 + $0x1ba8] sm:$0xff]
        %v2835 = vld [vmem:[%s3 + $0x1bb0] sm:$0xff]
        %v2836 = vld [vmem:[%s3 + $0x1bb8] sm:$0xff]
        %v2837 = vld [vmem:[%s3 + $0x1bc0] sm:$0xff]
        %v2838 = vld [vmem:[%s3 + $0x1bc8] sm:$0xff]
        %v2839 = vld [vmem:[%s3 + $0x1bd0] sm:$0xff]
        %v2840 = vld [vmem:[%s3 + $0x1bd8] sm:$0xff]
        %v2841 = vld [vmem:[%s3 + $0x1be0] sm:$0xff]
        %v2842 = vld [vmem:[%s3 + $0x1be8] sm:$0xff]
        %v2843 = vld [vmem:[%s3 + $0x1bf0] sm:$0xff]
        %v2844 = vld [vmem:[%s3 + $0x1bf8] sm:$0xff]
        %v2845 = vld [vmem:[%s3 + $0x1c00] sm:$0xff]
        %v2846 = vld [vmem:[%s3 + $0x1c08] sm:$0xff]
        %v2847 = vld [vmem:[%s3 + $0x1c10] sm:$0xff]
        %v2848 = vld [vmem:[%s3 + $0x1c18] sm:$0xff]
        %v2849 = vld [vmem:[%s3 + $0x1c20] sm:$0xff]
        %v2850 = vld [vmem:[%s3 + $0x1c28] sm:$0xff]
        %v2851 = vld [vmem:[%s3 + $0x1c30] sm:$0xff]
        %v2852 = vld [vmem:[%s3 + $0x1c38] sm:$0xff]
        %v2853 = vld [vmem:[%s3 + $0x1c40] sm:$0xff]
        %v2854 = vld [vmem:[%s3 + $0x1c48] sm:$0xff]
        %v2855 = vld [vmem:[%s3 + $0x1c50] sm:$0xff]
        %v2856 = vld [vmem:[%s3 + $0x1c58] sm:$0xff]
        %v2857 = vld [vmem:[%s3 + $0x1c60] sm:$0xff]
        %v2858 = vld [vmem:[%s3 + $0x1c68] sm:$0xff]
        %v2859 = vld [vmem:[%s3 + $0x1c70] sm:$0xff]
        %v2860 = vld [vmem:[%s3 + $0x1c78] sm:$0xff]
        %v2861 = vld [vmem:[%s3 + $0x1c80] sm:$0xff]
        %v2862 = vld [vmem:[%s3 + $0x1c88] sm:$0xff]
        %v2863 = vld [vmem:[%s3 + $0x1c90] sm:$0xff]
        %v2864 = vld [vmem:[%s3 + $0x1c98] sm:$0xff]
        %v2865 = vld [vmem:[%s3 + $0x1ca0] sm:$0xff]
        %v2866 = vld [vmem:[%s3 + $0x1ca8] sm:$0xff]
        %v2867 = vld [vmem:[%s3 + $0x1cb0] sm:$0xff]
        %v2868 = vld [vmem:[%s3 + $0x1cb8] sm:$0xff]
        %v2869 = vld [vmem:[%s3 + $0x1cc0] sm:$0xff]
        %v2870 = vld [vmem:[%s3 + $0x1cc8] sm:$0xff]
        %v2871 = vld [vmem:[%s3 + $0x1cd0] sm:$0xff]
        %v2872 = vld [vmem:[%s3 + $0x1cd8] sm:$0xff]
        %v2873 = vld [vmem:[%s3 + $0x1ce0] sm:$0xff]
        %v2874 = vld [vmem:[%s3 + $0x1ce8] sm:$0xff]
        %v2875 = vld [vmem:[%s3 + $0x1cf0] sm:$0xff]
        %v2876 = vld [vmem:[%s3 + $0x1cf8] sm:$0xff]
        %v2877 = vld [vmem:[%s3 + $0x1d00] sm:$0xff]
        %v2878 = vld [vmem:[%s3 + $0x1d08] sm:$0xff]
        %v2879 = vld [vmem:[%s3 + $0x1d10] sm:$0xff]
        %v2880 = vld [vmem:[%s3 + $0x1d18] sm:$0xff]
        %v2881 = vld [vmem:[%s3 + $0x1d20] sm:$0xff]
        %v2882 = vld [vmem:[%s3 + $0x1d28] sm:$0xff]
        %v2883 = vld [vmem:[%s3 + $0x1d30] sm:$0xff]
        %v2884 = vld [vmem:[%s3 + $0x1d38] sm:$0xff]
        %v2885 = vld [vmem:[%s3 + $0x1d40] sm:$0xff]
        %v2886 = vld [vmem:[%s3 + $0x1d48] sm:$0xff]
        %v2887 = vld [vmem:[%s3 + $0x1d50] sm:$0xff]
        %v2888 = vld [vmem:[%s3 + $0x1d58] sm:$0xff]
        %v2889 = vld [vmem:[%s3 + $0x1d60] sm:$0xff]
        %v2890 = vld [vmem:[%s3 + $0x1d68] sm:$0xff]
        %v2891 = vld [vmem:[%s3 + $0x1d70] sm:$0xff]
        %v2892 = vld [vmem:[%s3 + $0x1d78] sm:$0xff]
        %v2893 = vld [vmem:[%s3 + $0x1d80] sm:$0xff]
        %v2894 = vld [vmem:[%s3 + $0x1d88] sm:$0xff]
        %v2895 = vld [vmem:[%s3 + $0x1d90] sm:$0xff]
        %v2896 = vld [vmem:[%s3 + $0x1d98] sm:$0xff]
        %v2897 = vld [vmem:[%s3 + $0x1da0] sm:$0xff]
        %v2898 = vld [vmem:[%s3 + $0x1da8] sm:$0xff]
        %v2899 = vld [vmem:[%s3 + $0x1db0] sm:$0xff]
        %v2900 = vld [vmem:[%s3 + $0x1db8] sm:$0xff]
        %v2901 = vld [vmem:[%s3 + $0x1dc0] sm:$0xff]
        %v2902 = vld [vmem:[%s3 + $0x1dc8] sm:$0xff]
        %v2903 = vld [vmem:[%s3 + $0x1dd0] sm:$0xff]
        %v2904 = vld [vmem:[%s3 + $0x1dd8] sm:$0xff]
        %v2905 = vld [vmem:[%s3 + $0x1de0] sm:$0xff]
        %v2906 = vld [vmem:[%s3 + $0x1de8] sm:$0xff]
        %v2907 = vld [vmem:[%s3 + $0x1df0] sm:$0xff]
        %v2908 = vld [vmem:[%s3 + $0x1df8] sm:$0xff]
        %v2909 = vld [vmem:[%s3 + $0x1e00] sm:$0xff]
        %v2910 = vld [vmem:[%s3 + $0x1e08] sm:$0xff]
        %v2911 = vld [vmem:[%s3 + $0x1e10] sm:$0xff]
        %v2912 = vld [vmem:[%s3 + $0x1e18] sm:$0xff]
        %v2913 = vld [vmem:[%s3 + $0x1e20] sm:$0xff]
        %v2914 = vld [vmem:[%s3 + $0x1e28] sm:$0xff]
        %v2915 = vld [vmem:[%s3 + $0x1e30] sm:$0xff]
        %v2916 = vld [vmem:[%s3 + $0x1e38] sm:$0xff]
        %v2917 = vld [vmem:[%s3 + $0x1e40] sm:$0xff]
        %v2918 = vld [vmem:[%s3 + $0x1e48] sm:$0xff]
        %v2919 = vld [vmem:[%s3 + $0x1e50] sm:$0xff]
        %v2920 = vld [vmem:[%s3 + $0x1e58] sm:$0xff]
        %v2921 = vld [vmem:[%s3 + $0x1e60] sm:$0xff]
        %v2922 = vld [vmem:[%s3 + $0x1e68] sm:$0xff]
        %v2923 = vld [vmem:[%s3 + $0x1e70] sm:$0xff]
        %v2924 = vld [vmem:[%s3 + $0x1e78] sm:$0xff]
        %v2925 = vld [vmem:[%s3 + $0x1e80] sm:$0xff]
        %v2926 = vld [vmem:[%s3 + $0x1e88] sm:$0xff]
        %v2927 = vld [vmem:[%s3 + $0x1e90] sm:$0xff]
        %v2928 = vld [vmem:[%s3 + $0x1e98] sm:$0xff]
        %v2929 = vld [vmem:[%s3 + $0x1ea0] sm:$0xff]
        %v2930 = vld [vmem:[%s3 + $0x1ea8] sm:$0xff]
        %v2931 = vld [vmem:[%s3 + $0x1eb0] sm:$0xff]
        %v2932 = vld [vmem:[%s3 + $0x1eb8] sm:$0xff]
        %v2933 = vld [vmem:[%s3 + $0x1ec0] sm:$0xff]
        %v2934 = vld [vmem:[%s3 + $0x1ec8] sm:$0xff]
        %v2935 = vld [vmem:[%s3 + $0x1ed0] sm:$0xff]
        %v2936 = vld [vmem:[%s3 + $0x1ed8] sm:$0xff]
        %v2937 = vld [vmem:[%s3 + $0x1ee0] sm:$0xff]
        %v2938 = vld [vmem:[%s3 + $0x1ee8] sm:$0xff]
        %v2939 = vld [vmem:[%s3 + $0x1ef0] sm:$0xff]
        %v2940 = vld [vmem:[%s3 + $0x1ef8] sm:$0xff]
        %v2941 = vld [vmem:[%s3 + $0x1f00] sm:$0xff]
        %v2942 = vld [vmem:[%s3 + $0x1f08] sm:$0xff]
        %v2943 = vld [vmem:[%s3 + $0x1f10] sm:$0xff]
        %v2944 = vld [vmem:[%s3 + $0x1f18] sm:$0xff]
        %v2945 = vld [vmem:[%s3 + $0x1f20] sm:$0xff]
        %v2946 = vld [vmem:[%s3 + $0x1f28] sm:$0xff]
        %v2947 = vld [vmem:[%s3 + $0x1f30] sm:$0xff]
        %v2948 = vld [vmem:[%s3 + $0x1f38] sm:$0xff]
        %v2949 = vld [vmem:[%s3 + $0x1f40] sm:$0xff]
        %v2950 = vld [vmem:[%s3 + $0x1f48] sm:$0xff]
        %v2951 = vld [vmem:[%s3 + $0x1f50] sm:$0xff]
        %v2952 = vld [vmem:[%s3 + $0x1f58] sm:$0xff]
        %v2953 = vld [vmem:[%s3 + $0x1f60] sm:$0xff]
        %v2954 = vld [vmem:[%s3 + $0x1f68] sm:$0xff]
        %v2955 = vld [vmem:[%s3 + $0x1f70] sm:$0xff]
        %v2956 = vld [vmem:[%s3 + $0x1f78] sm:$0xff]
        %v2957 = vld [vmem:[%s3 + $0x1f80] sm:$0xff]
        %v2958 = vld [vmem:[%s3 + $0x1f88] sm:$0xff]
        %v2959 = vld [vmem:[%s3 + $0x1f90] sm:$0xff]
        %v2960 = vld [vmem:[%s3 + $0x1f98] sm:$0xff]
        %v2961 = vld [vmem:[%s3 + $0x1fa0] sm:$0xff]
        %v2962 = vld [vmem:[%s3 + $0x1fa8] sm:$0xff]
        %v2963 = vld [vmem:[%s3 + $0x1fb0] sm:$0xff]
        %v2964 = vld [vmem:[%s3 + $0x1fb8] sm:$0xff]
        %v2965 = vld [vmem:[%s3 + $0x1fc0] sm:$0xff]
        %v2966 = vld [vmem:[%s3 + $0x1fc8] sm:$0xff]
        %v2967 = vld [vmem:[%s3 + $0x1fd0] sm:$0xff]
        %v2968 = vld [vmem:[%s3 + $0x1fd8] sm:$0xff]
        %v2969 = vld [vmem:[%s3 + $0x1fe0] sm:$0xff]
        %v2970 = vld [vmem:[%s3 + $0x1fe8] sm:$0xff]
        %v2971 = vld [vmem:[%s3 + $0x1ff0] sm:$0xff]
        %v2972 = vld [vmem:[%s3 + $0x1ff8] sm:$0xff]
        %v2973 = vld [vmem:[%s3 + $0x2000] sm:$0xff]
        %v2974 = vld [vmem:[%s3 + $0x2008] sm:$0xff]
        %v2975 = vld [vmem:[%s3 + $0x2010] sm:$0xff]
        %v2976 = vld [vmem:[%s3 + $0x2018] sm:$0xff]
        %v2977 = vld [vmem:[%s3 + $0x2020] sm:$0xff]
        %v2978 = vld [vmem:[%s3 + $0x2028] sm:$0xff]
        %v2979 = vld [vmem:[%s3 + $0x2030] sm:$0xff]
        %v2980 = vld [vmem:[%s3 + $0x2038] sm:$0xff]
        %v2981 = vld [vmem:[%s3 + $0x2040] sm:$0xff]
        %v2982 = vld [vmem:[%s3 + $0x2048] sm:$0xff]
        %v2983 = vld [vmem:[%s3 + $0x2050] sm:$0xff]
        %v2984 = vld [vmem:[%s3 + $0x2058] sm:$0xff]
        %v2985 = vld [vmem:[%s3 + $0x2060] sm:$0xff]
        %v2986 = vld [vmem:[%s3 + $0x2068] sm:$0xff]
        %v2987 = vld [vmem:[%s3 + $0x2070] sm:$0xff]
        %v2988 = vld [vmem:[%s3 + $0x2078] sm:$0xff]
        %v2989 = vld [vmem:[%s3 + $0x2080] sm:$0xff]
        %v2990 = vld [vmem:[%s3 + $0x2088] sm:$0xff]
        %v2991 = vld [vmem:[%s3 + $0x2090] sm:$0xff]
        %v2992 = vld [vmem:[%s3 + $0x2098] sm:$0xff]
        %v2993 = vld [vmem:[%s3 + $0x20a0] sm:$0xff]
        %v2994 = vld [vmem:[%s3 + $0x20a8] sm:$0xff]
        %v2995 = vld [vmem:[%s3 + $0x20b0] sm:$0xff]
        %v2996 = vld [vmem:[%s3 + $0x20b8] sm:$0xff]
        %v2997 = vld [vmem:[%s3 + $0x20c0] sm:$0xff]
        %v2998 = vld [vmem:[%s3 + $0x20c8] sm:$0xff]
        %v2999 = vld [vmem:[%s3 + $0x20d0] sm:$0xff]
        %v3000 = vld [vmem:[%s3 + $0x20d8] sm:$0xff]
        %v3001 = vld [vmem:[%s3 + $0x20e0] sm:$0xff]
        %v3002 = vld [vmem:[%s3 + $0x20e8] sm:$0xff]
        %v3003 = vld [vmem:[%s3 + $0x20f0] sm:$0xff]
        %v3004 = vld [vmem:[%s3 + $0x20f8] sm:$0xff]
        %v3005 = vld [vmem:[%s3 + $0x2100] sm:$0xff]
        %v3006 = vld [vmem:[%s3 + $0x2108] sm:$0xff]
        %v3007 = vld [vmem:[%s3 + $0x2110] sm:$0xff]
        %v3008 = vld [vmem:[%s3 + $0x2118] sm:$0xff]
        %v3009 = vld [vmem:[%s3 + $0x2120] sm:$0xff]
        %v3010 = vld [vmem:[%s3 + $0x2128] sm:$0xff]
        %v3011 = vld [vmem:[%s3 + $0x2130] sm:$0xff]
        %v3012 = vld [vmem:[%s3 + $0x2138] sm:$0xff]
        %v3013 = vld [vmem:[%s3 + $0x2140] sm:$0xff]
        %v3014 = vld [vmem:[%s3 + $0x2148] sm:$0xff]
        %v3015 = vld [vmem:[%s3 + $0x2150] sm:$0xff]
        %v3016 = vld [vmem:[%s3 + $0x2158] sm:$0xff]
        %v3017 = vld [vmem:[%s3 + $0x2160] sm:$0xff]
        %v3018 = vld [vmem:[%s3 + $0x2168] sm:$0xff]
        %v3019 = vld [vmem:[%s3 + $0x2170] sm:$0xff]
        %v3020 = vld [vmem:[%s3 + $0x2178] sm:$0xff]
        %v3021 = vld [vmem:[%s3 + $0x2180] sm:$0xff]
        %v3022 = vld [vmem:[%s3 + $0x2188] sm:$0xff]
        %v3023 = vld [vmem:[%s3 + $0x2190] sm:$0xff]
        %v3024 = vld [vmem:[%s3 + $0x2198] sm:$0xff]
        %v3025 = vld [vmem:[%s3 + $0x21a0] sm:$0xff]
        %v3026 = vld [vmem:[%s3 + $0x21a8] sm:$0xff]
        %v3027 = vld [vmem:[%s3 + $0x21b0] sm:$0xff]
        %v3028 = vld [vmem:[%s3 + $0x21b8] sm:$0xff]
        %v3029 = vld [vmem:[%s3 + $0x21c0] sm:$0xff]
        %v3030 = vld [vmem:[%s3 + $0x21c8] sm:$0xff]
        %v3031 = vld [vmem:[%s3 + $0x21d0] sm:$0xff]
        %v3032 = vld [vmem:[%s3 + $0x21d8] sm:$0xff]
        %v3033 = vld [vmem:[%s3 + $0x21e0] sm:$0xff]
        %v3034 = vld [vmem:[%s3 + $0x21e8] sm:$0xff]
        %v3035 = vld [vmem:[%s3 + $0x21f0] sm:$0xff]
        %v3036 = vld [vmem:[%s3 + $0x21f8] sm:$0xff]
        %v3037 = vld [vmem:[%s3 + $0x2200] sm:$0xff]
        %v3038 = vld [vmem:[%s3 + $0x2208] sm:$0xff]
        %v3039 = vld [vmem:[%s3 + $0x2210] sm:$0xff]
        %v3040 = vld [vmem:[%s3 + $0x2218] sm:$0xff]
        %v3041 = vld [vmem:[%s3 + $0x2220] sm:$0xff]
        %v3042 = vld [vmem:[%s3 + $0x2228] sm:$0xff]
        %v3043 = vld [vmem:[%s3 + $0x2230] sm:$0xff]
        %v3044 = vld [vmem:[%s3 + $0x2238] sm:$0xff]
        %v3045 = vld [vmem:[%s3 + $0x2240] sm:$0xff]
        %v3046 = vld [vmem:[%s3 + $0x2248] sm:$0xff]
        %v3047 = vld [vmem:[%s3 + $0x2250] sm:$0xff]
        %v3048 = vld [vmem:[%s3 + $0x2258] sm:$0xff]
        %v3049 = vld [vmem:[%s3 + $0x2260] sm:$0xff]
        %v3050 = vld [vmem:[%s3 + $0x2268] sm:$0xff]
        %v3051 = vld [vmem:[%s3 + $0x2270] sm:$0xff]
        %v3052 = vld [vmem:[%s3 + $0x2278] sm:$0xff]
        %v3053 = vld [vmem:[%s3 + $0x2280] sm:$0xff]
        %v3054 = vld [vmem:[%s3 + $0x2288] sm:$0xff]
        %v3055 = vld [vmem:[%s3 + $0x2290] sm:$0xff]
        %v3056 = vld [vmem:[%s3 + $0x2298] sm:$0xff]
        %v3057 = vld [vmem:[%s3 + $0x22a0] sm:$0xff]
        %v3058 = vld [vmem:[%s3 + $0x22a8] sm:$0xff]
        %v3059 = vld [vmem:[%s3 + $0x22b0] sm:$0xff]
        %v3060 = vld [vmem:[%s3 + $0x22b8] sm:$0xff]
        %v3061 = vld [vmem:[%s3 + $0x22c0] sm:$0xff]
        %v3062 = vld [vmem:[%s3 + $0x22c8] sm:$0xff]
        %v3063 = vld [vmem:[%s3 + $0x22d0] sm:$0xff]
        %v3064 = vld [vmem:[%s3 + $0x22d8] sm:$0xff]
        %v3065 = vld [vmem:[%s3 + $0x22e0] sm:$0xff]
        %v3066 = vld [vmem:[%s3 + $0x22e8] sm:$0xff]
        %v3067 = vld [vmem:[%s3 + $0x22f0] sm:$0xff]
        %v3068 = vld [vmem:[%s3 + $0x22f8] sm:$0xff]
        %v3069 = vld [vmem:[%s3 + $0x2300] sm:$0xff]
        %v3070 = vld [vmem:[%s3 + $0x2308] sm:$0xff]
        %v3071 = vld [vmem:[%s3 + $0x2310] sm:$0xff]
        %v3072 = vld [vmem:[%s3 + $0x2318] sm:$0xff]
        %v3073 = vld [vmem:[%s3 + $0x2320] sm:$0xff]
        %v3074 = vld [vmem:[%s3 + $0x2328] sm:$0xff]
        %v3075 = vld [vmem:[%s3 + $0x2330] sm:$0xff]
        %v3076 = vld [vmem:[%s3 + $0x2338] sm:$0xff]
        %v3077 = vld [vmem:[%s3 + $0x2340] sm:$0xff]
        %v3078 = vld [vmem:[%s3 + $0x2348] sm:$0xff]
        %v3079 = vld [vmem:[%s3 + $0x2350] sm:$0xff]
        %v3080 = vld [vmem:[%s3 + $0x2358] sm:$0xff]
        %v3081 = vld [vmem:[%s3 + $0x2360] sm:$0xff]
        %v3082 = vld [vmem:[%s3 + $0x2368] sm:$0xff]
        %v3083 = vld [vmem:[%s3 + $0x2370] sm:$0xff]
        %v3084 = vld [vmem:[%s3 + $0x2378] sm:$0xff]
        %v3085 = vld [vmem:[%s3 + $0x2380] sm:$0xff]
        %v3086 = vld [vmem:[%s3 + $0x2388] sm:$0xff]
        %v3087 = vld [vmem:[%s3 + $0x2390] sm:$0xff]
        %v3088 = vld [vmem:[%s3 + $0x2398] sm:$0xff]
        %v3089 = vld [vmem:[%s3 + $0x23a0] sm:$0xff]
        %v3090 = vld [vmem:[%s3 + $0x23a8] sm:$0xff]
        %v3091 = vld [vmem:[%s3 + $0x23b0] sm:$0xff]
        %v3092 = vld [vmem:[%s3 + $0x23b8] sm:$0xff]
        %v3093 = vld [vmem:[%s3 + $0x23c0] sm:$0xff]
        %v3094 = vld [vmem:[%s3 + $0x23c8] sm:$0xff]
        %v3095 = vld [vmem:[%s3 + $0x23d0] sm:$0xff]
        %v3096 = vld [vmem:[%s3 + $0x23d8] sm:$0xff]
        %v3097 = vld [vmem:[%s3 + $0x23e0] sm:$0xff]
        %v3098 = vld [vmem:[%s3 + $0x23e8] sm:$0xff]
        %v3099 = vld [vmem:[%s3 + $0x23f0] sm:$0xff]
        %v3100 = vld [vmem:[%s3 + $0x23f8] sm:$0xff]
        %v3101 = vld [vmem:[%s3 + $0x2400] sm:$0xff]
        %v3102 = vld [vmem:[%s3 + $0x2408] sm:$0xff]
        %v3103 = vld [vmem:[%s3 + $0x2410] sm:$0xff]
        %v3104 = vld [vmem:[%s3 + $0x2418] sm:$0xff]
        %v3105 = vld [vmem:[%s3 + $0x2420] sm:$0xff]
        %v3106 = vld [vmem:[%s3 + $0x2428] sm:$0xff]
        %v3107 = vld [vmem:[%s3 + $0x2430] sm:$0xff]
        %v3108 = vld [vmem:[%s3 + $0x2438] sm:$0xff]
        %v3109 = vld [vmem:[%s3 + $0x2440] sm:$0xff]
        %v3110 = vld [vmem:[%s3 + $0x2448] sm:$0xff]
        %v3111 = vld [vmem:[%s3 + $0x2450] sm:$0xff]
        %v3112 = vld [vmem:[%s3 + $0x2458] sm:$0xff]
        %v3113 = vld [vmem:[%s3 + $0x2460] sm:$0xff]
        %v3114 = vld [vmem:[%s3 + $0x2468] sm:$0xff]
        %v3115 = vld [vmem:[%s3 + $0x2470] sm:$0xff]
        %v3116 = vld [vmem:[%s3 + $0x2478] sm:$0xff]
        %v3117 = vld [vmem:[%s3 + $0x2480] sm:$0xff]
        %v3118 = vld [vmem:[%s3 + $0x2488] sm:$0xff]
        %v3119 = vld [vmem:[%s3 + $0x2490] sm:$0xff]
        %v3120 = vld [vmem:[%s3 + $0x2498] sm:$0xff]
        %v3121 = vld [vmem:[%s3 + $0x24a0] sm:$0xff]
        %v3122 = vld [vmem:[%s3 + $0x24a8] sm:$0xff]
        %v3123 = vld [vmem:[%s3 + $0x24b0] sm:$0xff]
        %v3124 = vld [vmem:[%s3 + $0x24b8] sm:$0xff]
        %v3125 = vld [vmem:[%s3 + $0x24c0] sm:$0xff]
        %v3126 = vld [vmem:[%s3 + $0x24c8] sm:$0xff]
        %v3127 = vld [vmem:[%s3 + $0x24d0] sm:$0xff]
        %v3128 = vld [vmem:[%s3 + $0x24d8] sm:$0xff]
        %v3129 = vld [vmem:[%s3 + $0x24e0] sm:$0xff]
        %v3130 = vld [vmem:[%s3 + $0x24e8] sm:$0xff]
        %v3131 = vld [vmem:[%s3 + $0x24f0] sm:$0xff]
        %v3132 = vld [vmem:[%s3 + $0x24f8] sm:$0xff]
        %v3133 = vld [vmem:[%s3 + $0x2500] sm:$0xff]
        %v3134 = vld [vmem:[%s3 + $0x2508] sm:$0xff]
        %v3135 = vld [vmem:[%s3 + $0x2510] sm:$0xff]
        %v3136 = vld [vmem:[%s3 + $0x2518] sm:$0xff]
        %v3137 = vld [vmem:[%s3 + $0x2520] sm:$0xff]
        %v3138 = vld [vmem:[%s3 + $0x2528] sm:$0xff]
        %v3139 = vld [vmem:[%s3 + $0x2530] sm:$0xff]
        %v3140 = vld [vmem:[%s3 + $0x2538] sm:$0xff]
        %v3141 = vld [vmem:[%s3 + $0x2540] sm:$0xff]
        %v3142 = vld [vmem:[%s3 + $0x2548] sm:$0xff]
        %v3143 = vld [vmem:[%s3 + $0x2550] sm:$0xff]
        %v3144 = vld [vmem:[%s3 + $0x2558] sm:$0xff]
        %v3145 = vld [vmem:[%s3 + $0x2560] sm:$0xff]
        %v3146 = vld [vmem:[%s3 + $0x2568] sm:$0xff]
        %v3147 = vld [vmem:[%s3 + $0x2570] sm:$0xff]
        %v3148 = vld [vmem:[%s3 + $0x2578] sm:$0xff]
        %v3149 = vld [vmem:[%s3 + $0x2580] sm:$0xff]
        %v3150 = vld [vmem:[%s3 + $0x2588] sm:$0xff]
        %v3151 = vld [vmem:[%s3 + $0x2590] sm:$0xff]
        %v3152 = vld [vmem:[%s3 + $0x2598] sm:$0xff]
        %v3153 = vld [vmem:[%s3 + $0x25a0] sm:$0xff]
        %v3154 = vld [vmem:[%s3 + $0x25a8] sm:$0xff]
        %v3155 = vld [vmem:[%s3 + $0x25b0] sm:$0xff]
        %v3156 = vld [vmem:[%s3 + $0x25b8] sm:$0xff]
        %v3157 = vld [vmem:[%s3 + $0x25c0] sm:$0xff]
        %v3158 = vld [vmem:[%s3 + $0x25c8] sm:$0xff]
        %v3159 = vld [vmem:[%s3 + $0x25d0] sm:$0xff]
        %v3160 = vld [vmem:[%s3 + $0x25d8] sm:$0xff]
        %v3161 = vld [vmem:[%s3 + $0x25e0] sm:$0xff]
        %v3162 = vld [vmem:[%s3 + $0x25e8] sm:$0xff]
        %v3163 = vld [vmem:[%s3 + $0x25f0] sm:$0xff]
        %v3164 = vld [vmem:[%s3 + $0x25f8] sm:$0xff]
        %v3165 = vld [vmem:[%s3 + $0x2600] sm:$0xff]
        %v3166 = vld [vmem:[%s3 + $0x2608] sm:$0xff]
        %v3167 = vld [vmem:[%s3 + $0x2610] sm:$0xff]
        %v3168 = vld [vmem:[%s3 + $0x2618] sm:$0xff]
        %v3169 = vld [vmem:[%s3 + $0x2620] sm:$0xff]
        %v3170 = vld [vmem:[%s3 + $0x2628] sm:$0xff]
        %v3171 = vld [vmem:[%s3 + $0x2630] sm:$0xff]
        %v3172 = vld [vmem:[%s3 + $0x2638] sm:$0xff]
        %v3173 = vld [vmem:[%s3 + $0x2640] sm:$0xff]
        %v3174 = vld [vmem:[%s3 + $0x2648] sm:$0xff]
        %v3175 = vld [vmem:[%s3 + $0x2650] sm:$0xff]
        %v3176 = vld [vmem:[%s3 + $0x2658] sm:$0xff]
        %v3177 = vld [vmem:[%s3 + $0x2660] sm:$0xff]
        %v3178 = vld [vmem:[%s3 + $0x2668] sm:$0xff]
        %v3179 = vld [vmem:[%s3 + $0x2670] sm:$0xff]
        %v3180 = vld [vmem:[%s3 + $0x2678] sm:$0xff]
        %v3181 = vld [vmem:[%s3 + $0x2680] sm:$0xff]
        %v3182 = vld [vmem:[%s3 + $0x2688] sm:$0xff]
        %v3183 = vld [vmem:[%s3 + $0x2690] sm:$0xff]
        %v3184 = vld [vmem:[%s3 + $0x2698] sm:$0xff]
        %v3185 = vld [vmem:[%s3 + $0x26a0] sm:$0xff]
        %v3186 = vld [vmem:[%s3 + $0x26a8] sm:$0xff]
        %v3187 = vld [vmem:[%s3 + $0x26b0] sm:$0xff]
        %v3188 = vld [vmem:[%s3 + $0x26b8] sm:$0xff]
        %v3189 = vld [vmem:[%s3 + $0x26c0] sm:$0xff]
        %v3190 = vld [vmem:[%s3 + $0x26c8] sm:$0xff]
        %v3191 = vld [vmem:[%s3 + $0x26d0] sm:$0xff]
        %v3192 = vld [vmem:[%s3 + $0x26d8] sm:$0xff]
        %v3193 = vld [vmem:[%s3 + $0x26e0] sm:$0xff]
        %v3194 = vld [vmem:[%s3 + $0x26e8] sm:$0xff]
        %v3195 = vld [vmem:[%s3 + $0x26f0] sm:$0xff]
        %v3196 = vld [vmem:[%s3 + $0x26f8] sm:$0xff]
        %v3197 = vld [vmem:[%s3 + $0x2700] sm:$0xff]
        %v3198 = vld [vmem:[%s3 + $0x2708] sm:$0xff]
        %v3199 = vld [vmem:[%s3 + $0x2710] sm:$0xff]
        %v3200 = vld [vmem:[%s3 + $0x2718] sm:$0xff]
        %v3201 = vld [vmem:[%s3 + $0x2720] sm:$0xff]
        %v3202 = vld [vmem:[%s3 + $0x2728] sm:$0xff]
        %v3203 = vld [vmem:[%s3 + $0x2730] sm:$0xff]
        %v3204 = vld [vmem:[%s3 + $0x2738] sm:$0xff]
        %v3205 = vld [vmem:[%s3 + $0x2740] sm:$0xff]
        %v3206 = vld [vmem:[%s3 + $0x2748] sm:$0xff]
        %v3207 = vld [vmem:[%s3 + $0x2750] sm:$0xff]
        %v3208 = vld [vmem:[%s3 + $0x2758] sm:$0xff]
        %v3209 = vld [vmem:[%s3 + $0x2760] sm:$0xff]
        %v3210 = vld [vmem:[%s3 + $0x2768] sm:$0xff]
        %v3211 = vld [vmem:[%s3 + $0x2770] sm:$0xff]
        %v3212 = vld [vmem:[%s3 + $0x2778] sm:$0xff]
        %v3213 = vld [vmem:[%s3 + $0x2780] sm:$0xff]
        %v3214 = vld [vmem:[%s3 + $0x2788] sm:$0xff]
        %v3215 = vld [vmem:[%s3 + $0x2790] sm:$0xff]
        %v3216 = vld [vmem:[%s3 + $0x2798] sm:$0xff]
        %v3217 = vld [vmem:[%s3 + $0x27a0] sm:$0xff]
        %v3218 = vld [vmem:[%s3 + $0x27a8] sm:$0xff]
        %v3219 = vld [vmem:[%s3 + $0x27b0] sm:$0xff]
        %v3220 = vld [vmem:[%s3 + $0x27b8] sm:$0xff]
        %v3221 = vld [vmem:[%s3 + $0x27c0] sm:$0xff]
        %v3222 = vld [vmem:[%s3 + $0x27c8] sm:$0xff]
        %v3223 = vld [vmem:[%s3 + $0x27d0] sm:$0xff]
        %v3224 = vld [vmem:[%s3 + $0x27d8] sm:$0xff]
        %v3225 = vld [vmem:[%s3 + $0x27e0] sm:$0xff]
        %v3226 = vld [vmem:[%s3 + $0x27e8] sm:$0xff]
        %v3227 = vld [vmem:[%s3 + $0x27f0] sm:$0xff]
        %v3228 = vld [vmem:[%s3 + $0x27f8] sm:$0xff]
        %v3229 = vld [vmem:[%s466 + $0x8] sm:$0xff]
        %v3230 = vld [vmem:[%s466 + $0x10] sm:$0xff]
        %v3231 = vld [vmem:[%s6] sm:$0xff]
        %v3232 = vld [vmem:[%s6 + $0x8] sm:$0xff]
        %v3234 = vsel %vm1775, %v3231, 0
        %v3237 = vsel %vm1775, %v3232, 0
        %3239 = vmatprep.subr.mxu0 0.0
        %3240 = vmatpush1.msra.mxu0 %v3229
        %3241 = vmatprep.subr.mxu0 0.0
        %3242 = vmatpush1.msra.mxu0 %v3230
        %3243 = vmatprep.subr.mxu0 0.0
        %3244 = vmatpush1.msra.mxu0 0.0
        %3245 = vmatprep.subr.mxu0 0.0
        %3246 = vmatpush1.msra.mxu0 0.0
        %3247 = vmatprep.subr.mxu0 0.0
        %3248 = vmatpush1.msra.mxu0 0.0
        %3249 = vmatprep.subr.mxu0 0.0
        %3250 = vmatpush1.msra.mxu0 0.0
        %3251 = vmatprep.subr.mxu0 0.0
        %3252 = vmatpush1.msra.mxu0 0.0
        %3253 = vmatprep.subr.mxu0 0.0
        %3254 = vmatpush1.msra.mxu0 0.0
        %3255 = vmatprep.subr.mxu0 0.0
        %3256 = vmatpush1.msra.mxu0 0.0
        %3257 = vmatprep.subr.mxu0 0.0
        %3258 = vmatpush1.msra.mxu0 0.0
        %3259 = vmatprep.subr.mxu0 0.0
        %3260 = vmatpush1.msra.mxu0 0.0
        %3261 = vmatprep.subr.mxu0 0.0
        %3262 = vmatpush1.msra.mxu0 0.0
        %3263 = vmatprep.subr.mxu0 0.0
        %3264 = vmatpush1.msra.mxu0 0.0
        %3265 = vmatprep.subr.mxu0 0.0
        %3266 = vmatpush1.msra.mxu0 0.0
        %3267 = vmatprep.subr.mxu0 0.0
        %3268 = vmatpush1.msra.mxu0 0.0
        %3269 = vmatprep.subr.mxu0 0.0
        %3270 = vmatpush1.msra.mxu0 0.0
        %3271 = vmatprep.subr.mxu0 0.0
        %3272 = vmatpush1.msra.mxu0 0.0
        %3273 = vmatprep.subr.mxu0 0.0
        %3274 = vmatpush1.msra.mxu0 0.0
        %3275 = vmatprep.subr.mxu0 0.0
        %3276 = vmatpush1.msra.mxu0 0.0
        %3277 = vmatprep.subr.mxu0 0.0
        %3278 = vmatpush1.msra.mxu0 0.0
        %3279 = vmatprep.subr.mxu0 0.0
        %3280 = vmatpush1.msra.mxu0 0.0
        %3281 = vmatprep.subr.mxu0 0.0
        %3282 = vmatpush1.msra.mxu0 0.0
        %3283 = vmatprep.subr.mxu0 0.0
        %3284 = vmatpush1.msra.mxu0 0.0
        %3285 = vmatprep.subr.mxu0 0.0
        %3286 = vmatpush1.msra.mxu0 0.0
        %3287 = vmatprep.subr.mxu0 0.0
        %3288 = vmatpush1.msra.mxu0 0.0
        %3289 = vmatprep.subr.mxu0 0.0
        %3290 = vmatpush1.msra.mxu0 0.0
        %3291 = vmatprep.subr.mxu0 0.0
        %3292 = vmatpush1.msra.mxu0 0.0
        %3293 = vmatprep.subr.mxu0 0.0
        %3294 = vmatpush1.msra.mxu0 0.0
        %3295 = vmatprep.subr.mxu0 0.0
        %3296 = vmatpush1.msra.mxu0 0.0
        %3297 = vmatprep.subr.mxu0 0.0
        %3298 = vmatpush1.msra.mxu0 0.0
        %3299 = vmatprep.subr.mxu0 0.0
        %3300 = vmatpush1.msra.mxu0 0.0
        %3301 = vmatprep.subr.mxu0 0.0
        %3302 = vmatpush1.msra.mxu0 0.0
        %3303 = vmatprep.mubr.f32.mxu0 0.0
        %3304 = vmatmul.mubr.f32.gmra.mrb[0].mxu0 %v3234
        %v3305 = vpop.f32.mrb[0].mxu0
        %v3306 = vadd.f32 0.0, %v3305
        %v3307 = vpop.f32.mrb[0].mxu0
        %3308 = vmatprep.mubr.f32.mxu0 0.0
        %3309 = vmatmul.mubr.f32.gmra.mrb[0].mxu0 %v3237
        %v3310 = vpop.f32.mrb[0].mxu0
        %v3311 = vadd.f32 0.0, %v3310
        %v3312 = vpop.f32.mrb[0].mxu0
        %3313 = vdwg.mxu0
        %v3315 = vrot.slane %v3306, 4
        %v3317 = vmax.f32 %v3306, %v3315
        %v3319 = vrot.slane %v3311, 4
        %v3321 = vmax.f32 %v3311, %v3319
        %v3322 = vmax.f32 %v3317, %v3321
        %v3323 = vld [vmem:[%s4] sm:$0xff]
        %v3324 = vld [vmem:[%s4 + $0x8] sm:$0xff]
        %v3325 = vld [vmem:[%s4 + $0x10] sm:$0xff]
        %v3326 = vld [vmem:[%s4 + $0x18] sm:$0xff]
        %v3327 = vld [vmem:[%s4 + $0x20] sm:$0xff]
        %v3328 = vld [vmem:[%s4 + $0x28] sm:$0xff]
        %v3329 = vld [vmem:[%s4 + $0x30] sm:$0xff]
        %v3330 = vld [vmem:[%s4 + $0x38] sm:$0xff]
        %v3331 = vld [vmem:[%s4 + $0x40] sm:$0xff]
        %v3332 = vld [vmem:[%s4 + $0x48] sm:$0xff]
        %v3333 = vld [vmem:[%s4 + $0x50] sm:$0xff]
        %v3334 = vld [vmem:[%s4 + $0x58] sm:$0xff]
        %v3335 = vld [vmem:[%s4 + $0x60] sm:$0xff]
        %v3336 = vld [vmem:[%s4 + $0x68] sm:$0xff]
        %v3337 = vld [vmem:[%s4 + $0x70] sm:$0xff]
        %v3338 = vld [vmem:[%s4 + $0x78] sm:$0xff]
        %v3339 = vld [vmem:[%s4 + $0x80] sm:$0xff]
        %v3340 = vld [vmem:[%s4 + $0x88] sm:$0xff]
        %v3341 = vld [vmem:[%s4 + $0x90] sm:$0xff]
        %v3342 = vld [vmem:[%s4 + $0x98] sm:$0xff]
        %v3343 = vld [vmem:[%s4 + $0xa0] sm:$0xff]
        %v3344 = vld [vmem:[%s4 + $0xa8] sm:$0xff]
        %v3345 = vld [vmem:[%s4 + $0xb0] sm:$0xff]
        %v3346 = vld [vmem:[%s4 + $0xb8] sm:$0xff]
        %v3347 = vld [vmem:[%s4 + $0xc0] sm:$0xff]
        %v3348 = vld [vmem:[%s4 + $0xc8] sm:$0xff]
        %v3349 = vld [vmem:[%s4 + $0xd0] sm:$0xff]
        %v3350 = vld [vmem:[%s4 + $0xd8] sm:$0xff]
        %v3351 = vld [vmem:[%s4 + $0xe0] sm:$0xff]
        %v3352 = vld [vmem:[%s4 + $0xe8] sm:$0xff]
        %v3353 = vld [vmem:[%s4 + $0xf0] sm:$0xff]
        %v3354 = vld [vmem:[%s4 + $0xf8] sm:$0xff]
        %3355 = vmatprep.subr.mxu0 %v3324
        %3356 = vmatpush1.msra.mxu0 %v3323
        %3357 = vmatprep.subr.mxu0 %v3326
        %3358 = vmatpush1.msra.mxu0 %v3325
        %3359 = vmatprep.subr.mxu0 %v3328
        %3360 = vmatpush1.msra.mxu0 %v3327
        %3361 = vmatprep.subr.mxu0 %v3330
        %3362 = vmatpush1.msra.mxu0 %v3329
        %3363 = vmatprep.subr.mxu0 %v3332
        %3364 = vmatpush1.msra.mxu0 %v3331
        %3365 = vmatprep.subr.mxu0 %v3334
        %3366 = vmatpush1.msra.mxu0 %v3333
        %3367 = vmatprep.subr.mxu0 %v3336
        %3368 = vmatpush1.msra.mxu0 %v3335
        %3369 = vmatprep.subr.mxu0 %v3338
        %3370 = vmatpush1.msra.mxu0 %v3337
        %3371 = vmatprep.subr.mxu0 %v3340
        %3372 = vmatpush1.msra.mxu0 %v3339
        %3373 = vmatprep.subr.mxu0 %v3342
        %3374 = vmatpush1.msra.mxu0 %v3341
        %3375 = vmatprep.subr.mxu0 %v3344
        %3376 = vmatpush1.msra.mxu0 %v3343
        %3377 = vmatprep.subr.mxu0 %v3346
        %3378 = vmatpush1.msra.mxu0 %v3345
        %3379 = vmatprep.subr.mxu0 %v3348
        %3380 = vmatpush1.msra.mxu0 %v3347
        %3381 = vmatprep.subr.mxu0 %v3350
        %3382 = vmatpush1.msra.mxu0 %v3349
        %3383 = vmatprep.subr.mxu0 %v3352
        %3384 = vmatpush1.msra.mxu0 %v3351
        %3385 = vmatprep.subr.mxu0 %v3354
        %3386 = vmatpush1.msra.mxu0 %v3353
        %3387 = vmatprep.subr.mxu0 0.0
        %3388 = vmatpush1.msra.mxu0 0.0
        %3389 = vmatprep.subr.mxu0 0.0
        %3390 = vmatpush1.msra.mxu0 0.0
        %3391 = vmatprep.subr.mxu0 0.0
        %3392 = vmatpush1.msra.mxu0 0.0
        %3393 = vmatprep.subr.mxu0 0.0
        %3394 = vmatpush1.msra.mxu0 0.0
        %3395 = vmatprep.subr.mxu0 0.0
        %3396 = vmatpush1.msra.mxu0 0.0
        %3397 = vmatprep.subr.mxu0 0.0
        %3398 = vmatpush1.msra.mxu0 0.0
        %3399 = vmatprep.subr.mxu0 0.0
        %3400 = vmatpush1.msra.mxu0 0.0
        %3401 = vmatprep.subr.mxu0 0.0
        %3402 = vmatpush1.msra.mxu0 0.0
        %3403 = vmatprep.subr.mxu0 0.0
        %3404 = vmatpush1.msra.mxu0 0.0
        %3405 = vmatprep.subr.mxu0 0.0
        %3406 = vmatpush1.msra.mxu0 0.0
        %3407 = vmatprep.subr.mxu0 0.0
        %3408 = vmatpush1.msra.mxu0 0.0
        %3409 = vmatprep.subr.mxu0 0.0
        %3410 = vmatpush1.msra.mxu0 0.0
        %3411 = vmatprep.subr.mxu0 0.0
        %3412 = vmatpush1.msra.mxu0 0.0
        %3413 = vmatprep.subr.mxu0 0.0
        %3414 = vmatpush1.msra.mxu0 0.0
        %3415 = vmatprep.subr.mxu0 0.0
        %3416 = vmatpush1.msra.mxu0 0.0
        %3417 = vmatprep.subr.mxu0 0.0
        %3418 = vmatpush1.msra.mxu0 0.0
        %3419 = vmatprep.mubr.f32.mxu0 0.0
        %3420 = vmatmul.mubr.f32.gmra.mrb[0].mxu0 %v3322
        %v3421 = vpop.f32.mrb[0].mxu0
        %v3422 = vadd.f32 0.0, %v3421
        %v3423 = vpop.f32.mrb[0].mxu0
        %v3424 = vadd.f32 0.0, %v3423
        %3425 = vdwg.mxu0
        %3426 = vmatprep.subr.mxu0 %v1950
        %3427 = vmatpush1.msra.mxu0 %v1949
        %3428 = vmatprep.subr.mxu0 %v1952
        %3429 = vmatpush1.msra.mxu0 %v1951
        %3430 = vmatprep.subr.mxu0 %v1954
        %3431 = vmatpush1.msra.mxu0 %v1953
        %3432 = vmatprep.subr.mxu0 %v1956
        %3433 = vmatpush1.msra.mxu0 %v1955
        %3434 = vmatprep.subr.mxu0 %v1958
        %3435 = vmatpush1.msra.mxu0 %v1957
        %3436 = vmatprep.subr.mxu0 %v1960
        %3437 = vmatpush1.msra.mxu0 %v1959
        %3438 = vmatprep.subr.mxu0 %v1962
        %3439 = vmatpush1.msra.mxu0 %v1961
        %3440 = vmatprep.subr.mxu0 %v1964
        %3441 = vmatpush1.msra.mxu0 %v1963
        %3442 = vmatprep.subr.mxu0 %v1966
        %3443 = vmatpush1.msra.mxu0 %v1965
        %3444 = vmatprep.subr.mxu0 %v1968
        %3445 = vmatpush1.msra.mxu0 %v1967
        %3446 = vmatprep.subr.mxu0 %v1970
        %3447 = vmatpush1.msra.mxu0 %v1969
        %3448 = vmatprep.subr.mxu0 %v1972
        %3449 = vmatpush1.msra.mxu0 %v1971
        %3450 = vmatprep.subr.mxu0 %v1974
        %3451 = vmatpush1.msra.mxu0 %v1973
        %3452 = vmatprep.subr.mxu0 %v1976
        %3453 = vmatpush1.msra.mxu0 %v1975
        %3454 = vmatprep.subr.mxu0 %v1978
        %3455 = vmatpush1.msra.mxu0 %v1977
        %3456 = vmatprep.subr.mxu0 %v1980
        %3457 = vmatpush1.msra.mxu0 %v1979
        %3458 = vmatprep.subr.mxu0 %v1982
        %3459 = vmatpush1.msra.mxu0 %v1981
        %3460 = vmatprep.subr.mxu0 %v1984
        %3461 = vmatpush1.msra.mxu0 %v1983
        %3462 = vmatprep.subr.mxu0 %v1986
        %3463 = vmatpush1.msra.mxu0 %v1985
        %3464 = vmatprep.subr.mxu0 %v1988
        %3465 = vmatpush1.msra.mxu0 %v1987
        %3466 = vmatprep.subr.mxu0 %v1990
        %3467 = vmatpush1.msra.mxu0 %v1989
        %3468 = vmatprep.subr.mxu0 %v1992
        %3469 = vmatpush1.msra.mxu0 %v1991
        %3470 = vmatprep.subr.mxu0 %v1994
        %3471 = vmatpush1.msra.mxu0 %v1993
        %3472 = vmatprep.subr.mxu0 %v1996
        %3473 = vmatpush1.msra.mxu0 %v1995
        %3474 = vmatprep.subr.mxu0 %v1998
        %3475 = vmatpush1.msra.mxu0 %v1997
        %3476 = vmatprep.subr.mxu0 %v2000
        %3477 = vmatpush1.msra.mxu0 %v1999
        %3478 = vmatprep.subr.mxu0 %v2002
        %3479 = vmatpush1.msra.mxu0 %v2001
        %3480 = vmatprep.subr.mxu0 %v2004
        %3481 = vmatpush1.msra.mxu0 %v2003
        %3482 = vmatprep.subr.mxu0 %v2006
        %3483 = vmatpush1.msra.mxu0 %v2005
        %3484 = vmatprep.subr.mxu0 %v2008
        %3485 = vmatpush1.msra.mxu0 %v2007
        %3486 = vmatprep.subr.mxu0 %v2010
        %3487 = vmatpush1.msra.mxu0 %v2009
        %3488 = vmatprep.subr.mxu0 %v2012
        %3489 = vmatpush1.msra.mxu0 %v2011
        %3490 = vmatprep.mubr.f32.mxu0 %v1857
        %3491 = vmatmul.mubr.f32.gmra.mrb[0].mxu0 %v1855
        %v3492 = vpop.f32.mrb[0].mxu0
        %v3493 = vadd.f32 %v3422, %v3492
        %v3494 = vpop.f32.mrb[0].mxu0
        %v3495 = vadd.f32 %v3424, %v3494
        %3496 = vdwg.mxu0
        %3497 = vmatprep.subr.mxu0 %v2014
        %3498 = vmatpush1.msra.mxu0 %v2013
        %3499 = vmatprep.subr.mxu0 %v2016
        %3500 = vmatpush1.msra.mxu0 %v2015
        %3501 = vmatprep.subr.mxu0 %v2018
        %3502 = vmatpush1.msra.mxu0 %v2017
        %3503 = vmatprep.subr.mxu0 %v2020
        %3504 = vmatpush1.msra.mxu0 %v2019
        %3505 = vmatprep.subr.mxu0 %v2022
        %3506 = vmatpush1.msra.mxu0 %v2021
        %3507 = vmatprep.subr.mxu0 %v2024
        %3508 = vmatpush1.msra.mxu0 %v2023
        %3509 = vmatprep.subr.mxu0 %v2026
        %3510 = vmatpush1.msra.mxu0 %v2025
        %3511 = vmatprep.subr.mxu0 %v2028
        %3512 = vmatpush1.msra.mxu0 %v2027
        %3513 = vmatprep.subr.mxu0 %v2030
        %3514 = vmatpush1.msra.mxu0 %v2029
        %3515 = vmatprep.subr.mxu0 %v2032
        %3516 = vmatpush1.msra.mxu0 %v2031
        %3517 = vmatprep.subr.mxu0 %v2034
        %3518 = vmatpush1.msra.mxu0 %v2033
        %3519 = vmatprep.subr.mxu0 %v2036
        %3520 = vmatpush1.msra.mxu0 %v2035
        %3521 = vmatprep.subr.mxu0 %v2038
        %3522 = vmatpush1.msra.mxu0 %v2037
        %3523 = vmatprep.subr.mxu0 %v2040
        %3524 = vmatpush1.msra.mxu0 %v2039
        %3525 = vmatprep.subr.mxu0 %v2042
        %3526 = vmatpush1.msra.mxu0 %v2041
        %3527 = vmatprep.subr.mxu0 %v2044
        %3528 = vmatpush1.msra.mxu0 %v2043
        %3529 = vmatprep.subr.mxu0 %v2046
        %3530 = vmatpush1.msra.mxu0 %v2045
        %3531 = vmatprep.subr.mxu0 %v2048
        %3532 = vmatpush1.msra.mxu0 %v2047
        %3533 = vmatprep.subr.mxu0 %v2050
        %3534 = vmatpush1.msra.mxu0 %v2049
        %3535 = vmatprep.subr.mxu0 %v2052
        %3536 = vmatpush1.msra.mxu0 %v2051
        %3537 = vmatprep.subr.mxu0 %v2054
        %3538 = vmatpush1.msra.mxu0 %v2053
        %3539 = vmatprep.subr.mxu0 %v2056
        %3540 = vmatpush1.msra.mxu0 %v2055
        %3541 = vmatprep.subr.mxu0 %v2058
        %3542 = vmatpush1.msra.mxu0 %v2057
        %3543 = vmatprep.subr.mxu0 %v2060
        %3544 = vmatpush1.msra.mxu0 %v2059
        %3545 = vmatprep.subr.mxu0 %v2062
        %3546 = vmatpush1.msra.mxu0 %v2061
        %3547 = vmatprep.subr.mxu0 %v2064
        %3548 = vmatpush1.msra.mxu0 %v2063
        %3549 = vmatprep.subr.mxu0 %v2066
        %3550 = vmatpush1.msra.mxu0 %v2065
        %3551 = vmatprep.subr.mxu0 %v2068
        %3552 = vmatpush1.msra.mxu0 %v2067
        %3553 = vmatprep.subr.mxu0 %v2070
        %3554 = vmatpush1.msra.mxu0 %v2069
        %3555 = vmatprep.subr.mxu0 %v2072
        %3556 = vmatpush1.msra.mxu0 %v2071
        %3557 = vmatprep.subr.mxu0 %v2074
        %3558 = vmatpush1.msra.mxu0 %v2073
        %3559 = vmatprep.subr.mxu0 %v2076
        %3560 = vmatpush1.msra.mxu0 %v2075
        %3561 = vmatprep.mubr.f32.mxu0 %v1863
        %3562 = vmatmul.mubr.f32.gmra.mrb[0].mxu0 %v1861
        %v3563 = vpop.f32.mrb[0].mxu0
        %v3564 = vadd.f32 %v3493, %v3563
        %v3565 = vpop.f32.mrb[0].mxu0
        %v3566 = vadd.f32 %v3495, %v3565
        %3567 = vdwg.mxu0
        %3568 = vmatprep.subr.mxu0 %v2078
        %3569 = vmatpush1.msra.mxu0 %v2077
        %3570 = vmatprep.subr.mxu0 %v2080
        %3571 = vmatpush1.msra.mxu0 %v2079
        %3572 = vmatprep.subr.mxu0 %v2082
        %3573 = vmatpush1.msra.mxu0 %v2081
        %3574 = vmatprep.subr.mxu0 %v2084
        %3575 = vmatpush1.msra.mxu0 %v2083
        %3576 = vmatprep.subr.mxu0 %v2086
        %3577 = vmatpush1.msra.mxu0 %v2085
        %3578 = vmatprep.subr.mxu0 %v2088
        %3579 = vmatpush1.msra.mxu0 %v2087
        %3580 = vmatprep.subr.mxu0 %v2090
        %3581 = vmatpush1.msra.mxu0 %v2089
        %3582 = vmatprep.subr.mxu0 %v2092
        %3583 = vmatpush1.msra.mxu0 %v2091
        %3584 = vmatprep.subr.mxu0 %v2094
        %3585 = vmatpush1.msra.mxu0 %v2093
        %3586 = vmatprep.subr.mxu0 %v2096
        %3587 = vmatpush1.msra.mxu0 %v2095
        %3588 = vmatprep.subr.mxu0 %v2098
        %3589 = vmatpush1.msra.mxu0 %v2097
        %3590 = vmatprep.subr.mxu0 %v2100
        %3591 = vmatpush1.msra.mxu0 %v2099
        %3592 = vmatprep.subr.mxu0 %v2102
        %3593 = vmatpush1.msra.mxu0 %v2101
        %3594 = vmatprep.subr.mxu0 %v2104
        %3595 = vmatpush1.msra.mxu0 %v2103
        %3596 = vmatprep.subr.mxu0 %v2106
        %3597 = vmatpush1.msra.mxu0 %v2105
        %3598 = vmatprep.subr.mxu0 %v2108
        %3599 = vmatpush1.msra.mxu0 %v2107
        %3600 = vmatprep.subr.mxu0 %v2110
        %3601 = vmatpush1.msra.mxu0 %v2109
        %3602 = vmatprep.subr.mxu0 %v2112
        %3603 = vmatpush1.msra.mxu0 %v2111
        %3604 = vmatprep.subr.mxu0 %v2114
        %3605 = vmatpush1.msra.mxu0 %v2113
        %3606 = vmatprep.subr.mxu0 %v2116
        %3607 = vmatpush1.msra.mxu0 %v2115
        %3608 = vmatprep.subr.mxu0 %v2118
        %3609 = vmatpush1.msra.mxu0 %v2117
        %3610 = vmatprep.subr.mxu0 %v2120
        %3611 = vmatpush1.msra.mxu0 %v2119
        %3612 = vmatprep.subr.mxu0 %v2122
        %3613 = vmatpush1.msra.mxu0 %v2121
        %3614 = vmatprep.subr.mxu0 %v2124
        %3615 = vmatpush1.msra.mxu0 %v2123
        %3616 = vmatprep.subr.mxu0 %v2126
        %3617 = vmatpush1.msra.mxu0 %v2125
        %3618 = vmatprep.subr.mxu0 %v2128
        %3619 = vmatpush1.msra.mxu0 %v2127
        %3620 = vmatprep.subr.mxu0 %v2130
        %3621 = vmatpush1.msra.mxu0 %v2129
        %3622 = vmatprep.subr.mxu0 %v2132
        %3623 = vmatpush1.msra.mxu0 %v2131
        %3624 = vmatprep.subr.mxu0 %v2134
        %3625 = vmatpush1.msra.mxu0 %v2133
        %3626 = vmatprep.subr.mxu0 %v2136
        %3627 = vmatpush1.msra.mxu0 %v2135
        %3628 = vmatprep.subr.mxu0 %v2138
        %3629 = vmatpush1.msra.mxu0 %v2137
        %3630 = vmatprep.subr.mxu0 %v2140
        %3631 = vmatpush1.msra.mxu0 %v2139
        %3632 = vmatprep.mubr.f32.mxu0 %v1869
        %3633 = vmatmul.mubr.f32.gmra.mrb[0].mxu0 %v1867
        %v3634 = vpop.f32.mrb[0].mxu0
        %v3635 = vadd.f32 %v3564, %v3634
        %v3636 = vpop.f32.mrb[0].mxu0
        %v3637 = vadd.f32 %v3566, %v3636
        %3638 = vdwg.mxu0
        %3639 = vmatprep.subr.mxu0 %v2142
        %3640 = vmatpush1.msra.mxu0 %v2141
        %3641 = vmatprep.subr.mxu0 %v2144
        %3642 = vmatpush1.msra.mxu0 %v2143
        %3643 = vmatprep.subr.mxu0 %v2146
        %3644 = vmatpush1.msra.mxu0 %v2145
        %3645 = vmatprep.subr.mxu0 %v2148
        %3646 = vmatpush1.msra.mxu0 %v2147
        %3647 = vmatprep.subr.mxu0 %v2150
        %3648 = vmatpush1.msra.mxu0 %v2149
        %3649 = vmatprep.subr.mxu0 %v2152
        %3650 = vmatpush1.msra.mxu0 %v2151
        %3651 = vmatprep.subr.mxu0 %v2154
        %3652 = vmatpush1.msra.mxu0 %v2153
        %3653 = vmatprep.subr.mxu0 %v2156
        %3654 = vmatpush1.msra.mxu0 %v2155
        %3655 = vmatprep.subr.mxu0 %v2158
        %3656 = vmatpush1.msra.mxu0 %v2157
        %3657 = vmatprep.subr.mxu0 %v2160
        %3658 = vmatpush1.msra.mxu0 %v2159
        %3659 = vmatprep.subr.mxu0 %v2162
        %3660 = vmatpush1.msra.mxu0 %v2161
        %3661 = vmatprep.subr.mxu0 %v2164
        %3662 = vmatpush1.msra.mxu0 %v2163
        %3663 = vmatprep.subr.mxu0 %v2166
        %3664 = vmatpush1.msra.mxu0 %v2165
        %3665 = vmatprep.subr.mxu0 %v2168
        %3666 = vmatpush1.msra.mxu0 %v2167
        %3667 = vmatprep.subr.mxu0 %v2170
        %3668 = vmatpush1.msra.mxu0 %v2169
        %3669 = vmatprep.subr.mxu0 %v2172
        %3670 = vmatpush1.msra.mxu0 %v2171
        %3671 = vmatprep.subr.mxu0 %v2174
        %3672 = vmatpush1.msra.mxu0 %v2173
        %3673 = vmatprep.subr.mxu0 %v2176
        %3674 = vmatpush1.msra.mxu0 %v2175
        %3675 = vmatprep.subr.mxu0 %v2178
        %3676 = vmatpush1.msra.mxu0 %v2177
        %3677 = vmatprep.subr.mxu0 %v2180
        %3678 = vmatpush1.msra.mxu0 %v2179
        %3679 = vmatprep.subr.mxu0 %v2182
        %3680 = vmatpush1.msra.mxu0 %v2181
        %3681 = vmatprep.subr.mxu0 %v2184
        %3682 = vmatpush1.msra.mxu0 %v2183
        %3683 = vmatprep.subr.mxu0 %v2186
        %3684 = vmatpush1.msra.mxu0 %v2185
        %3685 = vmatprep.subr.mxu0 %v2188
        %3686 = vmatpush1.msra.mxu0 %v2187
        %3687 = vmatprep.subr.mxu0 %v2190
        %3688 = vmatpush1.msra.mxu0 %v2189
        %3689 = vmatprep.subr.mxu0 %v2192
        %3690 = vmatpush1.msra.mxu0 %v2191
        %3691 = vmatprep.subr.mxu0 %v2194
        %3692 = vmatpush1.msra.mxu0 %v2193
        %3693 = vmatprep.subr.mxu0 %v2196
        %3694 = vmatpush1.msra.mxu0 %v2195
        %3695 = vmatprep.subr.mxu0 %v2198
        %3696 = vmatpush1.msra.mxu0 %v2197
        %3697 = vmatprep.subr.mxu0 %v2200
        %3698 = vmatpush1.msra.mxu0 %v2199
        %3699 = vmatprep.subr.mxu0 %v2202
        %3700 = vmatpush1.msra.mxu0 %v2201
        %3701 = vmatprep.subr.mxu0 %v2204
        %3702 = vmatpush1.msra.mxu0 %v2203
        %3703 = vmatprep.mubr.f32.mxu0 %v1875
        %3704 = vmatmul.mubr.f32.gmra.mrb[0].mxu0 %v1873
        %v3705 = vpop.f32.mrb[0].mxu0
        %v3706 = vadd.f32 %v3635, %v3705
        %v3707 = vpop.f32.mrb[0].mxu0
        %v3708 = vadd.f32 %v3637, %v3707
        %3709 = vdwg.mxu0
        %3710 = vmatprep.subr.mxu0 %v2206
        %3711 = vmatpush1.msra.mxu0 %v2205
        %3712 = vmatprep.subr.mxu0 %v2208
        %3713 = vmatpush1.msra.mxu0 %v2207
        %3714 = vmatprep.subr.mxu0 %v2210
        %3715 = vmatpush1.msra.mxu0 %v2209
        %3716 = vmatprep.subr.mxu0 %v2212
        %3717 = vmatpush1.msra.mxu0 %v2211
        %3718 = vmatprep.subr.mxu0 %v2214
        %3719 = vmatpush1.msra.mxu0 %v2213
        %3720 = vmatprep.subr.mxu0 %v2216
        %3721 = vmatpush1.msra.mxu0 %v2215
        %3722 = vmatprep.subr.mxu0 %v2218
        %3723 = vmatpush1.msra.mxu0 %v2217
        %3724 = vmatprep.subr.mxu0 %v2220
        %3725 = vmatpush1.msra.mxu0 %v2219
        %3726 = vmatprep.subr.mxu0 %v2222
        %3727 = vmatpush1.msra.mxu0 %v2221
        %3728 = vmatprep.subr.mxu0 %v2224
        %3729 = vmatpush1.msra.mxu0 %v2223
        %3730 = vmatprep.subr.mxu0 %v2226
        %3731 = vmatpush1.msra.mxu0 %v2225
        %3732 = vmatprep.subr.mxu0 %v2228
        %3733 = vmatpush1.msra.mxu0 %v2227
        %3734 = vmatprep.subr.mxu0 %v2230
        %3735 = vmatpush1.msra.mxu0 %v2229
        %3736 = vmatprep.subr.mxu0 %v2232
        %3737 = vmatpush1.msra.mxu0 %v2231
        %3738 = vmatprep.subr.mxu0 %v2234
        %3739 = vmatpush1.msra.mxu0 %v2233
        %3740 = vmatprep.subr.mxu0 %v2236
        %3741 = vmatpush1.msra.mxu0 %v2235
        %3742 = vmatprep.subr.mxu0 %v2238
        %3743 = vmatpush1.msra.mxu0 %v2237
        %3744 = vmatprep.subr.mxu0 %v2240
        %3745 = vmatpush1.msra.mxu0 %v2239
        %3746 = vmatprep.subr.mxu0 %v2242
        %3747 = vmatpush1.msra.mxu0 %v2241
        %3748 = vmatprep.subr.mxu0 %v2244
        %3749 = vmatpush1.msra.mxu0 %v2243
        %3750 = vmatprep.subr.mxu0 %v2246
        %3751 = vmatpush1.msra.mxu0 %v2245
        %3752 = vmatprep.subr.mxu0 %v2248
        %3753 = vmatpush1.msra.mxu0 %v2247
        %3754 = vmatprep.subr.mxu0 %v2250
        %3755 = vmatpush1.msra.mxu0 %v2249
        %3756 = vmatprep.subr.mxu0 %v2252
        %3757 = vmatpush1.msra.mxu0 %v2251
        %3758 = vmatprep.subr.mxu0 %v2254
        %3759 = vmatpush1.msra.mxu0 %v2253
        %3760 = vmatprep.subr.mxu0 %v2256
        %3761 = vmatpush1.msra.mxu0 %v2255
        %3762 = vmatprep.subr.mxu0 %v2258
        %3763 = vmatpush1.msra.mxu0 %v2257
        %3764 = vmatprep.subr.mxu0 %v2260
        %3765 = vmatpush1.msra.mxu0 %v2259
        %3766 = vmatprep.subr.mxu0 %v2262
        %3767 = vmatpush1.msra.mxu0 %v2261
        %3768 = vmatprep.subr.mxu0 %v2264
        %3769 = vmatpush1.msra.mxu0 %v2263
        %3770 = vmatprep.subr.mxu0 %v2266
        %3771 = vmatpush1.msra.mxu0 %v2265
        %3772 = vmatprep.subr.mxu0 %v2268
        %3773 = vmatpush1.msra.mxu0 %v2267
        %3774 = vmatprep.mubr.f32.mxu0 %v1880
        %3775 = vmatmul.mubr.f32.gmra.mrb[0].mxu0 %v1879
        %v3776 = vpop.f32.mrb[0].mxu0
        %v3777 = vadd.f32 %v3706, %v3776
        %v3778 = vpop.f32.mrb[0].mxu0
        %v3779 = vadd.f32 %v3708, %v3778
        %3780 = vdwg.mxu0
        %3781 = vmatprep.subr.mxu0 %v2270
        %3782 = vmatpush1.msra.mxu0 %v2269
        %3783 = vmatprep.subr.mxu0 %v2272
        %3784 = vmatpush1.msra.mxu0 %v2271
        %3785 = vmatprep.subr.mxu0 %v2274
        %3786 = vmatpush1.msra.mxu0 %v2273
        %3787 = vmatprep.subr.mxu0 %v2276
        %3788 = vmatpush1.msra.mxu0 %v2275
        %3789 = vmatprep.subr.mxu0 %v2278
        %3790 = vmatpush1.msra.mxu0 %v2277
        %3791 = vmatprep.subr.mxu0 %v2280
        %3792 = vmatpush1.msra.mxu0 %v2279
        %3793 = vmatprep.subr.mxu0 %v2282
        %3794 = vmatpush1.msra.mxu0 %v2281
        %3795 = vmatprep.subr.mxu0 %v2284
        %3796 = vmatpush1.msra.mxu0 %v2283
        %3797 = vmatprep.subr.mxu0 %v2286
        %3798 = vmatpush1.msra.mxu0 %v2285
        %3799 = vmatprep.subr.mxu0 %v2288
        %3800 = vmatpush1.msra.mxu0 %v2287
        %3801 = vmatprep.subr.mxu0 %v2290
        %3802 = vmatpush1.msra.mxu0 %v2289
        %3803 = vmatprep.subr.mxu0 %v2292
        %3804 = vmatpush1.msra.mxu0 %v2291
        %3805 = vmatprep.subr.mxu0 %v2294
        %3806 = vmatpush1.msra.mxu0 %v2293
        %3807 = vmatprep.subr.mxu0 %v2296
        %3808 = vmatpush1.msra.mxu0 %v2295
        %3809 = vmatprep.subr.mxu0 %v2298
        %3810 = vmatpush1.msra.mxu0 %v2297
        %3811 = vmatprep.subr.mxu0 %v2300
        %3812 = vmatpush1.msra.mxu0 %v2299
        %3813 = vmatprep.subr.mxu0 %v2302
        %3814 = vmatpush1.msra.mxu0 %v2301
        %3815 = vmatprep.subr.mxu0 %v2304
        %3816 = vmatpush1.msra.mxu0 %v2303
        %3817 = vmatprep.subr.mxu0 %v2306
        %3818 = vmatpush1.msra.mxu0 %v2305
        %3819 = vmatprep.subr.mxu0 %v2308
        %3820 = vmatpush1.msra.mxu0 %v2307
        %3821 = vmatprep.subr.mxu0 %v2310
        %3822 = vmatpush1.msra.mxu0 %v2309
        %3823 = vmatprep.subr.mxu0 %v2312
        %3824 = vmatpush1.msra.mxu0 %v2311
        %3825 = vmatprep.subr.mxu0 %v2314
        %3826 = vmatpush1.msra.mxu0 %v2313
        %3827 = vmatprep.subr.mxu0 %v2316
        %3828 = vmatpush1.msra.mxu0 %v2315
        %3829 = vmatprep.subr.mxu0 %v2318
        %3830 = vmatpush1.msra.mxu0 %v2317
        %3831 = vmatprep.subr.mxu0 %v2320
        %3832 = vmatpush1.msra.mxu0 %v2319
        %3833 = vmatprep.subr.mxu0 %v2322
        %3834 = vmatpush1.msra.mxu0 %v2321
        %3835 = vmatprep.subr.mxu0 %v2324
        %3836 = vmatpush1.msra.mxu0 %v2323
        %3837 = vmatprep.subr.mxu0 %v2326
        %3838 = vmatpush1.msra.mxu0 %v2325
        %3839 = vmatprep.subr.mxu0 %v2328
        %3840 = vmatpush1.msra.mxu0 %v2327
        %3841 = vmatprep.subr.mxu0 %v2330
        %3842 = vmatpush1.msra.mxu0 %v2329
        %3843 = vmatprep.subr.mxu0 %v2332
        %3844 = vmatpush1.msra.mxu0 %v2331
        %3845 = vmatprep.mubr.f32.mxu0 %v1886
        %3846 = vmatmul.mubr.f32.gmra.mrb[0].mxu0 %v1885
        %v3847 = vpop.f32.mrb[0].mxu0
        %v3848 = vadd.f32 %v3777, %v3847
        %v3849 = vpop.f32.mrb[0].mxu0
        %v3850 = vadd.f32 %v3779, %v3849
        %3851 = vdwg.mxu0
        %3852 = vmatprep.subr.mxu0 %v2334
        %3853 = vmatpush1.msra.mxu0 %v2333
        %3854 = vmatprep.subr.mxu0 %v2336
        %3855 = vmatpush1.msra.mxu0 %v2335
        %3856 = vmatprep.subr.mxu0 %v2338
        %3857 = vmatpush1.msra.mxu0 %v2337
        %3858 = vmatprep.subr.mxu0 %v2340
        %3859 = vmatpush1.msra.mxu0 %v2339
        %3860 = vmatprep.subr.mxu0 %v2342
        %3861 = vmatpush1.msra.mxu0 %v2341
        %3862 = vmatprep.subr.mxu0 %v2344
        %3863 = vmatpush1.msra.mxu0 %v2343
        %3864 = vmatprep.subr.mxu0 %v2346
        %3865 = vmatpush1.msra.mxu0 %v2345
        %3866 = vmatprep.subr.mxu0 %v2348
        %3867 = vmatpush1.msra.mxu0 %v2347
        %3868 = vmatprep.subr.mxu0 %v2350
        %3869 = vmatpush1.msra.mxu0 %v2349
        %3870 = vmatprep.subr.mxu0 %v2352
        %3871 = vmatpush1.msra.mxu0 %v2351
        %3872 = vmatprep.subr.mxu0 %v2354
        %3873 = vmatpush1.msra.mxu0 %v2353
        %3874 = vmatprep.subr.mxu0 %v2356
        %3875 = vmatpush1.msra.mxu0 %v2355
        %3876 = vmatprep.subr.mxu0 %v2358
        %3877 = vmatpush1.msra.mxu0 %v2357
        %3878 = vmatprep.subr.mxu0 %v2360
        %3879 = vmatpush1.msra.mxu0 %v2359
        %3880 = vmatprep.subr.mxu0 %v2362
        %3881 = vmatpush1.msra.mxu0 %v2361
        %3882 = vmatprep.subr.mxu0 %v2364
        %3883 = vmatpush1.msra.mxu0 %v2363
        %3884 = vmatprep.subr.mxu0 %v2366
        %3885 = vmatpush1.msra.mxu0 %v2365
        %3886 = vmatprep.subr.mxu0 %v2368
        %3887 = vmatpush1.msra.mxu0 %v2367
        %3888 = vmatprep.subr.mxu0 %v2370
        %3889 = vmatpush1.msra.mxu0 %v2369
        %3890 = vmatprep.subr.mxu0 %v2372
        %3891 = vmatpush1.msra.mxu0 %v2371
        %3892 = vmatprep.subr.mxu0 %v2374
        %3893 = vmatpush1.msra.mxu0 %v2373
        %3894 = vmatprep.subr.mxu0 %v2376
        %3895 = vmatpush1.msra.mxu0 %v2375
        %3896 = vmatprep.subr.mxu0 %v2378
        %3897 = vmatpush1.msra.mxu0 %v2377
        %3898 = vmatprep.subr.mxu0 %v2380
        %3899 = vmatpush1.msra.mxu0 %v2379
        %3900 = vmatprep.subr.mxu0 %v2382
        %3901 = vmatpush1.msra.mxu0 %v2381
        %3902 = vmatprep.subr.mxu0 %v2384
        %3903 = vmatpush1.msra.mxu0 %v2383
        %3904 = vmatprep.subr.mxu0 %v2386
        %3905 = vmatpush1.msra.mxu0 %v2385
        %3906 = vmatprep.subr.mxu0 %v2388
        %3907 = vmatpush1.msra.mxu0 %v2387
        %3908 = vmatprep.subr.mxu0 %v2390
        %3909 = vmatpush1.msra.mxu0 %v2389
        %3910 = vmatprep.subr.mxu0 %v2392
        %3911 = vmatpush1.msra.mxu0 %v2391
        %3912 = vmatprep.subr.mxu0 %v2394
        %3913 = vmatpush1.msra.mxu0 %v2393
        %3914 = vmatprep.subr.mxu0 %v2396
        %3915 = vmatpush1.msra.mxu0 %v2395
        %3916 = vmatprep.mubr.f32.mxu0 %v1892
        %3917 = vmatmul.mubr.f32.gmra.mrb[0].mxu0 %v1891
        %v3918 = vpop.f32.mrb[0].mxu0
        %v3919 = vadd.f32 %v3848, %v3918
        %v3920 = vpop.f32.mrb[0].mxu0
        %v3921 = vadd.f32 %v3850, %v3920
        %3922 = vdwg.mxu0
        %3923 = vmatprep.subr.mxu0 %v2398
        %3924 = vmatpush1.msra.mxu0 %v2397
        %3925 = vmatprep.subr.mxu0 %v2400
        %3926 = vmatpush1.msra.mxu0 %v2399
        %3927 = vmatprep.subr.mxu0 %v2402
        %3928 = vmatpush1.msra.mxu0 %v2401
        %3929 = vmatprep.subr.mxu0 %v2404
        %3930 = vmatpush1.msra.mxu0 %v2403
        %3931 = vmatprep.subr.mxu0 %v2406
        %3932 = vmatpush1.msra.mxu0 %v2405
        %3933 = vmatprep.subr.mxu0 %v2408
        %3934 = vmatpush1.msra.mxu0 %v2407
        %3935 = vmatprep.subr.mxu0 %v2410
        %3936 = vmatpush1.msra.mxu0 %v2409
        %3937 = vmatprep.subr.mxu0 %v2412
        %3938 = vmatpush1.msra.mxu0 %v2411
        %3939 = vmatprep.subr.mxu0 %v2414
        %3940 = vmatpush1.msra.mxu0 %v2413
        %3941 = vmatprep.subr.mxu0 %v2416
        %3942 = vmatpush1.msra.mxu0 %v2415
        %3943 = vmatprep.subr.mxu0 %v2418
        %3944 = vmatpush1.msra.mxu0 %v2417
        %3945 = vmatprep.subr.mxu0 %v2420
        %3946 = vmatpush1.msra.mxu0 %v2419
        %3947 = vmatprep.subr.mxu0 %v2422
        %3948 = vmatpush1.msra.mxu0 %v2421
        %3949 = vmatprep.subr.mxu0 %v2424
        %3950 = vmatpush1.msra.mxu0 %v2423
        %3951 = vmatprep.subr.mxu0 %v2426
        %3952 = vmatpush1.msra.mxu0 %v2425
        %3953 = vmatprep.subr.mxu0 %v2428
        %3954 = vmatpush1.msra.mxu0 %v2427
        %3955 = vmatprep.subr.mxu0 %v2430
        %3956 = vmatpush1.msra.mxu0 %v2429
        %3957 = vmatprep.subr.mxu0 %v2432
        %3958 = vmatpush1.msra.mxu0 %v2431
        %3959 = vmatprep.subr.mxu0 %v2434
        %3960 = vmatpush1.msra.mxu0 %v2433
        %3961 = vmatprep.subr.mxu0 %v2436
        %3962 = vmatpush1.msra.mxu0 %v2435
        %3963 = vmatprep.subr.mxu0 %v2438
        %3964 = vmatpush1.msra.mxu0 %v2437
        %3965 = vmatprep.subr.mxu0 %v2440
        %3966 = vmatpush1.msra.mxu0 %v2439
        %3967 = vmatprep.subr.mxu0 %v2442
        %3968 = vmatpush1.msra.mxu0 %v2441
        %3969 = vmatprep.subr.mxu0 %v2444
        %3970 = vmatpush1.msra.mxu0 %v2443
        %3971 = vmatprep.subr.mxu0 %v2446
        %3972 = vmatpush1.msra.mxu0 %v2445
        %3973 = vmatprep.subr.mxu0 %v2448
        %3974 = vmatpush1.msra.mxu0 %v2447
        %3975 = vmatprep.subr.mxu0 %v2450
        %3976 = vmatpush1.msra.mxu0 %v2449
        %3977 = vmatprep.subr.mxu0 %v2452
        %3978 = vmatpush1.msra.mxu0 %v2451
        %3979 = vmatprep.subr.mxu0 %v2454
        %3980 = vmatpush1.msra.mxu0 %v2453
        %3981 = vmatprep.subr.mxu0 %v2456
        %3982 = vmatpush1.msra.mxu0 %v2455
        %3983 = vmatprep.subr.mxu0 %v2458
        %3984 = vmatpush1.msra.mxu0 %v2457
        %3985 = vmatprep.subr.mxu0 %v2460
        %3986 = vmatpush1.msra.mxu0 %v2459
        %3987 = vmatprep.mubr.f32.mxu0 %v1898
        %3988 = vmatmul.mubr.f32.gmra.mrb[0].mxu0 %v1897
        %v3989 = vpop.f32.mrb[0].mxu0
        %v3990 = vadd.f32 %v3919, %v3989
        %v3991 = vpop.f32.mrb[0].mxu0
        %v3992 = vadd.f32 %v3921, %v3991
        %3993 = vdwg.mxu0
        %3994 = vmatprep.subr.mxu0 %v2462
        %3995 = vmatpush1.msra.mxu0 %v2461
        %3996 = vmatprep.subr.mxu0 %v2464
        %3997 = vmatpush1.msra.mxu0 %v2463
        %3998 = vmatprep.subr.mxu0 %v2466
        %3999 = vmatpush1.msra.mxu0 %v2465
        %4000 = vmatprep.subr.mxu0 %v2468
        %4001 = vmatpush1.msra.mxu0 %v2467
        %4002 = vmatprep.subr.mxu0 %v2470
        %4003 = vmatpush1.msra.mxu0 %v2469
        %4004 = vmatprep.subr.mxu0 %v2472
        %4005 = vmatpush1.msra.mxu0 %v2471
        %4006 = vmatprep.subr.mxu0 %v2474
        %4007 = vmatpush1.msra.mxu0 %v2473
        %4008 = vmatprep.subr.mxu0 %v2476
        %4009 = vmatpush1.msra.mxu0 %v2475
        %4010 = vmatprep.subr.mxu0 %v2478
        %4011 = vmatpush1.msra.mxu0 %v2477
        %4012 = vmatprep.subr.mxu0 %v2480
        %4013 = vmatpush1.msra.mxu0 %v2479
        %4014 = vmatprep.subr.mxu0 %v2482
        %4015 = vmatpush1.msra.mxu0 %v2481
        %4016 = vmatprep.subr.mxu0 %v2484
        %4017 = vmatpush1.msra.mxu0 %v2483
        %4018 = vmatprep.subr.mxu0 %v2486
        %4019 = vmatpush1.msra.mxu0 %v2485
        %4020 = vmatprep.subr.mxu0 %v2488
        %4021 = vmatpush1.msra.mxu0 %v2487
        %4022 = vmatprep.subr.mxu0 %v2490
        %4023 = vmatpush1.msra.mxu0 %v2489
        %4024 = vmatprep.subr.mxu0 %v2492
        %4025 = vmatpush1.msra.mxu0 %v2491
        %4026 = vmatprep.subr.mxu0 %v2494
        %4027 = vmatpush1.msra.mxu0 %v2493
        %4028 = vmatprep.subr.mxu0 %v2496
        %4029 = vmatpush1.msra.mxu0 %v2495
        %4030 = vmatprep.subr.mxu0 %v2498
        %4031 = vmatpush1.msra.mxu0 %v2497
        %4032 = vmatprep.subr.mxu0 %v2500
        %4033 = vmatpush1.msra.mxu0 %v2499
        %4034 = vmatprep.subr.mxu0 %v2502
        %4035 = vmatpush1.msra.mxu0 %v2501
        %4036 = vmatprep.subr.mxu0 %v2504
        %4037 = vmatpush1.msra.mxu0 %v2503
        %4038 = vmatprep.subr.mxu0 %v2506
        %4039 = vmatpush1.msra.mxu0 %v2505
        %4040 = vmatprep.subr.mxu0 %v2508
        %4041 = vmatpush1.msra.mxu0 %v2507
        %4042 = vmatprep.subr.mxu0 %v2510
        %4043 = vmatpush1.msra.mxu0 %v2509
        %4044 = vmatprep.subr.mxu0 %v2512
        %4045 = vmatpush1.msra.mxu0 %v2511
        %4046 = vmatprep.subr.mxu0 %v2514
        %4047 = vmatpush1.msra.mxu0 %v2513
        %4048 = vmatprep.subr.mxu0 %v2516
        %4049 = vmatpush1.msra.mxu0 %v2515
        %4050 = vmatprep.subr.mxu0 %v2518
        %4051 = vmatpush1.msra.mxu0 %v2517
        %4052 = vmatprep.subr.mxu0 %v2520
        %4053 = vmatpush1.msra.mxu0 %v2519
        %4054 = vmatprep.subr.mxu0 %v2522
        %4055 = vmatpush1.msra.mxu0 %v2521
        %4056 = vmatprep.subr.mxu0 %v2524
        %4057 = vmatpush1.msra.mxu0 %v2523
        %4058 = vmatprep.mubr.f32.mxu0 %v1902
        %4059 = vmatmul.mubr.f32.gmra.mrb[0].mxu0 %v1901
        %v4060 = vpop.f32.mrb[0].mxu0
        %v4061 = vadd.f32 %v3990, %v4060
        %v4062 = vpop.f32.mrb[0].mxu0
        %v4063 = vadd.f32 %v3992, %v4062
        %4064 = vdwg.mxu0
        %4065 = vmatprep.subr.mxu0 %v2526
        %4066 = vmatpush1.msra.mxu0 %v2525
        %4067 = vmatprep.subr.mxu0 %v2528
        %4068 = vmatpush1.msra.mxu0 %v2527
        %4069 = vmatprep.subr.mxu0 %v2530
        %4070 = vmatpush1.msra.mxu0 %v2529
        %4071 = vmatprep.subr.mxu0 %v2532
        %4072 = vmatpush1.msra.mxu0 %v2531
        %4073 = vmatprep.subr.mxu0 %v2534
        %4074 = vmatpush1.msra.mxu0 %v2533
        %4075 = vmatprep.subr.mxu0 %v2536
        %4076 = vmatpush1.msra.mxu0 %v2535
        %4077 = vmatprep.subr.mxu0 %v2538
        %4078 = vmatpush1.msra.mxu0 %v2537
        %4079 = vmatprep.subr.mxu0 %v2540
        %4080 = vmatpush1.msra.mxu0 %v2539
        %4081 = vmatprep.subr.mxu0 %v2542
        %4082 = vmatpush1.msra.mxu0 %v2541
        %4083 = vmatprep.subr.mxu0 %v2544
        %4084 = vmatpush1.msra.mxu0 %v2543
        %4085 = vmatprep.subr.mxu0 %v2546
        %4086 = vmatpush1.msra.mxu0 %v2545
        %4087 = vmatprep.subr.mxu0 %v2548
        %4088 = vmatpush1.msra.mxu0 %v2547
        %4089 = vmatprep.subr.mxu0 %v2550
        %4090 = vmatpush1.msra.mxu0 %v2549
        %4091 = vmatprep.subr.mxu0 %v2552
        %4092 = vmatpush1.msra.mxu0 %v2551
        %4093 = vmatprep.subr.mxu0 %v2554
        %4094 = vmatpush1.msra.mxu0 %v2553
        %4095 = vmatprep.subr.mxu0 %v2556
        %4096 = vmatpush1.msra.mxu0 %v2555
        %4097 = vmatprep.subr.mxu0 %v2558
        %4098 = vmatpush1.msra.mxu0 %v2557
        %4099 = vmatprep.subr.mxu0 %v2560
        %4100 = vmatpush1.msra.mxu0 %v2559
        %4101 = vmatprep.subr.mxu0 %v2562
        %4102 = vmatpush1.msra.mxu0 %v2561
        %4103 = vmatprep.subr.mxu0 %v2564
        %4104 = vmatpush1.msra.mxu0 %v2563
        %4105 = vmatprep.subr.mxu0 %v2566
        %4106 = vmatpush1.msra.mxu0 %v2565
        %4107 = vmatprep.subr.mxu0 %v2568
        %4108 = vmatpush1.msra.mxu0 %v2567
        %4109 = vmatprep.subr.mxu0 %v2570
        %4110 = vmatpush1.msra.mxu0 %v2569
        %4111 = vmatprep.subr.mxu0 %v2572
        %4112 = vmatpush1.msra.mxu0 %v2571
        %4113 = vmatprep.subr.mxu0 %v2574
        %4114 = vmatpush1.msra.mxu0 %v2573
        %4115 = vmatprep.subr.mxu0 %v2576
        %4116 = vmatpush1.msra.mxu0 %v2575
        %4117 = vmatprep.subr.mxu0 %v2578
        %4118 = vmatpush1.msra.mxu0 %v2577
        %4119 = vmatprep.subr.mxu0 %v2580
        %4120 = vmatpush1.msra.mxu0 %v2579
        %4121 = vmatprep.subr.mxu0 %v2582
        %4122 = vmatpush1.msra.mxu0 %v2581
        %4123 = vmatprep.subr.mxu0 %v2584
        %4124 = vmatpush1.msra.mxu0 %v2583
        %4125 = vmatprep.subr.mxu0 %v2586
        %4126 = vmatpush1.msra.mxu0 %v2585
        %4127 = vmatprep.subr.mxu0 %v2588
        %4128 = vmatpush1.msra.mxu0 %v2587
        %4129 = vmatprep.mubr.f32.mxu0 %v1906
        %4130 = vmatmul.mubr.f32.gmra.mrb[0].mxu0 %v1905
        %v4131 = vpop.f32.mrb[0].mxu0
        %v4132 = vadd.f32 %v4061, %v4131
        %v4133 = vpop.f32.mrb[0].mxu0
        %v4134 = vadd.f32 %v4063, %v4133
        %4135 = vdwg.mxu0
        %4136 = vmatprep.subr.mxu0 %v2590
        %4137 = vmatpush1.msra.mxu0 %v2589
        %4138 = vmatprep.subr.mxu0 %v2592
        %4139 = vmatpush1.msra.mxu0 %v2591
        %4140 = vmatprep.subr.mxu0 %v2594
        %4141 = vmatpush1.msra.mxu0 %v2593
        %4142 = vmatprep.subr.mxu0 %v2596
        %4143 = vmatpush1.msra.mxu0 %v2595
        %4144 = vmatprep.subr.mxu0 %v2598
        %4145 = vmatpush1.msra.mxu0 %v2597
        %4146 = vmatprep.subr.mxu0 %v2600
        %4147 = vmatpush1.msra.mxu0 %v2599
        %4148 = vmatprep.subr.mxu0 %v2602
        %4149 = vmatpush1.msra.mxu0 %v2601
        %4150 = vmatprep.subr.mxu0 %v2604
        %4151 = vmatpush1.msra.mxu0 %v2603
        %4152 = vmatprep.subr.mxu0 %v2606
        %4153 = vmatpush1.msra.mxu0 %v2605
        %4154 = vmatprep.subr.mxu0 %v2608
        %4155 = vmatpush1.msra.mxu0 %v2607
        %4156 = vmatprep.subr.mxu0 %v2610
        %4157 = vmatpush1.msra.mxu0 %v2609
        %4158 = vmatprep.subr.mxu0 %v2612
        %4159 = vmatpush1.msra.mxu0 %v2611
        %4160 = vmatprep.subr.mxu0 %v2614
        %4161 = vmatpush1.msra.mxu0 %v2613
        %4162 = vmatprep.subr.mxu0 %v2616
        %4163 = vmatpush1.msra.mxu0 %v2615
        %4164 = vmatprep.subr.mxu0 %v2618
        %4165 = vmatpush1.msra.mxu0 %v2617
        %4166 = vmatprep.subr.mxu0 %v2620
        %4167 = vmatpush1.msra.mxu0 %v2619
        %4168 = vmatprep.subr.mxu0 %v2622
        %4169 = vmatpush1.msra.mxu0 %v2621
        %4170 = vmatprep.subr.mxu0 %v2624
        %4171 = vmatpush1.msra.mxu0 %v2623
        %4172 = vmatprep.subr.mxu0 %v2626
        %4173 = vmatpush1.msra.mxu0 %v2625
        %4174 = vmatprep.subr.mxu0 %v2628
        %4175 = vmatpush1.msra.mxu0 %v2627
        %4176 = vmatprep.subr.mxu0 %v2630
        %4177 = vmatpush1.msra.mxu0 %v2629
        %4178 = vmatprep.subr.mxu0 %v2632
        %4179 = vmatpush1.msra.mxu0 %v2631
        %4180 = vmatprep.subr.mxu0 %v2634
        %4181 = vmatpush1.msra.mxu0 %v2633
        %4182 = vmatprep.subr.mxu0 %v2636
        %4183 = vmatpush1.msra.mxu0 %v2635
        %4184 = vmatprep.subr.mxu0 %v2638
        %4185 = vmatpush1.msra.mxu0 %v2637
        %4186 = vmatprep.subr.mxu0 %v2640
        %4187 = vmatpush1.msra.mxu0 %v2639
        %4188 = vmatprep.subr.mxu0 %v2642
        %4189 = vmatpush1.msra.mxu0 %v2641
        %4190 = vmatprep.subr.mxu0 %v2644
        %4191 = vmatpush1.msra.mxu0 %v2643
        %4192 = vmatprep.subr.mxu0 %v2646
        %4193 = vmatpush1.msra.mxu0 %v2645
        %4194 = vmatprep.subr.mxu0 %v2648
        %4195 = vmatpush1.msra.mxu0 %v2647
        %4196 = vmatprep.subr.mxu0 %v2650
        %4197 = vmatpush1.msra.mxu0 %v2649
        %4198 = vmatprep.subr.mxu0 %v2652
        %4199 = vmatpush1.msra.mxu0 %v2651
        %4200 = vmatprep.mubr.f32.mxu0 %v1910
        %4201 = vmatmul.mubr.f32.gmra.mrb[0].mxu0 %v1909
        %v4202 = vpop.f32.mrb[0].mxu0
        %v4203 = vadd.f32 %v4132, %v4202
        %v4204 = vpop.f32.mrb[0].mxu0
        %v4205 = vadd.f32 %v4134, %v4204
        %4206 = vdwg.mxu0
        %4207 = vmatprep.subr.mxu0 %v2654
        %4208 = vmatpush1.msra.mxu0 %v2653
        %4209 = vmatprep.subr.mxu0 %v2656
        %4210 = vmatpush1.msra.mxu0 %v2655
        %4211 = vmatprep.subr.mxu0 %v2658
        %4212 = vmatpush1.msra.mxu0 %v2657
        %4213 = vmatprep.subr.mxu0 %v2660
        %4214 = vmatpush1.msra.mxu0 %v2659
        %4215 = vmatprep.subr.mxu0 %v2662
        %4216 = vmatpush1.msra.mxu0 %v2661
        %4217 = vmatprep.subr.mxu0 %v2664
        %4218 = vmatpush1.msra.mxu0 %v2663
        %4219 = vmatprep.subr.mxu0 %v2666
        %4220 = vmatpush1.msra.mxu0 %v2665
        %4221 = vmatprep.subr.mxu0 %v2668
        %4222 = vmatpush1.msra.mxu0 %v2667
        %4223 = vmatprep.subr.mxu0 %v2670
        %4224 = vmatpush1.msra.mxu0 %v2669
        %4225 = vmatprep.subr.mxu0 %v2672
        %4226 = vmatpush1.msra.mxu0 %v2671
        %4227 = vmatprep.subr.mxu0 %v2674
        %4228 = vmatpush1.msra.mxu0 %v2673
        %4229 = vmatprep.subr.mxu0 %v2676
        %4230 = vmatpush1.msra.mxu0 %v2675
        %4231 = vmatprep.subr.mxu0 %v2678
        %4232 = vmatpush1.msra.mxu0 %v2677
        %4233 = vmatprep.subr.mxu0 %v2680
        %4234 = vmatpush1.msra.mxu0 %v2679
        %4235 = vmatprep.subr.mxu0 %v2682
        %4236 = vmatpush1.msra.mxu0 %v2681
        %4237 = vmatprep.subr.mxu0 %v2684
        %4238 = vmatpush1.msra.mxu0 %v2683
        %4239 = vmatprep.subr.mxu0 %v2686
        %4240 = vmatpush1.msra.mxu0 %v2685
        %4241 = vmatprep.subr.mxu0 %v2688
        %4242 = vmatpush1.msra.mxu0 %v2687
        %4243 = vmatprep.subr.mxu0 %v2690
        %4244 = vmatpush1.msra.mxu0 %v2689
        %4245 = vmatprep.subr.mxu0 %v2692
        %4246 = vmatpush1.msra.mxu0 %v2691
        %4247 = vmatprep.subr.mxu0 %v2694
        %4248 = vmatpush1.msra.mxu0 %v2693
        %4249 = vmatprep.subr.mxu0 %v2696
        %4250 = vmatpush1.msra.mxu0 %v2695
        %4251 = vmatprep.subr.mxu0 %v2698
        %4252 = vmatpush1.msra.mxu0 %v2697
        %4253 = vmatprep.subr.mxu0 %v2700
        %4254 = vmatpush1.msra.mxu0 %v2699
        %4255 = vmatprep.subr.mxu0 %v2702
        %4256 = vmatpush1.msra.mxu0 %v2701
        %4257 = vmatprep.subr.mxu0 %v2704
        %4258 = vmatpush1.msra.mxu0 %v2703
        %4259 = vmatprep.subr.mxu0 %v2706
        %4260 = vmatpush1.msra.mxu0 %v2705
        %4261 = vmatprep.subr.mxu0 %v2708
        %4262 = vmatpush1.msra.mxu0 %v2707
        %4263 = vmatprep.subr.mxu0 %v2710
        %4264 = vmatpush1.msra.mxu0 %v2709
        %4265 = vmatprep.subr.mxu0 %v2712
        %4266 = vmatpush1.msra.mxu0 %v2711
        %4267 = vmatprep.subr.mxu0 %v2714
        %4268 = vmatpush1.msra.mxu0 %v2713
        %4269 = vmatprep.subr.mxu0 %v2716
        %4270 = vmatpush1.msra.mxu0 %v2715
        %4271 = vmatprep.mubr.f32.mxu0 %v1914
        %4272 = vmatmul.mubr.f32.gmra.mrb[0].mxu0 %v1913
        %v4273 = vpop.f32.mrb[0].mxu0
        %v4274 = vadd.f32 %v4203, %v4273
        %v4275 = vpop.f32.mrb[0].mxu0
        %v4276 = vadd.f32 %v4205, %v4275
        %4277 = vdwg.mxu0
        %4278 = vmatprep.subr.mxu0 %v2718
        %4279 = vmatpush1.msra.mxu0 %v2717
        %4280 = vmatprep.subr.mxu0 %v2720
        %4281 = vmatpush1.msra.mxu0 %v2719
        %4282 = vmatprep.subr.mxu0 %v2722
        %4283 = vmatpush1.msra.mxu0 %v2721
        %4284 = vmatprep.subr.mxu0 %v2724
        %4285 = vmatpush1.msra.mxu0 %v2723
        %4286 = vmatprep.subr.mxu0 %v2726
        %4287 = vmatpush1.msra.mxu0 %v2725
        %4288 = vmatprep.subr.mxu0 %v2728
        %4289 = vmatpush1.msra.mxu0 %v2727
        %4290 = vmatprep.subr.mxu0 %v2730
        %4291 = vmatpush1.msra.mxu0 %v2729
        %4292 = vmatprep.subr.mxu0 %v2732
        %4293 = vmatpush1.msra.mxu0 %v2731
        %4294 = vmatprep.subr.mxu0 %v2734
        %4295 = vmatpush1.msra.mxu0 %v2733
        %4296 = vmatprep.subr.mxu0 %v2736
        %4297 = vmatpush1.msra.mxu0 %v2735
        %4298 = vmatprep.subr.mxu0 %v2738
        %4299 = vmatpush1.msra.mxu0 %v2737
        %4300 = vmatprep.subr.mxu0 %v2740
        %4301 = vmatpush1.msra.mxu0 %v2739
        %4302 = vmatprep.subr.mxu0 %v2742
        %4303 = vmatpush1.msra.mxu0 %v2741
        %4304 = vmatprep.subr.mxu0 %v2744
        %4305 = vmatpush1.msra.mxu0 %v2743
        %4306 = vmatprep.subr.mxu0 %v2746
        %4307 = vmatpush1.msra.mxu0 %v2745
        %4308 = vmatprep.subr.mxu0 %v2748
        %4309 = vmatpush1.msra.mxu0 %v2747
        %4310 = vmatprep.subr.mxu0 %v2750
        %4311 = vmatpush1.msra.mxu0 %v2749
        %4312 = vmatprep.subr.mxu0 %v2752
        %4313 = vmatpush1.msra.mxu0 %v2751
        %4314 = vmatprep.subr.mxu0 %v2754
        %4315 = vmatpush1.msra.mxu0 %v2753
        %4316 = vmatprep.subr.mxu0 %v2756
        %4317 = vmatpush1.msra.mxu0 %v2755
        %4318 = vmatprep.subr.mxu0 %v2758
        %4319 = vmatpush1.msra.mxu0 %v2757
        %4320 = vmatprep.subr.mxu0 %v2760
        %4321 = vmatpush1.msra.mxu0 %v2759
        %4322 = vmatprep.subr.mxu0 %v2762
        %4323 = vmatpush1.msra.mxu0 %v2761
        %4324 = vmatprep.subr.mxu0 %v2764
        %4325 = vmatpush1.msra.mxu0 %v2763
        %4326 = vmatprep.subr.mxu0 %v2766
        %4327 = vmatpush1.msra.mxu0 %v2765
        %4328 = vmatprep.subr.mxu0 %v2768
        %4329 = vmatpush1.msra.mxu0 %v2767
        %4330 = vmatprep.subr.mxu0 %v2770
        %4331 = vmatpush1.msra.mxu0 %v2769
        %4332 = vmatprep.subr.mxu0 %v2772
        %4333 = vmatpush1.msra.mxu0 %v2771
        %4334 = vmatprep.subr.mxu0 %v2774
        %4335 = vmatpush1.msra.mxu0 %v2773
        %4336 = vmatprep.subr.mxu0 %v2776
        %4337 = vmatpush1.msra.mxu0 %v2775
        %4338 = vmatprep.subr.mxu0 %v2778
        %4339 = vmatpush1.msra.mxu0 %v2777
        %4340 = vmatprep.subr.mxu0 %v2780
        %4341 = vmatpush1.msra.mxu0 %v2779
        %4342 = vmatprep.mubr.f32.mxu0 %v1918
        %4343 = vmatmul.mubr.f32.gmra.mrb[0].mxu0 %v1917
        %v4344 = vpop.f32.mrb[0].mxu0
        %v4345 = vadd.f32 %v4274, %v4344
        %v4346 = vpop.f32.mrb[0].mxu0
        %v4347 = vadd.f32 %v4276, %v4346
        %4348 = vdwg.mxu0
        %4349 = vmatprep.subr.mxu0 %v2782
        %4350 = vmatpush1.msra.mxu0 %v2781
        %4351 = vmatprep.subr.mxu0 %v2784
        %4352 = vmatpush1.msra.mxu0 %v2783
        %4353 = vmatprep.subr.mxu0 %v2786
        %4354 = vmatpush1.msra.mxu0 %v2785
        %4355 = vmatprep.subr.mxu0 %v2788
        %4356 = vmatpush1.msra.mxu0 %v2787
        %4357 = vmatprep.subr.mxu0 %v2790
        %4358 = vmatpush1.msra.mxu0 %v2789
        %4359 = vmatprep.subr.mxu0 %v2792
        %4360 = vmatpush1.msra.mxu0 %v2791
        %4361 = vmatprep.subr.mxu0 %v2794
        %4362 = vmatpush1.msra.mxu0 %v2793
        %4363 = vmatprep.subr.mxu0 %v2796
        %4364 = vmatpush1.msra.mxu0 %v2795
        %4365 = vmatprep.subr.mxu0 %v2798
        %4366 = vmatpush1.msra.mxu0 %v2797
        %4367 = vmatprep.subr.mxu0 %v2800
        %4368 = vmatpush1.msra.mxu0 %v2799
        %4369 = vmatprep.subr.mxu0 %v2802
        %4370 = vmatpush1.msra.mxu0 %v2801
        %4371 = vmatprep.subr.mxu0 %v2804
        %4372 = vmatpush1.msra.mxu0 %v2803
        %4373 = vmatprep.subr.mxu0 %v2806
        %4374 = vmatpush1.msra.mxu0 %v2805
        %4375 = vmatprep.subr.mxu0 %v2808
        %4376 = vmatpush1.msra.mxu0 %v2807
        %4377 = vmatprep.subr.mxu0 %v2810
        %4378 = vmatpush1.msra.mxu0 %v2809
        %4379 = vmatprep.subr.mxu0 %v2812
        %4380 = vmatpush1.msra.mxu0 %v2811
        %4381 = vmatprep.subr.mxu0 %v2814
        %4382 = vmatpush1.msra.mxu0 %v2813
        %4383 = vmatprep.subr.mxu0 %v2816
        %4384 = vmatpush1.msra.mxu0 %v2815
        %4385 = vmatprep.subr.mxu0 %v2818
        %4386 = vmatpush1.msra.mxu0 %v2817
        %4387 = vmatprep.subr.mxu0 %v2820
        %4388 = vmatpush1.msra.mxu0 %v2819
        %4389 = vmatprep.subr.mxu0 %v2822
        %4390 = vmatpush1.msra.mxu0 %v2821
        %4391 = vmatprep.subr.mxu0 %v2824
        %4392 = vmatpush1.msra.mxu0 %v2823
        %4393 = vmatprep.subr.mxu0 %v2826
        %4394 = vmatpush1.msra.mxu0 %v2825
        %4395 = vmatprep.subr.mxu0 %v2828
        %4396 = vmatpush1.msra.mxu0 %v2827
        %4397 = vmatprep.subr.mxu0 %v2830
        %4398 = vmatpush1.msra.mxu0 %v2829
        %4399 = vmatprep.subr.mxu0 %v2832
        %4400 = vmatpush1.msra.mxu0 %v2831
        %4401 = vmatprep.subr.mxu0 %v2834
        %4402 = vmatpush1.msra.mxu0 %v2833
        %4403 = vmatprep.subr.mxu0 %v2836
        %4404 = vmatpush1.msra.mxu0 %v2835
        %4405 = vmatprep.subr.mxu0 %v2838
        %4406 = vmatpush1.msra.mxu0 %v2837
        %4407 = vmatprep.subr.mxu0 %v2840
        %4408 = vmatpush1.msra.mxu0 %v2839
        %4409 = vmatprep.subr.mxu0 %v2842
        %4410 = vmatpush1.msra.mxu0 %v2841
        %4411 = vmatprep.subr.mxu0 %v2844
        %4412 = vmatpush1.msra.mxu0 %v2843
        %4413 = vmatprep.mubr.f32.mxu0 %v1922
        %4414 = vmatmul.mubr.f32.gmra.mrb[0].mxu0 %v1921
        %v4415 = vpop.f32.mrb[0].mxu0
        %v4416 = vadd.f32 %v4345, %v4415
        %v4417 = vpop.f32.mrb[0].mxu0
        %v4418 = vadd.f32 %v4347, %v4417
        %4419 = vdwg.mxu0
        %4420 = vmatprep.subr.mxu0 %v2846
        %4421 = vmatpush1.msra.mxu0 %v2845
        %4422 = vmatprep.subr.mxu0 %v2848
        %4423 = vmatpush1.msra.mxu0 %v2847
        %4424 = vmatprep.subr.mxu0 %v2850
        %4425 = vmatpush1.msra.mxu0 %v2849
        %4426 = vmatprep.subr.mxu0 %v2852
        %4427 = vmatpush1.msra.mxu0 %v2851
        %4428 = vmatprep.subr.mxu0 %v2854
        %4429 = vmatpush1.msra.mxu0 %v2853
        %4430 = vmatprep.subr.mxu0 %v2856
        %4431 = vmatpush1.msra.mxu0 %v2855
        %4432 = vmatprep.subr.mxu0 %v2858
        %4433 = vmatpush1.msra.mxu0 %v2857
        %4434 = vmatprep.subr.mxu0 %v2860
        %4435 = vmatpush1.msra.mxu0 %v2859
        %4436 = vmatprep.subr.mxu0 %v2862
        %4437 = vmatpush1.msra.mxu0 %v2861
        %4438 = vmatprep.subr.mxu0 %v2864
        %4439 = vmatpush1.msra.mxu0 %v2863
        %4440 = vmatprep.subr.mxu0 %v2866
        %4441 = vmatpush1.msra.mxu0 %v2865
        %4442 = vmatprep.subr.mxu0 %v2868
        %4443 = vmatpush1.msra.mxu0 %v2867
        %4444 = vmatprep.subr.mxu0 %v2870
        %4445 = vmatpush1.msra.mxu0 %v2869
        %4446 = vmatprep.subr.mxu0 %v2872
        %4447 = vmatpush1.msra.mxu0 %v2871
        %4448 = vmatprep.subr.mxu0 %v2874
        %4449 = vmatpush1.msra.mxu0 %v2873
        %4450 = vmatprep.subr.mxu0 %v2876
        %4451 = vmatpush1.msra.mxu0 %v2875
        %4452 = vmatprep.subr.mxu0 %v2878
        %4453 = vmatpush1.msra.mxu0 %v2877
        %4454 = vmatprep.subr.mxu0 %v2880
        %4455 = vmatpush1.msra.mxu0 %v2879
        %4456 = vmatprep.subr.mxu0 %v2882
        %4457 = vmatpush1.msra.mxu0 %v2881
        %4458 = vmatprep.subr.mxu0 %v2884
        %4459 = vmatpush1.msra.mxu0 %v2883
        %4460 = vmatprep.subr.mxu0 %v2886
        %4461 = vmatpush1.msra.mxu0 %v2885
        %4462 = vmatprep.subr.mxu0 %v2888
        %4463 = vmatpush1.msra.mxu0 %v2887
        %4464 = vmatprep.subr.mxu0 %v2890
        %4465 = vmatpush1.msra.mxu0 %v2889
        %4466 = vmatprep.subr.mxu0 %v2892
        %4467 = vmatpush1.msra.mxu0 %v2891
        %4468 = vmatprep.subr.mxu0 %v2894
        %4469 = vmatpush1.msra.mxu0 %v2893
        %4470 = vmatprep.subr.mxu0 %v2896
        %4471 = vmatpush1.msra.mxu0 %v2895
        %4472 = vmatprep.subr.mxu0 %v2898
        %4473 = vmatpush1.msra.mxu0 %v2897
        %4474 = vmatprep.subr.mxu0 %v2900
        %4475 = vmatpush1.msra.mxu0 %v2899
        %4476 = vmatprep.subr.mxu0 %v2902
        %4477 = vmatpush1.msra.mxu0 %v2901
        %4478 = vmatprep.subr.mxu0 %v2904
        %4479 = vmatpush1.msra.mxu0 %v2903
        %4480 = vmatprep.subr.mxu0 %v2906
        %4481 = vmatpush1.msra.mxu0 %v2905
        %4482 = vmatprep.subr.mxu0 %v2908
        %4483 = vmatpush1.msra.mxu0 %v2907
        %4484 = vmatprep.mubr.f32.mxu0 %v1926
        %4485 = vmatmul.mubr.f32.gmra.mrb[0].mxu0 %v1925
        %v4486 = vpop.f32.mrb[0].mxu0
        %v4487 = vadd.f32 %v4416, %v4486
        %v4488 = vpop.f32.mrb[0].mxu0
        %v4489 = vadd.f32 %v4418, %v4488
        %4490 = vdwg.mxu0
        %4491 = vmatprep.subr.mxu0 %v2910
        %4492 = vmatpush1.msra.mxu0 %v2909
        %4493 = vmatprep.subr.mxu0 %v2912
        %4494 = vmatpush1.msra.mxu0 %v2911
        %4495 = vmatprep.subr.mxu0 %v2914
        %4496 = vmatpush1.msra.mxu0 %v2913
        %4497 = vmatprep.subr.mxu0 %v2916
        %4498 = vmatpush1.msra.mxu0 %v2915
        %4499 = vmatprep.subr.mxu0 %v2918
        %4500 = vmatpush1.msra.mxu0 %v2917
        %4501 = vmatprep.subr.mxu0 %v2920
        %4502 = vmatpush1.msra.mxu0 %v2919
        %4503 = vmatprep.subr.mxu0 %v2922
        %4504 = vmatpush1.msra.mxu0 %v2921
        %4505 = vmatprep.subr.mxu0 %v2924
        %4506 = vmatpush1.msra.mxu0 %v2923
        %4507 = vmatprep.subr.mxu0 %v2926
        %4508 = vmatpush1.msra.mxu0 %v2925
        %4509 = vmatprep.subr.mxu0 %v2928
        %4510 = vmatpush1.msra.mxu0 %v2927
        %4511 = vmatprep.subr.mxu0 %v2930
        %4512 = vmatpush1.msra.mxu0 %v2929
        %4513 = vmatprep.subr.mxu0 %v2932
        %4514 = vmatpush1.msra.mxu0 %v2931
        %4515 = vmatprep.subr.mxu0 %v2934
        %4516 = vmatpush1.msra.mxu0 %v2933
        %4517 = vmatprep.subr.mxu0 %v2936
        %4518 = vmatpush1.msra.mxu0 %v2935
        %4519 = vmatprep.subr.mxu0 %v2938
        %4520 = vmatpush1.msra.mxu0 %v2937
        %4521 = vmatprep.subr.mxu0 %v2940
        %4522 = vmatpush1.msra.mxu0 %v2939
        %4523 = vmatprep.subr.mxu0 %v2942
        %4524 = vmatpush1.msra.mxu0 %v2941
        %4525 = vmatprep.subr.mxu0 %v2944
        %4526 = vmatpush1.msra.mxu0 %v2943
        %4527 = vmatprep.subr.mxu0 %v2946
        %4528 = vmatpush1.msra.mxu0 %v2945
        %4529 = vmatprep.subr.mxu0 %v2948
        %4530 = vmatpush1.msra.mxu0 %v2947
        %4531 = vmatprep.subr.mxu0 %v2950
        %4532 = vmatpush1.msra.mxu0 %v2949
        %4533 = vmatprep.subr.mxu0 %v2952
        %4534 = vmatpush1.msra.mxu0 %v2951
        %4535 = vmatprep.subr.mxu0 %v2954
        %4536 = vmatpush1.msra.mxu0 %v2953
        %4537 = vmatprep.subr.mxu0 %v2956
        %4538 = vmatpush1.msra.mxu0 %v2955
        %4539 = vmatprep.subr.mxu0 %v2958
        %4540 = vmatpush1.msra.mxu0 %v2957
        %4541 = vmatprep.subr.mxu0 %v2960
        %4542 = vmatpush1.msra.mxu0 %v2959
        %4543 = vmatprep.subr.mxu0 %v2962
        %4544 = vmatpush1.msra.mxu0 %v2961
        %4545 = vmatprep.subr.mxu0 %v2964
        %4546 = vmatpush1.msra.mxu0 %v2963
        %4547 = vmatprep.subr.mxu0 %v2966
        %4548 = vmatpush1.msra.mxu0 %v2965
        %4549 = vmatprep.subr.mxu0 %v2968
        %4550 = vmatpush1.msra.mxu0 %v2967
        %4551 = vmatprep.subr.mxu0 %v2970
        %4552 = vmatpush1.msra.mxu0 %v2969
        %4553 = vmatprep.subr.mxu0 %v2972
        %4554 = vmatpush1.msra.mxu0 %v2971
        %4555 = vmatprep.mubr.f32.mxu0 %v1930
        %4556 = vmatmul.mubr.f32.gmra.mrb[0].mxu0 %v1929
        %v4557 = vpop.f32.mrb[0].mxu0
        %v4558 = vadd.f32 %v4487, %v4557
        %v4559 = vpop.f32.mrb[0].mxu0
        %v4560 = vadd.f32 %v4489, %v4559
        %4561 = vdwg.mxu0
        %4562 = vmatprep.subr.mxu0 %v2974
        %4563 = vmatpush1.msra.mxu0 %v2973
        %4564 = vmatprep.subr.mxu0 %v2976
        %4565 = vmatpush1.msra.mxu0 %v2975
        %4566 = vmatprep.subr.mxu0 %v2978
        %4567 = vmatpush1.msra.mxu0 %v2977
        %4568 = vmatprep.subr.mxu0 %v2980
        %4569 = vmatpush1.msra.mxu0 %v2979
        %4570 = vmatprep.subr.mxu0 %v2982
        %4571 = vmatpush1.msra.mxu0 %v2981
        %4572 = vmatprep.subr.mxu0 %v2984
        %4573 = vmatpush1.msra.mxu0 %v2983
        %4574 = vmatprep.subr.mxu0 %v2986
        %4575 = vmatpush1.msra.mxu0 %v2985
        %4576 = vmatprep.subr.mxu0 %v2988
        %4577 = vmatpush1.msra.mxu0 %v2987
        %4578 = vmatprep.subr.mxu0 %v2990
        %4579 = vmatpush1.msra.mxu0 %v2989
        %4580 = vmatprep.subr.mxu0 %v2992
        %4581 = vmatpush1.msra.mxu0 %v2991
        %4582 = vmatprep.subr.mxu0 %v2994
        %4583 = vmatpush1.msra.mxu0 %v2993
        %4584 = vmatprep.subr.mxu0 %v2996
        %4585 = vmatpush1.msra.mxu0 %v2995
        %4586 = vmatprep.subr.mxu0 %v2998
        %4587 = vmatpush1.msra.mxu0 %v2997
        %4588 = vmatprep.subr.mxu0 %v3000
        %4589 = vmatpush1.msra.mxu0 %v2999
        %4590 = vmatprep.subr.mxu0 %v3002
        %4591 = vmatpush1.msra.mxu0 %v3001
        %4592 = vmatprep.subr.mxu0 %v3004
        %4593 = vmatpush1.msra.mxu0 %v3003
        %4594 = vmatprep.subr.mxu0 %v3006
        %4595 = vmatpush1.msra.mxu0 %v3005
        %4596 = vmatprep.subr.mxu0 %v3008
        %4597 = vmatpush1.msra.mxu0 %v3007
        %4598 = vmatprep.subr.mxu0 %v3010
        %4599 = vmatpush1.msra.mxu0 %v3009
        %4600 = vmatprep.subr.mxu0 %v3012
        %4601 = vmatpush1.msra.mxu0 %v3011
        %4602 = vmatprep.subr.mxu0 %v3014
        %4603 = vmatpush1.msra.mxu0 %v3013
        %4604 = vmatprep.subr.mxu0 %v3016
        %4605 = vmatpush1.msra.mxu0 %v3015
        %4606 = vmatprep.subr.mxu0 %v3018
        %4607 = vmatpush1.msra.mxu0 %v3017
        %4608 = vmatprep.subr.mxu0 %v3020
        %4609 = vmatpush1.msra.mxu0 %v3019
        %4610 = vmatprep.subr.mxu0 %v3022
        %4611 = vmatpush1.msra.mxu0 %v3021
        %4612 = vmatprep.subr.mxu0 %v3024
        %4613 = vmatpush1.msra.mxu0 %v3023
        %4614 = vmatprep.subr.mxu0 %v3026
        %4615 = vmatpush1.msra.mxu0 %v3025
        %4616 = vmatprep.subr.mxu0 %v3028
        %4617 = vmatpush1.msra.mxu0 %v3027
        %4618 = vmatprep.subr.mxu0 %v3030
        %4619 = vmatpush1.msra.mxu0 %v3029
        %4620 = vmatprep.subr.mxu0 %v3032
        %4621 = vmatpush1.msra.mxu0 %v3031
        %4622 = vmatprep.subr.mxu0 %v3034
        %4623 = vmatpush1.msra.mxu0 %v3033
        %4624 = vmatprep.subr.mxu0 %v3036
        %4625 = vmatpush1.msra.mxu0 %v3035
        %4626 = vmatprep.mubr.f32.mxu0 %v1934
        %4627 = vmatmul.mubr.f32.gmra.mrb[0].mxu0 %v1933
        %v4628 = vpop.f32.mrb[0].mxu0
        %v4629 = vadd.f32 %v4558, %v4628
        %v4630 = vpop.f32.mrb[0].mxu0
        %v4631 = vadd.f32 %v4560, %v4630
        %4632 = vdwg.mxu0
        %4633 = vmatprep.subr.mxu0 %v3038
        %4634 = vmatpush1.msra.mxu0 %v3037
        %4635 = vmatprep.subr.mxu0 %v3040
        %4636 = vmatpush1.msra.mxu0 %v3039
        %4637 = vmatprep.subr.mxu0 %v3042
        %4638 = vmatpush1.msra.mxu0 %v3041
        %4639 = vmatprep.subr.mxu0 %v3044
        %4640 = vmatpush1.msra.mxu0 %v3043
        %4641 = vmatprep.subr.mxu0 %v3046
        %4642 = vmatpush1.msra.mxu0 %v3045
        %4643 = vmatprep.subr.mxu0 %v3048
        %4644 = vmatpush1.msra.mxu0 %v3047
        %4645 = vmatprep.subr.mxu0 %v3050
        %4646 = vmatpush1.msra.mxu0 %v3049
        %4647 = vmatprep.subr.mxu0 %v3052
        %4648 = vmatpush1.msra.mxu0 %v3051
        %4649 = vmatprep.subr.mxu0 %v3054
        %4650 = vmatpush1.msra.mxu0 %v3053
        %4651 = vmatprep.subr.mxu0 %v3056
        %4652 = vmatpush1.msra.mxu0 %v3055
        %4653 = vmatprep.subr.mxu0 %v3058
        %4654 = vmatpush1.msra.mxu0 %v3057
        %4655 = vmatprep.subr.mxu0 %v3060
        %4656 = vmatpush1.msra.mxu0 %v3059
        %4657 = vmatprep.subr.mxu0 %v3062
        %4658 = vmatpush1.msra.mxu0 %v3061
        %4659 = vmatprep.subr.mxu0 %v3064
        %4660 = vmatpush1.msra.mxu0 %v3063
        %4661 = vmatprep.subr.mxu0 %v3066
        %4662 = vmatpush1.msra.mxu0 %v3065
        %4663 = vmatprep.subr.mxu0 %v3068
        %4664 = vmatpush1.msra.mxu0 %v3067
        %4665 = vmatprep.subr.mxu0 %v3070
        %4666 = vmatpush1.msra.mxu0 %v3069
        %4667 = vmatprep.subr.mxu0 %v3072
        %4668 = vmatpush1.msra.mxu0 %v3071
        %4669 = vmatprep.subr.mxu0 %v3074
        %4670 = vmatpush1.msra.mxu0 %v3073
        %4671 = vmatprep.subr.mxu0 %v3076
        %4672 = vmatpush1.msra.mxu0 %v3075
        %4673 = vmatprep.subr.mxu0 %v3078
        %4674 = vmatpush1.msra.mxu0 %v3077
        %4675 = vmatprep.subr.mxu0 %v3080
        %4676 = vmatpush1.msra.mxu0 %v3079
        %4677 = vmatprep.subr.mxu0 %v3082
        %4678 = vmatpush1.msra.mxu0 %v3081
        %4679 = vmatprep.subr.mxu0 %v3084
        %4680 = vmatpush1.msra.mxu0 %v3083
        %4681 = vmatprep.subr.mxu0 %v3086
        %4682 = vmatpush1.msra.mxu0 %v3085
        %4683 = vmatprep.subr.mxu0 %v3088
        %4684 = vmatpush1.msra.mxu0 %v3087
        %4685 = vmatprep.subr.mxu0 %v3090
        %4686 = vmatpush1.msra.mxu0 %v3089
        %4687 = vmatprep.subr.mxu0 %v3092
        %4688 = vmatpush1.msra.mxu0 %v3091
        %4689 = vmatprep.subr.mxu0 %v3094
        %4690 = vmatpush1.msra.mxu0 %v3093
        %4691 = vmatprep.subr.mxu0 %v3096
        %4692 = vmatpush1.msra.mxu0 %v3095
        %4693 = vmatprep.subr.mxu0 %v3098
        %4694 = vmatpush1.msra.mxu0 %v3097
        %4695 = vmatprep.subr.mxu0 %v3100
        %4696 = vmatpush1.msra.mxu0 %v3099
        %4697 = vmatprep.mubr.f32.mxu0 %v1936
        %4698 = vmatmul.mubr.f32.gmra.mrb[0].mxu0 %v1935
        %v4699 = vpop.f32.mrb[0].mxu0
        %v4700 = vadd.f32 %v4629, %v4699
        %v4701 = vpop.f32.mrb[0].mxu0
        %v4702 = vadd.f32 %v4631, %v4701
        %4703 = vdwg.mxu0
        %4704 = vmatprep.subr.mxu0 %v3102
        %4705 = vmatpush1.msra.mxu0 %v3101
        %4706 = vmatprep.subr.mxu0 %v3104
        %4707 = vmatpush1.msra.mxu0 %v3103
        %4708 = vmatprep.subr.mxu0 %v3106
        %4709 = vmatpush1.msra.mxu0 %v3105
        %4710 = vmatprep.subr.mxu0 %v3108
        %4711 = vmatpush1.msra.mxu0 %v3107
        %4712 = vmatprep.subr.mxu0 %v3110
        %4713 = vmatpush1.msra.mxu0 %v3109
        %4714 = vmatprep.subr.mxu0 %v3112
        %4715 = vmatpush1.msra.mxu0 %v3111
        %4716 = vmatprep.subr.mxu0 %v3114
        %4717 = vmatpush1.msra.mxu0 %v3113
        %4718 = vmatprep.subr.mxu0 %v3116
        %4719 = vmatpush1.msra.mxu0 %v3115
        %4720 = vmatprep.subr.mxu0 %v3118
        %4721 = vmatpush1.msra.mxu0 %v3117
        %4722 = vmatprep.subr.mxu0 %v3120
        %4723 = vmatpush1.msra.mxu0 %v3119
        %4724 = vmatprep.subr.mxu0 %v3122
        %4725 = vmatpush1.msra.mxu0 %v3121
        %4726 = vmatprep.subr.mxu0 %v3124
        %4727 = vmatpush1.msra.mxu0 %v3123
        %4728 = vmatprep.subr.mxu0 %v3126
        %4729 = vmatpush1.msra.mxu0 %v3125
        %4730 = vmatprep.subr.mxu0 %v3128
        %4731 = vmatpush1.msra.mxu0 %v3127
        %4732 = vmatprep.subr.mxu0 %v3130
        %4733 = vmatpush1.msra.mxu0 %v3129
        %4734 = vmatprep.subr.mxu0 %v3132
        %4735 = vmatpush1.msra.mxu0 %v3131
        %4736 = vmatprep.subr.mxu0 %v3134
        %4737 = vmatpush1.msra.mxu0 %v3133
        %4738 = vmatprep.subr.mxu0 %v3136
        %4739 = vmatpush1.msra.mxu0 %v3135
        %4740 = vmatprep.subr.mxu0 %v3138
        %4741 = vmatpush1.msra.mxu0 %v3137
        %4742 = vmatprep.subr.mxu0 %v3140
        %4743 = vmatpush1.msra.mxu0 %v3139
        %4744 = vmatprep.subr.mxu0 %v3142
        %4745 = vmatpush1.msra.mxu0 %v3141
        %4746 = vmatprep.subr.mxu0 %v3144
        %4747 = vmatpush1.msra.mxu0 %v3143
        %4748 = vmatprep.subr.mxu0 %v3146
        %4749 = vmatpush1.msra.mxu0 %v3145
        %4750 = vmatprep.subr.mxu0 %v3148
        %4751 = vmatpush1.msra.mxu0 %v3147
        %4752 = vmatprep.subr.mxu0 %v3150
        %4753 = vmatpush1.msra.mxu0 %v3149
        %4754 = vmatprep.subr.mxu0 %v3152
        %4755 = vmatpush1.msra.mxu0 %v3151
        %4756 = vmatprep.subr.mxu0 %v3154
        %4757 = vmatpush1.msra.mxu0 %v3153
        %4758 = vmatprep.subr.mxu0 %v3156
        %4759 = vmatpush1.msra.mxu0 %v3155
        %4760 = vmatprep.subr.mxu0 %v3158
        %4761 = vmatpush1.msra.mxu0 %v3157
        %4762 = vmatprep.subr.mxu0 %v3160
        %4763 = vmatpush1.msra.mxu0 %v3159
        %4764 = vmatprep.subr.mxu0 %v3162
        %4765 = vmatpush1.msra.mxu0 %v3161
        %4766 = vmatprep.subr.mxu0 %v3164
        %4767 = vmatpush1.msra.mxu0 %v3163
        %4768 = vmatprep.mubr.f32.mxu0 %v1938
        %4769 = vmatmul.mubr.f32.gmra.mrb[0].mxu0 %v1937
        %v4770 = vpop.f32.mrb[0].mxu0
        %v4771 = vadd.f32 %v4700, %v4770
        %v4772 = vpop.f32.mrb[0].mxu0
        %v4773 = vadd.f32 %v4702, %v4772
        %4774 = vdwg.mxu0
        %4775 = vmatprep.subr.mxu0 %v3166
        %4776 = vmatpush1.msra.mxu0 %v3165
        %4777 = vmatprep.subr.mxu0 %v3168
        %4778 = vmatpush1.msra.mxu0 %v3167
        %4779 = vmatprep.subr.mxu0 %v3170
        %4780 = vmatpush1.msra.mxu0 %v3169
        %4781 = vmatprep.subr.mxu0 %v3172
        %4782 = vmatpush1.msra.mxu0 %v3171
        %4783 = vmatprep.subr.mxu0 %v3174
        %4784 = vmatpush1.msra.mxu0 %v3173
        %4785 = vmatprep.subr.mxu0 %v3176
        %4786 = vmatpush1.msra.mxu0 %v3175
        %4787 = vmatprep.subr.mxu0 %v3178
        %4788 = vmatpush1.msra.mxu0 %v3177
        %4789 = vmatprep.subr.mxu0 %v3180
        %4790 = vmatpush1.msra.mxu0 %v3179
        %4791 = vmatprep.subr.mxu0 %v3182
        %4792 = vmatpush1.msra.mxu0 %v3181
        %4793 = vmatprep.subr.mxu0 %v3184
        %4794 = vmatpush1.msra.mxu0 %v3183
        %4795 = vmatprep.subr.mxu0 %v3186
        %4796 = vmatpush1.msra.mxu0 %v3185
        %4797 = vmatprep.subr.mxu0 %v3188
        %4798 = vmatpush1.msra.mxu0 %v3187
        %4799 = vmatprep.subr.mxu0 %v3190
        %4800 = vmatpush1.msra.mxu0 %v3189
        %4801 = vmatprep.subr.mxu0 %v3192
        %4802 = vmatpush1.msra.mxu0 %v3191
        %4803 = vmatprep.subr.mxu0 %v3194
        %4804 = vmatpush1.msra.mxu0 %v3193
        %4805 = vmatprep.subr.mxu0 %v3196
        %4806 = vmatpush1.msra.mxu0 %v3195
        %4807 = vmatprep.subr.mxu0 %v3198
        %4808 = vmatpush1.msra.mxu0 %v3197
        %4809 = vmatprep.subr.mxu0 %v3200
        %4810 = vmatpush1.msra.mxu0 %v3199
        %4811 = vmatprep.subr.mxu0 %v3202
        %4812 = vmatpush1.msra.mxu0 %v3201
        %4813 = vmatprep.subr.mxu0 %v3204
        %4814 = vmatpush1.msra.mxu0 %v3203
        %4815 = vmatprep.subr.mxu0 %v3206
        %4816 = vmatpush1.msra.mxu0 %v3205
        %4817 = vmatprep.subr.mxu0 %v3208
        %4818 = vmatpush1.msra.mxu0 %v3207
        %4819 = vmatprep.subr.mxu0 %v3210
        %4820 = vmatpush1.msra.mxu0 %v3209
        %4821 = vmatprep.subr.mxu0 %v3212
        %4822 = vmatpush1.msra.mxu0 %v3211
        %4823 = vmatprep.subr.mxu0 %v3214
        %4824 = vmatpush1.msra.mxu0 %v3213
        %4825 = vmatprep.subr.mxu0 %v3216
        %4826 = vmatpush1.msra.mxu0 %v3215
        %4827 = vmatprep.subr.mxu0 %v3218
        %4828 = vmatpush1.msra.mxu0 %v3217
        %4829 = vmatprep.subr.mxu0 %v3220
        %4830 = vmatpush1.msra.mxu0 %v3219
        %4831 = vmatprep.subr.mxu0 %v3222
        %4832 = vmatpush1.msra.mxu0 %v3221
        %4833 = vmatprep.subr.mxu0 %v3224
        %4834 = vmatpush1.msra.mxu0 %v3223
        %4835 = vmatprep.subr.mxu0 %v3226
        %4836 = vmatpush1.msra.mxu0 %v3225
        %4837 = vmatprep.subr.mxu0 %v3228
        %4838 = vmatpush1.msra.mxu0 %v3227
        %4839 = vmatprep.mubr.f32.mxu0 %v1940
        %4840 = vmatmul.mubr.f32.gmra.mrb[0].mxu0 %v1939
        %v4841 = vpop.f32.mrb[0].mxu0
        %v4842 = vadd.f32 %v4771, %v4841
        %v4843 = vpop.f32.mrb[0].mxu0
        %v4844 = vadd.f32 %v4773, %v4843
        %4845 = vdwg.mxu0
        %v4846 = vld [vmem:[%s9] sm:$0x3]
        %v4848 = vlaneseq
        %v4849 = vshrl.u32 %v4848, 7
        %v4850 = vsub.s32 0, %v4849
        %v4851 = vrot.slane %v4846, %v4850
        %v4852 = vlaneseq
        %v4853 = vshrl.u32 %v4852, 7
        %v4854 = vsub.s32 1, %v4853
        %v4855 = vrot.slane %v4846, %v4854
        %v4858 = vadd.f32 %v4842, %v4851
        %v4859 = vadd.f32 %v4844, %v4855
        %v4860 = vld [vmem:[%s10] sm:$0x3]
        %v4862 = vlaneseq
        %v4863 = vshrl.u32 %v4862, 7
        %v4864 = vsub.s32 0, %v4863
        %v4865 = vrot.slane %v4860, %v4864
        %v4866 = vlaneseq
        %v4867 = vshrl.u32 %v4866, 7
        %v4868 = vsub.s32 1, %v4867
        %v4869 = vrot.slane %v4860, %v4868
        %v4872 = vmul.f32 %v4858, %v4865
        %v4873 = vmul.f32 %v4859, %v4869
        %v4874 = vld [vmem:[%s11] sm:$0x3]
        %v4876 = vlaneseq
        %v4877 = vshrl.u32 %v4876, 7
        %v4878 = vsub.s32 0, %v4877
        %v4879 = vrot.slane %v4874, %v4878
        %v4880 = vlaneseq
        %v4881 = vshrl.u32 %v4880, 7
        %v4882 = vsub.s32 1, %v4881
        %v4883 = vrot.slane %v4874, %v4882
        %v4886 = vadd.f32 %v4872, %v4879
        %v4887 = vadd.f32 %v4873, %v4883
        %v4888 = vmax.f32 %v4886, 0.0
        %v4889 = vmax.f32 %v4887, 0.0
        %4890 = vst [vmem:[%s456] sm:$0xff] 0.0
        %4891 = vst [vmem:[%s456 + $0x8] sm:$0xff] 0.0
        %4892 = vst [vmem:[%s456 + $0x10] sm:$0xf] %v4858
        %4893 = vst [vmem:[%s456 + $0x18] sm:$0xf] %v4859
        %4894 = vst [vmem:[%s456 + $0x10] sm:$0xf0] 0.0
        %4895 = vst [vmem:[%s456 + $0x18] sm:$0xf0] 0.0
        %4896 = vst [vmem:[%s456 + $0x20] sm:$0xf] 0.0
        %4897 = vst [vmem:[%s456 + $0x28] sm:$0xf] 0.0
        %4898 = vst [vmem:[%s471] sm:$0xff] 0.0
        %4899 = vst [vmem:[%s471 + $0x8] sm:$0xff] 0.0
        %4900 = vst [vmem:[%s471 + $0x10] sm:$0xf] %v4888
        %4901 = vst [vmem:[%s471 + $0x18] sm:$0xf] %v4889
        %4902 = vst [vmem:[%s471 + $0x10] sm:$0xf0] 0.0
        %4903 = vst [vmem:[%s471 + $0x18] sm:$0xf0] 0.0
        %4904 = vst [vmem:[%s471 + $0x20] sm:$0xf] 0.0
        %4905 = vst [vmem:[%s471 + $0x28] sm:$0xf] 0.0
        %p4906 = scmp.lt.s32.totalorder %s28, 1
        %s4907 = scalar_select %p4906, %s28, 1
        %s4908 = smul.addr %s4907, 6
        %s4909 = smul.addr %s4908, 8
        %s4910 = scalar_lea.vmem %s12, %s4909
        %s4911 = sand.u32 %s324, 1
        %s4912 = scalar_lea.sflag [#allocation3], %s4911
        %s4913 = sand.u32 %s324, 1
        %s4914 = smul.addr %s4913, 48
        %s4915 = scalar_lea.vmem [#allocation2], %s4914
        // Predicated region
        $region69: #{stacked_residual_pallas.3} parent=67 // pred_check
          %p4916 = pneg %p308
        $region70: #{stacked_residual_pallas.3} parent=67 // pred_check_branch
          %4918 = sbr.rel (%p4916) target = $region72
        $region71: #{stacked_residual_pallas.3} parent=67 // pred_region
          _
        $region72: #{stacked_residual_pallas.3} parent=67 // pred_fallthru
          _
        // Predicated region
        $region73: #{stacked_residual_pallas.3} parent=67 // pred_check
          %p4919 = pneg %p334
        $region74: #{stacked_residual_pallas.3} parent=67 // pred_check_branch
          %4921 = sbr.rel (%p4919) target = $region76
        $region75: #{stacked_residual_pallas.3} parent=67 // pred_region
          %s4923 = ssub.s32 768, 768
          %4924 = vsyncadd %s4912, %s4923
          %s4925 = smul.addr %s28, 6
          %s4926 = smul.addr %s4925, 128
          %s4927 = scalar_lea.hbm %s13, %s4926
          %s4928 = sshll.u32 %s4915, 4
          %s4929 = int_to_ptr.vmem [resolvable:$true] %s4928
          %4934 = dma.vmem_to_hbm [thread:$0]  %s4929, 768, %s4927, %s4912, 256, 256, 16
        $region76: #{stacked_residual_pallas.3} parent=67 // pred_fallthru
          _
      $region68: #{stacked_residual_pallas.3} parent=5 // pred_fallthru
        _
      %p4935 = scmp.le.s32.totalorder 2, %s23
      // Predicated region
      $region77: #{stacked_residual_pallas.3} parent=5 // pred_check
        %p4936 = pneg %p4935
      $region78: #{stacked_residual_pallas.3} parent=5 // pred_check_branch
        %4938 = sbr.rel (%p4936) target = $region80
      $region79: #{stacked_residual_pallas.3} parent=5 // pred_region
        %s4939 = ssub.s32 %s23, 2
        // Predicated region
        $region81: #{stacked_residual_pallas.3} parent=79 // pred_check
          %p4940 = pneg %p314
        $region82: #{stacked_residual_pallas.3} parent=79 // pred_check_branch
          %4942 = sbr.rel (%p4940) target = $region84
        $region83: #{stacked_residual_pallas.3} parent=79 // pred_region
          %p4943 = scmp.lt.s32.totalorder %s29, 1
          %s4944 = scalar_select %p4943, %s29, 1
          %s4945 = smul.addr %s4944, 6
          %s4946 = smul.addr %s4945, 8
          %s4947 = scalar_lea.vmem %s12, %s4946
        $region84: #{stacked_residual_pallas.3} parent=79 // pred_fallthru
          _
        // Predicated region
        $region85: #{stacked_residual_pallas.3} parent=79 // pred_check
          %p4948 = pneg %p340
        $region86: #{stacked_residual_pallas.3} parent=79 // pred_check_branch
          %4950 = sbr.rel (%p4948) target = $region88
        $region87: #{stacked_residual_pallas.3} parent=79 // pred_region
          %s4951 = sand.u32 %s325, 1
          %s4952 = scalar_lea.sflag [#allocation3], %s4951
          %s4953 = sand.u32 %s325, 1
          %s4954 = smul.addr %s4953, 48
          %s4955 = scalar_lea.vmem [#allocation2], %s4954
          %4956 = dma.done %s4952, 768
        $region88: #{stacked_residual_pallas.3} parent=79 // pred_fallthru
          _
      $region80: #{stacked_residual_pallas.3} parent=5 // pred_fallthru
        _
    $region6: #{stacked_residual_pallas.3} parent=1 // loop_footer
      %s27 = sadd.s32 1, %s23
    $region7: #{stacked_residual_pallas.3} parent=1 // loop_footer_branch
      %22 = sbr.rel target = $region3
    $region8: #{stacked_residual_pallas.3} parent=1 // loop_exit
      _
    %4957 = vsyncpa [#allocation3], 1
    %s4958 = scalar_lea.sflag [#allocation3], 1
    %4959 = vsyncpa %s4958, 1

</llo_original>
